<compile_context>
chip_gen: v6e
topology: v6e:2x2x1
jax: 0.10.0
libtpu: 0.0.40
codegen_flags: <defaults>
</compile_context>

<pallas_src>
import functools

import numpy as np

import jax
import jax.numpy as jnp
from jax import lax
from jax.experimental import pallas as pl
from jax.experimental.pallas import tpu as pltpu

_HIGHEST = lax.Precision.HIGHEST


# --------------------- Pass 1: SIREN MLP + BN partial statistics ---------------------
def siren_mlp_stats_kernel(xT_ref, w0a_ref, wha_ref, wfa_ref,
                           h_ref, sum_ref, sq_ref,
                           *, n_in, n_hidden_layers, hidden, d_out,
                           tile_rows, n_rows):
    # xT_ref : (n_in, TB)            batch tile, feature-major (batch in lanes)
    # w0a_ref: (hidden, n_in+1)      [w0*W0 | w0*b0]            (PyTorch (out,in) layout)
    # wha_ref: (L, hidden, hidden+1) [w1*Wi | w1*bi]
    # wfa_ref: (d_out, hidden+1)     [w1*Wf | w1*bf]
    # h_ref  : (TB, d_out)           pre-BN activations, batch-major
    # sum_ref/sq_ref: (1, 1, d_out)  per-tile BN partial sums
    w0a = w0a_ref[...]
    xT = xT_ref[...]

    # First SineLayer: K = n_in (e.g. 3) -> rank-1 VPU accumulation, no MXU
    # round-trip and no dead-lane padding.  Bias column seeds the accumulator.
    z = w0a[:, n_in:n_in + 1]                            # (hidden, 1)
    for d in range(n_in):                                # static unroll (tiny)
        z = z + w0a[:, d:d + 1] * xT[d:d + 1, :]         # (hidden, TB)
    h = jnp.sin(z)                                       # lane-dense sin

    # Hidden SineLayers (frequencies already folded into the weights/biases).
    for i in range(n_hidden_layers):                     # small, fixed -> static unroll
        wa = wha_ref[i]                                  # (hidden, hidden+1)
        z = jnp.dot(wa[:, :hidden], h,
                    preferred_element_type=jnp.float32,
                    precision=_HIGHEST) + wa[:, hidden:hidden + 1]
        h = jnp.sin(z)

    # Final SineLayer -> (d_out, TB); the big sin stays lane-dense.
    wfa = wfa_ref[...]
    z = jnp.dot(wfa[:, :hidden], h,
                preferred_element_type=jnp.float32,
                precision=_HIGHEST) + wfa[:, hidden:hidden + 1]
    hf = jnp.sin(z)

    # Back to batch-major (XLU transpose; free slot) so the HBM intermediate,
    # the BN reduction and the final output all keep d_out=256 in the lanes.
    h_bt = hf.T                                          # (TB, d_out)
    h_ref[...] = h_bt

    # Per-tile BatchNorm partial statistics.  If the batch was padded up to a
    # whole number of tiles, mask the padded rows out so the (global) batch
    # statistics stay exact.
    if n_rows % tile_rows != 0:                          # static flag
        row = (pl.program_id(0) * tile_rows
               + lax.broadcasted_iota(jnp.int32, (tile_rows, 1), 0))
        h_stat = jnp.where(row < n_rows, h_bt, 0.0)
    else:
        h_stat = h_bt
    sum_ref[...] = jnp.sum(h_stat, axis=0, keepdims=True).reshape(1, 1, d_out)
    sq_ref[...] = jnp.sum(h_stat * h_stat, axis=0, keepdims=True).reshape(1, 1, d_out)


# ---------------------- Pass 2: normalize + final sin (mem-bound) --------------------
def bn_sin_kernel(bn_ref, h_ref, o_ref):
    # bn_ref: (3, d_out) rows = [mean, scale, shift]  (w0 & BN affine folded in)
    # h_ref/o_ref: (TB, d_out)
    mean = bn_ref[0:1, :]
    scale = bn_ref[1:2, :]
    shift = bn_ref[2:3, :]
    o_ref[...] = jnp.sin((h_ref[...] - mean) * scale + shift)


# ------------------------------------ Wrapper -----------------------------------------
def siren_forward(x, kp, *, w0, eps=1e-5, gamma=None, beta=None,
                  block_rows=256, return_pre_bn=False):
    """x: (B, Din) float32. kp: packed params from prepare_params() (w0/w1 folded)."""
    B, Din = x.shape
    W0a, Wha, Wfa = kp["W0a"], kp["Wha"], kp["Wfa"]
    H = W0a.shape[0]
    L = Wha.shape[0]
    Dout = Wfa.shape[0]
    assert L >= 1, "at least one hidden SineLayer expected"

    # Batch tile: multiple of 128 so the feature-major activations are
    # lane-dense.  Per-step VMEM working set is ~(2 * TB*Dout*4B + ~45KB
    # resident weights), so TB in the 128..4096 range stays well inside the
    # scoped-VMEM limit on every generation (v5e 16MiB default scoped, v6e
    # 32MiB, v7x 64MiB physical) while keeping pipeline efficiency high.
    TB = max(128, (block_rows // 128) * 128)
    n_tiles = pl.cdiv(B, TB)
    B_pad = n_tiles * TB

    xp = x if B_pad == B else jnp.pad(x, ((0, B_pad - B), (0, 0)))
    xT = xp.T  # (Din, B_pad): wrapper-side layout plumbing (batch into the lane axis)

    kernel1 = functools.partial(
        siren_mlp_stats_kernel, n_in=Din, n_hidden_layers=L, hidden=H,
        d_out=Dout, tile_rows=TB, n_rows=B)

    h_pre, psum, psq = pl.pallas_call(
        kernel1,
        out_shape=(
            jax.ShapeDtypeStruct((B_pad, Dout), jnp.float32),       # pre-BN h
            jax.ShapeDtypeStruct((n_tiles, 1, Dout), jnp.float32),  # per-tile sum
            jax.ShapeDtypeStruct((n_tiles, 1, Dout), jnp.float32),  # per-tile sum sq
        ),
        grid_spec=pltpu.PrefetchScalarGridSpec(
            num_scalar_prefetch=0,
            grid=(n_tiles,),
            in_specs=[
                pl.BlockSpec((Din, TB), lambda b: (0, b)),       # x tile, feature-major
                # Packed weight arrays: index_map constant in the batch index,
                # so they are DMA'd once and stay VMEM-resident across tiles.
                pl.BlockSpec((H, Din + 1), lambda b: (0, 0)),    # [W0|b0]  (scaled)
                pl.BlockSpec((L, H, H + 1), lambda b: (0, 0, 0)),  # [Wi|bi] (scaled)
                pl.BlockSpec((Dout, H + 1), lambda b: (0, 0)),   # [Wf|bf]  (scaled)
            ],
            out_specs=(
                pl.BlockSpec((TB, Dout), lambda b: (b, 0)),
                pl.BlockSpec((1, 1, Dout), lambda b: (b, 0, 0)),
                pl.BlockSpec((1, 1, Dout), lambda b: (b, 0, 0)),
            ),
        ),
        compiler_params=pltpu.CompilerParams(
            dimension_semantics=("parallel",)),  # tiles independent -> v7x 2-TC sharding
    )(xT, W0a, Wha, Wfa)

    # Tiny finalize in plain JAX: GLOBAL batch statistics (training mode, biased
    # variance via E[h^2] - mean^2), with the final sine frequency w0 and the BN
    # affine (default gamma=1, beta=0) folded into one scale/shift pair.
    mean = jnp.sum(psum, axis=0) / B                                   # (1, Dout)
    var = jnp.maximum(jnp.sum(psq, axis=0) / B - mean * mean, 0.0)     # (1, Dout)
    g = jnp.ones((1, Dout), jnp.float32) if gamma is None else gamma.reshape(1, Dout)
    bt = jnp.zeros((1, Dout), jnp.float32) if beta is None else beta.reshape(1, Dout)
    scale = w0 * g * lax.rsqrt(var + eps)
    shift = w0 * bt
    bn = jnp.concatenate([mean, scale, shift], axis=0)                 # (3, Dout)

    out = pl.pallas_call(
        bn_sin_kernel,
        out_shape=jax.ShapeDtypeStruct((B_pad, Dout), jnp.float32),
        grid_spec=pltpu.PrefetchScalarGridSpec(
            num_scalar_prefetch=0,
            grid=(n_tiles,),
            in_specs=[
                pl.BlockSpec((3, Dout), lambda b: (0, 0)),    # [mean,scale,shift], resident
                pl.BlockSpec((TB, Dout), lambda b: (b, 0)),   # pre-BN h tile
            ],
            out_specs=pl.BlockSpec((TB, Dout), lambda b: (b, 0)),
        ),
        compiler_params=pltpu.CompilerParams(
            dimension_semantics=("parallel",)),
    )(bn, h_pre)

    out = out[:B]
    if return_pre_bn:
        return out, h_pre[:B]
    return out


# ----------------------------- Parameter init / prep -----------------------------------
def init_params(key, in_features, hidden, layers, out_features, w0, w1):
    """Raw parameters in PyTorch layout (W: (out, in), b: (out,)), unscaled.

    Mirrors SineLayer.init_weights for use_pe=False, outermost_linear=False.
    """
    ks = jax.random.split(key, 6)

    def u(k, shape, lo, hi):
        return jax.random.uniform(k, shape, jnp.float32, lo, hi)

    # First SineLayer (is_first=True, use_pe=False): W ~ U(-1/in, 1/in)
    W0 = u(ks[0], (hidden, in_features), -1.0 / in_features, 1.0 / in_features)
    b0 = u(ks[1], (hidden,), -1.0 / np.sqrt(in_features), 1.0 / np.sqrt(in_features))

    # Hidden + final SineLayers: W ~ U(-sqrt(6/in)/w1, sqrt(6/in)/w1), in=hidden
    lim = np.sqrt(6.0 / hidden) / w1
    Wh = u(ks[2], (layers, hidden, hidden), -lim, lim)
    bh = u(ks[3], (layers, hidden), -1.0 / np.sqrt(hidden), 1.0 / np.sqrt(hidden))
    Wf = u(ks[4], (out_features, hidden), -lim, lim)
    bf = u(ks[5], (out_features,), -1.0 / np.sqrt(hidden), 1.0 / np.sqrt(hidden))

    return dict(W0=W0, b0=b0, Wh=Wh, bh=bh, Wf=Wf, bf=bf)


def prepare_params(p, *, w0, w1):
    """One-time transform for the kernel.

    Keeps PyTorch (out, in) layout (feature-major compute), folds the sine
    frequencies into weights/biases (sin(w*(xW+b)) == sin(x(wW)+wb)), and packs
    each layer's bias as a trailing column so the kernel takes 3 weight arrays
    instead of 6 separately double-buffered blocks.
    """
    W0a = jnp.concatenate([w0 * p["W0"], (w0 * p["b0"])[:, None]], axis=1)     # (H, Din+1)
    Wha = jnp.concatenate([w1 * p["Wh"], (w1 * p["bh"])[:, :, None]], axis=2)  # (L, H, H+1)
    Wfa = jnp.concatenate([w1 * p["Wf"], (w1 * p["bf"])[:, None]], axis=1)     # (Dout, H+1)
    return dict(W0a=W0a, Wha=Wha, Wfa=Wfa)


# ------------------------------ Pure-JAX reference -------------------------------------
def siren_reference(x, p, *, w0, w1, eps=1e-5):
    """Faithful re-statement of SirenNetwork.forward (PyTorch-layout params).

    Returns (output, pre-BatchNorm activations) so tests can check the MLP
    before the sin(w0 * BatchNorm(.)) error amplification.
    """
    h = jnp.sin(w0 * (jnp.dot(x, p["W0"].T, precision=_HIGHEST) + p["b0"]))
    for i in range(p["Wh"].shape[0]):
        h = jnp.sin(w1 * (jnp.dot(h, p["Wh"][i].T, precision=_HIGHEST) + p["bh"][i]))
    h_pre = jnp.sin(w1 * (jnp.dot(h, p["Wf"].T, precision=_HIGHEST) + p["bf"]))
    mean = jnp.mean(h_pre, axis=0, keepdims=True)
    var = jnp.mean((h_pre - mean) ** 2, axis=0, keepdims=True)   # biased (train mode)
    hn = (h_pre - mean) / jnp.sqrt(var + eps)
    return jnp.sin(w0 * hn), h_pre


if __name__ == "__main__":
    # Small shapes consistent with the module: Dout=256 is forced by the
    # hard-coded nn.BatchNorm1d(256).  The batch is deliberately NOT a multiple
    # of the 128-row batch tile so the masked/ragged statistics path runs.
    B, Din, H, L, Dout = 192, 3, 32, 2, 256
    w0 = w1 = 30.0

    key = jax.random.PRNGKey(0)
    kx, kp = jax.random.split(key)
    x = jax.random.uniform(kx, (B, Din), jnp.float32, -1.0, 1.0)  # coord-like input

    raw_params = init_params(kp, Din, H, L, Dout, w0, w1)
    kparams = prepare_params(raw_params, w0=w0, w1=w1)

    out, h_pre = siren_forward(x, kparams, w0=w0, block_rows=128,
                               return_pre_bn=True)
    out = jax.block_until_ready(out)

    ref_out, ref_h_pre = siren_reference(x, raw_params, w0=w0, w1=w1)

    assert out.shape == (B, Dout)
    assert bool(jnp.all(jnp.isfinite(out)))
    # Tight check on the pre-BN intermediate (catches MLP-layer bugs before the
    # ~40x error amplification of sin(30 * BatchNorm(.)) in the final output).
    assert jnp.allclose(h_pre, ref_h_pre, atol=1e-4, rtol=1e-4), "pre-BN mismatch"
    # Final output: sin(30*BN(.)) amplifies ulp-level accumulation-order and
    # sin-implementation differences; 1e-2 still catches any semantic error
    # (those would produce O(1) deviations).
    assert jnp.allclose(out, ref_out, atol=1e-2, rtol=1e-2), "output mismatch"
    print("KERNEL_OK")
</pallas_src>

<mosaic_0001>
module attributes {stable_mosaic.version = 11 : i64} {
  func.func @siren_mlp_stats_kernel(%arg0: i32, %arg1: memref<3x128xf32, #tpu.memory_space<vmem>>, %arg2: memref<32x4xf32, #tpu.memory_space<vmem>>, %arg3: memref<2x32x33xf32, #tpu.memory_space<vmem>>, %arg4: memref<256x33xf32, #tpu.memory_space<vmem>>, %arg5: memref<128x256xf32, #tpu.memory_space<vmem>>, %arg6: memref<1x1x256xf32, #tpu.memory_space<vmem>>, %arg7: memref<1x1x256xf32, #tpu.memory_space<vmem>>) attributes {dimension_semantics = [#tpu.dimension_semantics<parallel>], iteration_bounds = array<i64: 2>, scalar_prefetch = 0 : i64, scratch_operands = 0 : i64, tpu.core_type = #tpu.core_type<tc>, window_params = [{transform_indices = @transform_0, window_bounds = array<i64: 3, 128>}, {pipeline_mode = #tpu.pipeline_mode<synchronous>, transform_indices = @transform_1, window_bounds = array<i64: 32, 4>}, {pipeline_mode = #tpu.pipeline_mode<synchronous>, transform_indices = @transform_2, window_bounds = array<i64: 2, 32, 33>}, {pipeline_mode = #tpu.pipeline_mode<synchronous>, transform_indices = @transform_3, window_bounds = array<i64: 256, 33>}, {transform_indices = @transform_4, window_bounds = array<i64: 128, 256>}, {transform_indices = @transform_5, window_bounds = array<i64: 1, 1, 256>}, {transform_indices = @transform_6, window_bounds = array<i64: 1, 1, 256>}]} {
    %c0 = arith.constant 0 : index
    %c0_0 = arith.constant 0 : index
    %0 = vector.load %arg2[%c0, %c0_0] : memref<32x4xf32, #tpu.memory_space<vmem>>, vector<32x4xf32>
    %c0_1 = arith.constant 0 : index
    %c0_2 = arith.constant 0 : index
    %1 = vector.load %arg1[%c0_1, %c0_2] : memref<3x128xf32, #tpu.memory_space<vmem>>, vector<3x128xf32>
    %2 = vector.extract_strided_slice %0 {offsets = [0, 3], sizes = [32, 1], strides = [1, 1]} : vector<32x4xf32> to vector<32x1xf32>
    %3 = vector.extract_strided_slice %0 {offsets = [0, 0], sizes = [32, 1], strides = [1, 1]} : vector<32x4xf32> to vector<32x1xf32>
    %4 = vector.extract_strided_slice %1 {offsets = [0, 0], sizes = [1, 128], strides = [1, 1]} : vector<3x128xf32> to vector<1x128xf32>
    %5 = vector.broadcast %3 : vector<32x1xf32> to vector<32x128xf32>
    %6 = vector.broadcast %4 : vector<1x128xf32> to vector<32x128xf32>
    %7 = arith.mulf %5, %6 : vector<32x128xf32>
    %8 = vector.broadcast %2 : vector<32x1xf32> to vector<32x128xf32>
    %9 = arith.addf %8, %7 : vector<32x128xf32>
    %10 = vector.extract_strided_slice %0 {offsets = [0, 1], sizes = [32, 1], strides = [1, 1]} : vector<32x4xf32> to vector<32x1xf32>
    %11 = vector.extract_strided_slice %1 {offsets = [1, 0], sizes = [1, 128], strides = [1, 1]} : vector<3x128xf32> to vector<1x128xf32>
    %12 = vector.broadcast %10 : vector<32x1xf32> to vector<32x128xf32>
    %13 = vector.broadcast %11 : vector<1x128xf32> to vector<32x128xf32>
    %14 = arith.mulf %12, %13 : vector<32x128xf32>
    %15 = arith.addf %9, %14 : vector<32x128xf32>
    %16 = vector.extract_strided_slice %0 {offsets = [0, 2], sizes = [32, 1], strides = [1, 1]} : vector<32x4xf32> to vector<32x1xf32>
    %17 = vector.extract_strided_slice %1 {offsets = [2, 0], sizes = [1, 128], strides = [1, 1]} : vector<3x128xf32> to vector<1x128xf32>
    %18 = vector.broadcast %16 : vector<32x1xf32> to vector<32x128xf32>
    %19 = vector.broadcast %17 : vector<1x128xf32> to vector<32x128xf32>
    %20 = arith.mulf %18, %19 : vector<32x128xf32>
    %21 = arith.addf %15, %20 : vector<32x128xf32>
    %22 = math.sin %21 : vector<32x128xf32>
    %c0_3 = arith.constant 0 : index
    %c0_4 = arith.constant 0 : index
    %c0_5 = arith.constant 0 : index
    %23 = vector.load %arg3[%c0_3, %c0_4, %c0_5] : memref<2x32x33xf32, #tpu.memory_space<vmem>>, vector<1x32x33xf32>
    %24 = vector.shape_cast %23 : vector<1x32x33xf32> to vector<32x33xf32>
    %25 = vector.extract_strided_slice %24 {offsets = [0, 0], sizes = [32, 32], strides = [1, 1]} : vector<32x33xf32> to vector<32x32xf32>
    %cst = arith.constant dense<0.000000e+00> : vector<32x128xf32>
    %26 = tpu.matmul %25, %22, %cst {dimension_numbers = #tpu.dot_dimension_numbers<[1], [0], [0], [1], [0, 0, 1, 1], [], []>, precision = #tpu.contract_precision<fp32>} : vector<32x32xf32>, vector<32x128xf32>, vector<32x128xf32> -> vector<32x128xf32>
    %27 = vector.extract_strided_slice %24 {offsets = [0, 32], sizes = [32, 1], strides = [1, 1]} : vector<32x33xf32> to vector<32x1xf32>
    %28 = vector.broadcast %27 : vector<32x1xf32> to vector<32x128xf32>
    %29 = arith.addf %26, %28 : vector<32x128xf32>
    %30 = math.sin %29 : vector<32x128xf32>
    %c1 = arith.constant 1 : index
    %c0_6 = arith.constant 0 : index
    %c0_7 = arith.constant 0 : index
    %31 = vector.load %arg3[%c1, %c0_6, %c0_7] : memref<2x32x33xf32, #tpu.memory_space<vmem>>, vector<1x32x33xf32>
    %32 = vector.shape_cast %31 : vector<1x32x33xf32> to vector<32x33xf32>
    %33 = vector.extract_strided_slice %32 {offsets = [0, 0], sizes = [32, 32], strides = [1, 1]} : vector<32x33xf32> to vector<32x32xf32>
    %cst_8 = arith.constant dense<0.000000e+00> : vector<32x128xf32>
    %34 = tpu.matmul %33, %30, %cst_8 {dimension_numbers = #tpu.dot_dimension_numbers<[1], [0], [0], [1], [0, 0, 1, 1], [], []>, precision = #tpu.contract_precision<fp32>} : vector<32x32xf32>, vector<32x128xf32>, vector<32x128xf32> -> vector<32x128xf32>
    %35 = vector.extract_strided_slice %32 {offsets = [0, 32], sizes = [32, 1], strides = [1, 1]} : vector<32x33xf32> to vector<32x1xf32>
    %36 = vector.broadcast %35 : vector<32x1xf32> to vector<32x128xf32>
    %37 = arith.addf %34, %36 : vector<32x128xf32>
    %38 = math.sin %37 : vector<32x128xf32>
    %c0_9 = arith.constant 0 : index
    %c0_10 = arith.constant 0 : index
    %39 = vector.load %arg4[%c0_9, %c0_10] : memref<256x33xf32, #tpu.memory_space<vmem>>, vector<256x33xf32>
    %40 = vector.extract_strided_slice %39 {offsets = [0, 0], sizes = [256, 32], strides = [1, 1]} : vector<256x33xf32> to vector<256x32xf32>
    %cst_11 = arith.constant dense<0.000000e+00> : vector<256x128xf32>
    %41 = tpu.matmul %40, %38, %cst_11 {dimension_numbers = #tpu.dot_dimension_numbers<[1], [0], [0], [1], [0, 0, 1, 1], [], []>, precision = #tpu.contract_precision<fp32>} : vector<256x32xf32>, vector<32x128xf32>, vector<256x128xf32> -> vector<256x128xf32>
    %42 = vector.extract_strided_slice %39 {offsets = [0, 32], sizes = [256, 1], strides = [1, 1]} : vector<256x33xf32> to vector<256x1xf32>
    %43 = vector.broadcast %42 : vector<256x1xf32> to vector<256x128xf32>
    %44 = arith.addf %41, %43 : vector<256x128xf32>
    %45 = math.sin %44 : vector<256x128xf32>
    %46 = tpu.transpose %45, [1, 0] : vector<256x128xf32> -> vector<128x256xf32>
    %c0_12 = arith.constant 0 : index
    %c0_13 = arith.constant 0 : index
    %47 = vector.load %arg5[%c0_12, %c0_13] : memref<128x256xf32, #tpu.memory_space<vmem>>, vector<128x256xf32>
    tpu.vector_store %arg5[%c0_12, %c0_13], %46 {strides = array<i32>} : memref<128x256xf32, #tpu.memory_space<vmem>>, vector<128x256xf32>,
    %c128_i32 = arith.constant 128 : i32
    %48 = arith.muli %arg0, %c128_i32 : i32
    %49 = tpu.iota {dimensions = array<i32: 0>} : vector<128x1xi32>
    %50 = vector.broadcast %48 : i32 to vector<128x1xi32>
    %51 = arith.addi %50, %49 : vector<128x1xi32>
    %c192_i32 = arith.constant 192 : i32
    %52 = vector.broadcast %c192_i32 : i32 to vector<128x1xi32>
    %53 = arith.cmpi slt, %51, %52 : vector<128x1xi32>
    %cst_14 = arith.constant 0.000000e+00 : f32
    %54 = vector.shape_cast %53 : vector<128x1xi1> to vector<128x1xi1>
    %55 = vector.broadcast %54 : vector<128x1xi1> to vector<128x256xi1>
    %56 = vector.broadcast %cst_14 : f32 to vector<128x256xf32>
    %57 = arith.select %55, %46, %56 : vector<128x256xi1>, vector<128x256xf32>
    %cst_15 = arith.constant dense<0.000000e+00> : vector<256xf32>
    %58 = vector.multi_reduction <add>, %57, %cst_15 [0] : vector<128x256xf32> to vector<256xf32>
    %59 = vector.shape_cast %58 : vector<256xf32> to vector<1x256xf32>
    %60 = vector.shape_cast %59 : vector<1x256xf32> to vector<1x1x256xf32>
    %c0_16 = arith.constant 0 : index
    %c0_17 = arith.constant 0 : index
    %c0_18 = arith.constant 0 : index
    %61 = vector.load %arg6[%c0_16, %c0_17, %c0_18] : memref<1x1x256xf32, #tpu.memory_space<vmem>>, vector<1x1x256xf32>
    tpu.vector_store %arg6[%c0_16, %c0_17, %c0_18], %60 {strides = array<i32>} : memref<1x1x256xf32, #tpu.memory_space<vmem>>, vector<1x1x256xf32>,
    %62 = arith.mulf %57, %57 : vector<128x256xf32>
    %cst_19 = arith.constant dense<0.000000e+00> : vector<256xf32>
    %63 = vector.multi_reduction <add>, %62, %cst_19 [0] : vector<128x256xf32> to vector<256xf32>
    %64 = vector.shape_cast %63 : vector<256xf32> to vector<1x256xf32>
    %65 = vector.shape_cast %64 : vector<1x256xf32> to vector<1x1x256xf32>
    %c0_20 = arith.constant 0 : index
    %c0_21 = arith.constant 0 : index
    %c0_22 = arith.constant 0 : index
    %66 = vector.load %arg7[%c0_20, %c0_21, %c0_22] : memref<1x1x256xf32, #tpu.memory_space<vmem>>, vector<1x1x256xf32>
    tpu.vector_store %arg7[%c0_20, %c0_21, %c0_22], %65 {strides = array<i32>} : memref<1x1x256xf32, #tpu.memory_space<vmem>>, vector<1x1x256xf32>,
    return
  }
  func.func @transform_0(%arg0: i32) -> (i32, i32) {
    %c0_i32 = arith.constant 0 : i32
    %c0_i32_0 = arith.constant 0 : i32
    return %c0_i32, %arg0 : i32, i32
  }
  func.func @transform_1(%arg0: i32) -> (i32, i32) {
    %c0_i32 = arith.constant 0 : i32
    %c0_i32_0 = arith.constant 0 : i32
    %c0_i32_1 = arith.constant 0 : i32
    return %c0_i32, %c0_i32_0 : i32, i32
  }
  func.func @transform_2(%arg0: i32) -> (i32, i32, i32) {
    %c0_i32 = arith.constant 0 : i32
    %c0_i32_0 = arith.constant 0 : i32
    %c0_i32_1 = arith.constant 0 : i32
    %c0_i32_2 = arith.constant 0 : i32
    return %c0_i32, %c0_i32_0, %c0_i32_1 : i32, i32, i32
  }
  func.func @transform_3(%arg0: i32) -> (i32, i32) {
    %c0_i32 = arith.constant 0 : i32
    %c0_i32_0 = arith.constant 0 : i32
    %c0_i32_1 = arith.constant 0 : i32
    return %c0_i32, %c0_i32_0 : i32, i32
  }
  func.func @transform_4(%arg0: i32) -> (i32, i32) {
    %c0_i32 = arith.constant 0 : i32
    %c0_i32_0 = arith.constant 0 : i32
    return %arg0, %c0_i32 : i32, i32
  }
  func.func @transform_5(%arg0: i32) -> (i32, i32, i32) {
    %c0_i32 = arith.constant 0 : i32
    %c0_i32_0 = arith.constant 0 : i32
    %c0_i32_1 = arith.constant 0 : i32
    return %arg0, %c0_i32, %c0_i32_0 : i32, i32, i32
  }
  func.func @transform_6(%arg0: i32) -> (i32, i32, i32) {
    %c0_i32 = arith.constant 0 : i32
    %c0_i32_0 = arith.constant 0 : i32
    %c0_i32_1 = arith.constant 0 : i32
    return %arg0, %c0_i32, %c0_i32_0 : i32, i32, i32
  }
}

</mosaic_0001>

<llo_original>
// kernel: tpu_custom_call.1
$region0: #{tpu_custom_call.1}
  #allocation0 [shape = 'u32[]', space=smem, size = 0x4, offset = 0x4, fixed_abs, tag = 'smem constant byte address 0x4 - core index']
  #allocation1 [shape = 'u32[144,128]{1,0:T(1,128)}', space=vmem, size = 0x12000, scoped, tag = 'internal scratch']
  %s0 = inlined_call_operand.vmem [shape: f32[3,256], index: 0, kind: input, shape index: {}]
  %s1 = inlined_call_operand.vmem [shape: f32[32,4], index: 1, kind: input, shape index: {}]
  %s2 = inlined_call_operand.vmem [shape: f32[2,32,33], index: 2, kind: input, shape index: {}]
  %s3 = inlined_call_operand.vmem [shape: f32[256,33], index: 3, kind: input, shape index: {}]
  %s4 = inlined_call_operand.hbm [shape: f32[256,256], index: 4, kind: output, shape index: {0}]
  %s5 = inlined_call_operand.hbm [shape: f32[2,1,256], index: 5, kind: output, shape index: {1}]
  %s6 = inlined_call_operand.hbm [shape: f32[2,1,256], index: 6, kind: output, shape index: {2}]
  %7 = xla_tuple %s4, %s5, %s6
  %s8 = sld [smem:[#allocation0]]
  $region65: #{tpu_custom_call.1} parent=0
    _
  %s10 = ssub.s32 1, %s8
  %s11 = scalar_select 0, %s10, %s8
  $region1: #{tpu_custom_call.1} parent=0
    #allocation2 [shape = 'u8[262144]{0}', space=vmem, size = 0x40000, scoped, tag = 'output window, operand 0']
    #allocation3 [shape = 's32[2]{0}', space=sflag, size = 0x8, scoped, tag = 'scoped memory for tpu_custom_call.1']
    #allocation4 [shape = 'u8[2048]{0}', space=vmem, size = 0x800, scoped, tag = 'output window, operand 1']
    #allocation5 [shape = 's32[2]{0}', space=sflag, size = 0x8, scoped, tag = 'scoped memory for tpu_custom_call.1']
    #allocation6 [shape = 'u8[2048]{0}', space=vmem, size = 0x800, scoped, tag = 'output window, operand 2']
    %12 = vsyncpa [#allocation3], 0
    %s13 = scalar_lea.sflag [#allocation3], 1
    %14 = vsyncpa %s13, 0
    %15 = vsyncpa [#allocation5], 0
    %s16 = scalar_lea.sflag [#allocation5], 1
    %17 = vsyncpa %s16, 0
    loop: start=0, step=1, limit=4
    $region2: #{tpu_custom_call.1} parent=1 // loop_pre_header
      _
    $region3: #{tpu_custom_call.1} parent=1 // loop_header
      %s19 = sphi 0, %s23
      %p20 = scmp.ge.s32.totalorder %s19, 4
      %s29 = sphi 0, %s31
      %s32 = sphi 0, %s29
      %s33 = sphi 0, %s32
      %s49 = sphi 0, %s33
      %s53 = sphi 0, %s53
      %s55 = sphi 0, %s53
      %s56 = sphi 0, %s55
      %s70 = sphi 0, %s56
      %s74 = sphi 0, %s74
      %s76 = sphi 0, %s74
      %s77 = sphi 0, %s76
      %s91 = sphi 0, %s77
      %s95 = sphi 0, %s95
      %s97 = sphi 0, %s95
      %s98 = sphi 0, %s97
      %s112 = sphi 0, %s98
      %s118 = sphi 0, %s120
      %s121 = sphi 0, %s118
      %s122 = sphi 0, %s121
      %s138 = sphi 0, %s122
      %s144 = sphi 0, %s146
      %s147 = sphi 0, %s144
      %s148 = sphi 0, %s147
      %s164 = sphi 0, %s148
      %s170 = sphi 0, %s172
      %s173 = sphi 0, %s170
      %s174 = sphi 0, %s173
      %s190 = sphi 0, %s174
    $region4: #{tpu_custom_call.1} parent=1 // loop_header_branch
      %22 = sbr.rel (%p20) target = $region8
    $region5: #{tpu_custom_call.1} parent=1 // loop_body
      %s24 = ssub.s32 %s19, 1
      %s25 = ssub.s32 %s19, 2
      %s26 = sadd.s32 %s19, 1
      %s27 = ssub.s32 %s19, %s26
      %p28 = scmp.eq.s32.totalorder %s27, 0
      %s30 = sadd.s32 %s29, 1
      %s31 = scalar_select %p28, %s29, %s30
      %p34 = pneg %p28
      %p35 = scmp.eq.s32.totalorder %s19, 1
      %p36 = por %p34, %p35
      %p37 = scmp.ne.s32.totalorder %s29, %s32
      %p38 = scmp.eq.s32.totalorder %s19, 0
      %p39 = por %p37, %p38
      %p40 = scmp.ne.s32.totalorder %s29, %s32
      %p41 = scmp.eq.s32.totalorder %s24, 1
      %p42 = por %p40, %p41
      %p43 = scmp.ne.s32.totalorder %s32, %s33
      %p44 = scmp.eq.s32.totalorder %s24, 0
      %p45 = por %p43, %p44
      %p46 = scmp.ne.s32.totalorder %s32, %s33
      %p47 = scmp.eq.s32.totalorder %s25, 1
      %p48 = por %p46, %p47
      %p50 = scmp.ne.s32.totalorder %s33, %s49
      %p51 = scmp.eq.s32.totalorder %s25, 0
      %p52 = por %p50, %p51
      %s54 = sadd.s32 %s53, 1
      %p57 = scmp.eq.s32.totalorder %s19, 1
      %p58 = scmp.ne.s32.totalorder %s53, %s55
      %p59 = scmp.eq.s32.totalorder %s19, 0
      %p60 = por %p58, %p59
      %p61 = scmp.ne.s32.totalorder %s53, %s55
      %p62 = scmp.eq.s32.totalorder %s24, 1
      %p63 = por %p61, %p62
      %p64 = scmp.ne.s32.totalorder %s55, %s56
      %p65 = scmp.eq.s32.totalorder %s24, 0
      %p66 = por %p64, %p65
      %p67 = scmp.ne.s32.totalorder %s55, %s56
      %p68 = scmp.eq.s32.totalorder %s25, 1
      %p69 = por %p67, %p68
      %p71 = scmp.ne.s32.totalorder %s56, %s70
      %p72 = scmp.eq.s32.totalorder %s25, 0
      %p73 = por %p71, %p72
      %s75 = sadd.s32 %s74, 1
      %p78 = scmp.eq.s32.totalorder %s19, 1
      %p79 = scmp.ne.s32.totalorder %s74, %s76
      %p80 = scmp.eq.s32.totalorder %s19, 0
      %p81 = por %p79, %p80
      %p82 = scmp.ne.s32.totalorder %s74, %s76
      %p83 = scmp.eq.s32.totalorder %s24, 1
      %p84 = por %p82, %p83
      %p85 = scmp.ne.s32.totalorder %s76, %s77
      %p86 = scmp.eq.s32.totalorder %s24, 0
      %p87 = por %p85, %p86
      %p88 = scmp.ne.s32.totalorder %s76, %s77
      %p89 = scmp.eq.s32.totalorder %s25, 1
      %p90 = por %p88, %p89
      %p92 = scmp.ne.s32.totalorder %s77, %s91
      %p93 = scmp.eq.s32.totalorder %s25, 0
      %p94 = por %p92, %p93
      %s96 = sadd.s32 %s95, 1
      %p99 = scmp.eq.s32.totalorder %s19, 1
      %p100 = scmp.ne.s32.totalorder %s95, %s97
      %p101 = scmp.eq.s32.totalorder %s19, 0
      %p102 = por %p100, %p101
      %p103 = scmp.ne.s32.totalorder %s95, %s97
      %p104 = scmp.eq.s32.totalorder %s24, 1
      %p105 = por %p103, %p104
      %p106 = scmp.ne.s32.totalorder %s97, %s98
      %p107 = scmp.eq.s32.totalorder %s24, 0
      %p108 = por %p106, %p107
      %p109 = scmp.ne.s32.totalorder %s97, %s98
      %p110 = scmp.eq.s32.totalorder %s25, 1
      %p111 = por %p109, %p110
      %p113 = scmp.ne.s32.totalorder %s98, %s112
      %p114 = scmp.eq.s32.totalorder %s25, 0
      %p115 = por %p113, %p114
      %s116 = ssub.s32 %s19, %s26
      %p117 = scmp.eq.s32.totalorder %s116, 0
      %s119 = sadd.s32 %s118, 1
      %s120 = scalar_select %p117, %s118, %s119
      %p123 = pneg %p117
      %p124 = scmp.eq.s32.totalorder %s19, 1
      %p125 = por %p123, %p124
      %p126 = scmp.ne.s32.totalorder %s118, %s121
      %p127 = scmp.eq.s32.totalorder %s19, 0
      %p128 = por %p126, %p127
      %p129 = scmp.ne.s32.totalorder %s118, %s121
      %p130 = scmp.eq.s32.totalorder %s24, 1
      %p131 = por %p129, %p130
      %p132 = scmp.ne.s32.totalorder %s121, %s122
      %p133 = scmp.eq.s32.totalorder %s24, 0
      %p134 = por %p132, %p133
      %p135 = scmp.ne.s32.totalorder %s121, %s122
      %p136 = scmp.eq.s32.totalorder %s25, 1
      %p137 = por %p135, %p136
      %p139 = scmp.ne.s32.totalorder %s122, %s138
      %p140 = scmp.eq.s32.totalorder %s25, 0
      %p141 = por %p139, %p140
      %s142 = ssub.s32 %s19, %s26
      %p143 = scmp.eq.s32.totalorder %s142, 0
      %s145 = sadd.s32 %s144, 1
      %s146 = scalar_select %p143, %s144, %s145
      %p149 = pneg %p143
      %p150 = scmp.eq.s32.totalorder %s19, 1
      %p151 = por %p149, %p150
      %p152 = scmp.ne.s32.totalorder %s144, %s147
      %p153 = scmp.eq.s32.totalorder %s19, 0
      %p154 = por %p152, %p153
      %p155 = scmp.ne.s32.totalorder %s144, %s147
      %p156 = scmp.eq.s32.totalorder %s24, 1
      %p157 = por %p155, %p156
      %p158 = scmp.ne.s32.totalorder %s147, %s148
      %p159 = scmp.eq.s32.totalorder %s24, 0
      %p160 = por %p158, %p159
      %p161 = scmp.ne.s32.totalorder %s147, %s148
      %p162 = scmp.eq.s32.totalorder %s25, 1
      %p163 = por %p161, %p162
      %p165 = scmp.ne.s32.totalorder %s148, %s164
      %p166 = scmp.eq.s32.totalorder %s25, 0
      %p167 = por %p165, %p166
      %s168 = ssub.s32 %s19, %s26
      %p169 = scmp.eq.s32.totalorder %s168, 0
      %s171 = sadd.s32 %s170, 1
      %s172 = scalar_select %p169, %s170, %s171
      %p175 = pneg %p169
      %p176 = scmp.eq.s32.totalorder %s19, 1
      %p177 = por %p175, %p176
      %p178 = scmp.ne.s32.totalorder %s170, %s173
      %p179 = scmp.eq.s32.totalorder %s19, 0
      %p180 = por %p178, %p179
      %p181 = scmp.ne.s32.totalorder %s170, %s173
      %p182 = scmp.eq.s32.totalorder %s24, 1
      %p183 = por %p181, %p182
      %p184 = scmp.ne.s32.totalorder %s173, %s174
      %p185 = scmp.eq.s32.totalorder %s24, 0
      %p186 = por %p184, %p185
      %p187 = scmp.ne.s32.totalorder %s173, %s174
      %p188 = scmp.eq.s32.totalorder %s25, 1
      %p189 = por %p187, %p188
      %p191 = scmp.ne.s32.totalorder %s174, %s190
      %p192 = scmp.eq.s32.totalorder %s25, 0
      %p193 = por %p191, %p192
      %p194 = scmp.le.s32.totalorder 1, %s19
      %p195 = scmp.lt.s32.totalorder %s19, 3
      %p196 = pnand %p194, %p195
      %p197 = pneg %p196
      // Predicated region
      $region9: #{tpu_custom_call.1} parent=5 // pred_check
        _
      $region10: #{tpu_custom_call.1} parent=5 // pred_check_branch
        %199 = sbr.rel (%p196) target = $region12
      $region11: #{tpu_custom_call.1} parent=5 // pred_region
        %s200 = ssub.s32 %s19, 1
        // Predicated region
        $region13: #{tpu_custom_call.1} parent=11 // pred_check
          %p201 = pneg %p66
        $region14: #{tpu_custom_call.1} parent=11 // pred_check_branch
          %203 = sbr.rel (%p201) target = $region16
        $region15: #{tpu_custom_call.1} parent=11 // pred_region
          _
        $region16: #{tpu_custom_call.1} parent=11 // pred_fallthru
          _
        // Predicated region
        $region17: #{tpu_custom_call.1} parent=11 // pred_check
          %p204 = pneg %p87
        $region18: #{tpu_custom_call.1} parent=11 // pred_check_branch
          %206 = sbr.rel (%p204) target = $region20
        $region19: #{tpu_custom_call.1} parent=11 // pred_region
          _
        $region20: #{tpu_custom_call.1} parent=11 // pred_fallthru
          _
        // Predicated region
        $region21: #{tpu_custom_call.1} parent=11 // pred_check
          %p207 = pneg %p108
        $region22: #{tpu_custom_call.1} parent=11 // pred_check_branch
          %209 = sbr.rel (%p207) target = $region24
        $region23: #{tpu_custom_call.1} parent=11 // pred_region
          _
        $region24: #{tpu_custom_call.1} parent=11 // pred_fallthru
          _
      $region12: #{tpu_custom_call.1} parent=5 // pred_fallthru
        _
      %p210 = scmp.lt.s32.totalorder %s19, 2
      // Predicated region
      $region25: #{tpu_custom_call.1} parent=5 // pred_check
        %p211 = pneg %p210
      $region26: #{tpu_custom_call.1} parent=5 // pred_check_branch
        %213 = sbr.rel (%p211) target = $region28
      $region27: #{tpu_custom_call.1} parent=5 // pred_region
        // Predicated region
        $region29: #{tpu_custom_call.1} parent=27 // pred_check
          %p214 = pneg %p39
        $region30: #{tpu_custom_call.1} parent=27 // pred_check_branch
          %216 = sbr.rel (%p214) target = $region32
        $region31: #{tpu_custom_call.1} parent=27 // pred_region
          %p217 = scmp.lt.s32.totalorder %s19, 1
          %s218 = scalar_select %p217, %s19, 1
          %s219 = smul.addr %s218, 4
          %s220 = scalar_lea.vmem %s0, %s219
        $region32: #{tpu_custom_call.1} parent=27 // pred_fallthru
          _
      $region28: #{tpu_custom_call.1} parent=5 // pred_fallthru
        _
      %p221 = scmp.le.s32.totalorder 1, %s19
      %p222 = scmp.lt.s32.totalorder %s19, 3
      %p223 = pnand %p221, %p222
      %p224 = pneg %p223
      // Predicated region
      $region33: #{tpu_custom_call.1} parent=5 // pred_check
        _
      $region34: #{tpu_custom_call.1} parent=5 // pred_check_branch
        %226 = sbr.rel (%p223) target = $region36
      $region35: #{tpu_custom_call.1} parent=5 // pred_region
        %s227 = ssub.s32 %s19, 1
        %p228 = scmp.lt.s32.totalorder %s24, 1
        %s229 = scalar_select %p228, %s24, 1
        %s230 = smul.addr %s229, 4
        %s231 = scalar_lea.vmem %s0, %s230
        %p232 = pneg %p45
        %p233 = pneg %p42
        %p234 = pneg %p66
        %p235 = pneg %p63
        %p236 = pneg %p87
        %p237 = pneg %p84
        %p238 = pneg %p108
        %p239 = pneg %p105
        %p240 = pneg %p134
        %p241 = pneg %p131
        %s242 = sand.u32 %s121, 1
        %s243 = scalar_lea.sflag [#allocation3], %s242
        %s244 = sand.u32 %s121, 1
        %s245 = smul.addr %s244, 256
        %s246 = scalar_lea.vmem [#allocation2], %s245
        %p247 = pneg %p160
        %p248 = pneg %p157
        %s249 = sand.u32 %s24, 1
        %s250 = scalar_lea.sflag [#allocation5], %s249
        %s251 = sand.u32 %s147, 1
        %s252 = smul.addr %s251, 2
        %s253 = scalar_lea.vmem [#allocation4], %s252
        %p254 = pneg %p186
        %p255 = pneg %p183
        %s256 = sand.u32 %s24, 1
        %s257 = scalar_lea.sflag [#allocation5], %s256
        %s258 = sand.u32 %s173, 1
        %s259 = smul.addr %s258, 2
        %s260 = scalar_lea.vmem [#allocation6], %s259
        %p261 = scmp.lt.s32.totalorder %s24, 1
        %s262 = scalar_select %p261, %s24, 1
        %s263 = smul.addr %s262, 4
        %s264 = scalar_lea.vmem %s0, %s263
        %s265 = smul.u32 16, %s24
        %v266 = vld [vmem:[%s1] sm:$0xff]
        %v267 = vld [vmem:[%s1 + $0x8] sm:$0xff]
        %v268 = vld [vmem:[%s1 + $0x10] sm:$0xff]
        %v269 = vld [vmem:[%s1 + $0x18] sm:$0xff]
        %v270 = vld [vmem:[%s264] sm:$0x7]
        %272 = vset.pattern.permute.xlu0 0
        %273 = vperm.xlu0 %272, %v266
        %v274 = vpop.permute.xlu0 %273
        %277 = vset.pattern.permute.xlu0 0
        %278 = vperm.xlu0 %277, %v267
        %v279 = vpop.permute.xlu0 %278
        %282 = vset.pattern.permute.xlu0 0
        %283 = vperm.xlu0 %282, %v268
        %v284 = vpop.permute.xlu0 %283
        %287 = vset.pattern.permute.xlu0 0
        %288 = vperm.xlu0 %287, %v269
        %v289 = vpop.permute.xlu0 %288
        %v291 = vlaneseq
        %v292 = vshrl.u32 %v291, 7
        %v293 = vsub.s32 0, %v292
        %v294 = vrot.slane %v270, %v293
        %v295 = vmul.f32 %v274, %v294
        %v296 = vmul.f32 %v279, %v294
        %v297 = vmul.f32 %v284, %v294
        %v298 = vmul.f32 %v289, %v294
        %299 = vset.pattern.permute.xlu0 3
        %300 = vperm.xlu0 %299, %v266
        %v301 = vpop.permute.xlu0 %300
        %303 = vset.pattern.permute.xlu0 3
        %304 = vperm.xlu0 %303, %v267
        %v305 = vpop.permute.xlu0 %304
        %307 = vset.pattern.permute.xlu0 3
        %308 = vperm.xlu0 %307, %v268
        %v309 = vpop.permute.xlu0 %308
        %311 = vset.pattern.permute.xlu0 3
        %312 = vperm.xlu0 %311, %v269
        %v313 = vpop.permute.xlu0 %312
        %v315 = vadd.f32 %v301, %v295
        %v316 = vadd.f32 %v305, %v296
        %v317 = vadd.f32 %v309, %v297
        %v318 = vadd.f32 %v313, %v298
        %319 = vset.pattern.permute.xlu0 1
        %320 = vperm.xlu0 %319, %v266
        %v321 = vpop.permute.xlu0 %320
        %323 = vset.pattern.permute.xlu0 1
        %324 = vperm.xlu0 %323, %v267
        %v325 = vpop.permute.xlu0 %324
        %327 = vset.pattern.permute.xlu0 1
        %328 = vperm.xlu0 %327, %v268
        %v329 = vpop.permute.xlu0 %328
        %331 = vset.pattern.permute.xlu0 1
        %332 = vperm.xlu0 %331, %v269
        %v333 = vpop.permute.xlu0 %332
        %v335 = vlaneseq
        %v336 = vshrl.u32 %v335, 7
        %v337 = vsub.s32 1, %v336
        %v338 = vrot.slane %v270, %v337
        %v339 = vmul.f32 %v321, %v338
        %v340 = vmul.f32 %v325, %v338
        %v341 = vmul.f32 %v329, %v338
        %v342 = vmul.f32 %v333, %v338
        %v343 = vadd.f32 %v315, %v339
        %v344 = vadd.f32 %v316, %v340
        %v345 = vadd.f32 %v317, %v341
        %v346 = vadd.f32 %v318, %v342
        %347 = vset.pattern.permute.xlu0 2
        %348 = vperm.xlu0 %347, %v266
        %v349 = vpop.permute.xlu0 %348
        %351 = vset.pattern.permute.xlu0 2
        %352 = vperm.xlu0 %351, %v267
        %v353 = vpop.permute.xlu0 %352
        %355 = vset.pattern.permute.xlu0 2
        %356 = vperm.xlu0 %355, %v268
        %v357 = vpop.permute.xlu0 %356
        %359 = vset.pattern.permute.xlu0 2
        %360 = vperm.xlu0 %359, %v269
        %v361 = vpop.permute.xlu0 %360
        %v363 = vlaneseq
        %v364 = vshrl.u32 %v363, 7
        %v365 = vsub.s32 2, %v364
        %v366 = vrot.slane %v270, %v365
        %v367 = vmul.f32 %v349, %v366
        %v368 = vmul.f32 %v353, %v366
        %v369 = vmul.f32 %v357, %v366
        %v370 = vmul.f32 %v361, %v366
        %v371 = vadd.f32 %v343, %v367
        %v372 = vadd.f32 %v344, %v368
        %v373 = vadd.f32 %v345, %v369
        %v374 = vadd.f32 %v346, %v370
        %v375 = vand.u32 2147483647, %v371
        %vm376 = vcmp.le.f32.partialorder %v375, 0.7853982
        %vm377 = vcmp.lt.s32.totalorder %v371, 0
        %v378 = vand.u32 %v371, 2139095040
        %v379 = vshrl.u32 %v378, 23
        %v380 = vsub.s32 %v379, 127
        %v381 = vand.u32 2147483647, %v371
        %v382 = vand.u32 %v381, 8388607
        %v383 = vor.u32 %v382, 8388608
        %v384 = vsub.s32 0, %v383
        %v385 = vadd.s32 %v380, 1
        %vm386 = vcmp.gt.s32.totalorder %v385, 0
        %v387 = vsel %vm386, %v385, 0
        %v388 = vshrl.u32 %v387, 5
        %v389 = vand.u32 %v387, 31
        %v390 = vsub.s32 32, %v389
        %v391 = vshrl.u32 683565275, %v390
        %v392 = vshll.u32 683565275, %v389
        %v393 = vshrl.u32 2475754826, %v390
        %v394 = vor.u32 %v392, %v393
        %v395 = vshll.u32 2475754826, %v389
        %v396 = vshrl.u32 2131351028, %v390
        %v397 = vor.u32 %v395, %v396
        %v398 = vshll.u32 2131351028, %v389
        %v399 = vshrl.u32 2102212464, %v390
        %v400 = vor.u32 %v398, %v399
        %v401 = vshll.u32 2102212464, %v389
        %v402 = vshrl.u32 920167782, %v390
        %v403 = vor.u32 %v401, %v402
        %v404 = vshll.u32 920167782, %v389
        %v405 = vshrl.u32 1326507024, %v390
        %v406 = vor.u32 %v404, %v405
        %vm407 = vcmp.lt.s32.totalorder %v388, 1
        %vm408 = vcmp.lt.s32.totalorder %v388, 2
        %vm409 = vcmp.lt.s32.totalorder %v388, 3
        %vm410 = vcmp.lt.s32.totalorder %v388, 4
        %v411 = vsel %vm407, %v391, %v394
        %v412 = vsel %vm410, %v400, 2102212464
        %v413 = vsel %vm409, %v397, %v412
        %v414 = vsel %vm408, %v411, %v413
        %v415 = vsel %vm407, %v394, %v397
        %v416 = vsel %vm410, %v403, 920167782
        %v417 = vsel %vm409, %v400, %v416
        %v418 = vsel %vm408, %v415, %v417
        %v419 = vsel %vm407, %v397, %v400
        %v420 = vsel %vm410, %v406, 1326507024
        %v421 = vsel %vm409, %v403, %v420
        %v422 = vsel %vm408, %v419, %v421
        %v423 = vshll.u32 %v383, 8
        %v424 = vmul.u32.u64.compose %v423, %v422
        %v425 = vextract.low.u32 %v424
        %v426 = vextract.high.u32 %v424
        %v427 = vmul.u32.u64.compose %v423, %v418
        %v428 = vextract.low.u32 %v427
        %v429 = vextract.high.u32 %v427
        %v430 = vmul.u32 %v423, %v414
        %v431 = vadd.s32 %v426, %v428
        %vm432 = vc.u32 %v426, %v428
        %v433 = vadd.s32 %v429, 1
        %v434 = vsel %vm432, %v433, %v429
        %v435 = vadd.s32 %v430, %v434
        %v436 = vadd.s32 %v435, 536870912
        %v437 = vshrl.u32 %v436, 30
        %v438 = vshll.u32 %v437, 30
        %v439 = vsub.s32 %v435, %v438
        %vm440 = vcmp.lt.s32.totalorder %v439, 0
        %v441 = vsub.s32 0, %v439
        %v442 = vsel %vm440, %v441, %v439
        %v443 = vclz %v442
        %v444 = vsub.s32 %v443, 2
        %vm445 = vcmp.gt.s32.totalorder 0, %v444
        %v446 = vsel %vm445, 0, %v444
        %v447 = vsub.s32 32, %v446
        %v448 = vshll.u32 %v439, %v446
        %v449 = vshrl.u32 %v431, %v447
        %v450 = vor.u32 %v448, %v449
        %v451 = vsub.s32 4294967266, %v446
        %v452 = vadd.s32 %v451, 127
        %v453 = vshll.u32 %v452, 23
        %v454 = vor.u32 4788187, %v453
        %v455 = vand.u32 2147483647, %v454
        %v457 = vcvt.s32.f32 %v450
        %v458 = vmul.f32 %v457, %v455
        %v459 = vxor.u32 %v458, 2147483648
        %v460 = vsel %vm377, %v459, %v458
        %v461 = vsub.s32 4, %v437
        %v462 = vsel %vm377, %v461, %v437
        %v463 = vsel %vm376, %v371, %v460
        %v464 = vsel %vm376, 0, %v462
        %v465 = vcosq.f32.pop %v463
        %v466 = vsinq.f32.pop %v463
        %vm467 = vweird.f32 %v371
        %v468 = vadd.s32 %v464, 3
        %v469 = vand.u32 %v468, 3
        %vm470 = vcmp.lt.s32.totalorder %v469, 2
        %vm471 = vcmp.eq.s32.totalorder %v469, 0
        %v472 = vxor.u32 %v466, 2147483648
        %v473 = vsel %vm471, %v465, %v472
        %vm474 = vcmp.eq.s32.totalorder %v469, 2
        %v475 = vxor.u32 %v465, 2147483648
        %v476 = vsel %vm474, %v475, %v466
        %v477 = vsel %vm470, %v473, %v476
        %v478 = vsel %vm467, nan, %v477
        %v479 = vand.u32 2147483647, %v372
        %vm480 = vcmp.le.f32.partialorder %v479, 0.7853982
        %vm481 = vcmp.lt.s32.totalorder %v372, 0
        %v482 = vand.u32 %v372, 2139095040
        %v483 = vshrl.u32 %v482, 23
        %v484 = vsub.s32 %v483, 127
        %v485 = vand.u32 2147483647, %v372
        %v486 = vand.u32 %v485, 8388607
        %v487 = vor.u32 %v486, 8388608
        %v488 = vsub.s32 0, %v487
        %v489 = vadd.s32 %v484, 1
        %vm490 = vcmp.gt.s32.totalorder %v489, 0
        %v491 = vsel %vm490, %v489, 0
        %v492 = vshrl.u32 %v491, 5
        %v493 = vand.u32 %v491, 31
        %v494 = vsub.s32 32, %v493
        %v495 = vshrl.u32 683565275, %v494
        %v496 = vshll.u32 683565275, %v493
        %v497 = vshrl.u32 2475754826, %v494
        %v498 = vor.u32 %v496, %v497
        %v499 = vshll.u32 2475754826, %v493
        %v500 = vshrl.u32 2131351028, %v494
        %v501 = vor.u32 %v499, %v500
        %v502 = vshll.u32 2131351028, %v493
        %v503 = vshrl.u32 2102212464, %v494
        %v504 = vor.u32 %v502, %v503
        %v505 = vshll.u32 2102212464, %v493
        %v506 = vshrl.u32 920167782, %v494
        %v507 = vor.u32 %v505, %v506
        %v508 = vshll.u32 920167782, %v493
        %v509 = vshrl.u32 1326507024, %v494
        %v510 = vor.u32 %v508, %v509
        %vm511 = vcmp.lt.s32.totalorder %v492, 1
        %vm512 = vcmp.lt.s32.totalorder %v492, 2
        %vm513 = vcmp.lt.s32.totalorder %v492, 3
        %vm514 = vcmp.lt.s32.totalorder %v492, 4
        %v515 = vsel %vm511, %v495, %v498
        %v516 = vsel %vm514, %v504, 2102212464
        %v517 = vsel %vm513, %v501, %v516
        %v518 = vsel %vm512, %v515, %v517
        %v519 = vsel %vm511, %v498, %v501
        %v520 = vsel %vm514, %v507, 920167782
        %v521 = vsel %vm513, %v504, %v520
        %v522 = vsel %vm512, %v519, %v521
        %v523 = vsel %vm511, %v501, %v504
        %v524 = vsel %vm514, %v510, 1326507024
        %v525 = vsel %vm513, %v507, %v524
        %v526 = vsel %vm512, %v523, %v525
        %v527 = vshll.u32 %v487, 8
        %v528 = vmul.u32.u64.compose %v527, %v526
        %v529 = vextract.low.u32 %v528
        %v530 = vextract.high.u32 %v528
        %v531 = vmul.u32.u64.compose %v527, %v522
        %v532 = vextract.low.u32 %v531
        %v533 = vextract.high.u32 %v531
        %v534 = vmul.u32 %v527, %v518
        %v535 = vadd.s32 %v530, %v532
        %vm536 = vc.u32 %v530, %v532
        %v537 = vadd.s32 %v533, 1
        %v538 = vsel %vm536, %v537, %v533
        %v539 = vadd.s32 %v534, %v538
        %v540 = vadd.s32 %v539, 536870912
        %v541 = vshrl.u32 %v540, 30
        %v542 = vshll.u32 %v541, 30
        %v543 = vsub.s32 %v539, %v542
        %vm544 = vcmp.lt.s32.totalorder %v543, 0
        %v545 = vsub.s32 0, %v543
        %v546 = vsel %vm544, %v545, %v543
        %v547 = vclz %v546
        %v548 = vsub.s32 %v547, 2
        %vm549 = vcmp.gt.s32.totalorder 0, %v548
        %v550 = vsel %vm549, 0, %v548
        %v551 = vsub.s32 32, %v550
        %v552 = vshll.u32 %v543, %v550
        %v553 = vshrl.u32 %v535, %v551
        %v554 = vor.u32 %v552, %v553
        %v555 = vsub.s32 4294967266, %v550
        %v556 = vadd.s32 %v555, 127
        %v557 = vshll.u32 %v556, 23
        %v558 = vor.u32 4788187, %v557
        %v559 = vand.u32 2147483647, %v558
        %v561 = vcvt.s32.f32 %v554
        %v562 = vmul.f32 %v561, %v559
        %v563 = vxor.u32 %v562, 2147483648
        %v564 = vsel %vm481, %v563, %v562
        %v565 = vsub.s32 4, %v541
        %v566 = vsel %vm481, %v565, %v541
        %v567 = vsel %vm480, %v372, %v564
        %v568 = vsel %vm480, 0, %v566
        %v569 = vcosq.f32.pop %v567
        %v570 = vsinq.f32.pop %v567
        %vm571 = vweird.f32 %v372
        %v572 = vadd.s32 %v568, 3
        %v573 = vand.u32 %v572, 3
        %vm574 = vcmp.lt.s32.totalorder %v573, 2
        %vm575 = vcmp.eq.s32.totalorder %v573, 0
        %v576 = vxor.u32 %v570, 2147483648
        %v577 = vsel %vm575, %v569, %v576
        %vm578 = vcmp.eq.s32.totalorder %v573, 2
        %v579 = vxor.u32 %v569, 2147483648
        %v580 = vsel %vm578, %v579, %v570
        %v581 = vsel %vm574, %v577, %v580
        %v582 = vsel %vm571, nan, %v581
        %v583 = vand.u32 2147483647, %v373
        %vm584 = vcmp.le.f32.partialorder %v583, 0.7853982
        %vm585 = vcmp.lt.s32.totalorder %v373, 0
        %v586 = vand.u32 %v373, 2139095040
        %v587 = vshrl.u32 %v586, 23
        %v588 = vsub.s32 %v587, 127
        %v589 = vand.u32 2147483647, %v373
        %v590 = vand.u32 %v589, 8388607
        %v591 = vor.u32 %v590, 8388608
        %v592 = vsub.s32 0, %v591
        %v593 = vadd.s32 %v588, 1
        %vm594 = vcmp.gt.s32.totalorder %v593, 0
        %v595 = vsel %vm594, %v593, 0
        %v596 = vshrl.u32 %v595, 5
        %v597 = vand.u32 %v595, 31
        %v598 = vsub.s32 32, %v597
        %v599 = vshrl.u32 683565275, %v598
        %v600 = vshll.u32 683565275, %v597
        %v601 = vshrl.u32 2475754826, %v598
        %v602 = vor.u32 %v600, %v601
        %v603 = vshll.u32 2475754826, %v597
        %v604 = vshrl.u32 2131351028, %v598
        %v605 = vor.u32 %v603, %v604
        %v606 = vshll.u32 2131351028, %v597
        %v607 = vshrl.u32 2102212464, %v598
        %v608 = vor.u32 %v606, %v607
        %v609 = vshll.u32 2102212464, %v597
        %v610 = vshrl.u32 920167782, %v598
        %v611 = vor.u32 %v609, %v610
        %v612 = vshll.u32 920167782, %v597
        %v613 = vshrl.u32 1326507024, %v598
        %v614 = vor.u32 %v612, %v613
        %vm615 = vcmp.lt.s32.totalorder %v596, 1
        %vm616 = vcmp.lt.s32.totalorder %v596, 2
        %vm617 = vcmp.lt.s32.totalorder %v596, 3
        %vm618 = vcmp.lt.s32.totalorder %v596, 4
        %v619 = vsel %vm615, %v599, %v602
        %v620 = vsel %vm618, %v608, 2102212464
        %v621 = vsel %vm617, %v605, %v620
        %v622 = vsel %vm616, %v619, %v621
        %v623 = vsel %vm615, %v602, %v605
        %v624 = vsel %vm618, %v611, 920167782
        %v625 = vsel %vm617, %v608, %v624
        %v626 = vsel %vm616, %v623, %v625
        %v627 = vsel %vm615, %v605, %v608
        %v628 = vsel %vm618, %v614, 1326507024
        %v629 = vsel %vm617, %v611, %v628
        %v630 = vsel %vm616, %v627, %v629
        %v631 = vshll.u32 %v591, 8
        %v632 = vmul.u32.u64.compose %v631, %v630
        %v633 = vextract.low.u32 %v632
        %v634 = vextract.high.u32 %v632
        %v635 = vmul.u32.u64.compose %v631, %v626
        %v636 = vextract.low.u32 %v635
        %v637 = vextract.high.u32 %v635
        %v638 = vmul.u32 %v631, %v622
        %v639 = vadd.s32 %v634, %v636
        %vm640 = vc.u32 %v634, %v636
        %v641 = vadd.s32 %v637, 1
        %v642 = vsel %vm640, %v641, %v637
        %v643 = vadd.s32 %v638, %v642
        %v644 = vadd.s32 %v643, 536870912
        %v645 = vshrl.u32 %v644, 30
        %v646 = vshll.u32 %v645, 30
        %v647 = vsub.s32 %v643, %v646
        %vm648 = vcmp.lt.s32.totalorder %v647, 0
        %v649 = vsub.s32 0, %v647
        %v650 = vsel %vm648, %v649, %v647
        %v651 = vclz %v650
        %v652 = vsub.s32 %v651, 2
        %vm653 = vcmp.gt.s32.totalorder 0, %v652
        %v654 = vsel %vm653, 0, %v652
        %v655 = vsub.s32 32, %v654
        %v656 = vshll.u32 %v647, %v654
        %v657 = vshrl.u32 %v639, %v655
        %v658 = vor.u32 %v656, %v657
        %v659 = vsub.s32 4294967266, %v654
        %v660 = vadd.s32 %v659, 127
        %v661 = vshll.u32 %v660, 23
        %v662 = vor.u32 4788187, %v661
        %v663 = vand.u32 2147483647, %v662
        %v665 = vcvt.s32.f32 %v658
        %v666 = vmul.f32 %v665, %v663
        %v667 = vxor.u32 %v666, 2147483648
        %v668 = vsel %vm585, %v667, %v666
        %v669 = vsub.s32 4, %v645
        %v670 = vsel %vm585, %v669, %v645
        %v671 = vsel %vm584, %v373, %v668
        %v672 = vsel %vm584, 0, %v670
        %v673 = vcosq.f32.pop %v671
        %v674 = vsinq.f32.pop %v671
        %vm675 = vweird.f32 %v373
        %v676 = vadd.s32 %v672, 3
        %v677 = vand.u32 %v676, 3
        %vm678 = vcmp.lt.s32.totalorder %v677, 2
        %vm679 = vcmp.eq.s32.totalorder %v677, 0
        %v680 = vxor.u32 %v674, 2147483648
        %v681 = vsel %vm679, %v673, %v680
        %vm682 = vcmp.eq.s32.totalorder %v677, 2
        %v683 = vxor.u32 %v673, 2147483648
        %v684 = vsel %vm682, %v683, %v674
        %v685 = vsel %vm678, %v681, %v684
        %v686 = vsel %vm675, nan, %v685
        %v687 = vand.u32 2147483647, %v374
        %vm688 = vcmp.le.f32.partialorder %v687, 0.7853982
        %vm689 = vcmp.lt.s32.totalorder %v374, 0
        %v690 = vand.u32 %v374, 2139095040
        %v691 = vshrl.u32 %v690, 23
        %v692 = vsub.s32 %v691, 127
        %v693 = vand.u32 2147483647, %v374
        %v694 = vand.u32 %v693, 8388607
        %v695 = vor.u32 %v694, 8388608
        %v696 = vsub.s32 0, %v695
        %v697 = vadd.s32 %v692, 1
        %vm698 = vcmp.gt.s32.totalorder %v697, 0
        %v699 = vsel %vm698, %v697, 0
        %v700 = vshrl.u32 %v699, 5
        %v701 = vand.u32 %v699, 31
        %v702 = vsub.s32 32, %v701
        %v703 = vshrl.u32 683565275, %v702
        %v704 = vshll.u32 683565275, %v701
        %v705 = vshrl.u32 2475754826, %v702
        %v706 = vor.u32 %v704, %v705
        %v707 = vshll.u32 2475754826, %v701
        %v708 = vshrl.u32 2131351028, %v702
        %v709 = vor.u32 %v707, %v708
        %v710 = vshll.u32 2131351028, %v701
        %v711 = vshrl.u32 2102212464, %v702
        %v712 = vor.u32 %v710, %v711
        %v713 = vshll.u32 2102212464, %v701
        %v714 = vshrl.u32 920167782, %v702
        %v715 = vor.u32 %v713, %v714
        %v716 = vshll.u32 920167782, %v701
        %v717 = vshrl.u32 1326507024, %v702
        %v718 = vor.u32 %v716, %v717
        %vm719 = vcmp.lt.s32.totalorder %v700, 1
        %vm720 = vcmp.lt.s32.totalorder %v700, 2
        %vm721 = vcmp.lt.s32.totalorder %v700, 3
        %vm722 = vcmp.lt.s32.totalorder %v700, 4
        %v723 = vsel %vm719, %v703, %v706
        %v724 = vsel %vm722, %v712, 2102212464
        %v725 = vsel %vm721, %v709, %v724
        %v726 = vsel %vm720, %v723, %v725
        %v727 = vsel %vm719, %v706, %v709
        %v728 = vsel %vm722, %v715, 920167782
        %v729 = vsel %vm721, %v712, %v728
        %v730 = vsel %vm720, %v727, %v729
        %v731 = vsel %vm719, %v709, %v712
        %v732 = vsel %vm722, %v718, 1326507024
        %v733 = vsel %vm721, %v715, %v732
        %v734 = vsel %vm720, %v731, %v733
        %v735 = vshll.u32 %v695, 8
        %v736 = vmul.u32.u64.compose %v735, %v734
        %v737 = vextract.low.u32 %v736
        %v738 = vextract.high.u32 %v736
        %v739 = vmul.u32.u64.compose %v735, %v730
        %v740 = vextract.low.u32 %v739
        %v741 = vextract.high.u32 %v739
        %v742 = vmul.u32 %v735, %v726
        %v743 = vadd.s32 %v738, %v740
        %vm744 = vc.u32 %v738, %v740
        %v745 = vadd.s32 %v741, 1
        %v746 = vsel %vm744, %v745, %v741
        %v747 = vadd.s32 %v742, %v746
        %v748 = vadd.s32 %v747, 536870912
        %v749 = vshrl.u32 %v748, 30
        %v750 = vshll.u32 %v749, 30
        %v751 = vsub.s32 %v747, %v750
        %vm752 = vcmp.lt.s32.totalorder %v751, 0
        %v753 = vsub.s32 0, %v751
        %v754 = vsel %vm752, %v753, %v751
        %v755 = vclz %v754
        %v756 = vsub.s32 %v755, 2
        %vm757 = vcmp.gt.s32.totalorder 0, %v756
        %v758 = vsel %vm757, 0, %v756
        %v759 = vsub.s32 32, %v758
        %v760 = vshll.u32 %v751, %v758
        %v761 = vshrl.u32 %v743, %v759
        %v762 = vor.u32 %v760, %v761
        %v763 = vsub.s32 4294967266, %v758
        %v764 = vadd.s32 %v763, 127
        %v765 = vshll.u32 %v764, 23
        %v766 = vor.u32 4788187, %v765
        %v767 = vand.u32 2147483647, %v766
        %v769 = vcvt.s32.f32 %v762
        %v770 = vmul.f32 %v769, %v767
        %v771 = vxor.u32 %v770, 2147483648
        %v772 = vsel %vm689, %v771, %v770
        %v773 = vsub.s32 4, %v749
        %v774 = vsel %vm689, %v773, %v749
        %v775 = vsel %vm688, %v374, %v772
        %v776 = vsel %vm688, 0, %v774
        %v777 = vcosq.f32.pop %v775
        %v778 = vsinq.f32.pop %v775
        %vm779 = vweird.f32 %v374
        %v780 = vadd.s32 %v776, 3
        %v781 = vand.u32 %v780, 3
        %vm782 = vcmp.lt.s32.totalorder %v781, 2
        %vm783 = vcmp.eq.s32.totalorder %v781, 0
        %v784 = vxor.u32 %v778, 2147483648
        %v785 = vsel %vm783, %v777, %v784
        %vm786 = vcmp.eq.s32.totalorder %v781, 2
        %v787 = vxor.u32 %v777, 2147483648
        %v788 = vsel %vm786, %v787, %v778
        %v789 = vsel %vm782, %v785, %v788
        %v790 = vsel %vm779, nan, %v789
        %v791 = vld [vmem:[%s2] sm:$0xff]
        %v792 = vld [vmem:[%s2 + $0x8] sm:$0xff]
        %v793 = vld [vmem:[%s2 + $0x10] sm:$0xff]
        %v794 = vld [vmem:[%s2 + $0x18] sm:$0xff]
        %796 = vset.pattern.permute.xlu0 32
        %797 = vperm.xlu0 %796, %v791
        %v798 = vpop.permute.xlu0 %797
        %801 = vset.pattern.permute.xlu0 32
        %802 = vperm.xlu0 %801, %v792
        %v803 = vpop.permute.xlu0 %802
        %806 = vset.pattern.permute.xlu0 32
        %807 = vperm.xlu0 %806, %v793
        %v808 = vpop.permute.xlu0 %807
        %811 = vset.pattern.permute.xlu0 32
        %812 = vperm.xlu0 %811, %v794
        %v813 = vpop.permute.xlu0 %812
        %vm815 = vcmask 261120
        %v816 = vsel %vm815, %v791, 0
        %v818 = vsel %vm815, %v792, 0
        %v820 = vsel %vm815, %v793, 0
        %v822 = vsel %vm815, %v794, 0
        %824 = vmatprep.subr.mxu0 0.0
        %825 = vmatpush1.msra.mxu0 0.0
        %826 = vmatprep.subr.mxu0 0.0
        %827 = vmatpush1.msra.mxu0 0.0
        %828 = vmatprep.subr.mxu0 0.0
        %829 = vmatpush1.msra.mxu0 0.0
        %830 = vmatprep.subr.mxu0 0.0
        %831 = vmatpush1.msra.mxu0 0.0
        %832 = vmatprep.subr.mxu0 0.0
        %833 = vmatpush1.msra.mxu0 0.0
        %834 = vmatprep.subr.mxu0 0.0
        %835 = vmatpush1.msra.mxu0 0.0
        %836 = vmatprep.subr.mxu0 0.0
        %837 = vmatpush1.msra.mxu0 0.0
        %838 = vmatprep.subr.mxu0 0.0
        %839 = vmatpush1.msra.mxu0 0.0
        %840 = vmatprep.subr.mxu0 0.0
        %841 = vmatpush1.msra.mxu0 0.0
        %842 = vmatprep.subr.mxu0 0.0
        %843 = vmatpush1.msra.mxu0 0.0
        %844 = vmatprep.subr.mxu0 0.0
        %845 = vmatpush1.msra.mxu0 0.0
        %846 = vmatprep.subr.mxu0 0.0
        %847 = vmatpush1.msra.mxu0 0.0
        %848 = vmatprep.subr.mxu0 0.0
        %v849 = vand.u32 %v790, 4294901760
        %850 = vmatpush1.msra.mxu0 %v849
        %851 = vmatprep.subr.mxu0 0.0
        %v852 = vand.u32 %v686, 4294901760
        %853 = vmatpush1.msra.mxu0 %v852
        %854 = vmatprep.subr.mxu0 0.0
        %v855 = vand.u32 %v582, 4294901760
        %856 = vmatpush1.msra.mxu0 %v855
        %857 = vmatprep.subr.mxu0 0.0
        %v858 = vand.u32 %v478, 4294901760
        %859 = vmatpush1.msra.mxu0 %v858
        %860 = vmatprep.subr.mxu0 0.0
        %861 = vmatpush2.msra.mxu0 0.0
        %862 = vmatprep.subr.mxu0 0.0
        %863 = vmatpush2.msra.mxu0 0.0
        %864 = vmatprep.subr.mxu0 0.0
        %865 = vmatpush2.msra.mxu0 0.0
        %866 = vmatprep.subr.mxu0 0.0
        %867 = vmatpush2.msra.mxu0 0.0
        %868 = vmatprep.subr.mxu0 0.0
        %869 = vmatpush2.msra.mxu0 0.0
        %870 = vmatprep.subr.mxu0 0.0
        %871 = vmatpush2.msra.mxu0 0.0
        %872 = vmatprep.subr.mxu0 0.0
        %873 = vmatpush2.msra.mxu0 0.0
        %874 = vmatprep.subr.mxu0 0.0
        %875 = vmatpush2.msra.mxu0 0.0
        %876 = vmatprep.subr.mxu0 0.0
        %877 = vmatpush2.msra.mxu0 0.0
        %878 = vmatprep.subr.mxu0 0.0
        %879 = vmatpush2.msra.mxu0 0.0
        %880 = vmatprep.subr.mxu0 0.0
        %881 = vmatpush2.msra.mxu0 0.0
        %882 = vmatprep.subr.mxu0 0.0
        %883 = vmatpush2.msra.mxu0 0.0
        %884 = vmatprep.subr.mxu0 0.0
        %885 = vmatpush2.msra.mxu0 0.0
        %886 = vmatprep.subr.mxu0 0.0
        %887 = vmatpush2.msra.mxu0 0.0
        %888 = vmatprep.subr.mxu0 0.0
        %889 = vmatpush2.msra.mxu0 0.0
        %890 = vmatprep.subr.mxu0 0.0
        %891 = vmatpush2.msra.mxu0 0.0
        %892 = vmatprep.mubr.f32.mxu0 0.0
        %v893 = vand.u32 %v816, 4294901760
        %v894 = vsub.f32 %v816, %v893
        %v895 = vand.u32 %v894, 4294901760
        %v896 = vsub.f32 %v894, %v895
        %v897 = vand.u32 %v896, 4294901760
        %898 = vmatmul.mubr.f32.gmra.mxu0 %v897
        %v899 = vpop.f32.mrf.mxu0
        %v900 = vadd.f32 %v798, %v899
        %v901 = vpop.f32.mrf.mxu0
        %902 = vmatprep.mubr.f32.mxu0 0.0
        %v903 = vand.u32 %v818, 4294901760
        %v904 = vsub.f32 %v818, %v903
        %v905 = vand.u32 %v904, 4294901760
        %v906 = vsub.f32 %v904, %v905
        %v907 = vand.u32 %v906, 4294901760
        %908 = vmatmul.mubr.f32.gmra.mxu0 %v907
        %v909 = vpop.f32.mrf.mxu0
        %v910 = vadd.f32 %v803, %v909
        %v911 = vpop.f32.mrf.mxu0
        %912 = vmatprep.mubr.f32.mxu0 0.0
        %v913 = vand.u32 %v820, 4294901760
        %v914 = vsub.f32 %v820, %v913
        %v915 = vand.u32 %v914, 4294901760
        %v916 = vsub.f32 %v914, %v915
        %v917 = vand.u32 %v916, 4294901760
        %918 = vmatmul.mubr.f32.gmra.mxu0 %v917
        %v919 = vpop.f32.mrf.mxu0
        %v920 = vadd.f32 %v808, %v919
        %v921 = vpop.f32.mrf.mxu0
        %922 = vmatprep.mubr.f32.mxu0 0.0
        %v923 = vand.u32 %v822, 4294901760
        %v924 = vsub.f32 %v822, %v923
        %v925 = vand.u32 %v924, 4294901760
        %v926 = vsub.f32 %v924, %v925
        %v927 = vand.u32 %v926, 4294901760
        %928 = vmatmul.mubr.f32.gmra.mxu0 %v927
        %v929 = vpop.f32.mrf.mxu0
        %v930 = vadd.f32 %v813, %v929
        %v931 = vpop.f32.mrf.mxu0
        %932 = vdwg.mxu0
        %933 = vmatprep.subr.mxu0 0.0
        %934 = vmatpush1.msra.mxu0 0.0
        %935 = vmatprep.subr.mxu0 0.0
        %936 = vmatpush1.msra.mxu0 0.0
        %937 = vmatprep.subr.mxu0 0.0
        %938 = vmatpush1.msra.mxu0 0.0
        %939 = vmatprep.subr.mxu0 0.0
        %940 = vmatpush1.msra.mxu0 0.0
        %941 = vmatprep.subr.mxu0 0.0
        %942 = vmatpush1.msra.mxu0 0.0
        %943 = vmatprep.subr.mxu0 0.0
        %944 = vmatpush1.msra.mxu0 0.0
        %945 = vmatprep.subr.mxu0 0.0
        %946 = vmatpush1.msra.mxu0 0.0
        %947 = vmatprep.subr.mxu0 0.0
        %948 = vmatpush1.msra.mxu0 0.0
        %949 = vmatprep.subr.mxu0 0.0
        %950 = vmatpush1.msra.mxu0 0.0
        %951 = vmatprep.subr.mxu0 0.0
        %952 = vmatpush1.msra.mxu0 0.0
        %953 = vmatprep.subr.mxu0 0.0
        %954 = vmatpush1.msra.mxu0 0.0
        %955 = vmatprep.subr.mxu0 0.0
        %956 = vmatpush1.msra.mxu0 0.0
        %957 = vmatprep.subr.mxu0 0.0
        %v958 = vand.u32 %v790, 4294901760
        %v959 = vsub.f32 %v790, %v958
        %v960 = vand.u32 %v959, 4294901760
        %v961 = vsub.f32 %v959, %v960
        %v962 = vand.u32 %v961, 4294901760
        %963 = vmatpush1.msra.mxu0 %v962
        %964 = vmatprep.subr.mxu0 0.0
        %v965 = vand.u32 %v686, 4294901760
        %v966 = vsub.f32 %v686, %v965
        %v967 = vand.u32 %v966, 4294901760
        %v968 = vsub.f32 %v966, %v967
        %v969 = vand.u32 %v968, 4294901760
        %970 = vmatpush1.msra.mxu0 %v969
        %971 = vmatprep.subr.mxu0 0.0
        %v972 = vand.u32 %v582, 4294901760
        %v973 = vsub.f32 %v582, %v972
        %v974 = vand.u32 %v973, 4294901760
        %v975 = vsub.f32 %v973, %v974
        %v976 = vand.u32 %v975, 4294901760
        %977 = vmatpush1.msra.mxu0 %v976
        %978 = vmatprep.subr.mxu0 0.0
        %v979 = vand.u32 %v478, 4294901760
        %v980 = vsub.f32 %v478, %v979
        %v981 = vand.u32 %v980, 4294901760
        %v982 = vsub.f32 %v980, %v981
        %v983 = vand.u32 %v982, 4294901760
        %984 = vmatpush1.msra.mxu0 %v983
        %985 = vmatprep.subr.mxu0 0.0
        %986 = vmatpush2.msra.mxu0 0.0
        %987 = vmatprep.subr.mxu0 0.0
        %988 = vmatpush2.msra.mxu0 0.0
        %989 = vmatprep.subr.mxu0 0.0
        %990 = vmatpush2.msra.mxu0 0.0
        %991 = vmatprep.subr.mxu0 0.0
        %992 = vmatpush2.msra.mxu0 0.0
        %993 = vmatprep.subr.mxu0 0.0
        %994 = vmatpush2.msra.mxu0 0.0
        %995 = vmatprep.subr.mxu0 0.0
        %996 = vmatpush2.msra.mxu0 0.0
        %997 = vmatprep.subr.mxu0 0.0
        %998 = vmatpush2.msra.mxu0 0.0
        %999 = vmatprep.subr.mxu0 0.0
        %1000 = vmatpush2.msra.mxu0 0.0
        %1001 = vmatprep.subr.mxu0 0.0
        %1002 = vmatpush2.msra.mxu0 0.0
        %1003 = vmatprep.subr.mxu0 0.0
        %1004 = vmatpush2.msra.mxu0 0.0
        %1005 = vmatprep.subr.mxu0 0.0
        %1006 = vmatpush2.msra.mxu0 0.0
        %1007 = vmatprep.subr.mxu0 0.0
        %1008 = vmatpush2.msra.mxu0 0.0
        %1009 = vmatprep.subr.mxu0 0.0
        %1010 = vmatpush2.msra.mxu0 0.0
        %1011 = vmatprep.subr.mxu0 0.0
        %1012 = vmatpush2.msra.mxu0 0.0
        %1013 = vmatprep.subr.mxu0 0.0
        %1014 = vmatpush2.msra.mxu0 0.0
        %1015 = vmatprep.subr.mxu0 0.0
        %1016 = vmatpush2.msra.mxu0 0.0
        %1017 = vmatprep.mubr.f32.mxu0 0.0
        %v1018 = vand.u32 %v816, 4294901760
        %1019 = vmatmul.mubr.f32.gmra.mxu0 %v1018
        %v1020 = vpop.f32.mrf.mxu0
        %v1021 = vadd.f32 %v900, %v1020
        %v1022 = vpop.f32.mrf.mxu0
        %1023 = vmatprep.mubr.f32.mxu0 0.0
        %v1024 = vand.u32 %v818, 4294901760
        %1025 = vmatmul.mubr.f32.gmra.mxu0 %v1024
        %v1026 = vpop.f32.mrf.mxu0
        %v1027 = vadd.f32 %v910, %v1026
        %v1028 = vpop.f32.mrf.mxu0
        %1029 = vmatprep.mubr.f32.mxu0 0.0
        %v1030 = vand.u32 %v820, 4294901760
        %1031 = vmatmul.mubr.f32.gmra.mxu0 %v1030
        %v1032 = vpop.f32.mrf.mxu0
        %v1033 = vadd.f32 %v920, %v1032
        %v1034 = vpop.f32.mrf.mxu0
        %1035 = vmatprep.mubr.f32.mxu0 0.0
        %v1036 = vand.u32 %v822, 4294901760
        %1037 = vmatmul.mubr.f32.gmra.mxu0 %v1036
        %v1038 = vpop.f32.mrf.mxu0
        %v1039 = vadd.f32 %v930, %v1038
        %v1040 = vpop.f32.mrf.mxu0
        %1041 = vdwg.mxu0
        %1042 = vmatprep.subr.mxu0 0.0
        %1043 = vmatpush1.msra.mxu0 0.0
        %1044 = vmatprep.subr.mxu0 0.0
        %1045 = vmatpush1.msra.mxu0 0.0
        %1046 = vmatprep.subr.mxu0 0.0
        %1047 = vmatpush1.msra.mxu0 0.0
        %1048 = vmatprep.subr.mxu0 0.0
        %1049 = vmatpush1.msra.mxu0 0.0
        %1050 = vmatprep.subr.mxu0 0.0
        %1051 = vmatpush1.msra.mxu0 0.0
        %1052 = vmatprep.subr.mxu0 0.0
        %1053 = vmatpush1.msra.mxu0 0.0
        %1054 = vmatprep.subr.mxu0 0.0
        %1055 = vmatpush1.msra.mxu0 0.0
        %1056 = vmatprep.subr.mxu0 0.0
        %1057 = vmatpush1.msra.mxu0 0.0
        %1058 = vmatprep.subr.mxu0 0.0
        %1059 = vmatpush1.msra.mxu0 0.0
        %1060 = vmatprep.subr.mxu0 0.0
        %1061 = vmatpush1.msra.mxu0 0.0
        %1062 = vmatprep.subr.mxu0 0.0
        %1063 = vmatpush1.msra.mxu0 0.0
        %1064 = vmatprep.subr.mxu0 0.0
        %1065 = vmatpush1.msra.mxu0 0.0
        %1066 = vmatprep.subr.mxu0 0.0
        %v1067 = vand.u32 %v790, 4294901760
        %v1068 = vsub.f32 %v790, %v1067
        %1069 = vmatpush1.msra.mxu0 %v1068
        %1070 = vmatprep.subr.mxu0 0.0
        %v1071 = vand.u32 %v686, 4294901760
        %v1072 = vsub.f32 %v686, %v1071
        %1073 = vmatpush1.msra.mxu0 %v1072
        %1074 = vmatprep.subr.mxu0 0.0
        %v1075 = vand.u32 %v582, 4294901760
        %v1076 = vsub.f32 %v582, %v1075
        %1077 = vmatpush1.msra.mxu0 %v1076
        %1078 = vmatprep.subr.mxu0 0.0
        %v1079 = vand.u32 %v478, 4294901760
        %v1080 = vsub.f32 %v478, %v1079
        %1081 = vmatpush1.msra.mxu0 %v1080
        %1082 = vmatprep.subr.mxu0 0.0
        %1083 = vmatpush2.msra.mxu0 0.0
        %1084 = vmatprep.subr.mxu0 0.0
        %1085 = vmatpush2.msra.mxu0 0.0
        %1086 = vmatprep.subr.mxu0 0.0
        %1087 = vmatpush2.msra.mxu0 0.0
        %1088 = vmatprep.subr.mxu0 0.0
        %1089 = vmatpush2.msra.mxu0 0.0
        %1090 = vmatprep.subr.mxu0 0.0
        %1091 = vmatpush2.msra.mxu0 0.0
        %1092 = vmatprep.subr.mxu0 0.0
        %1093 = vmatpush2.msra.mxu0 0.0
        %1094 = vmatprep.subr.mxu0 0.0
        %1095 = vmatpush2.msra.mxu0 0.0
        %1096 = vmatprep.subr.mxu0 0.0
        %1097 = vmatpush2.msra.mxu0 0.0
        %1098 = vmatprep.subr.mxu0 0.0
        %1099 = vmatpush2.msra.mxu0 0.0
        %1100 = vmatprep.subr.mxu0 0.0
        %1101 = vmatpush2.msra.mxu0 0.0
        %1102 = vmatprep.subr.mxu0 0.0
        %1103 = vmatpush2.msra.mxu0 0.0
        %1104 = vmatprep.subr.mxu0 0.0
        %1105 = vmatpush2.msra.mxu0 0.0
        %1106 = vmatprep.subr.mxu0 0.0
        %1107 = vmatpush2.msra.mxu0 0.0
        %1108 = vmatprep.subr.mxu0 0.0
        %1109 = vmatpush2.msra.mxu0 0.0
        %1110 = vmatprep.subr.mxu0 0.0
        %1111 = vmatpush2.msra.mxu0 0.0
        %1112 = vmatprep.subr.mxu0 0.0
        %1113 = vmatpush2.msra.mxu0 0.0
        %1114 = vmatprep.mubr.f32.mxu0 0.0
        %v1115 = vand.u32 %v816, 4294901760
        %v1116 = vsub.f32 %v816, %v1115
        %1117 = vmatmul.mubr.f32.gmra.mxu0 %v1116
        %v1118 = vpop.f32.mrf.mxu0
        %v1119 = vadd.f32 %v1021, %v1118
        %v1120 = vpop.f32.mrf.mxu0
        %1121 = vmatprep.mubr.f32.mxu0 0.0
        %v1122 = vand.u32 %v818, 4294901760
        %v1123 = vsub.f32 %v818, %v1122
        %1124 = vmatmul.mubr.f32.gmra.mxu0 %v1123
        %v1125 = vpop.f32.mrf.mxu0
        %v1126 = vadd.f32 %v1027, %v1125
        %v1127 = vpop.f32.mrf.mxu0
        %1128 = vmatprep.mubr.f32.mxu0 0.0
        %v1129 = vand.u32 %v820, 4294901760
        %v1130 = vsub.f32 %v820, %v1129
        %1131 = vmatmul.mubr.f32.gmra.mxu0 %v1130
        %v1132 = vpop.f32.mrf.mxu0
        %v1133 = vadd.f32 %v1033, %v1132
        %v1134 = vpop.f32.mrf.mxu0
        %1135 = vmatprep.mubr.f32.mxu0 0.0
        %v1136 = vand.u32 %v822, 4294901760
        %v1137 = vsub.f32 %v822, %v1136
        %1138 = vmatmul.mubr.f32.gmra.mxu0 %v1137
        %v1139 = vpop.f32.mrf.mxu0
        %v1140 = vadd.f32 %v1039, %v1139
        %v1141 = vpop.f32.mrf.mxu0
        %1142 = vdwg.mxu0
        %1143 = vmatprep.subr.mxu0 0.0
        %1144 = vmatpush1.msra.mxu0 0.0
        %1145 = vmatprep.subr.mxu0 0.0
        %1146 = vmatpush1.msra.mxu0 0.0
        %1147 = vmatprep.subr.mxu0 0.0
        %1148 = vmatpush1.msra.mxu0 0.0
        %1149 = vmatprep.subr.mxu0 0.0
        %1150 = vmatpush1.msra.mxu0 0.0
        %1151 = vmatprep.subr.mxu0 0.0
        %1152 = vmatpush1.msra.mxu0 0.0
        %1153 = vmatprep.subr.mxu0 0.0
        %1154 = vmatpush1.msra.mxu0 0.0
        %1155 = vmatprep.subr.mxu0 0.0
        %1156 = vmatpush1.msra.mxu0 0.0
        %1157 = vmatprep.subr.mxu0 0.0
        %1158 = vmatpush1.msra.mxu0 0.0
        %1159 = vmatprep.subr.mxu0 0.0
        %1160 = vmatpush1.msra.mxu0 0.0
        %1161 = vmatprep.subr.mxu0 0.0
        %1162 = vmatpush1.msra.mxu0 0.0
        %1163 = vmatprep.subr.mxu0 0.0
        %1164 = vmatpush1.msra.mxu0 0.0
        %1165 = vmatprep.subr.mxu0 0.0
        %1166 = vmatpush1.msra.mxu0 0.0
        %1167 = vmatprep.subr.mxu0 0.0
        %v1168 = vand.u32 %v790, 4294901760
        %1169 = vmatpush1.msra.mxu0 %v1168
        %1170 = vmatprep.subr.mxu0 0.0
        %v1171 = vand.u32 %v686, 4294901760
        %1172 = vmatpush1.msra.mxu0 %v1171
        %1173 = vmatprep.subr.mxu0 0.0
        %v1174 = vand.u32 %v582, 4294901760
        %1175 = vmatpush1.msra.mxu0 %v1174
        %1176 = vmatprep.subr.mxu0 0.0
        %v1177 = vand.u32 %v478, 4294901760
        %1178 = vmatpush1.msra.mxu0 %v1177
        %1179 = vmatprep.subr.mxu0 0.0
        %1180 = vmatpush2.msra.mxu0 0.0
        %1181 = vmatprep.subr.mxu0 0.0
        %1182 = vmatpush2.msra.mxu0 0.0
        %1183 = vmatprep.subr.mxu0 0.0
        %1184 = vmatpush2.msra.mxu0 0.0
        %1185 = vmatprep.subr.mxu0 0.0
        %1186 = vmatpush2.msra.mxu0 0.0
        %1187 = vmatprep.subr.mxu0 0.0
        %1188 = vmatpush2.msra.mxu0 0.0
        %1189 = vmatprep.subr.mxu0 0.0
        %1190 = vmatpush2.msra.mxu0 0.0
        %1191 = vmatprep.subr.mxu0 0.0
        %1192 = vmatpush2.msra.mxu0 0.0
        %1193 = vmatprep.subr.mxu0 0.0
        %1194 = vmatpush2.msra.mxu0 0.0
        %1195 = vmatprep.subr.mxu0 0.0
        %1196 = vmatpush2.msra.mxu0 0.0
        %1197 = vmatprep.subr.mxu0 0.0
        %1198 = vmatpush2.msra.mxu0 0.0
        %1199 = vmatprep.subr.mxu0 0.0
        %1200 = vmatpush2.msra.mxu0 0.0
        %1201 = vmatprep.subr.mxu0 0.0
        %1202 = vmatpush2.msra.mxu0 0.0
        %1203 = vmatprep.subr.mxu0 0.0
        %1204 = vmatpush2.msra.mxu0 0.0
        %1205 = vmatprep.subr.mxu0 0.0
        %1206 = vmatpush2.msra.mxu0 0.0
        %1207 = vmatprep.subr.mxu0 0.0
        %1208 = vmatpush2.msra.mxu0 0.0
        %1209 = vmatprep.subr.mxu0 0.0
        %1210 = vmatpush2.msra.mxu0 0.0
        %1211 = vmatprep.mubr.f32.mxu0 0.0
        %v1212 = vand.u32 %v816, 4294901760
        %v1213 = vsub.f32 %v816, %v1212
        %v1214 = vand.u32 %v1213, 4294901760
        %1215 = vmatmul.mubr.f32.gmra.mxu0 %v1214
        %v1216 = vpop.f32.mrf.mxu0
        %v1217 = vadd.f32 %v1119, %v1216
        %v1218 = vpop.f32.mrf.mxu0
        %1219 = vmatprep.mubr.f32.mxu0 0.0
        %v1220 = vand.u32 %v818, 4294901760
        %v1221 = vsub.f32 %v818, %v1220
        %v1222 = vand.u32 %v1221, 4294901760
        %1223 = vmatmul.mubr.f32.gmra.mxu0 %v1222
        %v1224 = vpop.f32.mrf.mxu0
        %v1225 = vadd.f32 %v1126, %v1224
        %v1226 = vpop.f32.mrf.mxu0
        %1227 = vmatprep.mubr.f32.mxu0 0.0
        %v1228 = vand.u32 %v820, 4294901760
        %v1229 = vsub.f32 %v820, %v1228
        %v1230 = vand.u32 %v1229, 4294901760
        %1231 = vmatmul.mubr.f32.gmra.mxu0 %v1230
        %v1232 = vpop.f32.mrf.mxu0
        %v1233 = vadd.f32 %v1133, %v1232
        %v1234 = vpop.f32.mrf.mxu0
        %1235 = vmatprep.mubr.f32.mxu0 0.0
        %v1236 = vand.u32 %v822, 4294901760
        %v1237 = vsub.f32 %v822, %v1236
        %v1238 = vand.u32 %v1237, 4294901760
        %1239 = vmatmul.mubr.f32.gmra.mxu0 %v1238
        %v1240 = vpop.f32.mrf.mxu0
        %v1241 = vadd.f32 %v1140, %v1240
        %v1242 = vpop.f32.mrf.mxu0
        %1243 = vdwg.mxu0
        %1244 = vmatprep.subr.mxu0 0.0
        %1245 = vmatpush1.msra.mxu0 0.0
        %1246 = vmatprep.subr.mxu0 0.0
        %1247 = vmatpush1.msra.mxu0 0.0
        %1248 = vmatprep.subr.mxu0 0.0
        %1249 = vmatpush1.msra.mxu0 0.0
        %1250 = vmatprep.subr.mxu0 0.0
        %1251 = vmatpush1.msra.mxu0 0.0
        %1252 = vmatprep.subr.mxu0 0.0
        %1253 = vmatpush1.msra.mxu0 0.0
        %1254 = vmatprep.subr.mxu0 0.0
        %1255 = vmatpush1.msra.mxu0 0.0
        %1256 = vmatprep.subr.mxu0 0.0
        %1257 = vmatpush1.msra.mxu0 0.0
        %1258 = vmatprep.subr.mxu0 0.0
        %1259 = vmatpush1.msra.mxu0 0.0
        %1260 = vmatprep.subr.mxu0 0.0
        %1261 = vmatpush1.msra.mxu0 0.0
        %1262 = vmatprep.subr.mxu0 0.0
        %1263 = vmatpush1.msra.mxu0 0.0
        %1264 = vmatprep.subr.mxu0 0.0
        %1265 = vmatpush1.msra.mxu0 0.0
        %1266 = vmatprep.subr.mxu0 0.0
        %1267 = vmatpush1.msra.mxu0 0.0
        %1268 = vmatprep.subr.mxu0 0.0
        %v1269 = vand.u32 %v790, 4294901760
        %v1270 = vsub.f32 %v790, %v1269
        %v1271 = vand.u32 %v1270, 4294901760
        %1272 = vmatpush1.msra.mxu0 %v1271
        %1273 = vmatprep.subr.mxu0 0.0
        %v1274 = vand.u32 %v686, 4294901760
        %v1275 = vsub.f32 %v686, %v1274
        %v1276 = vand.u32 %v1275, 4294901760
        %1277 = vmatpush1.msra.mxu0 %v1276
        %1278 = vmatprep.subr.mxu0 0.0
        %v1279 = vand.u32 %v582, 4294901760
        %v1280 = vsub.f32 %v582, %v1279
        %v1281 = vand.u32 %v1280, 4294901760
        %1282 = vmatpush1.msra.mxu0 %v1281
        %1283 = vmatprep.subr.mxu0 0.0
        %v1284 = vand.u32 %v478, 4294901760
        %v1285 = vsub.f32 %v478, %v1284
        %v1286 = vand.u32 %v1285, 4294901760
        %1287 = vmatpush1.msra.mxu0 %v1286
        %1288 = vmatprep.subr.mxu0 0.0
        %1289 = vmatpush2.msra.mxu0 0.0
        %1290 = vmatprep.subr.mxu0 0.0
        %1291 = vmatpush2.msra.mxu0 0.0
        %1292 = vmatprep.subr.mxu0 0.0
        %1293 = vmatpush2.msra.mxu0 0.0
        %1294 = vmatprep.subr.mxu0 0.0
        %1295 = vmatpush2.msra.mxu0 0.0
        %1296 = vmatprep.subr.mxu0 0.0
        %1297 = vmatpush2.msra.mxu0 0.0
        %1298 = vmatprep.subr.mxu0 0.0
        %1299 = vmatpush2.msra.mxu0 0.0
        %1300 = vmatprep.subr.mxu0 0.0
        %1301 = vmatpush2.msra.mxu0 0.0
        %1302 = vmatprep.subr.mxu0 0.0
        %1303 = vmatpush2.msra.mxu0 0.0
        %1304 = vmatprep.subr.mxu0 0.0
        %1305 = vmatpush2.msra.mxu0 0.0
        %1306 = vmatprep.subr.mxu0 0.0
        %1307 = vmatpush2.msra.mxu0 0.0
        %1308 = vmatprep.subr.mxu0 0.0
        %1309 = vmatpush2.msra.mxu0 0.0
        %1310 = vmatprep.subr.mxu0 0.0
        %1311 = vmatpush2.msra.mxu0 0.0
        %1312 = vmatprep.subr.mxu0 0.0
        %1313 = vmatpush2.msra.mxu0 0.0
        %1314 = vmatprep.subr.mxu0 0.0
        %1315 = vmatpush2.msra.mxu0 0.0
        %1316 = vmatprep.subr.mxu0 0.0
        %1317 = vmatpush2.msra.mxu0 0.0
        %1318 = vmatprep.subr.mxu0 0.0
        %1319 = vmatpush2.msra.mxu0 0.0
        %1320 = vmatprep.mubr.f32.mxu0 0.0
        %v1321 = vand.u32 %v816, 4294901760
        %1322 = vmatmul.mubr.f32.gmra.mxu0 %v1321
        %v1323 = vpop.f32.mrf.mxu0
        %v1324 = vadd.f32 %v1217, %v1323
        %v1325 = vpop.f32.mrf.mxu0
        %1326 = vmatprep.mubr.f32.mxu0 0.0
        %v1327 = vand.u32 %v818, 4294901760
        %1328 = vmatmul.mubr.f32.gmra.mxu0 %v1327
        %v1329 = vpop.f32.mrf.mxu0
        %v1330 = vadd.f32 %v1225, %v1329
        %v1331 = vpop.f32.mrf.mxu0
        %1332 = vmatprep.mubr.f32.mxu0 0.0
        %v1333 = vand.u32 %v820, 4294901760
        %1334 = vmatmul.mubr.f32.gmra.mxu0 %v1333
        %v1335 = vpop.f32.mrf.mxu0
        %v1336 = vadd.f32 %v1233, %v1335
        %v1337 = vpop.f32.mrf.mxu0
        %1338 = vmatprep.mubr.f32.mxu0 0.0
        %v1339 = vand.u32 %v822, 4294901760
        %1340 = vmatmul.mubr.f32.gmra.mxu0 %v1339
        %v1341 = vpop.f32.mrf.mxu0
        %v1342 = vadd.f32 %v1241, %v1341
        %v1343 = vpop.f32.mrf.mxu0
        %1344 = vdwg.mxu0
        %1345 = vmatprep.subr.mxu0 0.0
        %1346 = vmatpush1.msra.mxu0 0.0
        %1347 = vmatprep.subr.mxu0 0.0
        %1348 = vmatpush1.msra.mxu0 0.0
        %1349 = vmatprep.subr.mxu0 0.0
        %1350 = vmatpush1.msra.mxu0 0.0
        %1351 = vmatprep.subr.mxu0 0.0
        %1352 = vmatpush1.msra.mxu0 0.0
        %1353 = vmatprep.subr.mxu0 0.0
        %1354 = vmatpush1.msra.mxu0 0.0
        %1355 = vmatprep.subr.mxu0 0.0
        %1356 = vmatpush1.msra.mxu0 0.0
        %1357 = vmatprep.subr.mxu0 0.0
        %1358 = vmatpush1.msra.mxu0 0.0
        %1359 = vmatprep.subr.mxu0 0.0
        %1360 = vmatpush1.msra.mxu0 0.0
        %1361 = vmatprep.subr.mxu0 0.0
        %1362 = vmatpush1.msra.mxu0 0.0
        %1363 = vmatprep.subr.mxu0 0.0
        %1364 = vmatpush1.msra.mxu0 0.0
        %1365 = vmatprep.subr.mxu0 0.0
        %1366 = vmatpush1.msra.mxu0 0.0
        %1367 = vmatprep.subr.mxu0 0.0
        %1368 = vmatpush1.msra.mxu0 0.0
        %1369 = vmatprep.subr.mxu0 0.0
        %v1370 = vand.u32 %v790, 4294901760
        %1371 = vmatpush1.msra.mxu0 %v1370
        %1372 = vmatprep.subr.mxu0 0.0
        %v1373 = vand.u32 %v686, 4294901760
        %1374 = vmatpush1.msra.mxu0 %v1373
        %1375 = vmatprep.subr.mxu0 0.0
        %v1376 = vand.u32 %v582, 4294901760
        %1377 = vmatpush1.msra.mxu0 %v1376
        %1378 = vmatprep.subr.mxu0 0.0
        %v1379 = vand.u32 %v478, 4294901760
        %1380 = vmatpush1.msra.mxu0 %v1379
        %1381 = vmatprep.subr.mxu0 0.0
        %1382 = vmatpush2.msra.mxu0 0.0
        %1383 = vmatprep.subr.mxu0 0.0
        %1384 = vmatpush2.msra.mxu0 0.0
        %1385 = vmatprep.subr.mxu0 0.0
        %1386 = vmatpush2.msra.mxu0 0.0
        %1387 = vmatprep.subr.mxu0 0.0
        %1388 = vmatpush2.msra.mxu0 0.0
        %1389 = vmatprep.subr.mxu0 0.0
        %1390 = vmatpush2.msra.mxu0 0.0
        %1391 = vmatprep.subr.mxu0 0.0
        %1392 = vmatpush2.msra.mxu0 0.0
        %1393 = vmatprep.subr.mxu0 0.0
        %1394 = vmatpush2.msra.mxu0 0.0
        %1395 = vmatprep.subr.mxu0 0.0
        %1396 = vmatpush2.msra.mxu0 0.0
        %1397 = vmatprep.subr.mxu0 0.0
        %1398 = vmatpush2.msra.mxu0 0.0
        %1399 = vmatprep.subr.mxu0 0.0
        %1400 = vmatpush2.msra.mxu0 0.0
        %1401 = vmatprep.subr.mxu0 0.0
        %1402 = vmatpush2.msra.mxu0 0.0
        %1403 = vmatprep.subr.mxu0 0.0
        %1404 = vmatpush2.msra.mxu0 0.0
        %1405 = vmatprep.subr.mxu0 0.0
        %1406 = vmatpush2.msra.mxu0 0.0
        %1407 = vmatprep.subr.mxu0 0.0
        %1408 = vmatpush2.msra.mxu0 0.0
        %1409 = vmatprep.subr.mxu0 0.0
        %1410 = vmatpush2.msra.mxu0 0.0
        %1411 = vmatprep.subr.mxu0 0.0
        %1412 = vmatpush2.msra.mxu0 0.0
        %1413 = vmatprep.mubr.f32.mxu0 0.0
        %v1414 = vand.u32 %v816, 4294901760
        %1415 = vmatmul.mubr.f32.gmra.mxu0 %v1414
        %v1416 = vpop.f32.mrf.mxu0
        %v1417 = vadd.f32 %v1324, %v1416
        %v1418 = vpop.f32.mrf.mxu0
        %1419 = vmatprep.mubr.f32.mxu0 0.0
        %v1420 = vand.u32 %v818, 4294901760
        %1421 = vmatmul.mubr.f32.gmra.mxu0 %v1420
        %v1422 = vpop.f32.mrf.mxu0
        %v1423 = vadd.f32 %v1330, %v1422
        %v1424 = vpop.f32.mrf.mxu0
        %1425 = vmatprep.mubr.f32.mxu0 0.0
        %v1426 = vand.u32 %v820, 4294901760
        %1427 = vmatmul.mubr.f32.gmra.mxu0 %v1426
        %v1428 = vpop.f32.mrf.mxu0
        %v1429 = vadd.f32 %v1336, %v1428
        %v1430 = vpop.f32.mrf.mxu0
        %1431 = vmatprep.mubr.f32.mxu0 0.0
        %v1432 = vand.u32 %v822, 4294901760
        %1433 = vmatmul.mubr.f32.gmra.mxu0 %v1432
        %v1434 = vpop.f32.mrf.mxu0
        %v1435 = vadd.f32 %v1342, %v1434
        %v1436 = vpop.f32.mrf.mxu0
        %1437 = vdwg.mxu0
        %v1438 = vand.u32 2147483647, %v1417
        %vm1439 = vcmp.le.f32.partialorder %v1438, 0.7853982
        %vm1440 = vcmp.lt.s32.totalorder %v1417, 0
        %v1441 = vand.u32 %v1417, 2139095040
        %v1442 = vshrl.u32 %v1441, 23
        %v1443 = vsub.s32 %v1442, 127
        %v1444 = vand.u32 2147483647, %v1417
        %v1445 = vand.u32 %v1444, 8388607
        %v1446 = vor.u32 %v1445, 8388608
        %v1447 = vsub.s32 0, %v1446
        %v1448 = vadd.s32 %v1443, 1
        %vm1449 = vcmp.gt.s32.totalorder %v1448, 0
        %v1450 = vsel %vm1449, %v1448, 0
        %v1451 = vshrl.u32 %v1450, 5
        %v1452 = vand.u32 %v1450, 31
        %v1453 = vsub.s32 32, %v1452
        %v1454 = vshrl.u32 683565275, %v1453
        %v1455 = vshll.u32 683565275, %v1452
        %v1456 = vshrl.u32 2475754826, %v1453
        %v1457 = vor.u32 %v1455, %v1456
        %v1458 = vshll.u32 2475754826, %v1452
        %v1459 = vshrl.u32 2131351028, %v1453
        %v1460 = vor.u32 %v1458, %v1459
        %v1461 = vshll.u32 2131351028, %v1452
        %v1462 = vshrl.u32 2102212464, %v1453
        %v1463 = vor.u32 %v1461, %v1462
        %v1464 = vshll.u32 2102212464, %v1452
        %v1465 = vshrl.u32 920167782, %v1453
        %v1466 = vor.u32 %v1464, %v1465
        %v1467 = vshll.u32 920167782, %v1452
        %v1468 = vshrl.u32 1326507024, %v1453
        %v1469 = vor.u32 %v1467, %v1468
        %vm1470 = vcmp.lt.s32.totalorder %v1451, 1
        %vm1471 = vcmp.lt.s32.totalorder %v1451, 2
        %vm1472 = vcmp.lt.s32.totalorder %v1451, 3
        %vm1473 = vcmp.lt.s32.totalorder %v1451, 4
        %v1474 = vsel %vm1470, %v1454, %v1457
        %v1475 = vsel %vm1473, %v1463, 2102212464
        %v1476 = vsel %vm1472, %v1460, %v1475
        %v1477 = vsel %vm1471, %v1474, %v1476
        %v1478 = vsel %vm1470, %v1457, %v1460
        %v1479 = vsel %vm1473, %v1466, 920167782
        %v1480 = vsel %vm1472, %v1463, %v1479
        %v1481 = vsel %vm1471, %v1478, %v1480
        %v1482 = vsel %vm1470, %v1460, %v1463
        %v1483 = vsel %vm1473, %v1469, 1326507024
        %v1484 = vsel %vm1472, %v1466, %v1483
        %v1485 = vsel %vm1471, %v1482, %v1484
        %v1486 = vshll.u32 %v1446, 8
        %v1487 = vmul.u32.u64.compose %v1486, %v1485
        %v1488 = vextract.low.u32 %v1487
        %v1489 = vextract.high.u32 %v1487
        %v1490 = vmul.u32.u64.compose %v1486, %v1481
        %v1491 = vextract.low.u32 %v1490
        %v1492 = vextract.high.u32 %v1490
        %v1493 = vmul.u32 %v1486, %v1477
        %v1494 = vadd.s32 %v1489, %v1491
        %vm1495 = vc.u32 %v1489, %v1491
        %v1496 = vadd.s32 %v1492, 1
        %v1497 = vsel %vm1495, %v1496, %v1492
        %v1498 = vadd.s32 %v1493, %v1497
        %v1499 = vadd.s32 %v1498, 536870912
        %v1500 = vshrl.u32 %v1499, 30
        %v1501 = vshll.u32 %v1500, 30
        %v1502 = vsub.s32 %v1498, %v1501
        %vm1503 = vcmp.lt.s32.totalorder %v1502, 0
        %v1504 = vsub.s32 0, %v1502
        %v1505 = vsel %vm1503, %v1504, %v1502
        %v1506 = vclz %v1505
        %v1507 = vsub.s32 %v1506, 2
        %vm1508 = vcmp.gt.s32.totalorder 0, %v1507
        %v1509 = vsel %vm1508, 0, %v1507
        %v1510 = vsub.s32 32, %v1509
        %v1511 = vshll.u32 %v1502, %v1509
        %v1512 = vshrl.u32 %v1494, %v1510
        %v1513 = vor.u32 %v1511, %v1512
        %v1514 = vsub.s32 4294967266, %v1509
        %v1515 = vadd.s32 %v1514, 127
        %v1516 = vshll.u32 %v1515, 23
        %v1517 = vor.u32 4788187, %v1516
        %v1518 = vand.u32 2147483647, %v1517
        %v1520 = vcvt.s32.f32 %v1513
        %v1521 = vmul.f32 %v1520, %v1518
        %v1522 = vxor.u32 %v1521, 2147483648
        %v1523 = vsel %vm1440, %v1522, %v1521
        %v1524 = vsub.s32 4, %v1500
        %v1525 = vsel %vm1440, %v1524, %v1500
        %v1526 = vsel %vm1439, %v1417, %v1523
        %v1527 = vsel %vm1439, 0, %v1525
        %v1528 = vcosq.f32.pop %v1526
        %v1529 = vsinq.f32.pop %v1526
        %vm1530 = vweird.f32 %v1417
        %v1531 = vadd.s32 %v1527, 3
        %v1532 = vand.u32 %v1531, 3
        %vm1533 = vcmp.lt.s32.totalorder %v1532, 2
        %vm1534 = vcmp.eq.s32.totalorder %v1532, 0
        %v1535 = vxor.u32 %v1529, 2147483648
        %v1536 = vsel %vm1534, %v1528, %v1535
        %vm1537 = vcmp.eq.s32.totalorder %v1532, 2
        %v1538 = vxor.u32 %v1528, 2147483648
        %v1539 = vsel %vm1537, %v1538, %v1529
        %v1540 = vsel %vm1533, %v1536, %v1539
        %v1541 = vsel %vm1530, nan, %v1540
        %v1542 = vand.u32 2147483647, %v1423
        %vm1543 = vcmp.le.f32.partialorder %v1542, 0.7853982
        %vm1544 = vcmp.lt.s32.totalorder %v1423, 0
        %v1545 = vand.u32 %v1423, 2139095040
        %v1546 = vshrl.u32 %v1545, 23
        %v1547 = vsub.s32 %v1546, 127
        %v1548 = vand.u32 2147483647, %v1423
        %v1549 = vand.u32 %v1548, 8388607
        %v1550 = vor.u32 %v1549, 8388608
        %v1551 = vsub.s32 0, %v1550
        %v1552 = vadd.s32 %v1547, 1
        %vm1553 = vcmp.gt.s32.totalorder %v1552, 0
        %v1554 = vsel %vm1553, %v1552, 0
        %v1555 = vshrl.u32 %v1554, 5
        %v1556 = vand.u32 %v1554, 31
        %v1557 = vsub.s32 32, %v1556
        %v1558 = vshrl.u32 683565275, %v1557
        %v1559 = vshll.u32 683565275, %v1556
        %v1560 = vshrl.u32 2475754826, %v1557
        %v1561 = vor.u32 %v1559, %v1560
        %v1562 = vshll.u32 2475754826, %v1556
        %v1563 = vshrl.u32 2131351028, %v1557
        %v1564 = vor.u32 %v1562, %v1563
        %v1565 = vshll.u32 2131351028, %v1556
        %v1566 = vshrl.u32 2102212464, %v1557
        %v1567 = vor.u32 %v1565, %v1566
        %v1568 = vshll.u32 2102212464, %v1556
        %v1569 = vshrl.u32 920167782, %v1557
        %v1570 = vor.u32 %v1568, %v1569
        %v1571 = vshll.u32 920167782, %v1556
        %v1572 = vshrl.u32 1326507024, %v1557
        %v1573 = vor.u32 %v1571, %v1572
        %vm1574 = vcmp.lt.s32.totalorder %v1555, 1
        %vm1575 = vcmp.lt.s32.totalorder %v1555, 2
        %vm1576 = vcmp.lt.s32.totalorder %v1555, 3
        %vm1577 = vcmp.lt.s32.totalorder %v1555, 4
        %v1578 = vsel %vm1574, %v1558, %v1561
        %v1579 = vsel %vm1577, %v1567, 2102212464
        %v1580 = vsel %vm1576, %v1564, %v1579
        %v1581 = vsel %vm1575, %v1578, %v1580
        %v1582 = vsel %vm1574, %v1561, %v1564
        %v1583 = vsel %vm1577, %v1570, 920167782
        %v1584 = vsel %vm1576, %v1567, %v1583
        %v1585 = vsel %vm1575, %v1582, %v1584
        %v1586 = vsel %vm1574, %v1564, %v1567
        %v1587 = vsel %vm1577, %v1573, 1326507024
        %v1588 = vsel %vm1576, %v1570, %v1587
        %v1589 = vsel %vm1575, %v1586, %v1588
        %v1590 = vshll.u32 %v1550, 8
        %v1591 = vmul.u32.u64.compose %v1590, %v1589
        %v1592 = vextract.low.u32 %v1591
        %v1593 = vextract.high.u32 %v1591
        %v1594 = vmul.u32.u64.compose %v1590, %v1585
        %v1595 = vextract.low.u32 %v1594
        %v1596 = vextract.high.u32 %v1594
        %v1597 = vmul.u32 %v1590, %v1581
        %v1598 = vadd.s32 %v1593, %v1595
        %vm1599 = vc.u32 %v1593, %v1595
        %v1600 = vadd.s32 %v1596, 1
        %v1601 = vsel %vm1599, %v1600, %v1596
        %v1602 = vadd.s32 %v1597, %v1601
        %v1603 = vadd.s32 %v1602, 536870912
        %v1604 = vshrl.u32 %v1603, 30
        %v1605 = vshll.u32 %v1604, 30
        %v1606 = vsub.s32 %v1602, %v1605
        %vm1607 = vcmp.lt.s32.totalorder %v1606, 0
        %v1608 = vsub.s32 0, %v1606
        %v1609 = vsel %vm1607, %v1608, %v1606
        %v1610 = vclz %v1609
        %v1611 = vsub.s32 %v1610, 2
        %vm1612 = vcmp.gt.s32.totalorder 0, %v1611
        %v1613 = vsel %vm1612, 0, %v1611
        %v1614 = vsub.s32 32, %v1613
        %v1615 = vshll.u32 %v1606, %v1613
        %v1616 = vshrl.u32 %v1598, %v1614
        %v1617 = vor.u32 %v1615, %v1616
        %v1618 = vsub.s32 4294967266, %v1613
        %v1619 = vadd.s32 %v1618, 127
        %v1620 = vshll.u32 %v1619, 23
        %v1621 = vor.u32 4788187, %v1620
        %v1622 = vand.u32 2147483647, %v1621
        %v1624 = vcvt.s32.f32 %v1617
        %v1625 = vmul.f32 %v1624, %v1622
        %v1626 = vxor.u32 %v1625, 2147483648
        %v1627 = vsel %vm1544, %v1626, %v1625
        %v1628 = vsub.s32 4, %v1604
        %v1629 = vsel %vm1544, %v1628, %v1604
        %v1630 = vsel %vm1543, %v1423, %v1627
        %v1631 = vsel %vm1543, 0, %v1629
        %v1632 = vcosq.f32.pop %v1630
        %v1633 = vsinq.f32.pop %v1630
        %vm1634 = vweird.f32 %v1423
        %v1635 = vadd.s32 %v1631, 3
        %v1636 = vand.u32 %v1635, 3
        %vm1637 = vcmp.lt.s32.totalorder %v1636, 2
        %vm1638 = vcmp.eq.s32.totalorder %v1636, 0
        %v1639 = vxor.u32 %v1633, 2147483648
        %v1640 = vsel %vm1638, %v1632, %v1639
        %vm1641 = vcmp.eq.s32.totalorder %v1636, 2
        %v1642 = vxor.u32 %v1632, 2147483648
        %v1643 = vsel %vm1641, %v1642, %v1633
        %v1644 = vsel %vm1637, %v1640, %v1643
        %v1645 = vsel %vm1634, nan, %v1644
        %v1646 = vand.u32 2147483647, %v1429
        %vm1647 = vcmp.le.f32.partialorder %v1646, 0.7853982
        %vm1648 = vcmp.lt.s32.totalorder %v1429, 0
        %v1649 = vand.u32 %v1429, 2139095040
        %v1650 = vshrl.u32 %v1649, 23
        %v1651 = vsub.s32 %v1650, 127
        %v1652 = vand.u32 2147483647, %v1429
        %v1653 = vand.u32 %v1652, 8388607
        %v1654 = vor.u32 %v1653, 8388608
        %v1655 = vsub.s32 0, %v1654
        %v1656 = vadd.s32 %v1651, 1
        %vm1657 = vcmp.gt.s32.totalorder %v1656, 0
        %v1658 = vsel %vm1657, %v1656, 0
        %v1659 = vshrl.u32 %v1658, 5
        %v1660 = vand.u32 %v1658, 31
        %v1661 = vsub.s32 32, %v1660
        %v1662 = vshrl.u32 683565275, %v1661
        %v1663 = vshll.u32 683565275, %v1660
        %v1664 = vshrl.u32 2475754826, %v1661
        %v1665 = vor.u32 %v1663, %v1664
        %v1666 = vshll.u32 2475754826, %v1660
        %v1667 = vshrl.u32 2131351028, %v1661
        %v1668 = vor.u32 %v1666, %v1667
        %v1669 = vshll.u32 2131351028, %v1660
        %v1670 = vshrl.u32 2102212464, %v1661
        %v1671 = vor.u32 %v1669, %v1670
        %v1672 = vshll.u32 2102212464, %v1660
        %v1673 = vshrl.u32 920167782, %v1661
        %v1674 = vor.u32 %v1672, %v1673
        %v1675 = vshll.u32 920167782, %v1660
        %v1676 = vshrl.u32 1326507024, %v1661
        %v1677 = vor.u32 %v1675, %v1676
        %vm1678 = vcmp.lt.s32.totalorder %v1659, 1
        %vm1679 = vcmp.lt.s32.totalorder %v1659, 2
        %vm1680 = vcmp.lt.s32.totalorder %v1659, 3
        %vm1681 = vcmp.lt.s32.totalorder %v1659, 4
        %v1682 = vsel %vm1678, %v1662, %v1665
        %v1683 = vsel %vm1681, %v1671, 2102212464
        %v1684 = vsel %vm1680, %v1668, %v1683
        %v1685 = vsel %vm1679, %v1682, %v1684
        %v1686 = vsel %vm1678, %v1665, %v1668
        %v1687 = vsel %vm1681, %v1674, 920167782
        %v1688 = vsel %vm1680, %v1671, %v1687
        %v1689 = vsel %vm1679, %v1686, %v1688
        %v1690 = vsel %vm1678, %v1668, %v1671
        %v1691 = vsel %vm1681, %v1677, 1326507024
        %v1692 = vsel %vm1680, %v1674, %v1691
        %v1693 = vsel %vm1679, %v1690, %v1692
        %v1694 = vshll.u32 %v1654, 8
        %v1695 = vmul.u32.u64.compose %v1694, %v1693
        %v1696 = vextract.low.u32 %v1695
        %v1697 = vextract.high.u32 %v1695
        %v1698 = vmul.u32.u64.compose %v1694, %v1689
        %v1699 = vextract.low.u32 %v1698
        %v1700 = vextract.high.u32 %v1698
        %v1701 = vmul.u32 %v1694, %v1685
        %v1702 = vadd.s32 %v1697, %v1699
        %vm1703 = vc.u32 %v1697, %v1699
        %v1704 = vadd.s32 %v1700, 1
        %v1705 = vsel %vm1703, %v1704, %v1700
        %v1706 = vadd.s32 %v1701, %v1705
        %v1707 = vadd.s32 %v1706, 536870912
        %v1708 = vshrl.u32 %v1707, 30
        %v1709 = vshll.u32 %v1708, 30
        %v1710 = vsub.s32 %v1706, %v1709
        %vm1711 = vcmp.lt.s32.totalorder %v1710, 0
        %v1712 = vsub.s32 0, %v1710
        %v1713 = vsel %vm1711, %v1712, %v1710
        %v1714 = vclz %v1713
        %v1715 = vsub.s32 %v1714, 2
        %vm1716 = vcmp.gt.s32.totalorder 0, %v1715
        %v1717 = vsel %vm1716, 0, %v1715
        %v1718 = vsub.s32 32, %v1717
        %v1719 = vshll.u32 %v1710, %v1717
        %v1720 = vshrl.u32 %v1702, %v1718
        %v1721 = vor.u32 %v1719, %v1720
        %v1722 = vsub.s32 4294967266, %v1717
        %v1723 = vadd.s32 %v1722, 127
        %v1724 = vshll.u32 %v1723, 23
        %v1725 = vor.u32 4788187, %v1724
        %v1726 = vand.u32 2147483647, %v1725
        %v1728 = vcvt.s32.f32 %v1721
        %v1729 = vmul.f32 %v1728, %v1726
        %v1730 = vxor.u32 %v1729, 2147483648
        %v1731 = vsel %vm1648, %v1730, %v1729
        %v1732 = vsub.s32 4, %v1708
        %v1733 = vsel %vm1648, %v1732, %v1708
        %v1734 = vsel %vm1647, %v1429, %v1731
        %v1735 = vsel %vm1647, 0, %v1733
        %v1736 = vcosq.f32.pop %v1734
        %v1737 = vsinq.f32.pop %v1734
        %vm1738 = vweird.f32 %v1429
        %v1739 = vadd.s32 %v1735, 3
        %v1740 = vand.u32 %v1739, 3
        %vm1741 = vcmp.lt.s32.totalorder %v1740, 2
        %vm1742 = vcmp.eq.s32.totalorder %v1740, 0
        %v1743 = vxor.u32 %v1737, 2147483648
        %v1744 = vsel %vm1742, %v1736, %v1743
        %vm1745 = vcmp.eq.s32.totalorder %v1740, 2
        %v1746 = vxor.u32 %v1736, 2147483648
        %v1747 = vsel %vm1745, %v1746, %v1737
        %v1748 = vsel %vm1741, %v1744, %v1747
        %v1749 = vsel %vm1738, nan, %v1748
        %v1750 = vand.u32 2147483647, %v1435
        %vm1751 = vcmp.le.f32.partialorder %v1750, 0.7853982
        %vm1752 = vcmp.lt.s32.totalorder %v1435, 0
        %v1753 = vand.u32 %v1435, 2139095040
        %v1754 = vshrl.u32 %v1753, 23
        %v1755 = vsub.s32 %v1754, 127
        %v1756 = vand.u32 2147483647, %v1435
        %v1757 = vand.u32 %v1756, 8388607
        %v1758 = vor.u32 %v1757, 8388608
        %v1759 = vsub.s32 0, %v1758
        %v1760 = vadd.s32 %v1755, 1
        %vm1761 = vcmp.gt.s32.totalorder %v1760, 0
        %v1762 = vsel %vm1761, %v1760, 0
        %v1763 = vshrl.u32 %v1762, 5
        %v1764 = vand.u32 %v1762, 31
        %v1765 = vsub.s32 32, %v1764
        %v1766 = vshrl.u32 683565275, %v1765
        %v1767 = vshll.u32 683565275, %v1764
        %v1768 = vshrl.u32 2475754826, %v1765
        %v1769 = vor.u32 %v1767, %v1768
        %v1770 = vshll.u32 2475754826, %v1764
        %v1771 = vshrl.u32 2131351028, %v1765
        %v1772 = vor.u32 %v1770, %v1771
        %v1773 = vshll.u32 2131351028, %v1764
        %v1774 = vshrl.u32 2102212464, %v1765
        %v1775 = vor.u32 %v1773, %v1774
        %v1776 = vshll.u32 2102212464, %v1764
        %v1777 = vshrl.u32 920167782, %v1765
        %v1778 = vor.u32 %v1776, %v1777
        %v1779 = vshll.u32 920167782, %v1764
        %v1780 = vshrl.u32 1326507024, %v1765
        %v1781 = vor.u32 %v1779, %v1780
        %vm1782 = vcmp.lt.s32.totalorder %v1763, 1
        %vm1783 = vcmp.lt.s32.totalorder %v1763, 2
        %vm1784 = vcmp.lt.s32.totalorder %v1763, 3
        %vm1785 = vcmp.lt.s32.totalorder %v1763, 4
        %v1786 = vsel %vm1782, %v1766, %v1769
        %v1787 = vsel %vm1785, %v1775, 2102212464
        %v1788 = vsel %vm1784, %v1772, %v1787
        %v1789 = vsel %vm1783, %v1786, %v1788
        %v1790 = vsel %vm1782, %v1769, %v1772
        %v1791 = vsel %vm1785, %v1778, 920167782
        %v1792 = vsel %vm1784, %v1775, %v1791
        %v1793 = vsel %vm1783, %v1790, %v1792
        %v1794 = vsel %vm1782, %v1772, %v1775
        %v1795 = vsel %vm1785, %v1781, 1326507024
        %v1796 = vsel %vm1784, %v1778, %v1795
        %v1797 = vsel %vm1783, %v1794, %v1796
        %v1798 = vshll.u32 %v1758, 8
        %v1799 = vmul.u32.u64.compose %v1798, %v1797
        %v1800 = vextract.low.u32 %v1799
        %v1801 = vextract.high.u32 %v1799
        %v1802 = vmul.u32.u64.compose %v1798, %v1793
        %v1803 = vextract.low.u32 %v1802
        %v1804 = vextract.high.u32 %v1802
        %v1805 = vmul.u32 %v1798, %v1789
        %v1806 = vadd.s32 %v1801, %v1803
        %vm1807 = vc.u32 %v1801, %v1803
        %v1808 = vadd.s32 %v1804, 1
        %v1809 = vsel %vm1807, %v1808, %v1804
        %v1810 = vadd.s32 %v1805, %v1809
        %v1811 = vadd.s32 %v1810, 536870912
        %v1812 = vshrl.u32 %v1811, 30
        %v1813 = vshll.u32 %v1812, 30
        %v1814 = vsub.s32 %v1810, %v1813
        %vm1815 = vcmp.lt.s32.totalorder %v1814, 0
        %v1816 = vsub.s32 0, %v1814
        %v1817 = vsel %vm1815, %v1816, %v1814
        %v1818 = vclz %v1817
        %v1819 = vsub.s32 %v1818, 2
        %vm1820 = vcmp.gt.s32.totalorder 0, %v1819
        %v1821 = vsel %vm1820, 0, %v1819
        %v1822 = vsub.s32 32, %v1821
        %v1823 = vshll.u32 %v1814, %v1821
        %v1824 = vshrl.u32 %v1806, %v1822
        %v1825 = vor.u32 %v1823, %v1824
        %v1826 = vsub.s32 4294967266, %v1821
        %v1827 = vadd.s32 %v1826, 127
        %v1828 = vshll.u32 %v1827, 23
        %v1829 = vor.u32 4788187, %v1828
        %v1830 = vand.u32 2147483647, %v1829
        %v1832 = vcvt.s32.f32 %v1825
        %v1833 = vmul.f32 %v1832, %v1830
        %v1834 = vxor.u32 %v1833, 2147483648
        %v1835 = vsel %vm1752, %v1834, %v1833
        %v1836 = vsub.s32 4, %v1812
        %v1837 = vsel %vm1752, %v1836, %v1812
        %v1838 = vsel %vm1751, %v1435, %v1835
        %v1839 = vsel %vm1751, 0, %v1837
        %v1840 = vcosq.f32.pop %v1838
        %v1841 = vsinq.f32.pop %v1838
        %vm1842 = vweird.f32 %v1435
        %v1843 = vadd.s32 %v1839, 3
        %v1844 = vand.u32 %v1843, 3
        %vm1845 = vcmp.lt.s32.totalorder %v1844, 2
        %vm1846 = vcmp.eq.s32.totalorder %v1844, 0
        %v1847 = vxor.u32 %v1841, 2147483648
        %v1848 = vsel %vm1846, %v1840, %v1847
        %vm1849 = vcmp.eq.s32.totalorder %v1844, 2
        %v1850 = vxor.u32 %v1840, 2147483648
        %v1851 = vsel %vm1849, %v1850, %v1841
        %v1852 = vsel %vm1845, %v1848, %v1851
        %v1853 = vsel %vm1842, nan, %v1852
        %s1854 = scalar_lea.vmem %s2, 32
        %v1855 = vld [vmem:[%s1854] sm:$0xff]
        %v1856 = vld [vmem:[%s1854 + $0x8] sm:$0xff]
        %v1857 = vld [vmem:[%s1854 + $0x10] sm:$0xff]
        %v1858 = vld [vmem:[%s1854 + $0x18] sm:$0xff]
        %1860 = vset.pattern.permute.xlu0 32
        %1861 = vperm.xlu0 %1860, %v1855
        %v1862 = vpop.permute.xlu0 %1861
        %1865 = vset.pattern.permute.xlu0 32
        %1866 = vperm.xlu0 %1865, %v1856
        %v1867 = vpop.permute.xlu0 %1866
        %1870 = vset.pattern.permute.xlu0 32
        %1871 = vperm.xlu0 %1870, %v1857
        %v1872 = vpop.permute.xlu0 %1871
        %1875 = vset.pattern.permute.xlu0 32
        %1876 = vperm.xlu0 %1875, %v1858
        %v1877 = vpop.permute.xlu0 %1876
        %v1879 = vsel %vm815, %v1855, 0
        %v1881 = vsel %vm815, %v1856, 0
        %v1883 = vsel %vm815, %v1857, 0
        %v1885 = vsel %vm815, %v1858, 0
        %1887 = vmatprep.subr.mxu0 0.0
        %1888 = vmatpush1.msra.mxu0 0.0
        %1889 = vmatprep.subr.mxu0 0.0
        %1890 = vmatpush1.msra.mxu0 0.0
        %1891 = vmatprep.subr.mxu0 0.0
        %1892 = vmatpush1.msra.mxu0 0.0
        %1893 = vmatprep.subr.mxu0 0.0
        %1894 = vmatpush1.msra.mxu0 0.0
        %1895 = vmatprep.subr.mxu0 0.0
        %1896 = vmatpush1.msra.mxu0 0.0
        %1897 = vmatprep.subr.mxu0 0.0
        %1898 = vmatpush1.msra.mxu0 0.0
        %1899 = vmatprep.subr.mxu0 0.0
        %1900 = vmatpush1.msra.mxu0 0.0
        %1901 = vmatprep.subr.mxu0 0.0
        %1902 = vmatpush1.msra.mxu0 0.0
        %1903 = vmatprep.subr.mxu0 0.0
        %1904 = vmatpush1.msra.mxu0 0.0
        %1905 = vmatprep.subr.mxu0 0.0
        %1906 = vmatpush1.msra.mxu0 0.0
        %1907 = vmatprep.subr.mxu0 0.0
        %1908 = vmatpush1.msra.mxu0 0.0
        %1909 = vmatprep.subr.mxu0 0.0
        %1910 = vmatpush1.msra.mxu0 0.0
        %1911 = vmatprep.subr.mxu0 0.0
        %v1912 = vand.u32 %v1853, 4294901760
        %1913 = vmatpush1.msra.mxu0 %v1912
        %1914 = vmatprep.subr.mxu0 0.0
        %v1915 = vand.u32 %v1749, 4294901760
        %1916 = vmatpush1.msra.mxu0 %v1915
        %1917 = vmatprep.subr.mxu0 0.0
        %v1918 = vand.u32 %v1645, 4294901760
        %1919 = vmatpush1.msra.mxu0 %v1918
        %1920 = vmatprep.subr.mxu0 0.0
        %v1921 = vand.u32 %v1541, 4294901760
        %1922 = vmatpush1.msra.mxu0 %v1921
        %1923 = vmatprep.subr.mxu0 0.0
        %1924 = vmatpush2.msra.mxu0 0.0
        %1925 = vmatprep.subr.mxu0 0.0
        %1926 = vmatpush2.msra.mxu0 0.0
        %1927 = vmatprep.subr.mxu0 0.0
        %1928 = vmatpush2.msra.mxu0 0.0
        %1929 = vmatprep.subr.mxu0 0.0
        %1930 = vmatpush2.msra.mxu0 0.0
        %1931 = vmatprep.subr.mxu0 0.0
        %1932 = vmatpush2.msra.mxu0 0.0
        %1933 = vmatprep.subr.mxu0 0.0
        %1934 = vmatpush2.msra.mxu0 0.0
        %1935 = vmatprep.subr.mxu0 0.0
        %1936 = vmatpush2.msra.mxu0 0.0
        %1937 = vmatprep.subr.mxu0 0.0
        %1938 = vmatpush2.msra.mxu0 0.0
        %1939 = vmatprep.subr.mxu0 0.0
        %1940 = vmatpush2.msra.mxu0 0.0
        %1941 = vmatprep.subr.mxu0 0.0
        %1942 = vmatpush2.msra.mxu0 0.0
        %1943 = vmatprep.subr.mxu0 0.0
        %1944 = vmatpush2.msra.mxu0 0.0
        %1945 = vmatprep.subr.mxu0 0.0
        %1946 = vmatpush2.msra.mxu0 0.0
        %1947 = vmatprep.subr.mxu0 0.0
        %1948 = vmatpush2.msra.mxu0 0.0
        %1949 = vmatprep.subr.mxu0 0.0
        %1950 = vmatpush2.msra.mxu0 0.0
        %1951 = vmatprep.subr.mxu0 0.0
        %1952 = vmatpush2.msra.mxu0 0.0
        %1953 = vmatprep.subr.mxu0 0.0
        %1954 = vmatpush2.msra.mxu0 0.0
        %1955 = vmatprep.mubr.f32.mxu0 0.0
        %v1956 = vand.u32 %v1879, 4294901760
        %v1957 = vsub.f32 %v1879, %v1956
        %v1958 = vand.u32 %v1957, 4294901760
        %v1959 = vsub.f32 %v1957, %v1958
        %v1960 = vand.u32 %v1959, 4294901760
        %1961 = vmatmul.mubr.f32.gmra.mxu0 %v1960
        %v1962 = vpop.f32.mrf.mxu0
        %v1963 = vadd.f32 %v1862, %v1962
        %v1964 = vpop.f32.mrf.mxu0
        %1965 = vmatprep.mubr.f32.mxu0 0.0
        %v1966 = vand.u32 %v1881, 4294901760
        %v1967 = vsub.f32 %v1881, %v1966
        %v1968 = vand.u32 %v1967, 4294901760
        %v1969 = vsub.f32 %v1967, %v1968
        %v1970 = vand.u32 %v1969, 4294901760
        %1971 = vmatmul.mubr.f32.gmra.mxu0 %v1970
        %v1972 = vpop.f32.mrf.mxu0
        %v1973 = vadd.f32 %v1867, %v1972
        %v1974 = vpop.f32.mrf.mxu0
        %1975 = vmatprep.mubr.f32.mxu0 0.0
        %v1976 = vand.u32 %v1883, 4294901760
        %v1977 = vsub.f32 %v1883, %v1976
        %v1978 = vand.u32 %v1977, 4294901760
        %v1979 = vsub.f32 %v1977, %v1978
        %v1980 = vand.u32 %v1979, 4294901760
        %1981 = vmatmul.mubr.f32.gmra.mxu0 %v1980
        %v1982 = vpop.f32.mrf.mxu0
        %v1983 = vadd.f32 %v1872, %v1982
        %v1984 = vpop.f32.mrf.mxu0
        %1985 = vmatprep.mubr.f32.mxu0 0.0
        %v1986 = vand.u32 %v1885, 4294901760
        %v1987 = vsub.f32 %v1885, %v1986
        %v1988 = vand.u32 %v1987, 4294901760
        %v1989 = vsub.f32 %v1987, %v1988
        %v1990 = vand.u32 %v1989, 4294901760
        %1991 = vmatmul.mubr.f32.gmra.mxu0 %v1990
        %v1992 = vpop.f32.mrf.mxu0
        %v1993 = vadd.f32 %v1877, %v1992
        %v1994 = vpop.f32.mrf.mxu0
        %1995 = vdwg.mxu0
        %1996 = vmatprep.subr.mxu0 0.0
        %1997 = vmatpush1.msra.mxu0 0.0
        %1998 = vmatprep.subr.mxu0 0.0
        %1999 = vmatpush1.msra.mxu0 0.0
        %2000 = vmatprep.subr.mxu0 0.0
        %2001 = vmatpush1.msra.mxu0 0.0
        %2002 = vmatprep.subr.mxu0 0.0
        %2003 = vmatpush1.msra.mxu0 0.0
        %2004 = vmatprep.subr.mxu0 0.0
        %2005 = vmatpush1.msra.mxu0 0.0
        %2006 = vmatprep.subr.mxu0 0.0
        %2007 = vmatpush1.msra.mxu0 0.0
        %2008 = vmatprep.subr.mxu0 0.0
        %2009 = vmatpush1.msra.mxu0 0.0
        %2010 = vmatprep.subr.mxu0 0.0
        %2011 = vmatpush1.msra.mxu0 0.0
        %2012 = vmatprep.subr.mxu0 0.0
        %2013 = vmatpush1.msra.mxu0 0.0
        %2014 = vmatprep.subr.mxu0 0.0
        %2015 = vmatpush1.msra.mxu0 0.0
        %2016 = vmatprep.subr.mxu0 0.0
        %2017 = vmatpush1.msra.mxu0 0.0
        %2018 = vmatprep.subr.mxu0 0.0
        %2019 = vmatpush1.msra.mxu0 0.0
        %2020 = vmatprep.subr.mxu0 0.0
        %v2021 = vand.u32 %v1853, 4294901760
        %v2022 = vsub.f32 %v1853, %v2021
        %v2023 = vand.u32 %v2022, 4294901760
        %v2024 = vsub.f32 %v2022, %v2023
        %v2025 = vand.u32 %v2024, 4294901760
        %2026 = vmatpush1.msra.mxu0 %v2025
        %2027 = vmatprep.subr.mxu0 0.0
        %v2028 = vand.u32 %v1749, 4294901760
        %v2029 = vsub.f32 %v1749, %v2028
        %v2030 = vand.u32 %v2029, 4294901760
        %v2031 = vsub.f32 %v2029, %v2030
        %v2032 = vand.u32 %v2031, 4294901760
        %2033 = vmatpush1.msra.mxu0 %v2032
        %2034 = vmatprep.subr.mxu0 0.0
        %v2035 = vand.u32 %v1645, 4294901760
        %v2036 = vsub.f32 %v1645, %v2035
        %v2037 = vand.u32 %v2036, 4294901760
        %v2038 = vsub.f32 %v2036, %v2037
        %v2039 = vand.u32 %v2038, 4294901760
        %2040 = vmatpush1.msra.mxu0 %v2039
        %2041 = vmatprep.subr.mxu0 0.0
        %v2042 = vand.u32 %v1541, 4294901760
        %v2043 = vsub.f32 %v1541, %v2042
        %v2044 = vand.u32 %v2043, 4294901760
        %v2045 = vsub.f32 %v2043, %v2044
        %v2046 = vand.u32 %v2045, 4294901760
        %2047 = vmatpush1.msra.mxu0 %v2046
        %2048 = vmatprep.subr.mxu0 0.0
        %2049 = vmatpush2.msra.mxu0 0.0
        %2050 = vmatprep.subr.mxu0 0.0
        %2051 = vmatpush2.msra.mxu0 0.0
        %2052 = vmatprep.subr.mxu0 0.0
        %2053 = vmatpush2.msra.mxu0 0.0
        %2054 = vmatprep.subr.mxu0 0.0
        %2055 = vmatpush2.msra.mxu0 0.0
        %2056 = vmatprep.subr.mxu0 0.0
        %2057 = vmatpush2.msra.mxu0 0.0
        %2058 = vmatprep.subr.mxu0 0.0
        %2059 = vmatpush2.msra.mxu0 0.0
        %2060 = vmatprep.subr.mxu0 0.0
        %2061 = vmatpush2.msra.mxu0 0.0
        %2062 = vmatprep.subr.mxu0 0.0
        %2063 = vmatpush2.msra.mxu0 0.0
        %2064 = vmatprep.subr.mxu0 0.0
        %2065 = vmatpush2.msra.mxu0 0.0
        %2066 = vmatprep.subr.mxu0 0.0
        %2067 = vmatpush2.msra.mxu0 0.0
        %2068 = vmatprep.subr.mxu0 0.0
        %2069 = vmatpush2.msra.mxu0 0.0
        %2070 = vmatprep.subr.mxu0 0.0
        %2071 = vmatpush2.msra.mxu0 0.0
        %2072 = vmatprep.subr.mxu0 0.0
        %2073 = vmatpush2.msra.mxu0 0.0
        %2074 = vmatprep.subr.mxu0 0.0
        %2075 = vmatpush2.msra.mxu0 0.0
        %2076 = vmatprep.subr.mxu0 0.0
        %2077 = vmatpush2.msra.mxu0 0.0
        %2078 = vmatprep.subr.mxu0 0.0
        %2079 = vmatpush2.msra.mxu0 0.0
        %2080 = vmatprep.mubr.f32.mxu0 0.0
        %v2081 = vand.u32 %v1879, 4294901760
        %2082 = vmatmul.mubr.f32.gmra.mxu0 %v2081
        %v2083 = vpop.f32.mrf.mxu0
        %v2084 = vadd.f32 %v1963, %v2083
        %v2085 = vpop.f32.mrf.mxu0
        %2086 = vmatprep.mubr.f32.mxu0 0.0
        %v2087 = vand.u32 %v1881, 4294901760
        %2088 = vmatmul.mubr.f32.gmra.mxu0 %v2087
        %v2089 = vpop.f32.mrf.mxu0
        %v2090 = vadd.f32 %v1973, %v2089
        %v2091 = vpop.f32.mrf.mxu0
        %2092 = vmatprep.mubr.f32.mxu0 0.0
        %v2093 = vand.u32 %v1883, 4294901760
        %2094 = vmatmul.mubr.f32.gmra.mxu0 %v2093
        %v2095 = vpop.f32.mrf.mxu0
        %v2096 = vadd.f32 %v1983, %v2095
        %v2097 = vpop.f32.mrf.mxu0
        %2098 = vmatprep.mubr.f32.mxu0 0.0
        %v2099 = vand.u32 %v1885, 4294901760
        %2100 = vmatmul.mubr.f32.gmra.mxu0 %v2099
        %v2101 = vpop.f32.mrf.mxu0
        %v2102 = vadd.f32 %v1993, %v2101
        %v2103 = vpop.f32.mrf.mxu0
        %2104 = vdwg.mxu0
        %2105 = vmatprep.subr.mxu0 0.0
        %2106 = vmatpush1.msra.mxu0 0.0
        %2107 = vmatprep.subr.mxu0 0.0
        %2108 = vmatpush1.msra.mxu0 0.0
        %2109 = vmatprep.subr.mxu0 0.0
        %2110 = vmatpush1.msra.mxu0 0.0
        %2111 = vmatprep.subr.mxu0 0.0
        %2112 = vmatpush1.msra.mxu0 0.0
        %2113 = vmatprep.subr.mxu0 0.0
        %2114 = vmatpush1.msra.mxu0 0.0
        %2115 = vmatprep.subr.mxu0 0.0
        %2116 = vmatpush1.msra.mxu0 0.0
        %2117 = vmatprep.subr.mxu0 0.0
        %2118 = vmatpush1.msra.mxu0 0.0
        %2119 = vmatprep.subr.mxu0 0.0
        %2120 = vmatpush1.msra.mxu0 0.0
        %2121 = vmatprep.subr.mxu0 0.0
        %2122 = vmatpush1.msra.mxu0 0.0
        %2123 = vmatprep.subr.mxu0 0.0
        %2124 = vmatpush1.msra.mxu0 0.0
        %2125 = vmatprep.subr.mxu0 0.0
        %2126 = vmatpush1.msra.mxu0 0.0
        %2127 = vmatprep.subr.mxu0 0.0
        %2128 = vmatpush1.msra.mxu0 0.0
        %2129 = vmatprep.subr.mxu0 0.0
        %v2130 = vand.u32 %v1853, 4294901760
        %v2131 = vsub.f32 %v1853, %v2130
        %2132 = vmatpush1.msra.mxu0 %v2131
        %2133 = vmatprep.subr.mxu0 0.0
        %v2134 = vand.u32 %v1749, 4294901760
        %v2135 = vsub.f32 %v1749, %v2134
        %2136 = vmatpush1.msra.mxu0 %v2135
        %2137 = vmatprep.subr.mxu0 0.0
        %v2138 = vand.u32 %v1645, 4294901760
        %v2139 = vsub.f32 %v1645, %v2138
        %2140 = vmatpush1.msra.mxu0 %v2139
        %2141 = vmatprep.subr.mxu0 0.0
        %v2142 = vand.u32 %v1541, 4294901760
        %v2143 = vsub.f32 %v1541, %v2142
        %2144 = vmatpush1.msra.mxu0 %v2143
        %2145 = vmatprep.subr.mxu0 0.0
        %2146 = vmatpush2.msra.mxu0 0.0
        %2147 = vmatprep.subr.mxu0 0.0
        %2148 = vmatpush2.msra.mxu0 0.0
        %2149 = vmatprep.subr.mxu0 0.0
        %2150 = vmatpush2.msra.mxu0 0.0
        %2151 = vmatprep.subr.mxu0 0.0
        %2152 = vmatpush2.msra.mxu0 0.0
        %2153 = vmatprep.subr.mxu0 0.0
        %2154 = vmatpush2.msra.mxu0 0.0
        %2155 = vmatprep.subr.mxu0 0.0
        %2156 = vmatpush2.msra.mxu0 0.0
        %2157 = vmatprep.subr.mxu0 0.0
        %2158 = vmatpush2.msra.mxu0 0.0
        %2159 = vmatprep.subr.mxu0 0.0
        %2160 = vmatpush2.msra.mxu0 0.0
        %2161 = vmatprep.subr.mxu0 0.0
        %2162 = vmatpush2.msra.mxu0 0.0
        %2163 = vmatprep.subr.mxu0 0.0
        %2164 = vmatpush2.msra.mxu0 0.0
        %2165 = vmatprep.subr.mxu0 0.0
        %2166 = vmatpush2.msra.mxu0 0.0
        %2167 = vmatprep.subr.mxu0 0.0
        %2168 = vmatpush2.msra.mxu0 0.0
        %2169 = vmatprep.subr.mxu0 0.0
        %2170 = vmatpush2.msra.mxu0 0.0
        %2171 = vmatprep.subr.mxu0 0.0
        %2172 = vmatpush2.msra.mxu0 0.0
        %2173 = vmatprep.subr.mxu0 0.0
        %2174 = vmatpush2.msra.mxu0 0.0
        %2175 = vmatprep.subr.mxu0 0.0
        %2176 = vmatpush2.msra.mxu0 0.0
        %2177 = vmatprep.mubr.f32.mxu0 0.0
        %v2178 = vand.u32 %v1879, 4294901760
        %v2179 = vsub.f32 %v1879, %v2178
        %2180 = vmatmul.mubr.f32.gmra.mxu0 %v2179
        %v2181 = vpop.f32.mrf.mxu0
        %v2182 = vadd.f32 %v2084, %v2181
        %v2183 = vpop.f32.mrf.mxu0
        %2184 = vmatprep.mubr.f32.mxu0 0.0
        %v2185 = vand.u32 %v1881, 4294901760
        %v2186 = vsub.f32 %v1881, %v2185
        %2187 = vmatmul.mubr.f32.gmra.mxu0 %v2186
        %v2188 = vpop.f32.mrf.mxu0
        %v2189 = vadd.f32 %v2090, %v2188
        %v2190 = vpop.f32.mrf.mxu0
        %2191 = vmatprep.mubr.f32.mxu0 0.0
        %v2192 = vand.u32 %v1883, 4294901760
        %v2193 = vsub.f32 %v1883, %v2192
        %2194 = vmatmul.mubr.f32.gmra.mxu0 %v2193
        %v2195 = vpop.f32.mrf.mxu0
        %v2196 = vadd.f32 %v2096, %v2195
        %v2197 = vpop.f32.mrf.mxu0
        %2198 = vmatprep.mubr.f32.mxu0 0.0
        %v2199 = vand.u32 %v1885, 4294901760
        %v2200 = vsub.f32 %v1885, %v2199
        %2201 = vmatmul.mubr.f32.gmra.mxu0 %v2200
        %v2202 = vpop.f32.mrf.mxu0
        %v2203 = vadd.f32 %v2102, %v2202
        %v2204 = vpop.f32.mrf.mxu0
        %2205 = vdwg.mxu0
        %2206 = vmatprep.subr.mxu0 0.0
        %2207 = vmatpush1.msra.mxu0 0.0
        %2208 = vmatprep.subr.mxu0 0.0
        %2209 = vmatpush1.msra.mxu0 0.0
        %2210 = vmatprep.subr.mxu0 0.0
        %2211 = vmatpush1.msra.mxu0 0.0
        %2212 = vmatprep.subr.mxu0 0.0
        %2213 = vmatpush1.msra.mxu0 0.0
        %2214 = vmatprep.subr.mxu0 0.0
        %2215 = vmatpush1.msra.mxu0 0.0
        %2216 = vmatprep.subr.mxu0 0.0
        %2217 = vmatpush1.msra.mxu0 0.0
        %2218 = vmatprep.subr.mxu0 0.0
        %2219 = vmatpush1.msra.mxu0 0.0
        %2220 = vmatprep.subr.mxu0 0.0
        %2221 = vmatpush1.msra.mxu0 0.0
        %2222 = vmatprep.subr.mxu0 0.0
        %2223 = vmatpush1.msra.mxu0 0.0
        %2224 = vmatprep.subr.mxu0 0.0
        %2225 = vmatpush1.msra.mxu0 0.0
        %2226 = vmatprep.subr.mxu0 0.0
        %2227 = vmatpush1.msra.mxu0 0.0
        %2228 = vmatprep.subr.mxu0 0.0
        %2229 = vmatpush1.msra.mxu0 0.0
        %2230 = vmatprep.subr.mxu0 0.0
        %v2231 = vand.u32 %v1853, 4294901760
        %2232 = vmatpush1.msra.mxu0 %v2231
        %2233 = vmatprep.subr.mxu0 0.0
        %v2234 = vand.u32 %v1749, 4294901760
        %2235 = vmatpush1.msra.mxu0 %v2234
        %2236 = vmatprep.subr.mxu0 0.0
        %v2237 = vand.u32 %v1645, 4294901760
        %2238 = vmatpush1.msra.mxu0 %v2237
        %2239 = vmatprep.subr.mxu0 0.0
        %v2240 = vand.u32 %v1541, 4294901760
        %2241 = vmatpush1.msra.mxu0 %v2240
        %2242 = vmatprep.subr.mxu0 0.0
        %2243 = vmatpush2.msra.mxu0 0.0
        %2244 = vmatprep.subr.mxu0 0.0
        %2245 = vmatpush2.msra.mxu0 0.0
        %2246 = vmatprep.subr.mxu0 0.0
        %2247 = vmatpush2.msra.mxu0 0.0
        %2248 = vmatprep.subr.mxu0 0.0
        %2249 = vmatpush2.msra.mxu0 0.0
        %2250 = vmatprep.subr.mxu0 0.0
        %2251 = vmatpush2.msra.mxu0 0.0
        %2252 = vmatprep.subr.mxu0 0.0
        %2253 = vmatpush2.msra.mxu0 0.0
        %2254 = vmatprep.subr.mxu0 0.0
        %2255 = vmatpush2.msra.mxu0 0.0
        %2256 = vmatprep.subr.mxu0 0.0
        %2257 = vmatpush2.msra.mxu0 0.0
        %2258 = vmatprep.subr.mxu0 0.0
        %2259 = vmatpush2.msra.mxu0 0.0
        %2260 = vmatprep.subr.mxu0 0.0
        %2261 = vmatpush2.msra.mxu0 0.0
        %2262 = vmatprep.subr.mxu0 0.0
        %2263 = vmatpush2.msra.mxu0 0.0
        %2264 = vmatprep.subr.mxu0 0.0
        %2265 = vmatpush2.msra.mxu0 0.0
        %2266 = vmatprep.subr.mxu0 0.0
        %2267 = vmatpush2.msra.mxu0 0.0
        %2268 = vmatprep.subr.mxu0 0.0
        %2269 = vmatpush2.msra.mxu0 0.0
        %2270 = vmatprep.subr.mxu0 0.0
        %2271 = vmatpush2.msra.mxu0 0.0
        %2272 = vmatprep.subr.mxu0 0.0
        %2273 = vmatpush2.msra.mxu0 0.0
        %2274 = vmatprep.mubr.f32.mxu0 0.0
        %v2275 = vand.u32 %v1879, 4294901760
        %v2276 = vsub.f32 %v1879, %v2275
        %v2277 = vand.u32 %v2276, 4294901760
        %2278 = vmatmul.mubr.f32.gmra.mxu0 %v2277
        %v2279 = vpop.f32.mrf.mxu0
        %v2280 = vadd.f32 %v2182, %v2279
        %v2281 = vpop.f32.mrf.mxu0
        %2282 = vmatprep.mubr.f32.mxu0 0.0
        %v2283 = vand.u32 %v1881, 4294901760
        %v2284 = vsub.f32 %v1881, %v2283
        %v2285 = vand.u32 %v2284, 4294901760
        %2286 = vmatmul.mubr.f32.gmra.mxu0 %v2285
        %v2287 = vpop.f32.mrf.mxu0
        %v2288 = vadd.f32 %v2189, %v2287
        %v2289 = vpop.f32.mrf.mxu0
        %2290 = vmatprep.mubr.f32.mxu0 0.0
        %v2291 = vand.u32 %v1883, 4294901760
        %v2292 = vsub.f32 %v1883, %v2291
        %v2293 = vand.u32 %v2292, 4294901760
        %2294 = vmatmul.mubr.f32.gmra.mxu0 %v2293
        %v2295 = vpop.f32.mrf.mxu0
        %v2296 = vadd.f32 %v2196, %v2295
        %v2297 = vpop.f32.mrf.mxu0
        %2298 = vmatprep.mubr.f32.mxu0 0.0
        %v2299 = vand.u32 %v1885, 4294901760
        %v2300 = vsub.f32 %v1885, %v2299
        %v2301 = vand.u32 %v2300, 4294901760
        %2302 = vmatmul.mubr.f32.gmra.mxu0 %v2301
        %v2303 = vpop.f32.mrf.mxu0
        %v2304 = vadd.f32 %v2203, %v2303
        %v2305 = vpop.f32.mrf.mxu0
        %2306 = vdwg.mxu0
        %2307 = vmatprep.subr.mxu0 0.0
        %2308 = vmatpush1.msra.mxu0 0.0
        %2309 = vmatprep.subr.mxu0 0.0
        %2310 = vmatpush1.msra.mxu0 0.0
        %2311 = vmatprep.subr.mxu0 0.0
        %2312 = vmatpush1.msra.mxu0 0.0
        %2313 = vmatprep.subr.mxu0 0.0
        %2314 = vmatpush1.msra.mxu0 0.0
        %2315 = vmatprep.subr.mxu0 0.0
        %2316 = vmatpush1.msra.mxu0 0.0
        %2317 = vmatprep.subr.mxu0 0.0
        %2318 = vmatpush1.msra.mxu0 0.0
        %2319 = vmatprep.subr.mxu0 0.0
        %2320 = vmatpush1.msra.mxu0 0.0
        %2321 = vmatprep.subr.mxu0 0.0
        %2322 = vmatpush1.msra.mxu0 0.0
        %2323 = vmatprep.subr.mxu0 0.0
        %2324 = vmatpush1.msra.mxu0 0.0
        %2325 = vmatprep.subr.mxu0 0.0
        %2326 = vmatpush1.msra.mxu0 0.0
        %2327 = vmatprep.subr.mxu0 0.0
        %2328 = vmatpush1.msra.mxu0 0.0
        %2329 = vmatprep.subr.mxu0 0.0
        %2330 = vmatpush1.msra.mxu0 0.0
        %2331 = vmatprep.subr.mxu0 0.0
        %v2332 = vand.u32 %v1853, 4294901760
        %v2333 = vsub.f32 %v1853, %v2332
        %v2334 = vand.u32 %v2333, 4294901760
        %2335 = vmatpush1.msra.mxu0 %v2334
        %2336 = vmatprep.subr.mxu0 0.0
        %v2337 = vand.u32 %v1749, 4294901760
        %v2338 = vsub.f32 %v1749, %v2337
        %v2339 = vand.u32 %v2338, 4294901760
        %2340 = vmatpush1.msra.mxu0 %v2339
        %2341 = vmatprep.subr.mxu0 0.0
        %v2342 = vand.u32 %v1645, 4294901760
        %v2343 = vsub.f32 %v1645, %v2342
        %v2344 = vand.u32 %v2343, 4294901760
        %2345 = vmatpush1.msra.mxu0 %v2344
        %2346 = vmatprep.subr.mxu0 0.0
        %v2347 = vand.u32 %v1541, 4294901760
        %v2348 = vsub.f32 %v1541, %v2347
        %v2349 = vand.u32 %v2348, 4294901760
        %2350 = vmatpush1.msra.mxu0 %v2349
        %2351 = vmatprep.subr.mxu0 0.0
        %2352 = vmatpush2.msra.mxu0 0.0
        %2353 = vmatprep.subr.mxu0 0.0
        %2354 = vmatpush2.msra.mxu0 0.0
        %2355 = vmatprep.subr.mxu0 0.0
        %2356 = vmatpush2.msra.mxu0 0.0
        %2357 = vmatprep.subr.mxu0 0.0
        %2358 = vmatpush2.msra.mxu0 0.0
        %2359 = vmatprep.subr.mxu0 0.0
        %2360 = vmatpush2.msra.mxu0 0.0
        %2361 = vmatprep.subr.mxu0 0.0
        %2362 = vmatpush2.msra.mxu0 0.0
        %2363 = vmatprep.subr.mxu0 0.0
        %2364 = vmatpush2.msra.mxu0 0.0
        %2365 = vmatprep.subr.mxu0 0.0
        %2366 = vmatpush2.msra.mxu0 0.0
        %2367 = vmatprep.subr.mxu0 0.0
        %2368 = vmatpush2.msra.mxu0 0.0
        %2369 = vmatprep.subr.mxu0 0.0
        %2370 = vmatpush2.msra.mxu0 0.0
        %2371 = vmatprep.subr.mxu0 0.0
        %2372 = vmatpush2.msra.mxu0 0.0
        %2373 = vmatprep.subr.mxu0 0.0
        %2374 = vmatpush2.msra.mxu0 0.0
        %2375 = vmatprep.subr.mxu0 0.0
        %2376 = vmatpush2.msra.mxu0 0.0
        %2377 = vmatprep.subr.mxu0 0.0
        %2378 = vmatpush2.msra.mxu0 0.0
        %2379 = vmatprep.subr.mxu0 0.0
        %2380 = vmatpush2.msra.mxu0 0.0
        %2381 = vmatprep.subr.mxu0 0.0
        %2382 = vmatpush2.msra.mxu0 0.0
        %2383 = vmatprep.mubr.f32.mxu0 0.0
        %v2384 = vand.u32 %v1879, 4294901760
        %2385 = vmatmul.mubr.f32.gmra.mxu0 %v2384
        %v2386 = vpop.f32.mrf.mxu0
        %v2387 = vadd.f32 %v2280, %v2386
        %v2388 = vpop.f32.mrf.mxu0
        %2389 = vmatprep.mubr.f32.mxu0 0.0
        %v2390 = vand.u32 %v1881, 4294901760
        %2391 = vmatmul.mubr.f32.gmra.mxu0 %v2390
        %v2392 = vpop.f32.mrf.mxu0
        %v2393 = vadd.f32 %v2288, %v2392
        %v2394 = vpop.f32.mrf.mxu0
        %2395 = vmatprep.mubr.f32.mxu0 0.0
        %v2396 = vand.u32 %v1883, 4294901760
        %2397 = vmatmul.mubr.f32.gmra.mxu0 %v2396
        %v2398 = vpop.f32.mrf.mxu0
        %v2399 = vadd.f32 %v2296, %v2398
        %v2400 = vpop.f32.mrf.mxu0
        %2401 = vmatprep.mubr.f32.mxu0 0.0
        %v2402 = vand.u32 %v1885, 4294901760
        %2403 = vmatmul.mubr.f32.gmra.mxu0 %v2402
        %v2404 = vpop.f32.mrf.mxu0
        %v2405 = vadd.f32 %v2304, %v2404
        %v2406 = vpop.f32.mrf.mxu0
        %2407 = vdwg.mxu0
        %2408 = vmatprep.subr.mxu0 0.0
        %2409 = vmatpush1.msra.mxu0 0.0
        %2410 = vmatprep.subr.mxu0 0.0
        %2411 = vmatpush1.msra.mxu0 0.0
        %2412 = vmatprep.subr.mxu0 0.0
        %2413 = vmatpush1.msra.mxu0 0.0
        %2414 = vmatprep.subr.mxu0 0.0
        %2415 = vmatpush1.msra.mxu0 0.0
        %2416 = vmatprep.subr.mxu0 0.0
        %2417 = vmatpush1.msra.mxu0 0.0
        %2418 = vmatprep.subr.mxu0 0.0
        %2419 = vmatpush1.msra.mxu0 0.0
        %2420 = vmatprep.subr.mxu0 0.0
        %2421 = vmatpush1.msra.mxu0 0.0
        %2422 = vmatprep.subr.mxu0 0.0
        %2423 = vmatpush1.msra.mxu0 0.0
        %2424 = vmatprep.subr.mxu0 0.0
        %2425 = vmatpush1.msra.mxu0 0.0
        %2426 = vmatprep.subr.mxu0 0.0
        %2427 = vmatpush1.msra.mxu0 0.0
        %2428 = vmatprep.subr.mxu0 0.0
        %2429 = vmatpush1.msra.mxu0 0.0
        %2430 = vmatprep.subr.mxu0 0.0
        %2431 = vmatpush1.msra.mxu0 0.0
        %2432 = vmatprep.subr.mxu0 0.0
        %v2433 = vand.u32 %v1853, 4294901760
        %2434 = vmatpush1.msra.mxu0 %v2433
        %2435 = vmatprep.subr.mxu0 0.0
        %v2436 = vand.u32 %v1749, 4294901760
        %2437 = vmatpush1.msra.mxu0 %v2436
        %2438 = vmatprep.subr.mxu0 0.0
        %v2439 = vand.u32 %v1645, 4294901760
        %2440 = vmatpush1.msra.mxu0 %v2439
        %2441 = vmatprep.subr.mxu0 0.0
        %v2442 = vand.u32 %v1541, 4294901760
        %2443 = vmatpush1.msra.mxu0 %v2442
        %2444 = vmatprep.subr.mxu0 0.0
        %2445 = vmatpush2.msra.mxu0 0.0
        %2446 = vmatprep.subr.mxu0 0.0
        %2447 = vmatpush2.msra.mxu0 0.0
        %2448 = vmatprep.subr.mxu0 0.0
        %2449 = vmatpush2.msra.mxu0 0.0
        %2450 = vmatprep.subr.mxu0 0.0
        %2451 = vmatpush2.msra.mxu0 0.0
        %2452 = vmatprep.subr.mxu0 0.0
        %2453 = vmatpush2.msra.mxu0 0.0
        %2454 = vmatprep.subr.mxu0 0.0
        %2455 = vmatpush2.msra.mxu0 0.0
        %2456 = vmatprep.subr.mxu0 0.0
        %2457 = vmatpush2.msra.mxu0 0.0
        %2458 = vmatprep.subr.mxu0 0.0
        %2459 = vmatpush2.msra.mxu0 0.0
        %2460 = vmatprep.subr.mxu0 0.0
        %2461 = vmatpush2.msra.mxu0 0.0
        %2462 = vmatprep.subr.mxu0 0.0
        %2463 = vmatpush2.msra.mxu0 0.0
        %2464 = vmatprep.subr.mxu0 0.0
        %2465 = vmatpush2.msra.mxu0 0.0
        %2466 = vmatprep.subr.mxu0 0.0
        %2467 = vmatpush2.msra.mxu0 0.0
        %2468 = vmatprep.subr.mxu0 0.0
        %2469 = vmatpush2.msra.mxu0 0.0
        %2470 = vmatprep.subr.mxu0 0.0
        %2471 = vmatpush2.msra.mxu0 0.0
        %2472 = vmatprep.subr.mxu0 0.0
        %2473 = vmatpush2.msra.mxu0 0.0
        %2474 = vmatprep.subr.mxu0 0.0
        %2475 = vmatpush2.msra.mxu0 0.0
        %2476 = vmatprep.mubr.f32.mxu0 0.0
        %v2477 = vand.u32 %v1879, 4294901760
        %2478 = vmatmul.mubr.f32.gmra.mxu0 %v2477
        %v2479 = vpop.f32.mrf.mxu0
        %v2480 = vadd.f32 %v2387, %v2479
        %v2481 = vpop.f32.mrf.mxu0
        %2482 = vmatprep.mubr.f32.mxu0 0.0
        %v2483 = vand.u32 %v1881, 4294901760
        %2484 = vmatmul.mubr.f32.gmra.mxu0 %v2483
        %v2485 = vpop.f32.mrf.mxu0
        %v2486 = vadd.f32 %v2393, %v2485
        %v2487 = vpop.f32.mrf.mxu0
        %2488 = vmatprep.mubr.f32.mxu0 0.0
        %v2489 = vand.u32 %v1883, 4294901760
        %2490 = vmatmul.mubr.f32.gmra.mxu0 %v2489
        %v2491 = vpop.f32.mrf.mxu0
        %v2492 = vadd.f32 %v2399, %v2491
        %v2493 = vpop.f32.mrf.mxu0
        %2494 = vmatprep.mubr.f32.mxu0 0.0
        %v2495 = vand.u32 %v1885, 4294901760
        %2496 = vmatmul.mubr.f32.gmra.mxu0 %v2495
        %v2497 = vpop.f32.mrf.mxu0
        %v2498 = vadd.f32 %v2405, %v2497
        %v2499 = vpop.f32.mrf.mxu0
        %2500 = vdwg.mxu0
        %v2501 = vand.u32 2147483647, %v2480
        %vm2502 = vcmp.le.f32.partialorder %v2501, 0.7853982
        %vm2503 = vcmp.lt.s32.totalorder %v2480, 0
        %v2504 = vand.u32 %v2480, 2139095040
        %v2505 = vshrl.u32 %v2504, 23
        %v2506 = vsub.s32 %v2505, 127
        %v2507 = vand.u32 2147483647, %v2480
        %v2508 = vand.u32 %v2507, 8388607
        %v2509 = vor.u32 %v2508, 8388608
        %v2510 = vsub.s32 0, %v2509
        %v2511 = vadd.s32 %v2506, 1
        %vm2512 = vcmp.gt.s32.totalorder %v2511, 0
        %v2513 = vsel %vm2512, %v2511, 0
        %v2514 = vshrl.u32 %v2513, 5
        %v2515 = vand.u32 %v2513, 31
        %v2516 = vsub.s32 32, %v2515
        %v2517 = vshrl.u32 683565275, %v2516
        %v2518 = vshll.u32 683565275, %v2515
        %v2519 = vshrl.u32 2475754826, %v2516
        %v2520 = vor.u32 %v2518, %v2519
        %v2521 = vshll.u32 2475754826, %v2515
        %v2522 = vshrl.u32 2131351028, %v2516
        %v2523 = vor.u32 %v2521, %v2522
        %v2524 = vshll.u32 2131351028, %v2515
        %v2525 = vshrl.u32 2102212464, %v2516
        %v2526 = vor.u32 %v2524, %v2525
        %v2527 = vshll.u32 2102212464, %v2515
        %v2528 = vshrl.u32 920167782, %v2516
        %v2529 = vor.u32 %v2527, %v2528
        %v2530 = vshll.u32 920167782, %v2515
        %v2531 = vshrl.u32 1326507024, %v2516
        %v2532 = vor.u32 %v2530, %v2531
        %vm2533 = vcmp.lt.s32.totalorder %v2514, 1
        %vm2534 = vcmp.lt.s32.totalorder %v2514, 2
        %vm2535 = vcmp.lt.s32.totalorder %v2514, 3
        %vm2536 = vcmp.lt.s32.totalorder %v2514, 4
        %v2537 = vsel %vm2533, %v2517, %v2520
        %v2538 = vsel %vm2536, %v2526, 2102212464
        %v2539 = vsel %vm2535, %v2523, %v2538
        %v2540 = vsel %vm2534, %v2537, %v2539
        %v2541 = vsel %vm2533, %v2520, %v2523
        %v2542 = vsel %vm2536, %v2529, 920167782
        %v2543 = vsel %vm2535, %v2526, %v2542
        %v2544 = vsel %vm2534, %v2541, %v2543
        %v2545 = vsel %vm2533, %v2523, %v2526
        %v2546 = vsel %vm2536, %v2532, 1326507024
        %v2547 = vsel %vm2535, %v2529, %v2546
        %v2548 = vsel %vm2534, %v2545, %v2547
        %v2549 = vshll.u32 %v2509, 8
        %v2550 = vmul.u32.u64.compose %v2549, %v2548
        %v2551 = vextract.low.u32 %v2550
        %v2552 = vextract.high.u32 %v2550
        %v2553 = vmul.u32.u64.compose %v2549, %v2544
        %v2554 = vextract.low.u32 %v2553
        %v2555 = vextract.high.u32 %v2553
        %v2556 = vmul.u32 %v2549, %v2540
        %v2557 = vadd.s32 %v2552, %v2554
        %vm2558 = vc.u32 %v2552, %v2554
        %v2559 = vadd.s32 %v2555, 1
        %v2560 = vsel %vm2558, %v2559, %v2555
        %v2561 = vadd.s32 %v2556, %v2560
        %v2562 = vadd.s32 %v2561, 536870912
        %v2563 = vshrl.u32 %v2562, 30
        %v2564 = vshll.u32 %v2563, 30
        %v2565 = vsub.s32 %v2561, %v2564
        %vm2566 = vcmp.lt.s32.totalorder %v2565, 0
        %v2567 = vsub.s32 0, %v2565
        %v2568 = vsel %vm2566, %v2567, %v2565
        %v2569 = vclz %v2568
        %v2570 = vsub.s32 %v2569, 2
        %vm2571 = vcmp.gt.s32.totalorder 0, %v2570
        %v2572 = vsel %vm2571, 0, %v2570
        %v2573 = vsub.s32 32, %v2572
        %v2574 = vshll.u32 %v2565, %v2572
        %v2575 = vshrl.u32 %v2557, %v2573
        %v2576 = vor.u32 %v2574, %v2575
        %v2577 = vsub.s32 4294967266, %v2572
        %v2578 = vadd.s32 %v2577, 127
        %v2579 = vshll.u32 %v2578, 23
        %v2580 = vor.u32 4788187, %v2579
        %v2581 = vand.u32 2147483647, %v2580
        %v2583 = vcvt.s32.f32 %v2576
        %v2584 = vmul.f32 %v2583, %v2581
        %v2585 = vxor.u32 %v2584, 2147483648
        %v2586 = vsel %vm2503, %v2585, %v2584
        %v2587 = vsub.s32 4, %v2563
        %v2588 = vsel %vm2503, %v2587, %v2563
        %v2589 = vsel %vm2502, %v2480, %v2586
        %v2590 = vsel %vm2502, 0, %v2588
        %v2591 = vcosq.f32.pop %v2589
        %v2592 = vsinq.f32.pop %v2589
        %vm2593 = vweird.f32 %v2480
        %v2594 = vadd.s32 %v2590, 3
        %v2595 = vand.u32 %v2594, 3
        %vm2596 = vcmp.lt.s32.totalorder %v2595, 2
        %vm2597 = vcmp.eq.s32.totalorder %v2595, 0
        %v2598 = vxor.u32 %v2592, 2147483648
        %v2599 = vsel %vm2597, %v2591, %v2598
        %vm2600 = vcmp.eq.s32.totalorder %v2595, 2
        %v2601 = vxor.u32 %v2591, 2147483648
        %v2602 = vsel %vm2600, %v2601, %v2592
        %v2603 = vsel %vm2596, %v2599, %v2602
        %v2604 = vsel %vm2593, nan, %v2603
        %v2605 = vand.u32 2147483647, %v2486
        %vm2606 = vcmp.le.f32.partialorder %v2605, 0.7853982
        %vm2607 = vcmp.lt.s32.totalorder %v2486, 0
        %v2608 = vand.u32 %v2486, 2139095040
        %v2609 = vshrl.u32 %v2608, 23
        %v2610 = vsub.s32 %v2609, 127
        %v2611 = vand.u32 2147483647, %v2486
        %v2612 = vand.u32 %v2611, 8388607
        %v2613 = vor.u32 %v2612, 8388608
        %v2614 = vsub.s32 0, %v2613
        %v2615 = vadd.s32 %v2610, 1
        %vm2616 = vcmp.gt.s32.totalorder %v2615, 0
        %v2617 = vsel %vm2616, %v2615, 0
        %v2618 = vshrl.u32 %v2617, 5
        %v2619 = vand.u32 %v2617, 31
        %v2620 = vsub.s32 32, %v2619
        %v2621 = vshrl.u32 683565275, %v2620
        %v2622 = vshll.u32 683565275, %v2619
        %v2623 = vshrl.u32 2475754826, %v2620
        %v2624 = vor.u32 %v2622, %v2623
        %v2625 = vshll.u32 2475754826, %v2619
        %v2626 = vshrl.u32 2131351028, %v2620
        %v2627 = vor.u32 %v2625, %v2626
        %v2628 = vshll.u32 2131351028, %v2619
        %v2629 = vshrl.u32 2102212464, %v2620
        %v2630 = vor.u32 %v2628, %v2629
        %v2631 = vshll.u32 2102212464, %v2619
        %v2632 = vshrl.u32 920167782, %v2620
        %v2633 = vor.u32 %v2631, %v2632
        %v2634 = vshll.u32 920167782, %v2619
        %v2635 = vshrl.u32 1326507024, %v2620
        %v2636 = vor.u32 %v2634, %v2635
        %vm2637 = vcmp.lt.s32.totalorder %v2618, 1
        %vm2638 = vcmp.lt.s32.totalorder %v2618, 2
        %vm2639 = vcmp.lt.s32.totalorder %v2618, 3
        %vm2640 = vcmp.lt.s32.totalorder %v2618, 4
        %v2641 = vsel %vm2637, %v2621, %v2624
        %v2642 = vsel %vm2640, %v2630, 2102212464
        %v2643 = vsel %vm2639, %v2627, %v2642
        %v2644 = vsel %vm2638, %v2641, %v2643
        %v2645 = vsel %vm2637, %v2624, %v2627
        %v2646 = vsel %vm2640, %v2633, 920167782
        %v2647 = vsel %vm2639, %v2630, %v2646
        %v2648 = vsel %vm2638, %v2645, %v2647
        %v2649 = vsel %vm2637, %v2627, %v2630
        %v2650 = vsel %vm2640, %v2636, 1326507024
        %v2651 = vsel %vm2639, %v2633, %v2650
        %v2652 = vsel %vm2638, %v2649, %v2651
        %v2653 = vshll.u32 %v2613, 8
        %v2654 = vmul.u32.u64.compose %v2653, %v2652
        %v2655 = vextract.low.u32 %v2654
        %v2656 = vextract.high.u32 %v2654
        %v2657 = vmul.u32.u64.compose %v2653, %v2648
        %v2658 = vextract.low.u32 %v2657
        %v2659 = vextract.high.u32 %v2657
        %v2660 = vmul.u32 %v2653, %v2644
        %v2661 = vadd.s32 %v2656, %v2658
        %vm2662 = vc.u32 %v2656, %v2658
        %v2663 = vadd.s32 %v2659, 1
        %v2664 = vsel %vm2662, %v2663, %v2659
        %v2665 = vadd.s32 %v2660, %v2664
        %v2666 = vadd.s32 %v2665, 536870912
        %v2667 = vshrl.u32 %v2666, 30
        %v2668 = vshll.u32 %v2667, 30
        %v2669 = vsub.s32 %v2665, %v2668
        %vm2670 = vcmp.lt.s32.totalorder %v2669, 0
        %v2671 = vsub.s32 0, %v2669
        %v2672 = vsel %vm2670, %v2671, %v2669
        %v2673 = vclz %v2672
        %v2674 = vsub.s32 %v2673, 2
        %vm2675 = vcmp.gt.s32.totalorder 0, %v2674
        %v2676 = vsel %vm2675, 0, %v2674
        %v2677 = vsub.s32 32, %v2676
        %v2678 = vshll.u32 %v2669, %v2676
        %v2679 = vshrl.u32 %v2661, %v2677
        %v2680 = vor.u32 %v2678, %v2679
        %v2681 = vsub.s32 4294967266, %v2676
        %v2682 = vadd.s32 %v2681, 127
        %v2683 = vshll.u32 %v2682, 23
        %v2684 = vor.u32 4788187, %v2683
        %v2685 = vand.u32 2147483647, %v2684
        %v2687 = vcvt.s32.f32 %v2680
        %v2688 = vmul.f32 %v2687, %v2685
        %v2689 = vxor.u32 %v2688, 2147483648
        %v2690 = vsel %vm2607, %v2689, %v2688
        %v2691 = vsub.s32 4, %v2667
        %v2692 = vsel %vm2607, %v2691, %v2667
        %v2693 = vsel %vm2606, %v2486, %v2690
        %v2694 = vsel %vm2606, 0, %v2692
        %v2695 = vcosq.f32.pop %v2693
        %v2696 = vsinq.f32.pop %v2693
        %vm2697 = vweird.f32 %v2486
        %v2698 = vadd.s32 %v2694, 3
        %v2699 = vand.u32 %v2698, 3
        %vm2700 = vcmp.lt.s32.totalorder %v2699, 2
        %vm2701 = vcmp.eq.s32.totalorder %v2699, 0
        %v2702 = vxor.u32 %v2696, 2147483648
        %v2703 = vsel %vm2701, %v2695, %v2702
        %vm2704 = vcmp.eq.s32.totalorder %v2699, 2
        %v2705 = vxor.u32 %v2695, 2147483648
        %v2706 = vsel %vm2704, %v2705, %v2696
        %v2707 = vsel %vm2700, %v2703, %v2706
        %v2708 = vsel %vm2697, nan, %v2707
        %v2709 = vand.u32 2147483647, %v2492
        %vm2710 = vcmp.le.f32.partialorder %v2709, 0.7853982
        %vm2711 = vcmp.lt.s32.totalorder %v2492, 0
        %v2712 = vand.u32 %v2492, 2139095040
        %v2713 = vshrl.u32 %v2712, 23
        %v2714 = vsub.s32 %v2713, 127
        %v2715 = vand.u32 2147483647, %v2492
        %v2716 = vand.u32 %v2715, 8388607
        %v2717 = vor.u32 %v2716, 8388608
        %v2718 = vsub.s32 0, %v2717
        %v2719 = vadd.s32 %v2714, 1
        %vm2720 = vcmp.gt.s32.totalorder %v2719, 0
        %v2721 = vsel %vm2720, %v2719, 0
        %v2722 = vshrl.u32 %v2721, 5
        %v2723 = vand.u32 %v2721, 31
        %v2724 = vsub.s32 32, %v2723
        %v2725 = vshrl.u32 683565275, %v2724
        %v2726 = vshll.u32 683565275, %v2723
        %v2727 = vshrl.u32 2475754826, %v2724
        %v2728 = vor.u32 %v2726, %v2727
        %v2729 = vshll.u32 2475754826, %v2723
        %v2730 = vshrl.u32 2131351028, %v2724
        %v2731 = vor.u32 %v2729, %v2730
        %v2732 = vshll.u32 2131351028, %v2723
        %v2733 = vshrl.u32 2102212464, %v2724
        %v2734 = vor.u32 %v2732, %v2733
        %v2735 = vshll.u32 2102212464, %v2723
        %v2736 = vshrl.u32 920167782, %v2724
        %v2737 = vor.u32 %v2735, %v2736
        %v2738 = vshll.u32 920167782, %v2723
        %v2739 = vshrl.u32 1326507024, %v2724
        %v2740 = vor.u32 %v2738, %v2739
        %vm2741 = vcmp.lt.s32.totalorder %v2722, 1
        %vm2742 = vcmp.lt.s32.totalorder %v2722, 2
        %vm2743 = vcmp.lt.s32.totalorder %v2722, 3
        %vm2744 = vcmp.lt.s32.totalorder %v2722, 4
        %v2745 = vsel %vm2741, %v2725, %v2728
        %v2746 = vsel %vm2744, %v2734, 2102212464
        %v2747 = vsel %vm2743, %v2731, %v2746
        %v2748 = vsel %vm2742, %v2745, %v2747
        %v2749 = vsel %vm2741, %v2728, %v2731
        %v2750 = vsel %vm2744, %v2737, 920167782
        %v2751 = vsel %vm2743, %v2734, %v2750
        %v2752 = vsel %vm2742, %v2749, %v2751
        %v2753 = vsel %vm2741, %v2731, %v2734
        %v2754 = vsel %vm2744, %v2740, 1326507024
        %v2755 = vsel %vm2743, %v2737, %v2754
        %v2756 = vsel %vm2742, %v2753, %v2755
        %v2757 = vshll.u32 %v2717, 8
        %v2758 = vmul.u32.u64.compose %v2757, %v2756
        %v2759 = vextract.low.u32 %v2758
        %v2760 = vextract.high.u32 %v2758
        %v2761 = vmul.u32.u64.compose %v2757, %v2752
        %v2762 = vextract.low.u32 %v2761
        %v2763 = vextract.high.u32 %v2761
        %v2764 = vmul.u32 %v2757, %v2748
        %v2765 = vadd.s32 %v2760, %v2762
        %vm2766 = vc.u32 %v2760, %v2762
        %v2767 = vadd.s32 %v2763, 1
        %v2768 = vsel %vm2766, %v2767, %v2763
        %v2769 = vadd.s32 %v2764, %v2768
        %v2770 = vadd.s32 %v2769, 536870912
        %v2771 = vshrl.u32 %v2770, 30
        %v2772 = vshll.u32 %v2771, 30
        %v2773 = vsub.s32 %v2769, %v2772
        %vm2774 = vcmp.lt.s32.totalorder %v2773, 0
        %v2775 = vsub.s32 0, %v2773
        %v2776 = vsel %vm2774, %v2775, %v2773
        %v2777 = vclz %v2776
        %v2778 = vsub.s32 %v2777, 2
        %vm2779 = vcmp.gt.s32.totalorder 0, %v2778
        %v2780 = vsel %vm2779, 0, %v2778
        %v2781 = vsub.s32 32, %v2780
        %v2782 = vshll.u32 %v2773, %v2780
        %v2783 = vshrl.u32 %v2765, %v2781
        %v2784 = vor.u32 %v2782, %v2783
        %v2785 = vsub.s32 4294967266, %v2780
        %v2786 = vadd.s32 %v2785, 127
        %v2787 = vshll.u32 %v2786, 23
        %v2788 = vor.u32 4788187, %v2787
        %v2789 = vand.u32 2147483647, %v2788
        %v2791 = vcvt.s32.f32 %v2784
        %v2792 = vmul.f32 %v2791, %v2789
        %v2793 = vxor.u32 %v2792, 2147483648
        %v2794 = vsel %vm2711, %v2793, %v2792
        %v2795 = vsub.s32 4, %v2771
        %v2796 = vsel %vm2711, %v2795, %v2771
        %v2797 = vsel %vm2710, %v2492, %v2794
        %v2798 = vsel %vm2710, 0, %v2796
        %v2799 = vcosq.f32.pop %v2797
        %v2800 = vsinq.f32.pop %v2797
        %vm2801 = vweird.f32 %v2492
        %v2802 = vadd.s32 %v2798, 3
        %v2803 = vand.u32 %v2802, 3
        %vm2804 = vcmp.lt.s32.totalorder %v2803, 2
        %vm2805 = vcmp.eq.s32.totalorder %v2803, 0
        %v2806 = vxor.u32 %v2800, 2147483648
        %v2807 = vsel %vm2805, %v2799, %v2806
        %vm2808 = vcmp.eq.s32.totalorder %v2803, 2
        %v2809 = vxor.u32 %v2799, 2147483648
        %v2810 = vsel %vm2808, %v2809, %v2800
        %v2811 = vsel %vm2804, %v2807, %v2810
        %v2812 = vsel %vm2801, nan, %v2811
        %v2813 = vand.u32 2147483647, %v2498
        %vm2814 = vcmp.le.f32.partialorder %v2813, 0.7853982
        %vm2815 = vcmp.lt.s32.totalorder %v2498, 0
        %v2816 = vand.u32 %v2498, 2139095040
        %v2817 = vshrl.u32 %v2816, 23
        %v2818 = vsub.s32 %v2817, 127
        %v2819 = vand.u32 2147483647, %v2498
        %v2820 = vand.u32 %v2819, 8388607
        %v2821 = vor.u32 %v2820, 8388608
        %v2822 = vsub.s32 0, %v2821
        %v2823 = vadd.s32 %v2818, 1
        %vm2824 = vcmp.gt.s32.totalorder %v2823, 0
        %v2825 = vsel %vm2824, %v2823, 0
        %v2826 = vshrl.u32 %v2825, 5
        %v2827 = vand.u32 %v2825, 31
        %v2828 = vsub.s32 32, %v2827
        %v2829 = vshrl.u32 683565275, %v2828
        %v2830 = vshll.u32 683565275, %v2827
        %v2831 = vshrl.u32 2475754826, %v2828
        %v2832 = vor.u32 %v2830, %v2831
        %v2833 = vshll.u32 2475754826, %v2827
        %v2834 = vshrl.u32 2131351028, %v2828
        %v2835 = vor.u32 %v2833, %v2834
        %v2836 = vshll.u32 2131351028, %v2827
        %v2837 = vshrl.u32 2102212464, %v2828
        %v2838 = vor.u32 %v2836, %v2837
        %v2839 = vshll.u32 2102212464, %v2827
        %v2840 = vshrl.u32 920167782, %v2828
        %v2841 = vor.u32 %v2839, %v2840
        %v2842 = vshll.u32 920167782, %v2827
        %v2843 = vshrl.u32 1326507024, %v2828
        %v2844 = vor.u32 %v2842, %v2843
        %vm2845 = vcmp.lt.s32.totalorder %v2826, 1
        %vm2846 = vcmp.lt.s32.totalorder %v2826, 2
        %vm2847 = vcmp.lt.s32.totalorder %v2826, 3
        %vm2848 = vcmp.lt.s32.totalorder %v2826, 4
        %v2849 = vsel %vm2845, %v2829, %v2832
        %v2850 = vsel %vm2848, %v2838, 2102212464
        %v2851 = vsel %vm2847, %v2835, %v2850
        %v2852 = vsel %vm2846, %v2849, %v2851
        %v2853 = vsel %vm2845, %v2832, %v2835
        %v2854 = vsel %vm2848, %v2841, 920167782
        %v2855 = vsel %vm2847, %v2838, %v2854
        %v2856 = vsel %vm2846, %v2853, %v2855
        %v2857 = vsel %vm2845, %v2835, %v2838
        %v2858 = vsel %vm2848, %v2844, 1326507024
        %v2859 = vsel %vm2847, %v2841, %v2858
        %v2860 = vsel %vm2846, %v2857, %v2859
        %v2861 = vshll.u32 %v2821, 8
        %v2862 = vmul.u32.u64.compose %v2861, %v2860
        %v2863 = vextract.low.u32 %v2862
        %v2864 = vextract.high.u32 %v2862
        %v2865 = vmul.u32.u64.compose %v2861, %v2856
        %v2866 = vextract.low.u32 %v2865
        %v2867 = vextract.high.u32 %v2865
        %v2868 = vmul.u32 %v2861, %v2852
        %v2869 = vadd.s32 %v2864, %v2866
        %vm2870 = vc.u32 %v2864, %v2866
        %v2871 = vadd.s32 %v2867, 1
        %v2872 = vsel %vm2870, %v2871, %v2867
        %v2873 = vadd.s32 %v2868, %v2872
        %v2874 = vadd.s32 %v2873, 536870912
        %v2875 = vshrl.u32 %v2874, 30
        %v2876 = vshll.u32 %v2875, 30
        %v2877 = vsub.s32 %v2873, %v2876
        %vm2878 = vcmp.lt.s32.totalorder %v2877, 0
        %v2879 = vsub.s32 0, %v2877
        %v2880 = vsel %vm2878, %v2879, %v2877
        %v2881 = vclz %v2880
        %v2882 = vsub.s32 %v2881, 2
        %vm2883 = vcmp.gt.s32.totalorder 0, %v2882
        %v2884 = vsel %vm2883, 0, %v2882
        %v2885 = vsub.s32 32, %v2884
        %v2886 = vshll.u32 %v2877, %v2884
        %v2887 = vshrl.u32 %v2869, %v2885
        %v2888 = vor.u32 %v2886, %v2887
        %v2889 = vsub.s32 4294967266, %v2884
        %v2890 = vadd.s32 %v2889, 127
        %v2891 = vshll.u32 %v2890, 23
        %v2892 = vor.u32 4788187, %v2891
        %v2893 = vand.u32 2147483647, %v2892
        %v2895 = vcvt.s32.f32 %v2888
        %v2896 = vmul.f32 %v2895, %v2893
        %v2897 = vxor.u32 %v2896, 2147483648
        %v2898 = vsel %vm2815, %v2897, %v2896
        %v2899 = vsub.s32 4, %v2875
        %v2900 = vsel %vm2815, %v2899, %v2875
        %v2901 = vsel %vm2814, %v2498, %v2898
        %v2902 = vsel %vm2814, 0, %v2900
        %v2903 = vcosq.f32.pop %v2901
        %v2904 = vsinq.f32.pop %v2901
        %vm2905 = vweird.f32 %v2498
        %v2906 = vadd.s32 %v2902, 3
        %v2907 = vand.u32 %v2906, 3
        %vm2908 = vcmp.lt.s32.totalorder %v2907, 2
        %vm2909 = vcmp.eq.s32.totalorder %v2907, 0
        %v2910 = vxor.u32 %v2904, 2147483648
        %v2911 = vsel %vm2909, %v2903, %v2910
        %vm2912 = vcmp.eq.s32.totalorder %v2907, 2
        %v2913 = vxor.u32 %v2903, 2147483648
        %v2914 = vsel %vm2912, %v2913, %v2904
        %v2915 = vsel %vm2908, %v2911, %v2914
        %v2916 = vsel %vm2905, nan, %v2915
        %v2917 = vld [vmem:[%s3] sm:$0xff]
        %v2918 = vld [vmem:[%s3 + $0x8] sm:$0xff]
        %v2919 = vld [vmem:[%s3 + $0x10] sm:$0xff]
        %v2920 = vld [vmem:[%s3 + $0x18] sm:$0xff]
        %v2921 = vld [vmem:[%s3 + $0x20] sm:$0xff]
        %v2922 = vld [vmem:[%s3 + $0x28] sm:$0xff]
        %v2923 = vld [vmem:[%s3 + $0x30] sm:$0xff]
        %v2924 = vld [vmem:[%s3 + $0x38] sm:$0xff]
        %v2925 = vld [vmem:[%s3 + $0x40] sm:$0xff]
        %v2926 = vld [vmem:[%s3 + $0x48] sm:$0xff]
        %v2927 = vld [vmem:[%s3 + $0x50] sm:$0xff]
        %v2928 = vld [vmem:[%s3 + $0x58] sm:$0xff]
        %v2929 = vld [vmem:[%s3 + $0x60] sm:$0xff]
        %v2930 = vld [vmem:[%s3 + $0x68] sm:$0xff]
        %v2931 = vld [vmem:[%s3 + $0x70] sm:$0xff]
        %v2932 = vld [vmem:[%s3 + $0x78] sm:$0xff]
        %v2933 = vld [vmem:[%s3 + $0x80] sm:$0xff]
        %v2934 = vld [vmem:[%s3 + $0x88] sm:$0xff]
        %v2935 = vld [vmem:[%s3 + $0x90] sm:$0xff]
        %v2936 = vld [vmem:[%s3 + $0x98] sm:$0xff]
        %v2937 = vld [vmem:[%s3 + $0xa0] sm:$0xff]
        %v2938 = vld [vmem:[%s3 + $0xa8] sm:$0xff]
        %v2939 = vld [vmem:[%s3 + $0xb0] sm:$0xff]
        %v2940 = vld [vmem:[%s3 + $0xb8] sm:$0xff]
        %v2941 = vld [vmem:[%s3 + $0xc0] sm:$0xff]
        %v2942 = vld [vmem:[%s3 + $0xc8] sm:$0xff]
        %v2943 = vld [vmem:[%s3 + $0xd0] sm:$0xff]
        %v2944 = vld [vmem:[%s3 + $0xd8] sm:$0xff]
        %v2945 = vld [vmem:[%s3 + $0xe0] sm:$0xff]
        %v2946 = vld [vmem:[%s3 + $0xe8] sm:$0xff]
        %v2947 = vld [vmem:[%s3 + $0xf0] sm:$0xff]
        %v2948 = vld [vmem:[%s3 + $0xf8] sm:$0xff]
        %2950 = vset.pattern.permute.xlu0 32
        %2951 = vperm.xlu0 %2950, %v2917
        %v2952 = vpop.permute.xlu0 %2951
        %2955 = vset.pattern.permute.xlu0 32
        %2956 = vperm.xlu0 %2955, %v2918
        %v2957 = vpop.permute.xlu0 %2956
        %2960 = vset.pattern.permute.xlu0 32
        %2961 = vperm.xlu0 %2960, %v2919
        %v2962 = vpop.permute.xlu0 %2961
        %2965 = vset.pattern.permute.xlu0 32
        %2966 = vperm.xlu0 %2965, %v2920
        %v2967 = vpop.permute.xlu0 %2966
        %2970 = vset.pattern.permute.xlu0 32
        %2971 = vperm.xlu0 %2970, %v2921
        %v2972 = vpop.permute.xlu0 %2971
        %2975 = vset.pattern.permute.xlu0 32
        %2976 = vperm.xlu0 %2975, %v2922
        %v2977 = vpop.permute.xlu0 %2976
        %2980 = vset.pattern.permute.xlu0 32
        %2981 = vperm.xlu0 %2980, %v2923
        %v2982 = vpop.permute.xlu0 %2981
        %2985 = vset.pattern.permute.xlu0 32
        %2986 = vperm.xlu0 %2985, %v2924
        %v2987 = vpop.permute.xlu0 %2986
        %2990 = vset.pattern.permute.xlu0 32
        %2991 = vperm.xlu0 %2990, %v2925
        %v2992 = vpop.permute.xlu0 %2991
        %2995 = vset.pattern.permute.xlu0 32
        %2996 = vperm.xlu0 %2995, %v2926
        %v2997 = vpop.permute.xlu0 %2996
        %3000 = vset.pattern.permute.xlu0 32
        %3001 = vperm.xlu0 %3000, %v2927
        %v3002 = vpop.permute.xlu0 %3001
        %3005 = vset.pattern.permute.xlu0 32
        %3006 = vperm.xlu0 %3005, %v2928
        %v3007 = vpop.permute.xlu0 %3006
        %3010 = vset.pattern.permute.xlu0 32
        %3011 = vperm.xlu0 %3010, %v2929
        %v3012 = vpop.permute.xlu0 %3011
        %3015 = vset.pattern.permute.xlu0 32
        %3016 = vperm.xlu0 %3015, %v2930
        %v3017 = vpop.permute.xlu0 %3016
        %3020 = vset.pattern.permute.xlu0 32
        %3021 = vperm.xlu0 %3020, %v2931
        %v3022 = vpop.permute.xlu0 %3021
        %3025 = vset.pattern.permute.xlu0 32
        %3026 = vperm.xlu0 %3025, %v2932
        %v3027 = vpop.permute.xlu0 %3026
        %3030 = vset.pattern.permute.xlu0 32
        %3031 = vperm.xlu0 %3030, %v2933
        %v3032 = vpop.permute.xlu0 %3031
        %3035 = vset.pattern.permute.xlu0 32
        %3036 = vperm.xlu0 %3035, %v2934
        %v3037 = vpop.permute.xlu0 %3036
        %3040 = vset.pattern.permute.xlu0 32
        %3041 = vperm.xlu0 %3040, %v2935
        %v3042 = vpop.permute.xlu0 %3041
        %3045 = vset.pattern.permute.xlu0 32
        %3046 = vperm.xlu0 %3045, %v2936
        %v3047 = vpop.permute.xlu0 %3046
        %3050 = vset.pattern.permute.xlu0 32
        %3051 = vperm.xlu0 %3050, %v2937
        %v3052 = vpop.permute.xlu0 %3051
        %3055 = vset.pattern.permute.xlu0 32
        %3056 = vperm.xlu0 %3055, %v2938
        %v3057 = vpop.permute.xlu0 %3056
        %3060 = vset.pattern.permute.xlu0 32
        %3061 = vperm.xlu0 %3060, %v2939
        %v3062 = vpop.permute.xlu0 %3061
        %3065 = vset.pattern.permute.xlu0 32
        %3066 = vperm.xlu0 %3065, %v2940
        %v3067 = vpop.permute.xlu0 %3066
        %3070 = vset.pattern.permute.xlu0 32
        %3071 = vperm.xlu0 %3070, %v2941
        %v3072 = vpop.permute.xlu0 %3071
        %3075 = vset.pattern.permute.xlu0 32
        %3076 = vperm.xlu0 %3075, %v2942
        %v3077 = vpop.permute.xlu0 %3076
        %3080 = vset.pattern.permute.xlu0 32
        %3081 = vperm.xlu0 %3080, %v2943
        %v3082 = vpop.permute.xlu0 %3081
        %3085 = vset.pattern.permute.xlu0 32
        %3086 = vperm.xlu0 %3085, %v2944
        %v3087 = vpop.permute.xlu0 %3086
        %3090 = vset.pattern.permute.xlu0 32
        %3091 = vperm.xlu0 %3090, %v2945
        %v3092 = vpop.permute.xlu0 %3091
        %3095 = vset.pattern.permute.xlu0 32
        %3096 = vperm.xlu0 %3095, %v2946
        %v3097 = vpop.permute.xlu0 %3096
        %3100 = vset.pattern.permute.xlu0 32
        %3101 = vperm.xlu0 %3100, %v2947
        %v3102 = vpop.permute.xlu0 %3101
        %3105 = vset.pattern.permute.xlu0 32
        %3106 = vperm.xlu0 %3105, %v2948
        %v3107 = vpop.permute.xlu0 %3106
        %v3109 = vsel %vm815, %v2917, 0
        %v3111 = vsel %vm815, %v2918, 0
        %v3113 = vsel %vm815, %v2919, 0
        %v3115 = vsel %vm815, %v2920, 0
        %v3117 = vsel %vm815, %v2921, 0
        %v3119 = vsel %vm815, %v2922, 0
        %v3121 = vsel %vm815, %v2923, 0
        %v3123 = vsel %vm815, %v2924, 0
        %v3125 = vsel %vm815, %v2925, 0
        %v3127 = vsel %vm815, %v2926, 0
        %v3129 = vsel %vm815, %v2927, 0
        %v3131 = vsel %vm815, %v2928, 0
        %v3133 = vsel %vm815, %v2929, 0
        %v3135 = vsel %vm815, %v2930, 0
        %v3137 = vsel %vm815, %v2931, 0
        %v3139 = vsel %vm815, %v2932, 0
        %v3141 = vsel %vm815, %v2933, 0
        %v3143 = vsel %vm815, %v2934, 0
        %v3145 = vsel %vm815, %v2935, 0
        %v3147 = vsel %vm815, %v2936, 0
        %v3149 = vsel %vm815, %v2937, 0
        %v3151 = vsel %vm815, %v2938, 0
        %v3153 = vsel %vm815, %v2939, 0
        %v3155 = vsel %vm815, %v2940, 0
        %v3157 = vsel %vm815, %v2941, 0
        %v3159 = vsel %vm815, %v2942, 0
        %v3161 = vsel %vm815, %v2943, 0
        %v3163 = vsel %vm815, %v2944, 0
        %v3165 = vsel %vm815, %v2945, 0
        %v3167 = vsel %vm815, %v2946, 0
        %v3169 = vsel %vm815, %v2947, 0
        %v3171 = vsel %vm815, %v2948, 0
        %3173 = vmatprep.subr.mxu0 0.0
        %3174 = vmatpush1.msra.mxu0 0.0
        %3175 = vmatprep.subr.mxu0 0.0
        %3176 = vmatpush1.msra.mxu0 0.0
        %3177 = vmatprep.subr.mxu0 0.0
        %3178 = vmatpush1.msra.mxu0 0.0
        %3179 = vmatprep.subr.mxu0 0.0
        %3180 = vmatpush1.msra.mxu0 0.0
        %3181 = vmatprep.subr.mxu0 0.0
        %3182 = vmatpush1.msra.mxu0 0.0
        %3183 = vmatprep.subr.mxu0 0.0
        %3184 = vmatpush1.msra.mxu0 0.0
        %3185 = vmatprep.subr.mxu0 0.0
        %3186 = vmatpush1.msra.mxu0 0.0
        %3187 = vmatprep.subr.mxu0 0.0
        %3188 = vmatpush1.msra.mxu0 0.0
        %3189 = vmatprep.subr.mxu0 0.0
        %3190 = vmatpush1.msra.mxu0 0.0
        %3191 = vmatprep.subr.mxu0 0.0
        %3192 = vmatpush1.msra.mxu0 0.0
        %3193 = vmatprep.subr.mxu0 0.0
        %3194 = vmatpush1.msra.mxu0 0.0
        %3195 = vmatprep.subr.mxu0 0.0
        %3196 = vmatpush1.msra.mxu0 0.0
        %3197 = vmatprep.subr.mxu0 0.0
        %v3198 = vand.u32 %v2916, 4294901760
        %3199 = vmatpush1.msra.mxu0 %v3198
        %3200 = vmatprep.subr.mxu0 0.0
        %v3201 = vand.u32 %v2812, 4294901760
        %3202 = vmatpush1.msra.mxu0 %v3201
        %3203 = vmatprep.subr.mxu0 0.0
        %v3204 = vand.u32 %v2708, 4294901760
        %3205 = vmatpush1.msra.mxu0 %v3204
        %3206 = vmatprep.subr.mxu0 0.0
        %v3207 = vand.u32 %v2604, 4294901760
        %3208 = vmatpush1.msra.mxu0 %v3207
        %3209 = vmatprep.subr.mxu0 0.0
        %3210 = vmatpush2.msra.mxu0 0.0
        %3211 = vmatprep.subr.mxu0 0.0
        %3212 = vmatpush2.msra.mxu0 0.0
        %3213 = vmatprep.subr.mxu0 0.0
        %3214 = vmatpush2.msra.mxu0 0.0
        %3215 = vmatprep.subr.mxu0 0.0
        %3216 = vmatpush2.msra.mxu0 0.0
        %3217 = vmatprep.subr.mxu0 0.0
        %3218 = vmatpush2.msra.mxu0 0.0
        %3219 = vmatprep.subr.mxu0 0.0
        %3220 = vmatpush2.msra.mxu0 0.0
        %3221 = vmatprep.subr.mxu0 0.0
        %3222 = vmatpush2.msra.mxu0 0.0
        %3223 = vmatprep.subr.mxu0 0.0
        %3224 = vmatpush2.msra.mxu0 0.0
        %3225 = vmatprep.subr.mxu0 0.0
        %3226 = vmatpush2.msra.mxu0 0.0
        %3227 = vmatprep.subr.mxu0 0.0
        %3228 = vmatpush2.msra.mxu0 0.0
        %3229 = vmatprep.subr.mxu0 0.0
        %3230 = vmatpush2.msra.mxu0 0.0
        %3231 = vmatprep.subr.mxu0 0.0
        %3232 = vmatpush2.msra.mxu0 0.0
        %3233 = vmatprep.subr.mxu0 0.0
        %3234 = vmatpush2.msra.mxu0 0.0
        %3235 = vmatprep.subr.mxu0 0.0
        %3236 = vmatpush2.msra.mxu0 0.0
        %3237 = vmatprep.subr.mxu0 0.0
        %3238 = vmatpush2.msra.mxu0 0.0
        %3239 = vmatprep.subr.mxu0 0.0
        %3240 = vmatpush2.msra.mxu0 0.0
        %3241 = vmatprep.mubr.f32.mxu0 0.0
        %v3242 = vand.u32 %v3109, 4294901760
        %v3243 = vsub.f32 %v3109, %v3242
        %v3244 = vand.u32 %v3243, 4294901760
        %v3245 = vsub.f32 %v3243, %v3244
        %v3246 = vand.u32 %v3245, 4294901760
        %3247 = vmatmul.mubr.f32.gmra.mxu0 %v3246
        %v3248 = vpop.f32.mrf.mxu0
        %v3249 = vadd.f32 %v2952, %v3248
        %v3250 = vpop.f32.mrf.mxu0
        %3251 = vmatprep.mubr.f32.mxu0 0.0
        %v3252 = vand.u32 %v3111, 4294901760
        %v3253 = vsub.f32 %v3111, %v3252
        %v3254 = vand.u32 %v3253, 4294901760
        %v3255 = vsub.f32 %v3253, %v3254
        %v3256 = vand.u32 %v3255, 4294901760
        %3257 = vmatmul.mubr.f32.gmra.mxu0 %v3256
        %v3258 = vpop.f32.mrf.mxu0
        %v3259 = vadd.f32 %v2957, %v3258
        %v3260 = vpop.f32.mrf.mxu0
        %3261 = vmatprep.mubr.f32.mxu0 0.0
        %v3262 = vand.u32 %v3113, 4294901760
        %v3263 = vsub.f32 %v3113, %v3262
        %v3264 = vand.u32 %v3263, 4294901760
        %v3265 = vsub.f32 %v3263, %v3264
        %v3266 = vand.u32 %v3265, 4294901760
        %3267 = vmatmul.mubr.f32.gmra.mxu0 %v3266
        %v3268 = vpop.f32.mrf.mxu0
        %v3269 = vadd.f32 %v2962, %v3268
        %v3270 = vpop.f32.mrf.mxu0
        %3271 = vmatprep.mubr.f32.mxu0 0.0
        %v3272 = vand.u32 %v3115, 4294901760
        %v3273 = vsub.f32 %v3115, %v3272
        %v3274 = vand.u32 %v3273, 4294901760
        %v3275 = vsub.f32 %v3273, %v3274
        %v3276 = vand.u32 %v3275, 4294901760
        %3277 = vmatmul.mubr.f32.gmra.mxu0 %v3276
        %v3278 = vpop.f32.mrf.mxu0
        %v3279 = vadd.f32 %v2967, %v3278
        %v3280 = vpop.f32.mrf.mxu0
        %3281 = vmatprep.mubr.f32.mxu0 0.0
        %v3282 = vand.u32 %v3117, 4294901760
        %v3283 = vsub.f32 %v3117, %v3282
        %v3284 = vand.u32 %v3283, 4294901760
        %v3285 = vsub.f32 %v3283, %v3284
        %v3286 = vand.u32 %v3285, 4294901760
        %3287 = vmatmul.mubr.f32.gmra.mxu0 %v3286
        %v3288 = vpop.f32.mrf.mxu0
        %v3289 = vadd.f32 %v2972, %v3288
        %v3290 = vpop.f32.mrf.mxu0
        %3291 = vmatprep.mubr.f32.mxu0 0.0
        %v3292 = vand.u32 %v3119, 4294901760
        %v3293 = vsub.f32 %v3119, %v3292
        %v3294 = vand.u32 %v3293, 4294901760
        %v3295 = vsub.f32 %v3293, %v3294
        %v3296 = vand.u32 %v3295, 4294901760
        %3297 = vmatmul.mubr.f32.gmra.mxu0 %v3296
        %v3298 = vpop.f32.mrf.mxu0
        %v3299 = vadd.f32 %v2977, %v3298
        %v3300 = vpop.f32.mrf.mxu0
        %3301 = vmatprep.mubr.f32.mxu0 0.0
        %v3302 = vand.u32 %v3121, 4294901760
        %v3303 = vsub.f32 %v3121, %v3302
        %v3304 = vand.u32 %v3303, 4294901760
        %v3305 = vsub.f32 %v3303, %v3304
        %v3306 = vand.u32 %v3305, 4294901760
        %3307 = vmatmul.mubr.f32.gmra.mxu0 %v3306
        %v3308 = vpop.f32.mrf.mxu0
        %v3309 = vadd.f32 %v2982, %v3308
        %v3310 = vpop.f32.mrf.mxu0
        %3311 = vmatprep.mubr.f32.mxu0 0.0
        %v3312 = vand.u32 %v3123, 4294901760
        %v3313 = vsub.f32 %v3123, %v3312
        %v3314 = vand.u32 %v3313, 4294901760
        %v3315 = vsub.f32 %v3313, %v3314
        %v3316 = vand.u32 %v3315, 4294901760
        %3317 = vmatmul.mubr.f32.gmra.mxu0 %v3316
        %v3318 = vpop.f32.mrf.mxu0
        %v3319 = vadd.f32 %v2987, %v3318
        %v3320 = vpop.f32.mrf.mxu0
        %3321 = vmatprep.mubr.f32.mxu0 0.0
        %v3322 = vand.u32 %v3125, 4294901760
        %v3323 = vsub.f32 %v3125, %v3322
        %v3324 = vand.u32 %v3323, 4294901760
        %v3325 = vsub.f32 %v3323, %v3324
        %v3326 = vand.u32 %v3325, 4294901760
        %3327 = vmatmul.mubr.f32.gmra.mxu0 %v3326
        %v3328 = vpop.f32.mrf.mxu0
        %v3329 = vadd.f32 %v2992, %v3328
        %v3330 = vpop.f32.mrf.mxu0
        %3331 = vmatprep.mubr.f32.mxu0 0.0
        %v3332 = vand.u32 %v3127, 4294901760
        %v3333 = vsub.f32 %v3127, %v3332
        %v3334 = vand.u32 %v3333, 4294901760
        %v3335 = vsub.f32 %v3333, %v3334
        %v3336 = vand.u32 %v3335, 4294901760
        %3337 = vmatmul.mubr.f32.gmra.mxu0 %v3336
        %v3338 = vpop.f32.mrf.mxu0
        %v3339 = vadd.f32 %v2997, %v3338
        %v3340 = vpop.f32.mrf.mxu0
        %3341 = vmatprep.mubr.f32.mxu0 0.0
        %v3342 = vand.u32 %v3129, 4294901760
        %v3343 = vsub.f32 %v3129, %v3342
        %v3344 = vand.u32 %v3343, 4294901760
        %v3345 = vsub.f32 %v3343, %v3344
        %v3346 = vand.u32 %v3345, 4294901760
        %3347 = vmatmul.mubr.f32.gmra.mxu0 %v3346
        %v3348 = vpop.f32.mrf.mxu0
        %v3349 = vadd.f32 %v3002, %v3348
        %v3350 = vpop.f32.mrf.mxu0
        %3351 = vmatprep.mubr.f32.mxu0 0.0
        %v3352 = vand.u32 %v3131, 4294901760
        %v3353 = vsub.f32 %v3131, %v3352
        %v3354 = vand.u32 %v3353, 4294901760
        %v3355 = vsub.f32 %v3353, %v3354
        %v3356 = vand.u32 %v3355, 4294901760
        %3357 = vmatmul.mubr.f32.gmra.mxu0 %v3356
        %v3358 = vpop.f32.mrf.mxu0
        %v3359 = vadd.f32 %v3007, %v3358
        %v3360 = vpop.f32.mrf.mxu0
        %3361 = vmatprep.mubr.f32.mxu0 0.0
        %v3362 = vand.u32 %v3133, 4294901760
        %v3363 = vsub.f32 %v3133, %v3362
        %v3364 = vand.u32 %v3363, 4294901760
        %v3365 = vsub.f32 %v3363, %v3364
        %v3366 = vand.u32 %v3365, 4294901760
        %3367 = vmatmul.mubr.f32.gmra.mxu0 %v3366
        %v3368 = vpop.f32.mrf.mxu0
        %v3369 = vadd.f32 %v3012, %v3368
        %v3370 = vpop.f32.mrf.mxu0
        %3371 = vmatprep.mubr.f32.mxu0 0.0
        %v3372 = vand.u32 %v3135, 4294901760
        %v3373 = vsub.f32 %v3135, %v3372
        %v3374 = vand.u32 %v3373, 4294901760
        %v3375 = vsub.f32 %v3373, %v3374
        %v3376 = vand.u32 %v3375, 4294901760
        %3377 = vmatmul.mubr.f32.gmra.mxu0 %v3376
        %v3378 = vpop.f32.mrf.mxu0
        %v3379 = vadd.f32 %v3017, %v3378
        %v3380 = vpop.f32.mrf.mxu0
        %3381 = vmatprep.mubr.f32.mxu0 0.0
        %v3382 = vand.u32 %v3137, 4294901760
        %v3383 = vsub.f32 %v3137, %v3382
        %v3384 = vand.u32 %v3383, 4294901760
        %v3385 = vsub.f32 %v3383, %v3384
        %v3386 = vand.u32 %v3385, 4294901760
        %3387 = vmatmul.mubr.f32.gmra.mxu0 %v3386
        %v3388 = vpop.f32.mrf.mxu0
        %v3389 = vadd.f32 %v3022, %v3388
        %v3390 = vpop.f32.mrf.mxu0
        %3391 = vmatprep.mubr.f32.mxu0 0.0
        %v3392 = vand.u32 %v3139, 4294901760
        %v3393 = vsub.f32 %v3139, %v3392
        %v3394 = vand.u32 %v3393, 4294901760
        %v3395 = vsub.f32 %v3393, %v3394
        %v3396 = vand.u32 %v3395, 4294901760
        %3397 = vmatmul.mubr.f32.gmra.mxu0 %v3396
        %v3398 = vpop.f32.mrf.mxu0
        %v3399 = vadd.f32 %v3027, %v3398
        %v3400 = vpop.f32.mrf.mxu0
        %3401 = vmatprep.mubr.f32.mxu0 0.0
        %v3402 = vand.u32 %v3141, 4294901760
        %v3403 = vsub.f32 %v3141, %v3402
        %v3404 = vand.u32 %v3403, 4294901760
        %v3405 = vsub.f32 %v3403, %v3404
        %v3406 = vand.u32 %v3405, 4294901760
        %3407 = vmatmul.mubr.f32.gmra.mxu0 %v3406
        %v3408 = vpop.f32.mrf.mxu0
        %v3409 = vadd.f32 %v3032, %v3408
        %v3410 = vpop.f32.mrf.mxu0
        %3411 = vmatprep.mubr.f32.mxu0 0.0
        %v3412 = vand.u32 %v3143, 4294901760
        %v3413 = vsub.f32 %v3143, %v3412
        %v3414 = vand.u32 %v3413, 4294901760
        %v3415 = vsub.f32 %v3413, %v3414
        %v3416 = vand.u32 %v3415, 4294901760
        %3417 = vmatmul.mubr.f32.gmra.mxu0 %v3416
        %v3418 = vpop.f32.mrf.mxu0
        %v3419 = vadd.f32 %v3037, %v3418
        %v3420 = vpop.f32.mrf.mxu0
        %3421 = vmatprep.mubr.f32.mxu0 0.0
        %v3422 = vand.u32 %v3145, 4294901760
        %v3423 = vsub.f32 %v3145, %v3422
        %v3424 = vand.u32 %v3423, 4294901760
        %v3425 = vsub.f32 %v3423, %v3424
        %v3426 = vand.u32 %v3425, 4294901760
        %3427 = vmatmul.mubr.f32.gmra.mxu0 %v3426
        %v3428 = vpop.f32.mrf.mxu0
        %v3429 = vadd.f32 %v3042, %v3428
        %v3430 = vpop.f32.mrf.mxu0
        %3431 = vmatprep.mubr.f32.mxu0 0.0
        %v3432 = vand.u32 %v3147, 4294901760
        %v3433 = vsub.f32 %v3147, %v3432
        %v3434 = vand.u32 %v3433, 4294901760
        %v3435 = vsub.f32 %v3433, %v3434
        %v3436 = vand.u32 %v3435, 4294901760
        %3437 = vmatmul.mubr.f32.gmra.mxu0 %v3436
        %v3438 = vpop.f32.mrf.mxu0
        %v3439 = vadd.f32 %v3047, %v3438
        %v3440 = vpop.f32.mrf.mxu0
        %3441 = vmatprep.mubr.f32.mxu0 0.0
        %v3442 = vand.u32 %v3149, 4294901760
        %v3443 = vsub.f32 %v3149, %v3442
        %v3444 = vand.u32 %v3443, 4294901760
        %v3445 = vsub.f32 %v3443, %v3444
        %v3446 = vand.u32 %v3445, 4294901760
        %3447 = vmatmul.mubr.f32.gmra.mxu0 %v3446
        %v3448 = vpop.f32.mrf.mxu0
        %v3449 = vadd.f32 %v3052, %v3448
        %v3450 = vpop.f32.mrf.mxu0
        %3451 = vmatprep.mubr.f32.mxu0 0.0
        %v3452 = vand.u32 %v3151, 4294901760
        %v3453 = vsub.f32 %v3151, %v3452
        %v3454 = vand.u32 %v3453, 4294901760
        %v3455 = vsub.f32 %v3453, %v3454
        %v3456 = vand.u32 %v3455, 4294901760
        %3457 = vmatmul.mubr.f32.gmra.mxu0 %v3456
        %v3458 = vpop.f32.mrf.mxu0
        %v3459 = vadd.f32 %v3057, %v3458
        %v3460 = vpop.f32.mrf.mxu0
        %3461 = vmatprep.mubr.f32.mxu0 0.0
        %v3462 = vand.u32 %v3153, 4294901760
        %v3463 = vsub.f32 %v3153, %v3462
        %v3464 = vand.u32 %v3463, 4294901760
        %v3465 = vsub.f32 %v3463, %v3464
        %v3466 = vand.u32 %v3465, 4294901760
        %3467 = vmatmul.mubr.f32.gmra.mxu0 %v3466
        %v3468 = vpop.f32.mrf.mxu0
        %v3469 = vadd.f32 %v3062, %v3468
        %v3470 = vpop.f32.mrf.mxu0
        %3471 = vmatprep.mubr.f32.mxu0 0.0
        %v3472 = vand.u32 %v3155, 4294901760
        %v3473 = vsub.f32 %v3155, %v3472
        %v3474 = vand.u32 %v3473, 4294901760
        %v3475 = vsub.f32 %v3473, %v3474
        %v3476 = vand.u32 %v3475, 4294901760
        %3477 = vmatmul.mubr.f32.gmra.mxu0 %v3476
        %v3478 = vpop.f32.mrf.mxu0
        %v3479 = vadd.f32 %v3067, %v3478
        %v3480 = vpop.f32.mrf.mxu0
        %3481 = vmatprep.mubr.f32.mxu0 0.0
        %v3482 = vand.u32 %v3157, 4294901760
        %v3483 = vsub.f32 %v3157, %v3482
        %v3484 = vand.u32 %v3483, 4294901760
        %v3485 = vsub.f32 %v3483, %v3484
        %v3486 = vand.u32 %v3485, 4294901760
        %3487 = vmatmul.mubr.f32.gmra.mxu0 %v3486
        %v3488 = vpop.f32.mrf.mxu0
        %v3489 = vadd.f32 %v3072, %v3488
        %v3490 = vpop.f32.mrf.mxu0
        %3491 = vmatprep.mubr.f32.mxu0 0.0
        %v3492 = vand.u32 %v3159, 4294901760
        %v3493 = vsub.f32 %v3159, %v3492
        %v3494 = vand.u32 %v3493, 4294901760
        %v3495 = vsub.f32 %v3493, %v3494
        %v3496 = vand.u32 %v3495, 4294901760
        %3497 = vmatmul.mubr.f32.gmra.mxu0 %v3496
        %v3498 = vpop.f32.mrf.mxu0
        %v3499 = vadd.f32 %v3077, %v3498
        %v3500 = vpop.f32.mrf.mxu0
        %3501 = vmatprep.mubr.f32.mxu0 0.0
        %v3502 = vand.u32 %v3161, 4294901760
        %v3503 = vsub.f32 %v3161, %v3502
        %v3504 = vand.u32 %v3503, 4294901760
        %v3505 = vsub.f32 %v3503, %v3504
        %v3506 = vand.u32 %v3505, 4294901760
        %3507 = vmatmul.mubr.f32.gmra.mxu0 %v3506
        %v3508 = vpop.f32.mrf.mxu0
        %v3509 = vadd.f32 %v3082, %v3508
        %v3510 = vpop.f32.mrf.mxu0
        %3511 = vmatprep.mubr.f32.mxu0 0.0
        %v3512 = vand.u32 %v3163, 4294901760
        %v3513 = vsub.f32 %v3163, %v3512
        %v3514 = vand.u32 %v3513, 4294901760
        %v3515 = vsub.f32 %v3513, %v3514
        %v3516 = vand.u32 %v3515, 4294901760
        %3517 = vmatmul.mubr.f32.gmra.mxu0 %v3516
        %v3518 = vpop.f32.mrf.mxu0
        %v3519 = vadd.f32 %v3087, %v3518
        %v3520 = vpop.f32.mrf.mxu0
        %3521 = vmatprep.mubr.f32.mxu0 0.0
        %v3522 = vand.u32 %v3165, 4294901760
        %v3523 = vsub.f32 %v3165, %v3522
        %v3524 = vand.u32 %v3523, 4294901760
        %v3525 = vsub.f32 %v3523, %v3524
        %v3526 = vand.u32 %v3525, 4294901760
        %3527 = vmatmul.mubr.f32.gmra.mxu0 %v3526
        %v3528 = vpop.f32.mrf.mxu0
        %v3529 = vadd.f32 %v3092, %v3528
        %v3530 = vpop.f32.mrf.mxu0
        %3531 = vmatprep.mubr.f32.mxu0 0.0
        %v3532 = vand.u32 %v3167, 4294901760
        %v3533 = vsub.f32 %v3167, %v3532
        %v3534 = vand.u32 %v3533, 4294901760
        %v3535 = vsub.f32 %v3533, %v3534
        %v3536 = vand.u32 %v3535, 4294901760
        %3537 = vmatmul.mubr.f32.gmra.mxu0 %v3536
        %v3538 = vpop.f32.mrf.mxu0
        %v3539 = vadd.f32 %v3097, %v3538
        %v3540 = vpop.f32.mrf.mxu0
        %3541 = vmatprep.mubr.f32.mxu0 0.0
        %v3542 = vand.u32 %v3169, 4294901760
        %v3543 = vsub.f32 %v3169, %v3542
        %v3544 = vand.u32 %v3543, 4294901760
        %v3545 = vsub.f32 %v3543, %v3544
        %v3546 = vand.u32 %v3545, 4294901760
        %3547 = vmatmul.mubr.f32.gmra.mxu0 %v3546
        %v3548 = vpop.f32.mrf.mxu0
        %v3549 = vadd.f32 %v3102, %v3548
        %v3550 = vpop.f32.mrf.mxu0
        %3551 = vmatprep.mubr.f32.mxu0 0.0
        %v3552 = vand.u32 %v3171, 4294901760
        %v3553 = vsub.f32 %v3171, %v3552
        %v3554 = vand.u32 %v3553, 4294901760
        %v3555 = vsub.f32 %v3553, %v3554
        %v3556 = vand.u32 %v3555, 4294901760
        %3557 = vmatmul.mubr.f32.gmra.mxu0 %v3556
        %v3558 = vpop.f32.mrf.mxu0
        %v3559 = vadd.f32 %v3107, %v3558
        %v3560 = vpop.f32.mrf.mxu0
        %3561 = vdwg.mxu0
        %3562 = vmatprep.subr.mxu0 0.0
        %3563 = vmatpush1.msra.mxu0 0.0
        %3564 = vmatprep.subr.mxu0 0.0
        %3565 = vmatpush1.msra.mxu0 0.0
        %3566 = vmatprep.subr.mxu0 0.0
        %3567 = vmatpush1.msra.mxu0 0.0
        %3568 = vmatprep.subr.mxu0 0.0
        %3569 = vmatpush1.msra.mxu0 0.0
        %3570 = vmatprep.subr.mxu0 0.0
        %3571 = vmatpush1.msra.mxu0 0.0
        %3572 = vmatprep.subr.mxu0 0.0
        %3573 = vmatpush1.msra.mxu0 0.0
        %3574 = vmatprep.subr.mxu0 0.0
        %3575 = vmatpush1.msra.mxu0 0.0
        %3576 = vmatprep.subr.mxu0 0.0
        %3577 = vmatpush1.msra.mxu0 0.0
        %3578 = vmatprep.subr.mxu0 0.0
        %3579 = vmatpush1.msra.mxu0 0.0
        %3580 = vmatprep.subr.mxu0 0.0
        %3581 = vmatpush1.msra.mxu0 0.0
        %3582 = vmatprep.subr.mxu0 0.0
        %3583 = vmatpush1.msra.mxu0 0.0
        %3584 = vmatprep.subr.mxu0 0.0
        %3585 = vmatpush1.msra.mxu0 0.0
        %3586 = vmatprep.subr.mxu0 0.0
        %v3587 = vand.u32 %v2916, 4294901760
        %v3588 = vsub.f32 %v2916, %v3587
        %v3589 = vand.u32 %v3588, 4294901760
        %v3590 = vsub.f32 %v3588, %v3589
        %v3591 = vand.u32 %v3590, 4294901760
        %3592 = vmatpush1.msra.mxu0 %v3591
        %3593 = vmatprep.subr.mxu0 0.0
        %v3594 = vand.u32 %v2812, 4294901760
        %v3595 = vsub.f32 %v2812, %v3594
        %v3596 = vand.u32 %v3595, 4294901760
        %v3597 = vsub.f32 %v3595, %v3596
        %v3598 = vand.u32 %v3597, 4294901760
        %3599 = vmatpush1.msra.mxu0 %v3598
        %3600 = vmatprep.subr.mxu0 0.0
        %v3601 = vand.u32 %v2708, 4294901760
        %v3602 = vsub.f32 %v2708, %v3601
        %v3603 = vand.u32 %v3602, 4294901760
        %v3604 = vsub.f32 %v3602, %v3603
        %v3605 = vand.u32 %v3604, 4294901760
        %3606 = vmatpush1.msra.mxu0 %v3605
        %3607 = vmatprep.subr.mxu0 0.0
        %v3608 = vand.u32 %v2604, 4294901760
        %v3609 = vsub.f32 %v2604, %v3608
        %v3610 = vand.u32 %v3609, 4294901760
        %v3611 = vsub.f32 %v3609, %v3610
        %v3612 = vand.u32 %v3611, 4294901760
        %3613 = vmatpush1.msra.mxu0 %v3612
        %3614 = vmatprep.subr.mxu0 0.0
        %3615 = vmatpush2.msra.mxu0 0.0
        %3616 = vmatprep.subr.mxu0 0.0
        %3617 = vmatpush2.msra.mxu0 0.0
        %3618 = vmatprep.subr.mxu0 0.0
        %3619 = vmatpush2.msra.mxu0 0.0
        %3620 = vmatprep.subr.mxu0 0.0
        %3621 = vmatpush2.msra.mxu0 0.0
        %3622 = vmatprep.subr.mxu0 0.0
        %3623 = vmatpush2.msra.mxu0 0.0
        %3624 = vmatprep.subr.mxu0 0.0
        %3625 = vmatpush2.msra.mxu0 0.0
        %3626 = vmatprep.subr.mxu0 0.0
        %3627 = vmatpush2.msra.mxu0 0.0
        %3628 = vmatprep.subr.mxu0 0.0
        %3629 = vmatpush2.msra.mxu0 0.0
        %3630 = vmatprep.subr.mxu0 0.0
        %3631 = vmatpush2.msra.mxu0 0.0
        %3632 = vmatprep.subr.mxu0 0.0
        %3633 = vmatpush2.msra.mxu0 0.0
        %3634 = vmatprep.subr.mxu0 0.0
        %3635 = vmatpush2.msra.mxu0 0.0
        %3636 = vmatprep.subr.mxu0 0.0
        %3637 = vmatpush2.msra.mxu0 0.0
        %3638 = vmatprep.subr.mxu0 0.0
        %3639 = vmatpush2.msra.mxu0 0.0
        %3640 = vmatprep.subr.mxu0 0.0
        %3641 = vmatpush2.msra.mxu0 0.0
        %3642 = vmatprep.subr.mxu0 0.0
        %3643 = vmatpush2.msra.mxu0 0.0
        %3644 = vmatprep.subr.mxu0 0.0
        %3645 = vmatpush2.msra.mxu0 0.0
        %3646 = vmatprep.mubr.f32.mxu0 0.0
        %v3647 = vand.u32 %v3109, 4294901760
        %3648 = vmatmul.mubr.f32.gmra.mxu0 %v3647
        %v3649 = vpop.f32.mrf.mxu0
        %v3650 = vadd.f32 %v3249, %v3649
        %v3651 = vpop.f32.mrf.mxu0
        %3652 = vmatprep.mubr.f32.mxu0 0.0
        %v3653 = vand.u32 %v3111, 4294901760
        %3654 = vmatmul.mubr.f32.gmra.mxu0 %v3653
        %v3655 = vpop.f32.mrf.mxu0
        %v3656 = vadd.f32 %v3259, %v3655
        %v3657 = vpop.f32.mrf.mxu0
        %3658 = vmatprep.mubr.f32.mxu0 0.0
        %v3659 = vand.u32 %v3113, 4294901760
        %3660 = vmatmul.mubr.f32.gmra.mxu0 %v3659
        %v3661 = vpop.f32.mrf.mxu0
        %v3662 = vadd.f32 %v3269, %v3661
        %v3663 = vpop.f32.mrf.mxu0
        %3664 = vmatprep.mubr.f32.mxu0 0.0
        %v3665 = vand.u32 %v3115, 4294901760
        %3666 = vmatmul.mubr.f32.gmra.mxu0 %v3665
        %v3667 = vpop.f32.mrf.mxu0
        %v3668 = vadd.f32 %v3279, %v3667
        %v3669 = vpop.f32.mrf.mxu0
        %3670 = vmatprep.mubr.f32.mxu0 0.0
        %v3671 = vand.u32 %v3117, 4294901760
        %3672 = vmatmul.mubr.f32.gmra.mxu0 %v3671
        %v3673 = vpop.f32.mrf.mxu0
        %v3674 = vadd.f32 %v3289, %v3673
        %v3675 = vpop.f32.mrf.mxu0
        %3676 = vmatprep.mubr.f32.mxu0 0.0
        %v3677 = vand.u32 %v3119, 4294901760
        %3678 = vmatmul.mubr.f32.gmra.mxu0 %v3677
        %v3679 = vpop.f32.mrf.mxu0
        %v3680 = vadd.f32 %v3299, %v3679
        %v3681 = vpop.f32.mrf.mxu0
        %3682 = vmatprep.mubr.f32.mxu0 0.0
        %v3683 = vand.u32 %v3121, 4294901760
        %3684 = vmatmul.mubr.f32.gmra.mxu0 %v3683
        %v3685 = vpop.f32.mrf.mxu0
        %v3686 = vadd.f32 %v3309, %v3685
        %v3687 = vpop.f32.mrf.mxu0
        %3688 = vmatprep.mubr.f32.mxu0 0.0
        %v3689 = vand.u32 %v3123, 4294901760
        %3690 = vmatmul.mubr.f32.gmra.mxu0 %v3689
        %v3691 = vpop.f32.mrf.mxu0
        %v3692 = vadd.f32 %v3319, %v3691
        %v3693 = vpop.f32.mrf.mxu0
        %3694 = vmatprep.mubr.f32.mxu0 0.0
        %v3695 = vand.u32 %v3125, 4294901760
        %3696 = vmatmul.mubr.f32.gmra.mxu0 %v3695
        %v3697 = vpop.f32.mrf.mxu0
        %v3698 = vadd.f32 %v3329, %v3697
        %v3699 = vpop.f32.mrf.mxu0
        %3700 = vmatprep.mubr.f32.mxu0 0.0
        %v3701 = vand.u32 %v3127, 4294901760
        %3702 = vmatmul.mubr.f32.gmra.mxu0 %v3701
        %v3703 = vpop.f32.mrf.mxu0
        %v3704 = vadd.f32 %v3339, %v3703
        %v3705 = vpop.f32.mrf.mxu0
        %3706 = vmatprep.mubr.f32.mxu0 0.0
        %v3707 = vand.u32 %v3129, 4294901760
        %3708 = vmatmul.mubr.f32.gmra.mxu0 %v3707
        %v3709 = vpop.f32.mrf.mxu0
        %v3710 = vadd.f32 %v3349, %v3709
        %v3711 = vpop.f32.mrf.mxu0
        %3712 = vmatprep.mubr.f32.mxu0 0.0
        %v3713 = vand.u32 %v3131, 4294901760
        %3714 = vmatmul.mubr.f32.gmra.mxu0 %v3713
        %v3715 = vpop.f32.mrf.mxu0
        %v3716 = vadd.f32 %v3359, %v3715
        %v3717 = vpop.f32.mrf.mxu0
        %3718 = vmatprep.mubr.f32.mxu0 0.0
        %v3719 = vand.u32 %v3133, 4294901760
        %3720 = vmatmul.mubr.f32.gmra.mxu0 %v3719
        %v3721 = vpop.f32.mrf.mxu0
        %v3722 = vadd.f32 %v3369, %v3721
        %v3723 = vpop.f32.mrf.mxu0
        %3724 = vmatprep.mubr.f32.mxu0 0.0
        %v3725 = vand.u32 %v3135, 4294901760
        %3726 = vmatmul.mubr.f32.gmra.mxu0 %v3725
        %v3727 = vpop.f32.mrf.mxu0
        %v3728 = vadd.f32 %v3379, %v3727
        %v3729 = vpop.f32.mrf.mxu0
        %3730 = vmatprep.mubr.f32.mxu0 0.0
        %v3731 = vand.u32 %v3137, 4294901760
        %3732 = vmatmul.mubr.f32.gmra.mxu0 %v3731
        %v3733 = vpop.f32.mrf.mxu0
        %v3734 = vadd.f32 %v3389, %v3733
        %v3735 = vpop.f32.mrf.mxu0
        %3736 = vmatprep.mubr.f32.mxu0 0.0
        %v3737 = vand.u32 %v3139, 4294901760
        %3738 = vmatmul.mubr.f32.gmra.mxu0 %v3737
        %v3739 = vpop.f32.mrf.mxu0
        %v3740 = vadd.f32 %v3399, %v3739
        %v3741 = vpop.f32.mrf.mxu0
        %3742 = vmatprep.mubr.f32.mxu0 0.0
        %v3743 = vand.u32 %v3141, 4294901760
        %3744 = vmatmul.mubr.f32.gmra.mxu0 %v3743
        %v3745 = vpop.f32.mrf.mxu0
        %v3746 = vadd.f32 %v3409, %v3745
        %v3747 = vpop.f32.mrf.mxu0
        %3748 = vmatprep.mubr.f32.mxu0 0.0
        %v3749 = vand.u32 %v3143, 4294901760
        %3750 = vmatmul.mubr.f32.gmra.mxu0 %v3749
        %v3751 = vpop.f32.mrf.mxu0
        %v3752 = vadd.f32 %v3419, %v3751
        %v3753 = vpop.f32.mrf.mxu0
        %3754 = vmatprep.mubr.f32.mxu0 0.0
        %v3755 = vand.u32 %v3145, 4294901760
        %3756 = vmatmul.mubr.f32.gmra.mxu0 %v3755
        %v3757 = vpop.f32.mrf.mxu0
        %v3758 = vadd.f32 %v3429, %v3757
        %v3759 = vpop.f32.mrf.mxu0
        %3760 = vmatprep.mubr.f32.mxu0 0.0
        %v3761 = vand.u32 %v3147, 4294901760
        %3762 = vmatmul.mubr.f32.gmra.mxu0 %v3761
        %v3763 = vpop.f32.mrf.mxu0
        %v3764 = vadd.f32 %v3439, %v3763
        %v3765 = vpop.f32.mrf.mxu0
        %3766 = vmatprep.mubr.f32.mxu0 0.0
        %v3767 = vand.u32 %v3149, 4294901760
        %3768 = vmatmul.mubr.f32.gmra.mxu0 %v3767
        %v3769 = vpop.f32.mrf.mxu0
        %v3770 = vadd.f32 %v3449, %v3769
        %v3771 = vpop.f32.mrf.mxu0
        %3772 = vmatprep.mubr.f32.mxu0 0.0
        %v3773 = vand.u32 %v3151, 4294901760
        %3774 = vmatmul.mubr.f32.gmra.mxu0 %v3773
        %v3775 = vpop.f32.mrf.mxu0
        %v3776 = vadd.f32 %v3459, %v3775
        %v3777 = vpop.f32.mrf.mxu0
        %3778 = vmatprep.mubr.f32.mxu0 0.0
        %v3779 = vand.u32 %v3153, 4294901760
        %3780 = vmatmul.mubr.f32.gmra.mxu0 %v3779
        %v3781 = vpop.f32.mrf.mxu0
        %v3782 = vadd.f32 %v3469, %v3781
        %v3783 = vpop.f32.mrf.mxu0
        %3784 = vmatprep.mubr.f32.mxu0 0.0
        %v3785 = vand.u32 %v3155, 4294901760
        %3786 = vmatmul.mubr.f32.gmra.mxu0 %v3785
        %v3787 = vpop.f32.mrf.mxu0
        %v3788 = vadd.f32 %v3479, %v3787
        %v3789 = vpop.f32.mrf.mxu0
        %3790 = vmatprep.mubr.f32.mxu0 0.0
        %v3791 = vand.u32 %v3157, 4294901760
        %3792 = vmatmul.mubr.f32.gmra.mxu0 %v3791
        %v3793 = vpop.f32.mrf.mxu0
        %v3794 = vadd.f32 %v3489, %v3793
        %v3795 = vpop.f32.mrf.mxu0
        %3796 = vmatprep.mubr.f32.mxu0 0.0
        %v3797 = vand.u32 %v3159, 4294901760
        %3798 = vmatmul.mubr.f32.gmra.mxu0 %v3797
        %v3799 = vpop.f32.mrf.mxu0
        %v3800 = vadd.f32 %v3499, %v3799
        %v3801 = vpop.f32.mrf.mxu0
        %3802 = vmatprep.mubr.f32.mxu0 0.0
        %v3803 = vand.u32 %v3161, 4294901760
        %3804 = vmatmul.mubr.f32.gmra.mxu0 %v3803
        %v3805 = vpop.f32.mrf.mxu0
        %v3806 = vadd.f32 %v3509, %v3805
        %v3807 = vpop.f32.mrf.mxu0
        %3808 = vmatprep.mubr.f32.mxu0 0.0
        %v3809 = vand.u32 %v3163, 4294901760
        %3810 = vmatmul.mubr.f32.gmra.mxu0 %v3809
        %v3811 = vpop.f32.mrf.mxu0
        %v3812 = vadd.f32 %v3519, %v3811
        %v3813 = vpop.f32.mrf.mxu0
        %3814 = vmatprep.mubr.f32.mxu0 0.0
        %v3815 = vand.u32 %v3165, 4294901760
        %3816 = vmatmul.mubr.f32.gmra.mxu0 %v3815
        %v3817 = vpop.f32.mrf.mxu0
        %v3818 = vadd.f32 %v3529, %v3817
        %v3819 = vpop.f32.mrf.mxu0
        %3820 = vmatprep.mubr.f32.mxu0 0.0
        %v3821 = vand.u32 %v3167, 4294901760
        %3822 = vmatmul.mubr.f32.gmra.mxu0 %v3821
        %v3823 = vpop.f32.mrf.mxu0
        %v3824 = vadd.f32 %v3539, %v3823
        %v3825 = vpop.f32.mrf.mxu0
        %3826 = vmatprep.mubr.f32.mxu0 0.0
        %v3827 = vand.u32 %v3169, 4294901760
        %3828 = vmatmul.mubr.f32.gmra.mxu0 %v3827
        %v3829 = vpop.f32.mrf.mxu0
        %v3830 = vadd.f32 %v3549, %v3829
        %v3831 = vpop.f32.mrf.mxu0
        %3832 = vmatprep.mubr.f32.mxu0 0.0
        %v3833 = vand.u32 %v3171, 4294901760
        %3834 = vmatmul.mubr.f32.gmra.mxu0 %v3833
        %v3835 = vpop.f32.mrf.mxu0
        %v3836 = vadd.f32 %v3559, %v3835
        %v3837 = vpop.f32.mrf.mxu0
        %3838 = vdwg.mxu0
        %3839 = vmatprep.subr.mxu0 0.0
        %3840 = vmatpush1.msra.mxu0 0.0
        %3841 = vmatprep.subr.mxu0 0.0
        %3842 = vmatpush1.msra.mxu0 0.0
        %3843 = vmatprep.subr.mxu0 0.0
        %3844 = vmatpush1.msra.mxu0 0.0
        %3845 = vmatprep.subr.mxu0 0.0
        %3846 = vmatpush1.msra.mxu0 0.0
        %3847 = vmatprep.subr.mxu0 0.0
        %3848 = vmatpush1.msra.mxu0 0.0
        %3849 = vmatprep.subr.mxu0 0.0
        %3850 = vmatpush1.msra.mxu0 0.0
        %3851 = vmatprep.subr.mxu0 0.0
        %3852 = vmatpush1.msra.mxu0 0.0
        %3853 = vmatprep.subr.mxu0 0.0
        %3854 = vmatpush1.msra.mxu0 0.0
        %3855 = vmatprep.subr.mxu0 0.0
        %3856 = vmatpush1.msra.mxu0 0.0
        %3857 = vmatprep.subr.mxu0 0.0
        %3858 = vmatpush1.msra.mxu0 0.0
        %3859 = vmatprep.subr.mxu0 0.0
        %3860 = vmatpush1.msra.mxu0 0.0
        %3861 = vmatprep.subr.mxu0 0.0
        %3862 = vmatpush1.msra.mxu0 0.0
        %3863 = vmatprep.subr.mxu0 0.0
        %v3864 = vand.u32 %v2916, 4294901760
        %v3865 = vsub.f32 %v2916, %v3864
        %3866 = vmatpush1.msra.mxu0 %v3865
        %3867 = vmatprep.subr.mxu0 0.0
        %v3868 = vand.u32 %v2812, 4294901760
        %v3869 = vsub.f32 %v2812, %v3868
        %3870 = vmatpush1.msra.mxu0 %v3869
        %3871 = vmatprep.subr.mxu0 0.0
        %v3872 = vand.u32 %v2708, 4294901760
        %v3873 = vsub.f32 %v2708, %v3872
        %3874 = vmatpush1.msra.mxu0 %v3873
        %3875 = vmatprep.subr.mxu0 0.0
        %v3876 = vand.u32 %v2604, 4294901760
        %v3877 = vsub.f32 %v2604, %v3876
        %3878 = vmatpush1.msra.mxu0 %v3877
        %3879 = vmatprep.subr.mxu0 0.0
        %3880 = vmatpush2.msra.mxu0 0.0
        %3881 = vmatprep.subr.mxu0 0.0
        %3882 = vmatpush2.msra.mxu0 0.0
        %3883 = vmatprep.subr.mxu0 0.0
        %3884 = vmatpush2.msra.mxu0 0.0
        %3885 = vmatprep.subr.mxu0 0.0
        %3886 = vmatpush2.msra.mxu0 0.0
        %3887 = vmatprep.subr.mxu0 0.0
        %3888 = vmatpush2.msra.mxu0 0.0
        %3889 = vmatprep.subr.mxu0 0.0
        %3890 = vmatpush2.msra.mxu0 0.0
        %3891 = vmatprep.subr.mxu0 0.0
        %3892 = vmatpush2.msra.mxu0 0.0
        %3893 = vmatprep.subr.mxu0 0.0
        %3894 = vmatpush2.msra.mxu0 0.0
        %3895 = vmatprep.subr.mxu0 0.0
        %3896 = vmatpush2.msra.mxu0 0.0
        %3897 = vmatprep.subr.mxu0 0.0
        %3898 = vmatpush2.msra.mxu0 0.0
        %3899 = vmatprep.subr.mxu0 0.0
        %3900 = vmatpush2.msra.mxu0 0.0
        %3901 = vmatprep.subr.mxu0 0.0
        %3902 = vmatpush2.msra.mxu0 0.0
        %3903 = vmatprep.subr.mxu0 0.0
        %3904 = vmatpush2.msra.mxu0 0.0
        %3905 = vmatprep.subr.mxu0 0.0
        %3906 = vmatpush2.msra.mxu0 0.0
        %3907 = vmatprep.subr.mxu0 0.0
        %3908 = vmatpush2.msra.mxu0 0.0
        %3909 = vmatprep.subr.mxu0 0.0
        %3910 = vmatpush2.msra.mxu0 0.0
        %3911 = vmatprep.mubr.f32.mxu0 0.0
        %v3912 = vand.u32 %v3109, 4294901760
        %v3913 = vsub.f32 %v3109, %v3912
        %3914 = vmatmul.mubr.f32.gmra.mxu0 %v3913
        %v3915 = vpop.f32.mrf.mxu0
        %v3916 = vadd.f32 %v3650, %v3915
        %v3917 = vpop.f32.mrf.mxu0
        %3918 = vmatprep.mubr.f32.mxu0 0.0
        %v3919 = vand.u32 %v3111, 4294901760
        %v3920 = vsub.f32 %v3111, %v3919
        %3921 = vmatmul.mubr.f32.gmra.mxu0 %v3920
        %v3922 = vpop.f32.mrf.mxu0
        %v3923 = vadd.f32 %v3656, %v3922
        %v3924 = vpop.f32.mrf.mxu0
        %3925 = vmatprep.mubr.f32.mxu0 0.0
        %v3926 = vand.u32 %v3113, 4294901760
        %v3927 = vsub.f32 %v3113, %v3926
        %3928 = vmatmul.mubr.f32.gmra.mxu0 %v3927
        %v3929 = vpop.f32.mrf.mxu0
        %v3930 = vadd.f32 %v3662, %v3929
        %v3931 = vpop.f32.mrf.mxu0
        %3932 = vmatprep.mubr.f32.mxu0 0.0
        %v3933 = vand.u32 %v3115, 4294901760
        %v3934 = vsub.f32 %v3115, %v3933
        %3935 = vmatmul.mubr.f32.gmra.mxu0 %v3934
        %v3936 = vpop.f32.mrf.mxu0
        %v3937 = vadd.f32 %v3668, %v3936
        %v3938 = vpop.f32.mrf.mxu0
        %3939 = vmatprep.mubr.f32.mxu0 0.0
        %v3940 = vand.u32 %v3117, 4294901760
        %v3941 = vsub.f32 %v3117, %v3940
        %3942 = vmatmul.mubr.f32.gmra.mxu0 %v3941
        %v3943 = vpop.f32.mrf.mxu0
        %v3944 = vadd.f32 %v3674, %v3943
        %v3945 = vpop.f32.mrf.mxu0
        %3946 = vmatprep.mubr.f32.mxu0 0.0
        %v3947 = vand.u32 %v3119, 4294901760
        %v3948 = vsub.f32 %v3119, %v3947
        %3949 = vmatmul.mubr.f32.gmra.mxu0 %v3948
        %v3950 = vpop.f32.mrf.mxu0
        %v3951 = vadd.f32 %v3680, %v3950
        %v3952 = vpop.f32.mrf.mxu0
        %3953 = vmatprep.mubr.f32.mxu0 0.0
        %v3954 = vand.u32 %v3121, 4294901760
        %v3955 = vsub.f32 %v3121, %v3954
        %3956 = vmatmul.mubr.f32.gmra.mxu0 %v3955
        %v3957 = vpop.f32.mrf.mxu0
        %v3958 = vadd.f32 %v3686, %v3957
        %v3959 = vpop.f32.mrf.mxu0
        %3960 = vmatprep.mubr.f32.mxu0 0.0
        %v3961 = vand.u32 %v3123, 4294901760
        %v3962 = vsub.f32 %v3123, %v3961
        %3963 = vmatmul.mubr.f32.gmra.mxu0 %v3962
        %v3964 = vpop.f32.mrf.mxu0
        %v3965 = vadd.f32 %v3692, %v3964
        %v3966 = vpop.f32.mrf.mxu0
        %3967 = vmatprep.mubr.f32.mxu0 0.0
        %v3968 = vand.u32 %v3125, 4294901760
        %v3969 = vsub.f32 %v3125, %v3968
        %3970 = vmatmul.mubr.f32.gmra.mxu0 %v3969
        %v3971 = vpop.f32.mrf.mxu0
        %v3972 = vadd.f32 %v3698, %v3971
        %v3973 = vpop.f32.mrf.mxu0
        %3974 = vmatprep.mubr.f32.mxu0 0.0
        %v3975 = vand.u32 %v3127, 4294901760
        %v3976 = vsub.f32 %v3127, %v3975
        %3977 = vmatmul.mubr.f32.gmra.mxu0 %v3976
        %v3978 = vpop.f32.mrf.mxu0
        %v3979 = vadd.f32 %v3704, %v3978
        %v3980 = vpop.f32.mrf.mxu0
        %3981 = vmatprep.mubr.f32.mxu0 0.0
        %v3982 = vand.u32 %v3129, 4294901760
        %v3983 = vsub.f32 %v3129, %v3982
        %3984 = vmatmul.mubr.f32.gmra.mxu0 %v3983
        %v3985 = vpop.f32.mrf.mxu0
        %v3986 = vadd.f32 %v3710, %v3985
        %v3987 = vpop.f32.mrf.mxu0
        %3988 = vmatprep.mubr.f32.mxu0 0.0
        %v3989 = vand.u32 %v3131, 4294901760
        %v3990 = vsub.f32 %v3131, %v3989
        %3991 = vmatmul.mubr.f32.gmra.mxu0 %v3990
        %v3992 = vpop.f32.mrf.mxu0
        %v3993 = vadd.f32 %v3716, %v3992
        %v3994 = vpop.f32.mrf.mxu0
        %3995 = vmatprep.mubr.f32.mxu0 0.0
        %v3996 = vand.u32 %v3133, 4294901760
        %v3997 = vsub.f32 %v3133, %v3996
        %3998 = vmatmul.mubr.f32.gmra.mxu0 %v3997
        %v3999 = vpop.f32.mrf.mxu0
        %v4000 = vadd.f32 %v3722, %v3999
        %v4001 = vpop.f32.mrf.mxu0
        %4002 = vmatprep.mubr.f32.mxu0 0.0
        %v4003 = vand.u32 %v3135, 4294901760
        %v4004 = vsub.f32 %v3135, %v4003
        %4005 = vmatmul.mubr.f32.gmra.mxu0 %v4004
        %v4006 = vpop.f32.mrf.mxu0
        %v4007 = vadd.f32 %v3728, %v4006
        %v4008 = vpop.f32.mrf.mxu0
        %4009 = vmatprep.mubr.f32.mxu0 0.0
        %v4010 = vand.u32 %v3137, 4294901760
        %v4011 = vsub.f32 %v3137, %v4010
        %4012 = vmatmul.mubr.f32.gmra.mxu0 %v4011
        %v4013 = vpop.f32.mrf.mxu0
        %v4014 = vadd.f32 %v3734, %v4013
        %v4015 = vpop.f32.mrf.mxu0
        %4016 = vmatprep.mubr.f32.mxu0 0.0
        %v4017 = vand.u32 %v3139, 4294901760
        %v4018 = vsub.f32 %v3139, %v4017
        %4019 = vmatmul.mubr.f32.gmra.mxu0 %v4018
        %v4020 = vpop.f32.mrf.mxu0
        %v4021 = vadd.f32 %v3740, %v4020
        %v4022 = vpop.f32.mrf.mxu0
        %4023 = vmatprep.mubr.f32.mxu0 0.0
        %v4024 = vand.u32 %v3141, 4294901760
        %v4025 = vsub.f32 %v3141, %v4024
        %4026 = vmatmul.mubr.f32.gmra.mxu0 %v4025
        %v4027 = vpop.f32.mrf.mxu0
        %v4028 = vadd.f32 %v3746, %v4027
        %v4029 = vpop.f32.mrf.mxu0
        %4030 = vmatprep.mubr.f32.mxu0 0.0
        %v4031 = vand.u32 %v3143, 4294901760
        %v4032 = vsub.f32 %v3143, %v4031
        %4033 = vmatmul.mubr.f32.gmra.mxu0 %v4032
        %v4034 = vpop.f32.mrf.mxu0
        %v4035 = vadd.f32 %v3752, %v4034
        %v4036 = vpop.f32.mrf.mxu0
        %4037 = vmatprep.mubr.f32.mxu0 0.0
        %v4038 = vand.u32 %v3145, 4294901760
        %v4039 = vsub.f32 %v3145, %v4038
        %4040 = vmatmul.mubr.f32.gmra.mxu0 %v4039
        %v4041 = vpop.f32.mrf.mxu0
        %v4042 = vadd.f32 %v3758, %v4041
        %v4043 = vpop.f32.mrf.mxu0
        %4044 = vmatprep.mubr.f32.mxu0 0.0
        %v4045 = vand.u32 %v3147, 4294901760
        %v4046 = vsub.f32 %v3147, %v4045
        %4047 = vmatmul.mubr.f32.gmra.mxu0 %v4046
        %v4048 = vpop.f32.mrf.mxu0
        %v4049 = vadd.f32 %v3764, %v4048
        %v4050 = vpop.f32.mrf.mxu0
        %4051 = vmatprep.mubr.f32.mxu0 0.0
        %v4052 = vand.u32 %v3149, 4294901760
        %v4053 = vsub.f32 %v3149, %v4052
        %4054 = vmatmul.mubr.f32.gmra.mxu0 %v4053
        %v4055 = vpop.f32.mrf.mxu0
        %v4056 = vadd.f32 %v3770, %v4055
        %v4057 = vpop.f32.mrf.mxu0
        %4058 = vmatprep.mubr.f32.mxu0 0.0
        %v4059 = vand.u32 %v3151, 4294901760
        %v4060 = vsub.f32 %v3151, %v4059
        %4061 = vmatmul.mubr.f32.gmra.mxu0 %v4060
        %v4062 = vpop.f32.mrf.mxu0
        %v4063 = vadd.f32 %v3776, %v4062
        %v4064 = vpop.f32.mrf.mxu0
        %4065 = vmatprep.mubr.f32.mxu0 0.0
        %v4066 = vand.u32 %v3153, 4294901760
        %v4067 = vsub.f32 %v3153, %v4066
        %4068 = vmatmul.mubr.f32.gmra.mxu0 %v4067
        %v4069 = vpop.f32.mrf.mxu0
        %v4070 = vadd.f32 %v3782, %v4069
        %v4071 = vpop.f32.mrf.mxu0
        %4072 = vmatprep.mubr.f32.mxu0 0.0
        %v4073 = vand.u32 %v3155, 4294901760
        %v4074 = vsub.f32 %v3155, %v4073
        %4075 = vmatmul.mubr.f32.gmra.mxu0 %v4074
        %v4076 = vpop.f32.mrf.mxu0
        %v4077 = vadd.f32 %v3788, %v4076
        %v4078 = vpop.f32.mrf.mxu0
        %4079 = vmatprep.mubr.f32.mxu0 0.0
        %v4080 = vand.u32 %v3157, 4294901760
        %v4081 = vsub.f32 %v3157, %v4080
        %4082 = vmatmul.mubr.f32.gmra.mxu0 %v4081
        %v4083 = vpop.f32.mrf.mxu0
        %v4084 = vadd.f32 %v3794, %v4083
        %v4085 = vpop.f32.mrf.mxu0
        %4086 = vmatprep.mubr.f32.mxu0 0.0
        %v4087 = vand.u32 %v3159, 4294901760
        %v4088 = vsub.f32 %v3159, %v4087
        %4089 = vmatmul.mubr.f32.gmra.mxu0 %v4088
        %v4090 = vpop.f32.mrf.mxu0
        %v4091 = vadd.f32 %v3800, %v4090
        %v4092 = vpop.f32.mrf.mxu0
        %4093 = vmatprep.mubr.f32.mxu0 0.0
        %v4094 = vand.u32 %v3161, 4294901760
        %v4095 = vsub.f32 %v3161, %v4094
        %4096 = vmatmul.mubr.f32.gmra.mxu0 %v4095
        %v4097 = vpop.f32.mrf.mxu0
        %v4098 = vadd.f32 %v3806, %v4097
        %v4099 = vpop.f32.mrf.mxu0
        %4100 = vmatprep.mubr.f32.mxu0 0.0
        %v4101 = vand.u32 %v3163, 4294901760
        %v4102 = vsub.f32 %v3163, %v4101
        %4103 = vmatmul.mubr.f32.gmra.mxu0 %v4102
        %v4104 = vpop.f32.mrf.mxu0
        %v4105 = vadd.f32 %v3812, %v4104
        %v4106 = vpop.f32.mrf.mxu0
        %4107 = vmatprep.mubr.f32.mxu0 0.0
        %v4108 = vand.u32 %v3165, 4294901760
        %v4109 = vsub.f32 %v3165, %v4108
        %4110 = vmatmul.mubr.f32.gmra.mxu0 %v4109
        %v4111 = vpop.f32.mrf.mxu0
        %v4112 = vadd.f32 %v3818, %v4111
        %v4113 = vpop.f32.mrf.mxu0
        %4114 = vmatprep.mubr.f32.mxu0 0.0
        %v4115 = vand.u32 %v3167, 4294901760
        %v4116 = vsub.f32 %v3167, %v4115
        %4117 = vmatmul.mubr.f32.gmra.mxu0 %v4116
        %v4118 = vpop.f32.mrf.mxu0
        %v4119 = vadd.f32 %v3824, %v4118
        %v4120 = vpop.f32.mrf.mxu0
        %4121 = vmatprep.mubr.f32.mxu0 0.0
        %v4122 = vand.u32 %v3169, 4294901760
        %v4123 = vsub.f32 %v3169, %v4122
        %4124 = vmatmul.mubr.f32.gmra.mxu0 %v4123
        %v4125 = vpop.f32.mrf.mxu0
        %v4126 = vadd.f32 %v3830, %v4125
        %v4127 = vpop.f32.mrf.mxu0
        %4128 = vmatprep.mubr.f32.mxu0 0.0
        %v4129 = vand.u32 %v3171, 4294901760
        %v4130 = vsub.f32 %v3171, %v4129
        %4131 = vmatmul.mubr.f32.gmra.mxu0 %v4130
        %v4132 = vpop.f32.mrf.mxu0
        %v4133 = vadd.f32 %v3836, %v4132
        %v4134 = vpop.f32.mrf.mxu0
        %4135 = vdwg.mxu0
        %4136 = vmatprep.subr.mxu0 0.0
        %4137 = vmatpush1.msra.mxu0 0.0
        %4138 = vmatprep.subr.mxu0 0.0
        %4139 = vmatpush1.msra.mxu0 0.0
        %4140 = vmatprep.subr.mxu0 0.0
        %4141 = vmatpush1.msra.mxu0 0.0
        %4142 = vmatprep.subr.mxu0 0.0
        %4143 = vmatpush1.msra.mxu0 0.0
        %4144 = vmatprep.subr.mxu0 0.0
        %4145 = vmatpush1.msra.mxu0 0.0
        %4146 = vmatprep.subr.mxu0 0.0
        %4147 = vmatpush1.msra.mxu0 0.0
        %4148 = vmatprep.subr.mxu0 0.0
        %4149 = vmatpush1.msra.mxu0 0.0
        %4150 = vmatprep.subr.mxu0 0.0
        %4151 = vmatpush1.msra.mxu0 0.0
        %4152 = vmatprep.subr.mxu0 0.0
        %4153 = vmatpush1.msra.mxu0 0.0
        %4154 = vmatprep.subr.mxu0 0.0
        %4155 = vmatpush1.msra.mxu0 0.0
        %4156 = vmatprep.subr.mxu0 0.0
        %4157 = vmatpush1.msra.mxu0 0.0
        %4158 = vmatprep.subr.mxu0 0.0
        %4159 = vmatpush1.msra.mxu0 0.0
        %4160 = vmatprep.subr.mxu0 0.0
        %v4161 = vand.u32 %v2916, 4294901760
        %4162 = vmatpush1.msra.mxu0 %v4161
        %4163 = vmatprep.subr.mxu0 0.0
        %v4164 = vand.u32 %v2812, 4294901760
        %4165 = vmatpush1.msra.mxu0 %v4164
        %4166 = vmatprep.subr.mxu0 0.0
        %v4167 = vand.u32 %v2708, 4294901760
        %4168 = vmatpush1.msra.mxu0 %v4167
        %4169 = vmatprep.subr.mxu0 0.0
        %v4170 = vand.u32 %v2604, 4294901760
        %4171 = vmatpush1.msra.mxu0 %v4170
        %4172 = vmatprep.subr.mxu0 0.0
        %4173 = vmatpush2.msra.mxu0 0.0
        %4174 = vmatprep.subr.mxu0 0.0
        %4175 = vmatpush2.msra.mxu0 0.0
        %4176 = vmatprep.subr.mxu0 0.0
        %4177 = vmatpush2.msra.mxu0 0.0
        %4178 = vmatprep.subr.mxu0 0.0
        %4179 = vmatpush2.msra.mxu0 0.0
        %4180 = vmatprep.subr.mxu0 0.0
        %4181 = vmatpush2.msra.mxu0 0.0
        %4182 = vmatprep.subr.mxu0 0.0
        %4183 = vmatpush2.msra.mxu0 0.0
        %4184 = vmatprep.subr.mxu0 0.0
        %4185 = vmatpush2.msra.mxu0 0.0
        %4186 = vmatprep.subr.mxu0 0.0
        %4187 = vmatpush2.msra.mxu0 0.0
        %4188 = vmatprep.subr.mxu0 0.0
        %4189 = vmatpush2.msra.mxu0 0.0
        %4190 = vmatprep.subr.mxu0 0.0
        %4191 = vmatpush2.msra.mxu0 0.0
        %4192 = vmatprep.subr.mxu0 0.0
        %4193 = vmatpush2.msra.mxu0 0.0
        %4194 = vmatprep.subr.mxu0 0.0
        %4195 = vmatpush2.msra.mxu0 0.0
        %4196 = vmatprep.subr.mxu0 0.0
        %4197 = vmatpush2.msra.mxu0 0.0
        %4198 = vmatprep.subr.mxu0 0.0
        %4199 = vmatpush2.msra.mxu0 0.0
        %4200 = vmatprep.subr.mxu0 0.0
        %4201 = vmatpush2.msra.mxu0 0.0
        %4202 = vmatprep.subr.mxu0 0.0
        %4203 = vmatpush2.msra.mxu0 0.0
        %4204 = vmatprep.mubr.f32.mxu0 0.0
        %v4205 = vand.u32 %v3109, 4294901760
        %v4206 = vsub.f32 %v3109, %v4205
        %v4207 = vand.u32 %v4206, 4294901760
        %4208 = vmatmul.mubr.f32.gmra.mxu0 %v4207
        %v4209 = vpop.f32.mrf.mxu0
        %v4210 = vadd.f32 %v3916, %v4209
        %v4211 = vpop.f32.mrf.mxu0
        %4212 = vmatprep.mubr.f32.mxu0 0.0
        %v4213 = vand.u32 %v3111, 4294901760
        %v4214 = vsub.f32 %v3111, %v4213
        %v4215 = vand.u32 %v4214, 4294901760
        %4216 = vmatmul.mubr.f32.gmra.mxu0 %v4215
        %v4217 = vpop.f32.mrf.mxu0
        %v4218 = vadd.f32 %v3923, %v4217
        %v4219 = vpop.f32.mrf.mxu0
        %4220 = vmatprep.mubr.f32.mxu0 0.0
        %v4221 = vand.u32 %v3113, 4294901760
        %v4222 = vsub.f32 %v3113, %v4221
        %v4223 = vand.u32 %v4222, 4294901760
        %4224 = vmatmul.mubr.f32.gmra.mxu0 %v4223
        %v4225 = vpop.f32.mrf.mxu0
        %v4226 = vadd.f32 %v3930, %v4225
        %v4227 = vpop.f32.mrf.mxu0
        %4228 = vmatprep.mubr.f32.mxu0 0.0
        %v4229 = vand.u32 %v3115, 4294901760
        %v4230 = vsub.f32 %v3115, %v4229
        %v4231 = vand.u32 %v4230, 4294901760
        %4232 = vmatmul.mubr.f32.gmra.mxu0 %v4231
        %v4233 = vpop.f32.mrf.mxu0
        %v4234 = vadd.f32 %v3937, %v4233
        %v4235 = vpop.f32.mrf.mxu0
        %4236 = vmatprep.mubr.f32.mxu0 0.0
        %v4237 = vand.u32 %v3117, 4294901760
        %v4238 = vsub.f32 %v3117, %v4237
        %v4239 = vand.u32 %v4238, 4294901760
        %4240 = vmatmul.mubr.f32.gmra.mxu0 %v4239
        %v4241 = vpop.f32.mrf.mxu0
        %v4242 = vadd.f32 %v3944, %v4241
        %v4243 = vpop.f32.mrf.mxu0
        %4244 = vmatprep.mubr.f32.mxu0 0.0
        %v4245 = vand.u32 %v3119, 4294901760
        %v4246 = vsub.f32 %v3119, %v4245
        %v4247 = vand.u32 %v4246, 4294901760
        %4248 = vmatmul.mubr.f32.gmra.mxu0 %v4247
        %v4249 = vpop.f32.mrf.mxu0
        %v4250 = vadd.f32 %v3951, %v4249
        %v4251 = vpop.f32.mrf.mxu0
        %4252 = vmatprep.mubr.f32.mxu0 0.0
        %v4253 = vand.u32 %v3121, 4294901760
        %v4254 = vsub.f32 %v3121, %v4253
        %v4255 = vand.u32 %v4254, 4294901760
        %4256 = vmatmul.mubr.f32.gmra.mxu0 %v4255
        %v4257 = vpop.f32.mrf.mxu0
        %v4258 = vadd.f32 %v3958, %v4257
        %v4259 = vpop.f32.mrf.mxu0
        %4260 = vmatprep.mubr.f32.mxu0 0.0
        %v4261 = vand.u32 %v3123, 4294901760
        %v4262 = vsub.f32 %v3123, %v4261
        %v4263 = vand.u32 %v4262, 4294901760
        %4264 = vmatmul.mubr.f32.gmra.mxu0 %v4263
        %v4265 = vpop.f32.mrf.mxu0
        %v4266 = vadd.f32 %v3965, %v4265
        %v4267 = vpop.f32.mrf.mxu0
        %4268 = vmatprep.mubr.f32.mxu0 0.0
        %v4269 = vand.u32 %v3125, 4294901760
        %v4270 = vsub.f32 %v3125, %v4269
        %v4271 = vand.u32 %v4270, 4294901760
        %4272 = vmatmul.mubr.f32.gmra.mxu0 %v4271
        %v4273 = vpop.f32.mrf.mxu0
        %v4274 = vadd.f32 %v3972, %v4273
        %v4275 = vpop.f32.mrf.mxu0
        %4276 = vmatprep.mubr.f32.mxu0 0.0
        %v4277 = vand.u32 %v3127, 4294901760
        %v4278 = vsub.f32 %v3127, %v4277
        %v4279 = vand.u32 %v4278, 4294901760
        %4280 = vmatmul.mubr.f32.gmra.mxu0 %v4279
        %v4281 = vpop.f32.mrf.mxu0
        %v4282 = vadd.f32 %v3979, %v4281
        %v4283 = vpop.f32.mrf.mxu0
        %4284 = vmatprep.mubr.f32.mxu0 0.0
        %v4285 = vand.u32 %v3129, 4294901760
        %v4286 = vsub.f32 %v3129, %v4285
        %v4287 = vand.u32 %v4286, 4294901760
        %4288 = vmatmul.mubr.f32.gmra.mxu0 %v4287
        %v4289 = vpop.f32.mrf.mxu0
        %v4290 = vadd.f32 %v3986, %v4289
        %v4291 = vpop.f32.mrf.mxu0
        %4292 = vmatprep.mubr.f32.mxu0 0.0
        %v4293 = vand.u32 %v3131, 4294901760
        %v4294 = vsub.f32 %v3131, %v4293
        %v4295 = vand.u32 %v4294, 4294901760
        %4296 = vmatmul.mubr.f32.gmra.mxu0 %v4295
        %v4297 = vpop.f32.mrf.mxu0
        %v4298 = vadd.f32 %v3993, %v4297
        %v4299 = vpop.f32.mrf.mxu0
        %4300 = vmatprep.mubr.f32.mxu0 0.0
        %v4301 = vand.u32 %v3133, 4294901760
        %v4302 = vsub.f32 %v3133, %v4301
        %v4303 = vand.u32 %v4302, 4294901760
        %4304 = vmatmul.mubr.f32.gmra.mxu0 %v4303
        %v4305 = vpop.f32.mrf.mxu0
        %v4306 = vadd.f32 %v4000, %v4305
        %v4307 = vpop.f32.mrf.mxu0
        %4308 = vmatprep.mubr.f32.mxu0 0.0
        %v4309 = vand.u32 %v3135, 4294901760
        %v4310 = vsub.f32 %v3135, %v4309
        %v4311 = vand.u32 %v4310, 4294901760
        %4312 = vmatmul.mubr.f32.gmra.mxu0 %v4311
        %v4313 = vpop.f32.mrf.mxu0
        %v4314 = vadd.f32 %v4007, %v4313
        %v4315 = vpop.f32.mrf.mxu0
        %4316 = vmatprep.mubr.f32.mxu0 0.0
        %v4317 = vand.u32 %v3137, 4294901760
        %v4318 = vsub.f32 %v3137, %v4317
        %v4319 = vand.u32 %v4318, 4294901760
        %4320 = vmatmul.mubr.f32.gmra.mxu0 %v4319
        %v4321 = vpop.f32.mrf.mxu0
        %v4322 = vadd.f32 %v4014, %v4321
        %v4323 = vpop.f32.mrf.mxu0
        %4324 = vmatprep.mubr.f32.mxu0 0.0
        %v4325 = vand.u32 %v3139, 4294901760
        %v4326 = vsub.f32 %v3139, %v4325
        %v4327 = vand.u32 %v4326, 4294901760
        %4328 = vmatmul.mubr.f32.gmra.mxu0 %v4327
        %v4329 = vpop.f32.mrf.mxu0
        %v4330 = vadd.f32 %v4021, %v4329
        %v4331 = vpop.f32.mrf.mxu0
        %4332 = vmatprep.mubr.f32.mxu0 0.0
        %v4333 = vand.u32 %v3141, 4294901760
        %v4334 = vsub.f32 %v3141, %v4333
        %v4335 = vand.u32 %v4334, 4294901760
        %4336 = vmatmul.mubr.f32.gmra.mxu0 %v4335
        %v4337 = vpop.f32.mrf.mxu0
        %v4338 = vadd.f32 %v4028, %v4337
        %v4339 = vpop.f32.mrf.mxu0
        %4340 = vmatprep.mubr.f32.mxu0 0.0
        %v4341 = vand.u32 %v3143, 4294901760
        %v4342 = vsub.f32 %v3143, %v4341
        %v4343 = vand.u32 %v4342, 4294901760
        %4344 = vmatmul.mubr.f32.gmra.mxu0 %v4343
        %v4345 = vpop.f32.mrf.mxu0
        %v4346 = vadd.f32 %v4035, %v4345
        %v4347 = vpop.f32.mrf.mxu0
        %4348 = vmatprep.mubr.f32.mxu0 0.0
        %v4349 = vand.u32 %v3145, 4294901760
        %v4350 = vsub.f32 %v3145, %v4349
        %v4351 = vand.u32 %v4350, 4294901760
        %4352 = vmatmul.mubr.f32.gmra.mxu0 %v4351
        %v4353 = vpop.f32.mrf.mxu0
        %v4354 = vadd.f32 %v4042, %v4353
        %v4355 = vpop.f32.mrf.mxu0
        %4356 = vmatprep.mubr.f32.mxu0 0.0
        %v4357 = vand.u32 %v3147, 4294901760
        %v4358 = vsub.f32 %v3147, %v4357
        %v4359 = vand.u32 %v4358, 4294901760
        %4360 = vmatmul.mubr.f32.gmra.mxu0 %v4359
        %v4361 = vpop.f32.mrf.mxu0
        %v4362 = vadd.f32 %v4049, %v4361
        %v4363 = vpop.f32.mrf.mxu0
        %4364 = vmatprep.mubr.f32.mxu0 0.0
        %v4365 = vand.u32 %v3149, 4294901760
        %v4366 = vsub.f32 %v3149, %v4365
        %v4367 = vand.u32 %v4366, 4294901760
        %4368 = vmatmul.mubr.f32.gmra.mxu0 %v4367
        %v4369 = vpop.f32.mrf.mxu0
        %v4370 = vadd.f32 %v4056, %v4369
        %v4371 = vpop.f32.mrf.mxu0
        %4372 = vmatprep.mubr.f32.mxu0 0.0
        %v4373 = vand.u32 %v3151, 4294901760
        %v4374 = vsub.f32 %v3151, %v4373
        %v4375 = vand.u32 %v4374, 4294901760
        %4376 = vmatmul.mubr.f32.gmra.mxu0 %v4375
        %v4377 = vpop.f32.mrf.mxu0
        %v4378 = vadd.f32 %v4063, %v4377
        %v4379 = vpop.f32.mrf.mxu0
        %4380 = vmatprep.mubr.f32.mxu0 0.0
        %v4381 = vand.u32 %v3153, 4294901760
        %v4382 = vsub.f32 %v3153, %v4381
        %v4383 = vand.u32 %v4382, 4294901760
        %4384 = vmatmul.mubr.f32.gmra.mxu0 %v4383
        %v4385 = vpop.f32.mrf.mxu0
        %v4386 = vadd.f32 %v4070, %v4385
        %v4387 = vpop.f32.mrf.mxu0
        %4388 = vmatprep.mubr.f32.mxu0 0.0
        %v4389 = vand.u32 %v3155, 4294901760
        %v4390 = vsub.f32 %v3155, %v4389
        %v4391 = vand.u32 %v4390, 4294901760
        %4392 = vmatmul.mubr.f32.gmra.mxu0 %v4391
        %v4393 = vpop.f32.mrf.mxu0
        %v4394 = vadd.f32 %v4077, %v4393
        %v4395 = vpop.f32.mrf.mxu0
        %4396 = vmatprep.mubr.f32.mxu0 0.0
        %v4397 = vand.u32 %v3157, 4294901760
        %v4398 = vsub.f32 %v3157, %v4397
        %v4399 = vand.u32 %v4398, 4294901760
        %4400 = vmatmul.mubr.f32.gmra.mxu0 %v4399
        %v4401 = vpop.f32.mrf.mxu0
        %v4402 = vadd.f32 %v4084, %v4401
        %v4403 = vpop.f32.mrf.mxu0
        %4404 = vmatprep.mubr.f32.mxu0 0.0
        %v4405 = vand.u32 %v3159, 4294901760
        %v4406 = vsub.f32 %v3159, %v4405
        %v4407 = vand.u32 %v4406, 4294901760
        %4408 = vmatmul.mubr.f32.gmra.mxu0 %v4407
        %v4409 = vpop.f32.mrf.mxu0
        %v4410 = vadd.f32 %v4091, %v4409
        %v4411 = vpop.f32.mrf.mxu0
        %4412 = vmatprep.mubr.f32.mxu0 0.0
        %v4413 = vand.u32 %v3161, 4294901760
        %v4414 = vsub.f32 %v3161, %v4413
        %v4415 = vand.u32 %v4414, 4294901760
        %4416 = vmatmul.mubr.f32.gmra.mxu0 %v4415
        %v4417 = vpop.f32.mrf.mxu0
        %v4418 = vadd.f32 %v4098, %v4417
        %v4419 = vpop.f32.mrf.mxu0
        %4420 = vmatprep.mubr.f32.mxu0 0.0
        %v4421 = vand.u32 %v3163, 4294901760
        %v4422 = vsub.f32 %v3163, %v4421
        %v4423 = vand.u32 %v4422, 4294901760
        %4424 = vmatmul.mubr.f32.gmra.mxu0 %v4423
        %v4425 = vpop.f32.mrf.mxu0
        %v4426 = vadd.f32 %v4105, %v4425
        %v4427 = vpop.f32.mrf.mxu0
        %4428 = vmatprep.mubr.f32.mxu0 0.0
        %v4429 = vand.u32 %v3165, 4294901760
        %v4430 = vsub.f32 %v3165, %v4429
        %v4431 = vand.u32 %v4430, 4294901760
        %4432 = vmatmul.mubr.f32.gmra.mxu0 %v4431
        %v4433 = vpop.f32.mrf.mxu0
        %v4434 = vadd.f32 %v4112, %v4433
        %v4435 = vpop.f32.mrf.mxu0
        %4436 = vmatprep.mubr.f32.mxu0 0.0
        %v4437 = vand.u32 %v3167, 4294901760
        %v4438 = vsub.f32 %v3167, %v4437
        %v4439 = vand.u32 %v4438, 4294901760
        %4440 = vmatmul.mubr.f32.gmra.mxu0 %v4439
        %v4441 = vpop.f32.mrf.mxu0
        %v4442 = vadd.f32 %v4119, %v4441
        %v4443 = vpop.f32.mrf.mxu0
        %4444 = vmatprep.mubr.f32.mxu0 0.0
        %v4445 = vand.u32 %v3169, 4294901760
        %v4446 = vsub.f32 %v3169, %v4445
        %v4447 = vand.u32 %v4446, 4294901760
        %4448 = vmatmul.mubr.f32.gmra.mxu0 %v4447
        %v4449 = vpop.f32.mrf.mxu0
        %v4450 = vadd.f32 %v4126, %v4449
        %v4451 = vpop.f32.mrf.mxu0
        %4452 = vmatprep.mubr.f32.mxu0 0.0
        %v4453 = vand.u32 %v3171, 4294901760
        %v4454 = vsub.f32 %v3171, %v4453
        %v4455 = vand.u32 %v4454, 4294901760
        %4456 = vmatmul.mubr.f32.gmra.mxu0 %v4455
        %v4457 = vpop.f32.mrf.mxu0
        %v4458 = vadd.f32 %v4133, %v4457
        %v4459 = vpop.f32.mrf.mxu0
        %4460 = vdwg.mxu0
        %4461 = vmatprep.subr.mxu0 0.0
        %4462 = vmatpush1.msra.mxu0 0.0
        %4463 = vmatprep.subr.mxu0 0.0
        %4464 = vmatpush1.msra.mxu0 0.0
        %4465 = vmatprep.subr.mxu0 0.0
        %4466 = vmatpush1.msra.mxu0 0.0
        %4467 = vmatprep.subr.mxu0 0.0
        %4468 = vmatpush1.msra.mxu0 0.0
        %4469 = vmatprep.subr.mxu0 0.0
        %4470 = vmatpush1.msra.mxu0 0.0
        %4471 = vmatprep.subr.mxu0 0.0
        %4472 = vmatpush1.msra.mxu0 0.0
        %4473 = vmatprep.subr.mxu0 0.0
        %4474 = vmatpush1.msra.mxu0 0.0
        %4475 = vmatprep.subr.mxu0 0.0
        %4476 = vmatpush1.msra.mxu0 0.0
        %4477 = vmatprep.subr.mxu0 0.0
        %4478 = vmatpush1.msra.mxu0 0.0
        %4479 = vmatprep.subr.mxu0 0.0
        %4480 = vmatpush1.msra.mxu0 0.0
        %4481 = vmatprep.subr.mxu0 0.0
        %4482 = vmatpush1.msra.mxu0 0.0
        %4483 = vmatprep.subr.mxu0 0.0
        %4484 = vmatpush1.msra.mxu0 0.0
        %4485 = vmatprep.subr.mxu0 0.0
        %v4486 = vand.u32 %v2916, 4294901760
        %v4487 = vsub.f32 %v2916, %v4486
        %v4488 = vand.u32 %v4487, 4294901760
        %4489 = vmatpush1.msra.mxu0 %v4488
        %4490 = vmatprep.subr.mxu0 0.0
        %v4491 = vand.u32 %v2812, 4294901760
        %v4492 = vsub.f32 %v2812, %v4491
        %v4493 = vand.u32 %v4492, 4294901760
        %4494 = vmatpush1.msra.mxu0 %v4493
        %4495 = vmatprep.subr.mxu0 0.0
        %v4496 = vand.u32 %v2708, 4294901760
        %v4497 = vsub.f32 %v2708, %v4496
        %v4498 = vand.u32 %v4497, 4294901760
        %4499 = vmatpush1.msra.mxu0 %v4498
        %4500 = vmatprep.subr.mxu0 0.0
        %v4501 = vand.u32 %v2604, 4294901760
        %v4502 = vsub.f32 %v2604, %v4501
        %v4503 = vand.u32 %v4502, 4294901760
        %4504 = vmatpush1.msra.mxu0 %v4503
        %4505 = vmatprep.subr.mxu0 0.0
        %4506 = vmatpush2.msra.mxu0 0.0
        %4507 = vmatprep.subr.mxu0 0.0
        %4508 = vmatpush2.msra.mxu0 0.0
        %4509 = vmatprep.subr.mxu0 0.0
        %4510 = vmatpush2.msra.mxu0 0.0
        %4511 = vmatprep.subr.mxu0 0.0
        %4512 = vmatpush2.msra.mxu0 0.0
        %4513 = vmatprep.subr.mxu0 0.0
        %4514 = vmatpush2.msra.mxu0 0.0
        %4515 = vmatprep.subr.mxu0 0.0
        %4516 = vmatpush2.msra.mxu0 0.0
        %4517 = vmatprep.subr.mxu0 0.0
        %4518 = vmatpush2.msra.mxu0 0.0
        %4519 = vmatprep.subr.mxu0 0.0
        %4520 = vmatpush2.msra.mxu0 0.0
        %4521 = vmatprep.subr.mxu0 0.0
        %4522 = vmatpush2.msra.mxu0 0.0
        %4523 = vmatprep.subr.mxu0 0.0
        %4524 = vmatpush2.msra.mxu0 0.0
        %4525 = vmatprep.subr.mxu0 0.0
        %4526 = vmatpush2.msra.mxu0 0.0
        %4527 = vmatprep.subr.mxu0 0.0
        %4528 = vmatpush2.msra.mxu0 0.0
        %4529 = vmatprep.subr.mxu0 0.0
        %4530 = vmatpush2.msra.mxu0 0.0
        %4531 = vmatprep.subr.mxu0 0.0
        %4532 = vmatpush2.msra.mxu0 0.0
        %4533 = vmatprep.subr.mxu0 0.0
        %4534 = vmatpush2.msra.mxu0 0.0
        %4535 = vmatprep.subr.mxu0 0.0
        %4536 = vmatpush2.msra.mxu0 0.0
        %4537 = vmatprep.mubr.f32.mxu0 0.0
        %v4538 = vand.u32 %v3109, 4294901760
        %4539 = vmatmul.mubr.f32.gmra.mxu0 %v4538
        %v4540 = vpop.f32.mrf.mxu0
        %v4541 = vadd.f32 %v4210, %v4540
        %v4542 = vpop.f32.mrf.mxu0
        %4543 = vmatprep.mubr.f32.mxu0 0.0
        %v4544 = vand.u32 %v3111, 4294901760
        %4545 = vmatmul.mubr.f32.gmra.mxu0 %v4544
        %v4546 = vpop.f32.mrf.mxu0
        %v4547 = vadd.f32 %v4218, %v4546
        %v4548 = vpop.f32.mrf.mxu0
        %4549 = vmatprep.mubr.f32.mxu0 0.0
        %v4550 = vand.u32 %v3113, 4294901760
        %4551 = vmatmul.mubr.f32.gmra.mxu0 %v4550
        %v4552 = vpop.f32.mrf.mxu0
        %v4553 = vadd.f32 %v4226, %v4552
        %v4554 = vpop.f32.mrf.mxu0
        %4555 = vmatprep.mubr.f32.mxu0 0.0
        %v4556 = vand.u32 %v3115, 4294901760
        %4557 = vmatmul.mubr.f32.gmra.mxu0 %v4556
        %v4558 = vpop.f32.mrf.mxu0
        %v4559 = vadd.f32 %v4234, %v4558
        %v4560 = vpop.f32.mrf.mxu0
        %4561 = vmatprep.mubr.f32.mxu0 0.0
        %v4562 = vand.u32 %v3117, 4294901760
        %4563 = vmatmul.mubr.f32.gmra.mxu0 %v4562
        %v4564 = vpop.f32.mrf.mxu0
        %v4565 = vadd.f32 %v4242, %v4564
        %v4566 = vpop.f32.mrf.mxu0
        %4567 = vmatprep.mubr.f32.mxu0 0.0
        %v4568 = vand.u32 %v3119, 4294901760
        %4569 = vmatmul.mubr.f32.gmra.mxu0 %v4568
        %v4570 = vpop.f32.mrf.mxu0
        %v4571 = vadd.f32 %v4250, %v4570
        %v4572 = vpop.f32.mrf.mxu0
        %4573 = vmatprep.mubr.f32.mxu0 0.0
        %v4574 = vand.u32 %v3121, 4294901760
        %4575 = vmatmul.mubr.f32.gmra.mxu0 %v4574
        %v4576 = vpop.f32.mrf.mxu0
        %v4577 = vadd.f32 %v4258, %v4576
        %v4578 = vpop.f32.mrf.mxu0
        %4579 = vmatprep.mubr.f32.mxu0 0.0
        %v4580 = vand.u32 %v3123, 4294901760
        %4581 = vmatmul.mubr.f32.gmra.mxu0 %v4580
        %v4582 = vpop.f32.mrf.mxu0
        %v4583 = vadd.f32 %v4266, %v4582
        %v4584 = vpop.f32.mrf.mxu0
        %4585 = vmatprep.mubr.f32.mxu0 0.0
        %v4586 = vand.u32 %v3125, 4294901760
        %4587 = vmatmul.mubr.f32.gmra.mxu0 %v4586
        %v4588 = vpop.f32.mrf.mxu0
        %v4589 = vadd.f32 %v4274, %v4588
        %v4590 = vpop.f32.mrf.mxu0
        %4591 = vmatprep.mubr.f32.mxu0 0.0
        %v4592 = vand.u32 %v3127, 4294901760
        %4593 = vmatmul.mubr.f32.gmra.mxu0 %v4592
        %v4594 = vpop.f32.mrf.mxu0
        %v4595 = vadd.f32 %v4282, %v4594
        %v4596 = vpop.f32.mrf.mxu0
        %4597 = vmatprep.mubr.f32.mxu0 0.0
        %v4598 = vand.u32 %v3129, 4294901760
        %4599 = vmatmul.mubr.f32.gmra.mxu0 %v4598
        %v4600 = vpop.f32.mrf.mxu0
        %v4601 = vadd.f32 %v4290, %v4600
        %v4602 = vpop.f32.mrf.mxu0
        %4603 = vmatprep.mubr.f32.mxu0 0.0
        %v4604 = vand.u32 %v3131, 4294901760
        %4605 = vmatmul.mubr.f32.gmra.mxu0 %v4604
        %v4606 = vpop.f32.mrf.mxu0
        %v4607 = vadd.f32 %v4298, %v4606
        %v4608 = vpop.f32.mrf.mxu0
        %4609 = vmatprep.mubr.f32.mxu0 0.0
        %v4610 = vand.u32 %v3133, 4294901760
        %4611 = vmatmul.mubr.f32.gmra.mxu0 %v4610
        %v4612 = vpop.f32.mrf.mxu0
        %v4613 = vadd.f32 %v4306, %v4612
        %v4614 = vpop.f32.mrf.mxu0
        %4615 = vmatprep.mubr.f32.mxu0 0.0
        %v4616 = vand.u32 %v3135, 4294901760
        %4617 = vmatmul.mubr.f32.gmra.mxu0 %v4616
        %v4618 = vpop.f32.mrf.mxu0
        %v4619 = vadd.f32 %v4314, %v4618
        %v4620 = vpop.f32.mrf.mxu0
        %4621 = vmatprep.mubr.f32.mxu0 0.0
        %v4622 = vand.u32 %v3137, 4294901760
        %4623 = vmatmul.mubr.f32.gmra.mxu0 %v4622
        %v4624 = vpop.f32.mrf.mxu0
        %v4625 = vadd.f32 %v4322, %v4624
        %v4626 = vpop.f32.mrf.mxu0
        %4627 = vmatprep.mubr.f32.mxu0 0.0
        %v4628 = vand.u32 %v3139, 4294901760
        %4629 = vmatmul.mubr.f32.gmra.mxu0 %v4628
        %v4630 = vpop.f32.mrf.mxu0
        %v4631 = vadd.f32 %v4330, %v4630
        %v4632 = vpop.f32.mrf.mxu0
        %4633 = vmatprep.mubr.f32.mxu0 0.0
        %v4634 = vand.u32 %v3141, 4294901760
        %4635 = vmatmul.mubr.f32.gmra.mxu0 %v4634
        %v4636 = vpop.f32.mrf.mxu0
        %v4637 = vadd.f32 %v4338, %v4636
        %v4638 = vpop.f32.mrf.mxu0
        %4639 = vmatprep.mubr.f32.mxu0 0.0
        %v4640 = vand.u32 %v3143, 4294901760
        %4641 = vmatmul.mubr.f32.gmra.mxu0 %v4640
        %v4642 = vpop.f32.mrf.mxu0
        %v4643 = vadd.f32 %v4346, %v4642
        %v4644 = vpop.f32.mrf.mxu0
        %4645 = vmatprep.mubr.f32.mxu0 0.0
        %v4646 = vand.u32 %v3145, 4294901760
        %4647 = vmatmul.mubr.f32.gmra.mxu0 %v4646
        %v4648 = vpop.f32.mrf.mxu0
        %v4649 = vadd.f32 %v4354, %v4648
        %v4650 = vpop.f32.mrf.mxu0
        %4651 = vmatprep.mubr.f32.mxu0 0.0
        %v4652 = vand.u32 %v3147, 4294901760
        %4653 = vmatmul.mubr.f32.gmra.mxu0 %v4652
        %v4654 = vpop.f32.mrf.mxu0
        %v4655 = vadd.f32 %v4362, %v4654
        %v4656 = vpop.f32.mrf.mxu0
        %4657 = vmatprep.mubr.f32.mxu0 0.0
        %v4658 = vand.u32 %v3149, 4294901760
        %4659 = vmatmul.mubr.f32.gmra.mxu0 %v4658
        %v4660 = vpop.f32.mrf.mxu0
        %v4661 = vadd.f32 %v4370, %v4660
        %v4662 = vpop.f32.mrf.mxu0
        %4663 = vmatprep.mubr.f32.mxu0 0.0
        %v4664 = vand.u32 %v3151, 4294901760
        %4665 = vmatmul.mubr.f32.gmra.mxu0 %v4664
        %v4666 = vpop.f32.mrf.mxu0
        %v4667 = vadd.f32 %v4378, %v4666
        %v4668 = vpop.f32.mrf.mxu0
        %4669 = vmatprep.mubr.f32.mxu0 0.0
        %v4670 = vand.u32 %v3153, 4294901760
        %4671 = vmatmul.mubr.f32.gmra.mxu0 %v4670
        %v4672 = vpop.f32.mrf.mxu0
        %v4673 = vadd.f32 %v4386, %v4672
        %v4674 = vpop.f32.mrf.mxu0
        %4675 = vmatprep.mubr.f32.mxu0 0.0
        %v4676 = vand.u32 %v3155, 4294901760
        %4677 = vmatmul.mubr.f32.gmra.mxu0 %v4676
        %v4678 = vpop.f32.mrf.mxu0
        %v4679 = vadd.f32 %v4394, %v4678
        %v4680 = vpop.f32.mrf.mxu0
        %4681 = vmatprep.mubr.f32.mxu0 0.0
        %v4682 = vand.u32 %v3157, 4294901760
        %4683 = vmatmul.mubr.f32.gmra.mxu0 %v4682
        %v4684 = vpop.f32.mrf.mxu0
        %v4685 = vadd.f32 %v4402, %v4684
        %v4686 = vpop.f32.mrf.mxu0
        %4687 = vmatprep.mubr.f32.mxu0 0.0
        %v4688 = vand.u32 %v3159, 4294901760
        %4689 = vmatmul.mubr.f32.gmra.mxu0 %v4688
        %v4690 = vpop.f32.mrf.mxu0
        %v4691 = vadd.f32 %v4410, %v4690
        %v4692 = vpop.f32.mrf.mxu0
        %4693 = vmatprep.mubr.f32.mxu0 0.0
        %v4694 = vand.u32 %v3161, 4294901760
        %4695 = vmatmul.mubr.f32.gmra.mxu0 %v4694
        %v4696 = vpop.f32.mrf.mxu0
        %v4697 = vadd.f32 %v4418, %v4696
        %v4698 = vpop.f32.mrf.mxu0
        %4699 = vmatprep.mubr.f32.mxu0 0.0
        %v4700 = vand.u32 %v3163, 4294901760
        %4701 = vmatmul.mubr.f32.gmra.mxu0 %v4700
        %v4702 = vpop.f32.mrf.mxu0
        %v4703 = vadd.f32 %v4426, %v4702
        %v4704 = vpop.f32.mrf.mxu0
        %4705 = vmatprep.mubr.f32.mxu0 0.0
        %v4706 = vand.u32 %v3165, 4294901760
        %4707 = vmatmul.mubr.f32.gmra.mxu0 %v4706
        %v4708 = vpop.f32.mrf.mxu0
        %v4709 = vadd.f32 %v4434, %v4708
        %v4710 = vpop.f32.mrf.mxu0
        %4711 = vmatprep.mubr.f32.mxu0 0.0
        %v4712 = vand.u32 %v3167, 4294901760
        %4713 = vmatmul.mubr.f32.gmra.mxu0 %v4712
        %v4714 = vpop.f32.mrf.mxu0
        %v4715 = vadd.f32 %v4442, %v4714
        %v4716 = vpop.f32.mrf.mxu0
        %4717 = vmatprep.mubr.f32.mxu0 0.0
        %v4718 = vand.u32 %v3169, 4294901760
        %4719 = vmatmul.mubr.f32.gmra.mxu0 %v4718
        %v4720 = vpop.f32.mrf.mxu0
        %v4721 = vadd.f32 %v4450, %v4720
        %v4722 = vpop.f32.mrf.mxu0
        %4723 = vmatprep.mubr.f32.mxu0 0.0
        %v4724 = vand.u32 %v3171, 4294901760
        %4725 = vmatmul.mubr.f32.gmra.mxu0 %v4724
        %v4726 = vpop.f32.mrf.mxu0
        %v4727 = vadd.f32 %v4458, %v4726
        %v4728 = vpop.f32.mrf.mxu0
        %4729 = vdwg.mxu0
        %4730 = vmatprep.subr.mxu0 0.0
        %4731 = vmatpush1.msra.mxu0 0.0
        %4732 = vmatprep.subr.mxu0 0.0
        %4733 = vmatpush1.msra.mxu0 0.0
        %4734 = vmatprep.subr.mxu0 0.0
        %4735 = vmatpush1.msra.mxu0 0.0
        %4736 = vmatprep.subr.mxu0 0.0
        %4737 = vmatpush1.msra.mxu0 0.0
        %4738 = vmatprep.subr.mxu0 0.0
        %4739 = vmatpush1.msra.mxu0 0.0
        %4740 = vmatprep.subr.mxu0 0.0
        %4741 = vmatpush1.msra.mxu0 0.0
        %4742 = vmatprep.subr.mxu0 0.0
        %4743 = vmatpush1.msra.mxu0 0.0
        %4744 = vmatprep.subr.mxu0 0.0
        %4745 = vmatpush1.msra.mxu0 0.0
        %4746 = vmatprep.subr.mxu0 0.0
        %4747 = vmatpush1.msra.mxu0 0.0
        %4748 = vmatprep.subr.mxu0 0.0
        %4749 = vmatpush1.msra.mxu0 0.0
        %4750 = vmatprep.subr.mxu0 0.0
        %4751 = vmatpush1.msra.mxu0 0.0
        %4752 = vmatprep.subr.mxu0 0.0
        %4753 = vmatpush1.msra.mxu0 0.0
        %4754 = vmatprep.subr.mxu0 0.0
        %v4755 = vand.u32 %v2916, 4294901760
        %4756 = vmatpush1.msra.mxu0 %v4755
        %4757 = vmatprep.subr.mxu0 0.0
        %v4758 = vand.u32 %v2812, 4294901760
        %4759 = vmatpush1.msra.mxu0 %v4758
        %4760 = vmatprep.subr.mxu0 0.0
        %v4761 = vand.u32 %v2708, 4294901760
        %4762 = vmatpush1.msra.mxu0 %v4761
        %4763 = vmatprep.subr.mxu0 0.0
        %v4764 = vand.u32 %v2604, 4294901760
        %4765 = vmatpush1.msra.mxu0 %v4764
        %4766 = vmatprep.subr.mxu0 0.0
        %4767 = vmatpush2.msra.mxu0 0.0
        %4768 = vmatprep.subr.mxu0 0.0
        %4769 = vmatpush2.msra.mxu0 0.0
        %4770 = vmatprep.subr.mxu0 0.0
        %4771 = vmatpush2.msra.mxu0 0.0
        %4772 = vmatprep.subr.mxu0 0.0
        %4773 = vmatpush2.msra.mxu0 0.0
        %4774 = vmatprep.subr.mxu0 0.0
        %4775 = vmatpush2.msra.mxu0 0.0
        %4776 = vmatprep.subr.mxu0 0.0
        %4777 = vmatpush2.msra.mxu0 0.0
        %4778 = vmatprep.subr.mxu0 0.0
        %4779 = vmatpush2.msra.mxu0 0.0
        %4780 = vmatprep.subr.mxu0 0.0
        %4781 = vmatpush2.msra.mxu0 0.0
        %4782 = vmatprep.subr.mxu0 0.0
        %4783 = vmatpush2.msra.mxu0 0.0
        %4784 = vmatprep.subr.mxu0 0.0
        %4785 = vmatpush2.msra.mxu0 0.0
        %4786 = vmatprep.subr.mxu0 0.0
        %4787 = vmatpush2.msra.mxu0 0.0
        %4788 = vmatprep.subr.mxu0 0.0
        %4789 = vmatpush2.msra.mxu0 0.0
        %4790 = vmatprep.subr.mxu0 0.0
        %4791 = vmatpush2.msra.mxu0 0.0
        %4792 = vmatprep.subr.mxu0 0.0
        %4793 = vmatpush2.msra.mxu0 0.0
        %4794 = vmatprep.subr.mxu0 0.0
        %4795 = vmatpush2.msra.mxu0 0.0
        %4796 = vmatprep.subr.mxu0 0.0
        %4797 = vmatpush2.msra.mxu0 0.0
        %4798 = vmatprep.mubr.f32.mxu0 0.0
        %v4799 = vand.u32 %v3109, 4294901760
        %4800 = vmatmul.mubr.f32.gmra.mxu0 %v4799
        %v4801 = vpop.f32.mrf.mxu0
        %v4802 = vadd.f32 %v4541, %v4801
        %v4803 = vpop.f32.mrf.mxu0
        %4804 = vmatprep.mubr.f32.mxu0 0.0
        %v4805 = vand.u32 %v3111, 4294901760
        %4806 = vmatmul.mubr.f32.gmra.mxu0 %v4805
        %v4807 = vpop.f32.mrf.mxu0
        %v4808 = vadd.f32 %v4547, %v4807
        %v4809 = vpop.f32.mrf.mxu0
        %4810 = vmatprep.mubr.f32.mxu0 0.0
        %v4811 = vand.u32 %v3113, 4294901760
        %4812 = vmatmul.mubr.f32.gmra.mxu0 %v4811
        %v4813 = vpop.f32.mrf.mxu0
        %v4814 = vadd.f32 %v4553, %v4813
        %v4815 = vpop.f32.mrf.mxu0
        %4816 = vmatprep.mubr.f32.mxu0 0.0
        %v4817 = vand.u32 %v3115, 4294901760
        %4818 = vmatmul.mubr.f32.gmra.mxu0 %v4817
        %v4819 = vpop.f32.mrf.mxu0
        %v4820 = vadd.f32 %v4559, %v4819
        %v4821 = vpop.f32.mrf.mxu0
        %4822 = vmatprep.mubr.f32.mxu0 0.0
        %v4823 = vand.u32 %v3117, 4294901760
        %4824 = vmatmul.mubr.f32.gmra.mxu0 %v4823
        %v4825 = vpop.f32.mrf.mxu0
        %v4826 = vadd.f32 %v4565, %v4825
        %v4827 = vpop.f32.mrf.mxu0
        %4828 = vmatprep.mubr.f32.mxu0 0.0
        %v4829 = vand.u32 %v3119, 4294901760
        %4830 = vmatmul.mubr.f32.gmra.mxu0 %v4829
        %v4831 = vpop.f32.mrf.mxu0
        %v4832 = vadd.f32 %v4571, %v4831
        %v4833 = vpop.f32.mrf.mxu0
        %4834 = vmatprep.mubr.f32.mxu0 0.0
        %v4835 = vand.u32 %v3121, 4294901760
        %4836 = vmatmul.mubr.f32.gmra.mxu0 %v4835
        %v4837 = vpop.f32.mrf.mxu0
        %v4838 = vadd.f32 %v4577, %v4837
        %v4839 = vpop.f32.mrf.mxu0
        %4840 = vmatprep.mubr.f32.mxu0 0.0
        %v4841 = vand.u32 %v3123, 4294901760
        %4842 = vmatmul.mubr.f32.gmra.mxu0 %v4841
        %v4843 = vpop.f32.mrf.mxu0
        %v4844 = vadd.f32 %v4583, %v4843
        %v4845 = vpop.f32.mrf.mxu0
        %4846 = vmatprep.mubr.f32.mxu0 0.0
        %v4847 = vand.u32 %v3125, 4294901760
        %4848 = vmatmul.mubr.f32.gmra.mxu0 %v4847
        %v4849 = vpop.f32.mrf.mxu0
        %v4850 = vadd.f32 %v4589, %v4849
        %v4851 = vpop.f32.mrf.mxu0
        %4852 = vmatprep.mubr.f32.mxu0 0.0
        %v4853 = vand.u32 %v3127, 4294901760
        %4854 = vmatmul.mubr.f32.gmra.mxu0 %v4853
        %v4855 = vpop.f32.mrf.mxu0
        %v4856 = vadd.f32 %v4595, %v4855
        %v4857 = vpop.f32.mrf.mxu0
        %4858 = vmatprep.mubr.f32.mxu0 0.0
        %v4859 = vand.u32 %v3129, 4294901760
        %4860 = vmatmul.mubr.f32.gmra.mxu0 %v4859
        %v4861 = vpop.f32.mrf.mxu0
        %v4862 = vadd.f32 %v4601, %v4861
        %v4863 = vpop.f32.mrf.mxu0
        %4864 = vmatprep.mubr.f32.mxu0 0.0
        %v4865 = vand.u32 %v3131, 4294901760
        %4866 = vmatmul.mubr.f32.gmra.mxu0 %v4865
        %v4867 = vpop.f32.mrf.mxu0
        %v4868 = vadd.f32 %v4607, %v4867
        %v4869 = vpop.f32.mrf.mxu0
        %4870 = vmatprep.mubr.f32.mxu0 0.0
        %v4871 = vand.u32 %v3133, 4294901760
        %4872 = vmatmul.mubr.f32.gmra.mxu0 %v4871
        %v4873 = vpop.f32.mrf.mxu0
        %v4874 = vadd.f32 %v4613, %v4873
        %v4875 = vpop.f32.mrf.mxu0
        %4876 = vmatprep.mubr.f32.mxu0 0.0
        %v4877 = vand.u32 %v3135, 4294901760
        %4878 = vmatmul.mubr.f32.gmra.mxu0 %v4877
        %v4879 = vpop.f32.mrf.mxu0
        %v4880 = vadd.f32 %v4619, %v4879
        %v4881 = vpop.f32.mrf.mxu0
        %4882 = vmatprep.mubr.f32.mxu0 0.0
        %v4883 = vand.u32 %v3137, 4294901760
        %4884 = vmatmul.mubr.f32.gmra.mxu0 %v4883
        %v4885 = vpop.f32.mrf.mxu0
        %v4886 = vadd.f32 %v4625, %v4885
        %v4887 = vpop.f32.mrf.mxu0
        %4888 = vmatprep.mubr.f32.mxu0 0.0
        %v4889 = vand.u32 %v3139, 4294901760
        %4890 = vmatmul.mubr.f32.gmra.mxu0 %v4889
        %v4891 = vpop.f32.mrf.mxu0
        %v4892 = vadd.f32 %v4631, %v4891
        %v4893 = vpop.f32.mrf.mxu0
        %4894 = vmatprep.mubr.f32.mxu0 0.0
        %v4895 = vand.u32 %v3141, 4294901760
        %4896 = vmatmul.mubr.f32.gmra.mxu0 %v4895
        %v4897 = vpop.f32.mrf.mxu0
        %v4898 = vadd.f32 %v4637, %v4897
        %v4899 = vpop.f32.mrf.mxu0
        %4900 = vmatprep.mubr.f32.mxu0 0.0
        %v4901 = vand.u32 %v3143, 4294901760
        %4902 = vmatmul.mubr.f32.gmra.mxu0 %v4901
        %v4903 = vpop.f32.mrf.mxu0
        %v4904 = vadd.f32 %v4643, %v4903
        %v4905 = vpop.f32.mrf.mxu0
        %4906 = vmatprep.mubr.f32.mxu0 0.0
        %v4907 = vand.u32 %v3145, 4294901760
        %4908 = vmatmul.mubr.f32.gmra.mxu0 %v4907
        %v4909 = vpop.f32.mrf.mxu0
        %v4910 = vadd.f32 %v4649, %v4909
        %v4911 = vpop.f32.mrf.mxu0
        %4912 = vmatprep.mubr.f32.mxu0 0.0
        %v4913 = vand.u32 %v3147, 4294901760
        %4914 = vmatmul.mubr.f32.gmra.mxu0 %v4913
        %v4915 = vpop.f32.mrf.mxu0
        %v4916 = vadd.f32 %v4655, %v4915
        %v4917 = vpop.f32.mrf.mxu0
        %4918 = vmatprep.mubr.f32.mxu0 0.0
        %v4919 = vand.u32 %v3149, 4294901760
        %4920 = vmatmul.mubr.f32.gmra.mxu0 %v4919
        %v4921 = vpop.f32.mrf.mxu0
        %v4922 = vadd.f32 %v4661, %v4921
        %v4923 = vpop.f32.mrf.mxu0
        %4924 = vmatprep.mubr.f32.mxu0 0.0
        %v4925 = vand.u32 %v3151, 4294901760
        %4926 = vmatmul.mubr.f32.gmra.mxu0 %v4925
        %v4927 = vpop.f32.mrf.mxu0
        %v4928 = vadd.f32 %v4667, %v4927
        %v4929 = vpop.f32.mrf.mxu0
        %4930 = vmatprep.mubr.f32.mxu0 0.0
        %v4931 = vand.u32 %v3153, 4294901760
        %4932 = vmatmul.mubr.f32.gmra.mxu0 %v4931
        %v4933 = vpop.f32.mrf.mxu0
        %v4934 = vadd.f32 %v4673, %v4933
        %v4935 = vpop.f32.mrf.mxu0
        %4936 = vmatprep.mubr.f32.mxu0 0.0
        %v4937 = vand.u32 %v3155, 4294901760
        %4938 = vmatmul.mubr.f32.gmra.mxu0 %v4937
        %v4939 = vpop.f32.mrf.mxu0
        %v4940 = vadd.f32 %v4679, %v4939
        %v4941 = vpop.f32.mrf.mxu0
        %4942 = vmatprep.mubr.f32.mxu0 0.0
        %v4943 = vand.u32 %v3157, 4294901760
        %4944 = vmatmul.mubr.f32.gmra.mxu0 %v4943
        %v4945 = vpop.f32.mrf.mxu0
        %v4946 = vadd.f32 %v4685, %v4945
        %v4947 = vpop.f32.mrf.mxu0
        %4948 = vmatprep.mubr.f32.mxu0 0.0
        %v4949 = vand.u32 %v3159, 4294901760
        %4950 = vmatmul.mubr.f32.gmra.mxu0 %v4949
        %v4951 = vpop.f32.mrf.mxu0
        %v4952 = vadd.f32 %v4691, %v4951
        %v4953 = vpop.f32.mrf.mxu0
        %4954 = vmatprep.mubr.f32.mxu0 0.0
        %v4955 = vand.u32 %v3161, 4294901760
        %4956 = vmatmul.mubr.f32.gmra.mxu0 %v4955
        %v4957 = vpop.f32.mrf.mxu0
        %v4958 = vadd.f32 %v4697, %v4957
        %v4959 = vpop.f32.mrf.mxu0
        %4960 = vmatprep.mubr.f32.mxu0 0.0
        %v4961 = vand.u32 %v3163, 4294901760
        %4962 = vmatmul.mubr.f32.gmra.mxu0 %v4961
        %v4963 = vpop.f32.mrf.mxu0
        %v4964 = vadd.f32 %v4703, %v4963
        %v4965 = vpop.f32.mrf.mxu0
        %4966 = vmatprep.mubr.f32.mxu0 0.0
        %v4967 = vand.u32 %v3165, 4294901760
        %4968 = vmatmul.mubr.f32.gmra.mxu0 %v4967
        %v4969 = vpop.f32.mrf.mxu0
        %v4970 = vadd.f32 %v4709, %v4969
        %v4971 = vpop.f32.mrf.mxu0
        %4972 = vmatprep.mubr.f32.mxu0 0.0
        %v4973 = vand.u32 %v3167, 4294901760
        %4974 = vmatmul.mubr.f32.gmra.mxu0 %v4973
        %v4975 = vpop.f32.mrf.mxu0
        %v4976 = vadd.f32 %v4715, %v4975
        %v4977 = vpop.f32.mrf.mxu0
        %4978 = vmatprep.mubr.f32.mxu0 0.0
        %v4979 = vand.u32 %v3169, 4294901760
        %4980 = vmatmul.mubr.f32.gmra.mxu0 %v4979
        %v4981 = vpop.f32.mrf.mxu0
        %v4982 = vadd.f32 %v4721, %v4981
        %v4983 = vpop.f32.mrf.mxu0
        %4984 = vmatprep.mubr.f32.mxu0 0.0
        %v4985 = vand.u32 %v3171, 4294901760
        %4986 = vmatmul.mubr.f32.gmra.mxu0 %v4985
        %v4987 = vpop.f32.mrf.mxu0
        %v4988 = vadd.f32 %v4727, %v4987
        %v4989 = vpop.f32.mrf.mxu0
        %4990 = vdwg.mxu0
        %v4991 = vand.u32 2147483647, %v4802
        %vm4992 = vcmp.le.f32.partialorder %v4991, 0.7853982
        %vm4993 = vcmp.lt.s32.totalorder %v4802, 0
        %v4994 = vand.u32 %v4802, 2139095040
        %v4995 = vshrl.u32 %v4994, 23
        %v4996 = vsub.s32 %v4995, 127
        %v4997 = vand.u32 2147483647, %v4802
        %v4998 = vand.u32 %v4997, 8388607
        %v4999 = vor.u32 %v4998, 8388608
        %v5000 = vsub.s32 0, %v4999
        %v5001 = vadd.s32 %v4996, 1
        %vm5002 = vcmp.gt.s32.totalorder %v5001, 0
        %v5003 = vsel %vm5002, %v5001, 0
        %v5004 = vshrl.u32 %v5003, 5
        %v5005 = vand.u32 %v5003, 31
        %v5006 = vsub.s32 32, %v5005
        %v5007 = vshrl.u32 683565275, %v5006
        %v5008 = vshll.u32 683565275, %v5005
        %v5009 = vshrl.u32 2475754826, %v5006
        %v5010 = vor.u32 %v5008, %v5009
        %v5011 = vshll.u32 2475754826, %v5005
        %v5012 = vshrl.u32 2131351028, %v5006
        %v5013 = vor.u32 %v5011, %v5012
        %v5014 = vshll.u32 2131351028, %v5005
        %v5015 = vshrl.u32 2102212464, %v5006
        %v5016 = vor.u32 %v5014, %v5015
        %v5017 = vshll.u32 2102212464, %v5005
        %v5018 = vshrl.u32 920167782, %v5006
        %v5019 = vor.u32 %v5017, %v5018
        %v5020 = vshll.u32 920167782, %v5005
        %v5021 = vshrl.u32 1326507024, %v5006
        %v5022 = vor.u32 %v5020, %v5021
        %vm5023 = vcmp.lt.s32.totalorder %v5004, 1
        %vm5024 = vcmp.lt.s32.totalorder %v5004, 2
        %vm5025 = vcmp.lt.s32.totalorder %v5004, 3
        %vm5026 = vcmp.lt.s32.totalorder %v5004, 4
        %v5027 = vsel %vm5023, %v5007, %v5010
        %v5028 = vsel %vm5026, %v5016, 2102212464
        %v5029 = vsel %vm5025, %v5013, %v5028
        %v5030 = vsel %vm5024, %v5027, %v5029
        %v5031 = vsel %vm5023, %v5010, %v5013
        %v5032 = vsel %vm5026, %v5019, 920167782
        %v5033 = vsel %vm5025, %v5016, %v5032
        %v5034 = vsel %vm5024, %v5031, %v5033
        %v5035 = vsel %vm5023, %v5013, %v5016
        %v5036 = vsel %vm5026, %v5022, 1326507024
        %v5037 = vsel %vm5025, %v5019, %v5036
        %v5038 = vsel %vm5024, %v5035, %v5037
        %v5039 = vshll.u32 %v4999, 8
        %v5040 = vmul.u32.u64.compose %v5039, %v5038
        %v5041 = vextract.low.u32 %v5040
        %v5042 = vextract.high.u32 %v5040
        %v5043 = vmul.u32.u64.compose %v5039, %v5034
        %v5044 = vextract.low.u32 %v5043
        %v5045 = vextract.high.u32 %v5043
        %v5046 = vmul.u32 %v5039, %v5030
        %v5047 = vadd.s32 %v5042, %v5044
        %vm5048 = vc.u32 %v5042, %v5044
        %v5049 = vadd.s32 %v5045, 1
        %v5050 = vsel %vm5048, %v5049, %v5045
        %v5051 = vadd.s32 %v5046, %v5050
        %v5052 = vadd.s32 %v5051, 536870912
        %v5053 = vshrl.u32 %v5052, 30
        %v5054 = vshll.u32 %v5053, 30
        %v5055 = vsub.s32 %v5051, %v5054
        %vm5056 = vcmp.lt.s32.totalorder %v5055, 0
        %v5057 = vsub.s32 0, %v5055
        %v5058 = vsel %vm5056, %v5057, %v5055
        %v5059 = vclz %v5058
        %v5060 = vsub.s32 %v5059, 2
        %vm5061 = vcmp.gt.s32.totalorder 0, %v5060
        %v5062 = vsel %vm5061, 0, %v5060
        %v5063 = vsub.s32 32, %v5062
        %v5064 = vshll.u32 %v5055, %v5062
        %v5065 = vshrl.u32 %v5047, %v5063
        %v5066 = vor.u32 %v5064, %v5065
        %v5067 = vsub.s32 4294967266, %v5062
        %v5068 = vadd.s32 %v5067, 127
        %v5069 = vshll.u32 %v5068, 23
        %v5070 = vor.u32 4788187, %v5069
        %v5071 = vand.u32 2147483647, %v5070
        %v5073 = vcvt.s32.f32 %v5066
        %v5074 = vmul.f32 %v5073, %v5071
        %v5075 = vxor.u32 %v5074, 2147483648
        %v5076 = vsel %vm4993, %v5075, %v5074
        %v5077 = vsub.s32 4, %v5053
        %v5078 = vsel %vm4993, %v5077, %v5053
        %v5079 = vsel %vm4992, %v4802, %v5076
        %v5080 = vsel %vm4992, 0, %v5078
        %v5081 = vcosq.f32.pop %v5079
        %v5082 = vsinq.f32.pop %v5079
        %vm5083 = vweird.f32 %v4802
        %v5084 = vadd.s32 %v5080, 3
        %v5085 = vand.u32 %v5084, 3
        %vm5086 = vcmp.lt.s32.totalorder %v5085, 2
        %vm5087 = vcmp.eq.s32.totalorder %v5085, 0
        %v5088 = vxor.u32 %v5082, 2147483648
        %v5089 = vsel %vm5087, %v5081, %v5088
        %vm5090 = vcmp.eq.s32.totalorder %v5085, 2
        %v5091 = vxor.u32 %v5081, 2147483648
        %v5092 = vsel %vm5090, %v5091, %v5082
        %v5093 = vsel %vm5086, %v5089, %v5092
        %v5094 = vsel %vm5083, nan, %v5093
        %v5095 = vand.u32 2147483647, %v4808
        %vm5096 = vcmp.le.f32.partialorder %v5095, 0.7853982
        %vm5097 = vcmp.lt.s32.totalorder %v4808, 0
        %v5098 = vand.u32 %v4808, 2139095040
        %v5099 = vshrl.u32 %v5098, 23
        %v5100 = vsub.s32 %v5099, 127
        %v5101 = vand.u32 2147483647, %v4808
        %v5102 = vand.u32 %v5101, 8388607
        %v5103 = vor.u32 %v5102, 8388608
        %v5104 = vsub.s32 0, %v5103
        %v5105 = vadd.s32 %v5100, 1
        %vm5106 = vcmp.gt.s32.totalorder %v5105, 0
        %v5107 = vsel %vm5106, %v5105, 0
        %v5108 = vshrl.u32 %v5107, 5
        %v5109 = vand.u32 %v5107, 31
        %v5110 = vsub.s32 32, %v5109
        %v5111 = vshrl.u32 683565275, %v5110
        %v5112 = vshll.u32 683565275, %v5109
        %v5113 = vshrl.u32 2475754826, %v5110
        %v5114 = vor.u32 %v5112, %v5113
        %v5115 = vshll.u32 2475754826, %v5109
        %v5116 = vshrl.u32 2131351028, %v5110
        %v5117 = vor.u32 %v5115, %v5116
        %v5118 = vshll.u32 2131351028, %v5109
        %v5119 = vshrl.u32 2102212464, %v5110
        %v5120 = vor.u32 %v5118, %v5119
        %v5121 = vshll.u32 2102212464, %v5109
        %v5122 = vshrl.u32 920167782, %v5110
        %v5123 = vor.u32 %v5121, %v5122
        %v5124 = vshll.u32 920167782, %v5109
        %v5125 = vshrl.u32 1326507024, %v5110
        %v5126 = vor.u32 %v5124, %v5125
        %vm5127 = vcmp.lt.s32.totalorder %v5108, 1
        %vm5128 = vcmp.lt.s32.totalorder %v5108, 2
        %vm5129 = vcmp.lt.s32.totalorder %v5108, 3
        %vm5130 = vcmp.lt.s32.totalorder %v5108, 4
        %v5131 = vsel %vm5127, %v5111, %v5114
        %v5132 = vsel %vm5130, %v5120, 2102212464
        %v5133 = vsel %vm5129, %v5117, %v5132
        %v5134 = vsel %vm5128, %v5131, %v5133
        %v5135 = vsel %vm5127, %v5114, %v5117
        %v5136 = vsel %vm5130, %v5123, 920167782
        %v5137 = vsel %vm5129, %v5120, %v5136
        %v5138 = vsel %vm5128, %v5135, %v5137
        %v5139 = vsel %vm5127, %v5117, %v5120
        %v5140 = vsel %vm5130, %v5126, 1326507024
        %v5141 = vsel %vm5129, %v5123, %v5140
        %v5142 = vsel %vm5128, %v5139, %v5141
        %v5143 = vshll.u32 %v5103, 8
        %v5144 = vmul.u32.u64.compose %v5143, %v5142
        %v5145 = vextract.low.u32 %v5144
        %v5146 = vextract.high.u32 %v5144
        %v5147 = vmul.u32.u64.compose %v5143, %v5138
        %v5148 = vextract.low.u32 %v5147
        %v5149 = vextract.high.u32 %v5147
        %v5150 = vmul.u32 %v5143, %v5134
        %v5151 = vadd.s32 %v5146, %v5148
        %vm5152 = vc.u32 %v5146, %v5148
        %v5153 = vadd.s32 %v5149, 1
        %v5154 = vsel %vm5152, %v5153, %v5149
        %v5155 = vadd.s32 %v5150, %v5154
        %v5156 = vadd.s32 %v5155, 536870912
        %v5157 = vshrl.u32 %v5156, 30
        %v5158 = vshll.u32 %v5157, 30
        %v5159 = vsub.s32 %v5155, %v5158
        %vm5160 = vcmp.lt.s32.totalorder %v5159, 0
        %v5161 = vsub.s32 0, %v5159
        %v5162 = vsel %vm5160, %v5161, %v5159
        %v5163 = vclz %v5162
        %v5164 = vsub.s32 %v5163, 2
        %vm5165 = vcmp.gt.s32.totalorder 0, %v5164
        %v5166 = vsel %vm5165, 0, %v5164
        %v5167 = vsub.s32 32, %v5166
        %v5168 = vshll.u32 %v5159, %v5166
        %v5169 = vshrl.u32 %v5151, %v5167
        %v5170 = vor.u32 %v5168, %v5169
        %v5171 = vsub.s32 4294967266, %v5166
        %v5172 = vadd.s32 %v5171, 127
        %v5173 = vshll.u32 %v5172, 23
        %v5174 = vor.u32 4788187, %v5173
        %v5175 = vand.u32 2147483647, %v5174
        %v5177 = vcvt.s32.f32 %v5170
        %v5178 = vmul.f32 %v5177, %v5175
        %v5179 = vxor.u32 %v5178, 2147483648
        %v5180 = vsel %vm5097, %v5179, %v5178
        %v5181 = vsub.s32 4, %v5157
        %v5182 = vsel %vm5097, %v5181, %v5157
        %v5183 = vsel %vm5096, %v4808, %v5180
        %v5184 = vsel %vm5096, 0, %v5182
        %v5185 = vcosq.f32.pop %v5183
        %v5186 = vsinq.f32.pop %v5183
        %vm5187 = vweird.f32 %v4808
        %v5188 = vadd.s32 %v5184, 3
        %v5189 = vand.u32 %v5188, 3
        %vm5190 = vcmp.lt.s32.totalorder %v5189, 2
        %vm5191 = vcmp.eq.s32.totalorder %v5189, 0
        %v5192 = vxor.u32 %v5186, 2147483648
        %v5193 = vsel %vm5191, %v5185, %v5192
        %vm5194 = vcmp.eq.s32.totalorder %v5189, 2
        %v5195 = vxor.u32 %v5185, 2147483648
        %v5196 = vsel %vm5194, %v5195, %v5186
        %v5197 = vsel %vm5190, %v5193, %v5196
        %v5198 = vsel %vm5187, nan, %v5197
        %v5199 = vand.u32 2147483647, %v4814
        %vm5200 = vcmp.le.f32.partialorder %v5199, 0.7853982
        %vm5201 = vcmp.lt.s32.totalorder %v4814, 0
        %v5202 = vand.u32 %v4814, 2139095040
        %v5203 = vshrl.u32 %v5202, 23
        %v5204 = vsub.s32 %v5203, 127
        %v5205 = vand.u32 2147483647, %v4814
        %v5206 = vand.u32 %v5205, 8388607
        %v5207 = vor.u32 %v5206, 8388608
        %v5208 = vsub.s32 0, %v5207
        %v5209 = vadd.s32 %v5204, 1
        %vm5210 = vcmp.gt.s32.totalorder %v5209, 0
        %v5211 = vsel %vm5210, %v5209, 0
        %v5212 = vshrl.u32 %v5211, 5
        %v5213 = vand.u32 %v5211, 31
        %v5214 = vsub.s32 32, %v5213
        %v5215 = vshrl.u32 683565275, %v5214
        %v5216 = vshll.u32 683565275, %v5213
        %v5217 = vshrl.u32 2475754826, %v5214
        %v5218 = vor.u32 %v5216, %v5217
        %v5219 = vshll.u32 2475754826, %v5213
        %v5220 = vshrl.u32 2131351028, %v5214
        %v5221 = vor.u32 %v5219, %v5220
        %v5222 = vshll.u32 2131351028, %v5213
        %v5223 = vshrl.u32 2102212464, %v5214
        %v5224 = vor.u32 %v5222, %v5223
        %v5225 = vshll.u32 2102212464, %v5213
        %v5226 = vshrl.u32 920167782, %v5214
        %v5227 = vor.u32 %v5225, %v5226
        %v5228 = vshll.u32 920167782, %v5213
        %v5229 = vshrl.u32 1326507024, %v5214
        %v5230 = vor.u32 %v5228, %v5229
        %vm5231 = vcmp.lt.s32.totalorder %v5212, 1
        %vm5232 = vcmp.lt.s32.totalorder %v5212, 2
        %vm5233 = vcmp.lt.s32.totalorder %v5212, 3
        %vm5234 = vcmp.lt.s32.totalorder %v5212, 4
        %v5235 = vsel %vm5231, %v5215, %v5218
        %v5236 = vsel %vm5234, %v5224, 2102212464
        %v5237 = vsel %vm5233, %v5221, %v5236
        %v5238 = vsel %vm5232, %v5235, %v5237
        %v5239 = vsel %vm5231, %v5218, %v5221
        %v5240 = vsel %vm5234, %v5227, 920167782
        %v5241 = vsel %vm5233, %v5224, %v5240
        %v5242 = vsel %vm5232, %v5239, %v5241
        %v5243 = vsel %vm5231, %v5221, %v5224
        %v5244 = vsel %vm5234, %v5230, 1326507024
        %v5245 = vsel %vm5233, %v5227, %v5244
        %v5246 = vsel %vm5232, %v5243, %v5245
        %v5247 = vshll.u32 %v5207, 8
        %v5248 = vmul.u32.u64.compose %v5247, %v5246
        %v5249 = vextract.low.u32 %v5248
        %v5250 = vextract.high.u32 %v5248
        %v5251 = vmul.u32.u64.compose %v5247, %v5242
        %v5252 = vextract.low.u32 %v5251
        %v5253 = vextract.high.u32 %v5251
        %v5254 = vmul.u32 %v5247, %v5238
        %v5255 = vadd.s32 %v5250, %v5252
        %vm5256 = vc.u32 %v5250, %v5252
        %v5257 = vadd.s32 %v5253, 1
        %v5258 = vsel %vm5256, %v5257, %v5253
        %v5259 = vadd.s32 %v5254, %v5258
        %v5260 = vadd.s32 %v5259, 536870912
        %v5261 = vshrl.u32 %v5260, 30
        %v5262 = vshll.u32 %v5261, 30
        %v5263 = vsub.s32 %v5259, %v5262
        %vm5264 = vcmp.lt.s32.totalorder %v5263, 0
        %v5265 = vsub.s32 0, %v5263
        %v5266 = vsel %vm5264, %v5265, %v5263
        %v5267 = vclz %v5266
        %v5268 = vsub.s32 %v5267, 2
        %vm5269 = vcmp.gt.s32.totalorder 0, %v5268
        %v5270 = vsel %vm5269, 0, %v5268
        %v5271 = vsub.s32 32, %v5270
        %v5272 = vshll.u32 %v5263, %v5270
        %v5273 = vshrl.u32 %v5255, %v5271
        %v5274 = vor.u32 %v5272, %v5273
        %v5275 = vsub.s32 4294967266, %v5270
        %v5276 = vadd.s32 %v5275, 127
        %v5277 = vshll.u32 %v5276, 23
        %v5278 = vor.u32 4788187, %v5277
        %v5279 = vand.u32 2147483647, %v5278
        %v5281 = vcvt.s32.f32 %v5274
        %v5282 = vmul.f32 %v5281, %v5279
        %v5283 = vxor.u32 %v5282, 2147483648
        %v5284 = vsel %vm5201, %v5283, %v5282
        %v5285 = vsub.s32 4, %v5261
        %v5286 = vsel %vm5201, %v5285, %v5261
        %v5287 = vsel %vm5200, %v4814, %v5284
        %v5288 = vsel %vm5200, 0, %v5286
        %v5289 = vcosq.f32.pop %v5287
        %v5290 = vsinq.f32.pop %v5287
        %vm5291 = vweird.f32 %v4814
        %v5292 = vadd.s32 %v5288, 3
        %v5293 = vand.u32 %v5292, 3
        %vm5294 = vcmp.lt.s32.totalorder %v5293, 2
        %vm5295 = vcmp.eq.s32.totalorder %v5293, 0
        %v5296 = vxor.u32 %v5290, 2147483648
        %v5297 = vsel %vm5295, %v5289, %v5296
        %vm5298 = vcmp.eq.s32.totalorder %v5293, 2
        %v5299 = vxor.u32 %v5289, 2147483648
        %v5300 = vsel %vm5298, %v5299, %v5290
        %v5301 = vsel %vm5294, %v5297, %v5300
        %v5302 = vsel %vm5291, nan, %v5301
        %v5303 = vand.u32 2147483647, %v4820
        %vm5304 = vcmp.le.f32.partialorder %v5303, 0.7853982
        %vm5305 = vcmp.lt.s32.totalorder %v4820, 0
        %v5306 = vand.u32 %v4820, 2139095040
        %v5307 = vshrl.u32 %v5306, 23
        %v5308 = vsub.s32 %v5307, 127
        %v5309 = vand.u32 2147483647, %v4820
        %v5310 = vand.u32 %v5309, 8388607
        %v5311 = vor.u32 %v5310, 8388608
        %v5312 = vsub.s32 0, %v5311
        %v5313 = vadd.s32 %v5308, 1
        %vm5314 = vcmp.gt.s32.totalorder %v5313, 0
        %v5315 = vsel %vm5314, %v5313, 0
        %v5316 = vshrl.u32 %v5315, 5
        %v5317 = vand.u32 %v5315, 31
        %v5318 = vsub.s32 32, %v5317
        %v5319 = vshrl.u32 683565275, %v5318
        %v5320 = vshll.u32 683565275, %v5317
        %v5321 = vshrl.u32 2475754826, %v5318
        %v5322 = vor.u32 %v5320, %v5321
        %v5323 = vshll.u32 2475754826, %v5317
        %v5324 = vshrl.u32 2131351028, %v5318
        %v5325 = vor.u32 %v5323, %v5324
        %v5326 = vshll.u32 2131351028, %v5317
        %v5327 = vshrl.u32 2102212464, %v5318
        %v5328 = vor.u32 %v5326, %v5327
        %v5329 = vshll.u32 2102212464, %v5317
        %v5330 = vshrl.u32 920167782, %v5318
        %v5331 = vor.u32 %v5329, %v5330
        %v5332 = vshll.u32 920167782, %v5317
        %v5333 = vshrl.u32 1326507024, %v5318
        %v5334 = vor.u32 %v5332, %v5333
        %vm5335 = vcmp.lt.s32.totalorder %v5316, 1
        %vm5336 = vcmp.lt.s32.totalorder %v5316, 2
        %vm5337 = vcmp.lt.s32.totalorder %v5316, 3
        %vm5338 = vcmp.lt.s32.totalorder %v5316, 4
        %v5339 = vsel %vm5335, %v5319, %v5322
        %v5340 = vsel %vm5338, %v5328, 2102212464
        %v5341 = vsel %vm5337, %v5325, %v5340
        %v5342 = vsel %vm5336, %v5339, %v5341
        %v5343 = vsel %vm5335, %v5322, %v5325
        %v5344 = vsel %vm5338, %v5331, 920167782
        %v5345 = vsel %vm5337, %v5328, %v5344
        %v5346 = vsel %vm5336, %v5343, %v5345
        %v5347 = vsel %vm5335, %v5325, %v5328
        %v5348 = vsel %vm5338, %v5334, 1326507024
        %v5349 = vsel %vm5337, %v5331, %v5348
        %v5350 = vsel %vm5336, %v5347, %v5349
        %v5351 = vshll.u32 %v5311, 8
        %v5352 = vmul.u32.u64.compose %v5351, %v5350
        %v5353 = vextract.low.u32 %v5352
        %v5354 = vextract.high.u32 %v5352
        %v5355 = vmul.u32.u64.compose %v5351, %v5346
        %v5356 = vextract.low.u32 %v5355
        %v5357 = vextract.high.u32 %v5355
        %v5358 = vmul.u32 %v5351, %v5342
        %v5359 = vadd.s32 %v5354, %v5356
        %vm5360 = vc.u32 %v5354, %v5356
        %v5361 = vadd.s32 %v5357, 1
        %v5362 = vsel %vm5360, %v5361, %v5357
        %v5363 = vadd.s32 %v5358, %v5362
        %v5364 = vadd.s32 %v5363, 536870912
        %v5365 = vshrl.u32 %v5364, 30
        %v5366 = vshll.u32 %v5365, 30
        %v5367 = vsub.s32 %v5363, %v5366
        %vm5368 = vcmp.lt.s32.totalorder %v5367, 0
        %v5369 = vsub.s32 0, %v5367
        %v5370 = vsel %vm5368, %v5369, %v5367
        %v5371 = vclz %v5370
        %v5372 = vsub.s32 %v5371, 2
        %vm5373 = vcmp.gt.s32.totalorder 0, %v5372
        %v5374 = vsel %vm5373, 0, %v5372
        %v5375 = vsub.s32 32, %v5374
        %v5376 = vshll.u32 %v5367, %v5374
        %v5377 = vshrl.u32 %v5359, %v5375
        %v5378 = vor.u32 %v5376, %v5377
        %v5379 = vsub.s32 4294967266, %v5374
        %v5380 = vadd.s32 %v5379, 127
        %v5381 = vshll.u32 %v5380, 23
        %v5382 = vor.u32 4788187, %v5381
        %v5383 = vand.u32 2147483647, %v5382
        %v5385 = vcvt.s32.f32 %v5378
        %v5386 = vmul.f32 %v5385, %v5383
        %v5387 = vxor.u32 %v5386, 2147483648
        %v5388 = vsel %vm5305, %v5387, %v5386
        %v5389 = vsub.s32 4, %v5365
        %v5390 = vsel %vm5305, %v5389, %v5365
        %v5391 = vsel %vm5304, %v4820, %v5388
        %v5392 = vsel %vm5304, 0, %v5390
        %v5393 = vcosq.f32.pop %v5391
        %v5394 = vsinq.f32.pop %v5391
        %vm5395 = vweird.f32 %v4820
        %v5396 = vadd.s32 %v5392, 3
        %v5397 = vand.u32 %v5396, 3
        %vm5398 = vcmp.lt.s32.totalorder %v5397, 2
        %vm5399 = vcmp.eq.s32.totalorder %v5397, 0
        %v5400 = vxor.u32 %v5394, 2147483648
        %v5401 = vsel %vm5399, %v5393, %v5400
        %vm5402 = vcmp.eq.s32.totalorder %v5397, 2
        %v5403 = vxor.u32 %v5393, 2147483648
        %v5404 = vsel %vm5402, %v5403, %v5394
        %v5405 = vsel %vm5398, %v5401, %v5404
        %v5406 = vsel %vm5395, nan, %v5405
        %v5407 = vand.u32 2147483647, %v4826
        %vm5408 = vcmp.le.f32.partialorder %v5407, 0.7853982
        %vm5409 = vcmp.lt.s32.totalorder %v4826, 0
        %v5410 = vand.u32 %v4826, 2139095040
        %v5411 = vshrl.u32 %v5410, 23
        %v5412 = vsub.s32 %v5411, 127
        %v5413 = vand.u32 2147483647, %v4826
        %v5414 = vand.u32 %v5413, 8388607
        %v5415 = vor.u32 %v5414, 8388608
        %v5416 = vsub.s32 0, %v5415
        %v5417 = vadd.s32 %v5412, 1
        %vm5418 = vcmp.gt.s32.totalorder %v5417, 0
        %v5419 = vsel %vm5418, %v5417, 0
        %v5420 = vshrl.u32 %v5419, 5
        %v5421 = vand.u32 %v5419, 31
        %v5422 = vsub.s32 32, %v5421
        %v5423 = vshrl.u32 683565275, %v5422
        %v5424 = vshll.u32 683565275, %v5421
        %v5425 = vshrl.u32 2475754826, %v5422
        %v5426 = vor.u32 %v5424, %v5425
        %v5427 = vshll.u32 2475754826, %v5421
        %v5428 = vshrl.u32 2131351028, %v5422
        %v5429 = vor.u32 %v5427, %v5428
        %v5430 = vshll.u32 2131351028, %v5421
        %v5431 = vshrl.u32 2102212464, %v5422
        %v5432 = vor.u32 %v5430, %v5431
        %v5433 = vshll.u32 2102212464, %v5421
        %v5434 = vshrl.u32 920167782, %v5422
        %v5435 = vor.u32 %v5433, %v5434
        %v5436 = vshll.u32 920167782, %v5421
        %v5437 = vshrl.u32 1326507024, %v5422
        %v5438 = vor.u32 %v5436, %v5437
        %vm5439 = vcmp.lt.s32.totalorder %v5420, 1
        %vm5440 = vcmp.lt.s32.totalorder %v5420, 2
        %vm5441 = vcmp.lt.s32.totalorder %v5420, 3
        %vm5442 = vcmp.lt.s32.totalorder %v5420, 4
        %v5443 = vsel %vm5439, %v5423, %v5426
        %v5444 = vsel %vm5442, %v5432, 2102212464
        %v5445 = vsel %vm5441, %v5429, %v5444
        %v5446 = vsel %vm5440, %v5443, %v5445
        %v5447 = vsel %vm5439, %v5426, %v5429
        %v5448 = vsel %vm5442, %v5435, 920167782
        %v5449 = vsel %vm5441, %v5432, %v5448
        %v5450 = vsel %vm5440, %v5447, %v5449
        %v5451 = vsel %vm5439, %v5429, %v5432
        %v5452 = vsel %vm5442, %v5438, 1326507024
        %v5453 = vsel %vm5441, %v5435, %v5452
        %v5454 = vsel %vm5440, %v5451, %v5453
        %v5455 = vshll.u32 %v5415, 8
        %v5456 = vmul.u32.u64.compose %v5455, %v5454
        %v5457 = vextract.low.u32 %v5456
        %v5458 = vextract.high.u32 %v5456
        %v5459 = vmul.u32.u64.compose %v5455, %v5450
        %v5460 = vextract.low.u32 %v5459
        %v5461 = vextract.high.u32 %v5459
        %v5462 = vmul.u32 %v5455, %v5446
        %v5463 = vadd.s32 %v5458, %v5460
        %vm5464 = vc.u32 %v5458, %v5460
        %v5465 = vadd.s32 %v5461, 1
        %v5466 = vsel %vm5464, %v5465, %v5461
        %v5467 = vadd.s32 %v5462, %v5466
        %v5468 = vadd.s32 %v5467, 536870912
        %v5469 = vshrl.u32 %v5468, 30
        %v5470 = vshll.u32 %v5469, 30
        %v5471 = vsub.s32 %v5467, %v5470
        %vm5472 = vcmp.lt.s32.totalorder %v5471, 0
        %v5473 = vsub.s32 0, %v5471
        %v5474 = vsel %vm5472, %v5473, %v5471
        %v5475 = vclz %v5474
        %v5476 = vsub.s32 %v5475, 2
        %vm5477 = vcmp.gt.s32.totalorder 0, %v5476
        %v5478 = vsel %vm5477, 0, %v5476
        %v5479 = vsub.s32 32, %v5478
        %v5480 = vshll.u32 %v5471, %v5478
        %v5481 = vshrl.u32 %v5463, %v5479
        %v5482 = vor.u32 %v5480, %v5481
        %v5483 = vsub.s32 4294967266, %v5478
        %v5484 = vadd.s32 %v5483, 127
        %v5485 = vshll.u32 %v5484, 23
        %v5486 = vor.u32 4788187, %v5485
        %v5487 = vand.u32 2147483647, %v5486
        %v5489 = vcvt.s32.f32 %v5482
        %v5490 = vmul.f32 %v5489, %v5487
        %v5491 = vxor.u32 %v5490, 2147483648
        %v5492 = vsel %vm5409, %v5491, %v5490
        %v5493 = vsub.s32 4, %v5469
        %v5494 = vsel %vm5409, %v5493, %v5469
        %v5495 = vsel %vm5408, %v4826, %v5492
        %v5496 = vsel %vm5408, 0, %v5494
        %v5497 = vcosq.f32.pop %v5495
        %v5498 = vsinq.f32.pop %v5495
        %vm5499 = vweird.f32 %v4826
        %v5500 = vadd.s32 %v5496, 3
        %v5501 = vand.u32 %v5500, 3
        %vm5502 = vcmp.lt.s32.totalorder %v5501, 2
        %vm5503 = vcmp.eq.s32.totalorder %v5501, 0
        %v5504 = vxor.u32 %v5498, 2147483648
        %v5505 = vsel %vm5503, %v5497, %v5504
        %vm5506 = vcmp.eq.s32.totalorder %v5501, 2
        %v5507 = vxor.u32 %v5497, 2147483648
        %v5508 = vsel %vm5506, %v5507, %v5498
        %v5509 = vsel %vm5502, %v5505, %v5508
        %v5510 = vsel %vm5499, nan, %v5509
        %v5511 = vand.u32 2147483647, %v4832
        %vm5512 = vcmp.le.f32.partialorder %v5511, 0.7853982
        %vm5513 = vcmp.lt.s32.totalorder %v4832, 0
        %v5514 = vand.u32 %v4832, 2139095040
        %v5515 = vshrl.u32 %v5514, 23
        %v5516 = vsub.s32 %v5515, 127
        %v5517 = vand.u32 2147483647, %v4832
        %v5518 = vand.u32 %v5517, 8388607
        %v5519 = vor.u32 %v5518, 8388608
        %v5520 = vsub.s32 0, %v5519
        %v5521 = vadd.s32 %v5516, 1
        %vm5522 = vcmp.gt.s32.totalorder %v5521, 0
        %v5523 = vsel %vm5522, %v5521, 0
        %v5524 = vshrl.u32 %v5523, 5
        %v5525 = vand.u32 %v5523, 31
        %v5526 = vsub.s32 32, %v5525
        %v5527 = vshrl.u32 683565275, %v5526
        %v5528 = vshll.u32 683565275, %v5525
        %v5529 = vshrl.u32 2475754826, %v5526
        %v5530 = vor.u32 %v5528, %v5529
        %v5531 = vshll.u32 2475754826, %v5525
        %v5532 = vshrl.u32 2131351028, %v5526
        %v5533 = vor.u32 %v5531, %v5532
        %v5534 = vshll.u32 2131351028, %v5525
        %v5535 = vshrl.u32 2102212464, %v5526
        %v5536 = vor.u32 %v5534, %v5535
        %v5537 = vshll.u32 2102212464, %v5525
        %v5538 = vshrl.u32 920167782, %v5526
        %v5539 = vor.u32 %v5537, %v5538
        %v5540 = vshll.u32 920167782, %v5525
        %v5541 = vshrl.u32 1326507024, %v5526
        %v5542 = vor.u32 %v5540, %v5541
        %vm5543 = vcmp.lt.s32.totalorder %v5524, 1
        %vm5544 = vcmp.lt.s32.totalorder %v5524, 2
        %vm5545 = vcmp.lt.s32.totalorder %v5524, 3
        %vm5546 = vcmp.lt.s32.totalorder %v5524, 4
        %v5547 = vsel %vm5543, %v5527, %v5530
        %v5548 = vsel %vm5546, %v5536, 2102212464
        %v5549 = vsel %vm5545, %v5533, %v5548
        %v5550 = vsel %vm5544, %v5547, %v5549
        %v5551 = vsel %vm5543, %v5530, %v5533
        %v5552 = vsel %vm5546, %v5539, 920167782
        %v5553 = vsel %vm5545, %v5536, %v5552
        %v5554 = vsel %vm5544, %v5551, %v5553
        %v5555 = vsel %vm5543, %v5533, %v5536
        %v5556 = vsel %vm5546, %v5542, 1326507024
        %v5557 = vsel %vm5545, %v5539, %v5556
        %v5558 = vsel %vm5544, %v5555, %v5557
        %v5559 = vshll.u32 %v5519, 8
        %v5560 = vmul.u32.u64.compose %v5559, %v5558
        %v5561 = vextract.low.u32 %v5560
        %v5562 = vextract.high.u32 %v5560
        %v5563 = vmul.u32.u64.compose %v5559, %v5554
        %v5564 = vextract.low.u32 %v5563
        %v5565 = vextract.high.u32 %v5563
        %v5566 = vmul.u32 %v5559, %v5550
        %v5567 = vadd.s32 %v5562, %v5564
        %vm5568 = vc.u32 %v5562, %v5564
        %v5569 = vadd.s32 %v5565, 1
        %v5570 = vsel %vm5568, %v5569, %v5565
        %v5571 = vadd.s32 %v5566, %v5570
        %v5572 = vadd.s32 %v5571, 536870912
        %v5573 = vshrl.u32 %v5572, 30
        %v5574 = vshll.u32 %v5573, 30
        %v5575 = vsub.s32 %v5571, %v5574
        %vm5576 = vcmp.lt.s32.totalorder %v5575, 0
        %v5577 = vsub.s32 0, %v5575
        %v5578 = vsel %vm5576, %v5577, %v5575
        %v5579 = vclz %v5578
        %v5580 = vsub.s32 %v5579, 2
        %vm5581 = vcmp.gt.s32.totalorder 0, %v5580
        %v5582 = vsel %vm5581, 0, %v5580
        %v5583 = vsub.s32 32, %v5582
        %v5584 = vshll.u32 %v5575, %v5582
        %v5585 = vshrl.u32 %v5567, %v5583
        %v5586 = vor.u32 %v5584, %v5585
        %v5587 = vsub.s32 4294967266, %v5582
        %v5588 = vadd.s32 %v5587, 127
        %v5589 = vshll.u32 %v5588, 23
        %v5590 = vor.u32 4788187, %v5589
        %v5591 = vand.u32 2147483647, %v5590
        %v5593 = vcvt.s32.f32 %v5586
        %v5594 = vmul.f32 %v5593, %v5591
        %v5595 = vxor.u32 %v5594, 2147483648
        %v5596 = vsel %vm5513, %v5595, %v5594
        %v5597 = vsub.s32 4, %v5573
        %v5598 = vsel %vm5513, %v5597, %v5573
        %v5599 = vsel %vm5512, %v4832, %v5596
        %v5600 = vsel %vm5512, 0, %v5598
        %v5601 = vcosq.f32.pop %v5599
        %v5602 = vsinq.f32.pop %v5599
        %vm5603 = vweird.f32 %v4832
        %v5604 = vadd.s32 %v5600, 3
        %v5605 = vand.u32 %v5604, 3
        %vm5606 = vcmp.lt.s32.totalorder %v5605, 2
        %vm5607 = vcmp.eq.s32.totalorder %v5605, 0
        %v5608 = vxor.u32 %v5602, 2147483648
        %v5609 = vsel %vm5607, %v5601, %v5608
        %vm5610 = vcmp.eq.s32.totalorder %v5605, 2
        %v5611 = vxor.u32 %v5601, 2147483648
        %v5612 = vsel %vm5610, %v5611, %v5602
        %v5613 = vsel %vm5606, %v5609, %v5612
        %v5614 = vsel %vm5603, nan, %v5613
        %v5615 = vand.u32 2147483647, %v4838
        %vm5616 = vcmp.le.f32.partialorder %v5615, 0.7853982
        %vm5617 = vcmp.lt.s32.totalorder %v4838, 0
        %v5618 = vand.u32 %v4838, 2139095040
        %v5619 = vshrl.u32 %v5618, 23
        %v5620 = vsub.s32 %v5619, 127
        %v5621 = vand.u32 2147483647, %v4838
        %v5622 = vand.u32 %v5621, 8388607
        %v5623 = vor.u32 %v5622, 8388608
        %v5624 = vsub.s32 0, %v5623
        %v5625 = vadd.s32 %v5620, 1
        %vm5626 = vcmp.gt.s32.totalorder %v5625, 0
        %v5627 = vsel %vm5626, %v5625, 0
        %v5628 = vshrl.u32 %v5627, 5
        %v5629 = vand.u32 %v5627, 31
        %v5630 = vsub.s32 32, %v5629
        %v5631 = vshrl.u32 683565275, %v5630
        %v5632 = vshll.u32 683565275, %v5629
        %v5633 = vshrl.u32 2475754826, %v5630
        %v5634 = vor.u32 %v5632, %v5633
        %v5635 = vshll.u32 2475754826, %v5629
        %v5636 = vshrl.u32 2131351028, %v5630
        %v5637 = vor.u32 %v5635, %v5636
        %v5638 = vshll.u32 2131351028, %v5629
        %v5639 = vshrl.u32 2102212464, %v5630
        %v5640 = vor.u32 %v5638, %v5639
        %v5641 = vshll.u32 2102212464, %v5629
        %v5642 = vshrl.u32 920167782, %v5630
        %v5643 = vor.u32 %v5641, %v5642
        %v5644 = vshll.u32 920167782, %v5629
        %v5645 = vshrl.u32 1326507024, %v5630
        %v5646 = vor.u32 %v5644, %v5645
        %vm5647 = vcmp.lt.s32.totalorder %v5628, 1
        %vm5648 = vcmp.lt.s32.totalorder %v5628, 2
        %vm5649 = vcmp.lt.s32.totalorder %v5628, 3
        %vm5650 = vcmp.lt.s32.totalorder %v5628, 4
        %v5651 = vsel %vm5647, %v5631, %v5634
        %v5652 = vsel %vm5650, %v5640, 2102212464
        %v5653 = vsel %vm5649, %v5637, %v5652
        %v5654 = vsel %vm5648, %v5651, %v5653
        %v5655 = vsel %vm5647, %v5634, %v5637
        %v5656 = vsel %vm5650, %v5643, 920167782
        %v5657 = vsel %vm5649, %v5640, %v5656
        %v5658 = vsel %vm5648, %v5655, %v5657
        %v5659 = vsel %vm5647, %v5637, %v5640
        %v5660 = vsel %vm5650, %v5646, 1326507024
        %v5661 = vsel %vm5649, %v5643, %v5660
        %v5662 = vsel %vm5648, %v5659, %v5661
        %v5663 = vshll.u32 %v5623, 8
        %v5664 = vmul.u32.u64.compose %v5663, %v5662
        %v5665 = vextract.low.u32 %v5664
        %v5666 = vextract.high.u32 %v5664
        %v5667 = vmul.u32.u64.compose %v5663, %v5658
        %v5668 = vextract.low.u32 %v5667
        %v5669 = vextract.high.u32 %v5667
        %v5670 = vmul.u32 %v5663, %v5654
        %v5671 = vadd.s32 %v5666, %v5668
        %vm5672 = vc.u32 %v5666, %v5668
        %v5673 = vadd.s32 %v5669, 1
        %v5674 = vsel %vm5672, %v5673, %v5669
        %v5675 = vadd.s32 %v5670, %v5674
        %v5676 = vadd.s32 %v5675, 536870912
        %v5677 = vshrl.u32 %v5676, 30
        %v5678 = vshll.u32 %v5677, 30
        %v5679 = vsub.s32 %v5675, %v5678
        %vm5680 = vcmp.lt.s32.totalorder %v5679, 0
        %v5681 = vsub.s32 0, %v5679
        %v5682 = vsel %vm5680, %v5681, %v5679
        %v5683 = vclz %v5682
        %v5684 = vsub.s32 %v5683, 2
        %vm5685 = vcmp.gt.s32.totalorder 0, %v5684
        %v5686 = vsel %vm5685, 0, %v5684
        %v5687 = vsub.s32 32, %v5686
        %v5688 = vshll.u32 %v5679, %v5686
        %v5689 = vshrl.u32 %v5671, %v5687
        %v5690 = vor.u32 %v5688, %v5689
        %v5691 = vsub.s32 4294967266, %v5686
        %v5692 = vadd.s32 %v5691, 127
        %v5693 = vshll.u32 %v5692, 23
        %v5694 = vor.u32 4788187, %v5693
        %v5695 = vand.u32 2147483647, %v5694
        %v5697 = vcvt.s32.f32 %v5690
        %v5698 = vmul.f32 %v5697, %v5695
        %v5699 = vxor.u32 %v5698, 2147483648
        %v5700 = vsel %vm5617, %v5699, %v5698
        %v5701 = vsub.s32 4, %v5677
        %v5702 = vsel %vm5617, %v5701, %v5677
        %v5703 = vsel %vm5616, %v4838, %v5700
        %v5704 = vsel %vm5616, 0, %v5702
        %v5705 = vcosq.f32.pop %v5703
        %v5706 = vsinq.f32.pop %v5703
        %vm5707 = vweird.f32 %v4838
        %v5708 = vadd.s32 %v5704, 3
        %v5709 = vand.u32 %v5708, 3
        %vm5710 = vcmp.lt.s32.totalorder %v5709, 2
        %vm5711 = vcmp.eq.s32.totalorder %v5709, 0
        %v5712 = vxor.u32 %v5706, 2147483648
        %v5713 = vsel %vm5711, %v5705, %v5712
        %vm5714 = vcmp.eq.s32.totalorder %v5709, 2
        %v5715 = vxor.u32 %v5705, 2147483648
        %v5716 = vsel %vm5714, %v5715, %v5706
        %v5717 = vsel %vm5710, %v5713, %v5716
        %v5718 = vsel %vm5707, nan, %v5717
        %v5719 = vand.u32 2147483647, %v4844
        %vm5720 = vcmp.le.f32.partialorder %v5719, 0.7853982
        %vm5721 = vcmp.lt.s32.totalorder %v4844, 0
        %v5722 = vand.u32 %v4844, 2139095040
        %v5723 = vshrl.u32 %v5722, 23
        %v5724 = vsub.s32 %v5723, 127
        %v5725 = vand.u32 2147483647, %v4844
        %v5726 = vand.u32 %v5725, 8388607
        %v5727 = vor.u32 %v5726, 8388608
        %v5728 = vsub.s32 0, %v5727
        %v5729 = vadd.s32 %v5724, 1
        %vm5730 = vcmp.gt.s32.totalorder %v5729, 0
        %v5731 = vsel %vm5730, %v5729, 0
        %v5732 = vshrl.u32 %v5731, 5
        %v5733 = vand.u32 %v5731, 31
        %v5734 = vsub.s32 32, %v5733
        %v5735 = vshrl.u32 683565275, %v5734
        %v5736 = vshll.u32 683565275, %v5733
        %v5737 = vshrl.u32 2475754826, %v5734
        %v5738 = vor.u32 %v5736, %v5737
        %v5739 = vshll.u32 2475754826, %v5733
        %v5740 = vshrl.u32 2131351028, %v5734
        %v5741 = vor.u32 %v5739, %v5740
        %v5742 = vshll.u32 2131351028, %v5733
        %v5743 = vshrl.u32 2102212464, %v5734
        %v5744 = vor.u32 %v5742, %v5743
        %v5745 = vshll.u32 2102212464, %v5733
        %v5746 = vshrl.u32 920167782, %v5734
        %v5747 = vor.u32 %v5745, %v5746
        %v5748 = vshll.u32 920167782, %v5733
        %v5749 = vshrl.u32 1326507024, %v5734
        %v5750 = vor.u32 %v5748, %v5749
        %vm5751 = vcmp.lt.s32.totalorder %v5732, 1
        %vm5752 = vcmp.lt.s32.totalorder %v5732, 2
        %vm5753 = vcmp.lt.s32.totalorder %v5732, 3
        %vm5754 = vcmp.lt.s32.totalorder %v5732, 4
        %v5755 = vsel %vm5751, %v5735, %v5738
        %v5756 = vsel %vm5754, %v5744, 2102212464
        %v5757 = vsel %vm5753, %v5741, %v5756
        %v5758 = vsel %vm5752, %v5755, %v5757
        %v5759 = vsel %vm5751, %v5738, %v5741
        %v5760 = vsel %vm5754, %v5747, 920167782
        %v5761 = vsel %vm5753, %v5744, %v5760
        %v5762 = vsel %vm5752, %v5759, %v5761
        %v5763 = vsel %vm5751, %v5741, %v5744
        %v5764 = vsel %vm5754, %v5750, 1326507024
        %v5765 = vsel %vm5753, %v5747, %v5764
        %v5766 = vsel %vm5752, %v5763, %v5765
        %v5767 = vshll.u32 %v5727, 8
        %v5768 = vmul.u32.u64.compose %v5767, %v5766
        %v5769 = vextract.low.u32 %v5768
        %v5770 = vextract.high.u32 %v5768
        %v5771 = vmul.u32.u64.compose %v5767, %v5762
        %v5772 = vextract.low.u32 %v5771
        %v5773 = vextract.high.u32 %v5771
        %v5774 = vmul.u32 %v5767, %v5758
        %v5775 = vadd.s32 %v5770, %v5772
        %vm5776 = vc.u32 %v5770, %v5772
        %v5777 = vadd.s32 %v5773, 1
        %v5778 = vsel %vm5776, %v5777, %v5773
        %v5779 = vadd.s32 %v5774, %v5778
        %v5780 = vadd.s32 %v5779, 536870912
        %v5781 = vshrl.u32 %v5780, 30
        %v5782 = vshll.u32 %v5781, 30
        %v5783 = vsub.s32 %v5779, %v5782
        %vm5784 = vcmp.lt.s32.totalorder %v5783, 0
        %v5785 = vsub.s32 0, %v5783
        %v5786 = vsel %vm5784, %v5785, %v5783
        %v5787 = vclz %v5786
        %v5788 = vsub.s32 %v5787, 2
        %vm5789 = vcmp.gt.s32.totalorder 0, %v5788
        %v5790 = vsel %vm5789, 0, %v5788
        %v5791 = vsub.s32 32, %v5790
        %v5792 = vshll.u32 %v5783, %v5790
        %v5793 = vshrl.u32 %v5775, %v5791
        %v5794 = vor.u32 %v5792, %v5793
        %v5795 = vsub.s32 4294967266, %v5790
        %v5796 = vadd.s32 %v5795, 127
        %v5797 = vshll.u32 %v5796, 23
        %v5798 = vor.u32 4788187, %v5797
        %v5799 = vand.u32 2147483647, %v5798
        %v5801 = vcvt.s32.f32 %v5794
        %v5802 = vmul.f32 %v5801, %v5799
        %v5803 = vxor.u32 %v5802, 2147483648
        %v5804 = vsel %vm5721, %v5803, %v5802
        %v5805 = vsub.s32 4, %v5781
        %v5806 = vsel %vm5721, %v5805, %v5781
        %v5807 = vsel %vm5720, %v4844, %v5804
        %v5808 = vsel %vm5720, 0, %v5806
        %v5809 = vcosq.f32.pop %v5807
        %v5810 = vsinq.f32.pop %v5807
        %vm5811 = vweird.f32 %v4844
        %v5812 = vadd.s32 %v5808, 3
        %v5813 = vand.u32 %v5812, 3
        %vm5814 = vcmp.lt.s32.totalorder %v5813, 2
        %vm5815 = vcmp.eq.s32.totalorder %v5813, 0
        %v5816 = vxor.u32 %v5810, 2147483648
        %v5817 = vsel %vm5815, %v5809, %v5816
        %vm5818 = vcmp.eq.s32.totalorder %v5813, 2
        %v5819 = vxor.u32 %v5809, 2147483648
        %v5820 = vsel %vm5818, %v5819, %v5810
        %v5821 = vsel %vm5814, %v5817, %v5820
        %v5822 = vsel %vm5811, nan, %v5821
        %v5823 = vand.u32 2147483647, %v4850
        %vm5824 = vcmp.le.f32.partialorder %v5823, 0.7853982
        %vm5825 = vcmp.lt.s32.totalorder %v4850, 0
        %v5826 = vand.u32 %v4850, 2139095040
        %v5827 = vshrl.u32 %v5826, 23
        %v5828 = vsub.s32 %v5827, 127
        %v5829 = vand.u32 2147483647, %v4850
        %v5830 = vand.u32 %v5829, 8388607
        %v5831 = vor.u32 %v5830, 8388608
        %v5832 = vsub.s32 0, %v5831
        %v5833 = vadd.s32 %v5828, 1
        %vm5834 = vcmp.gt.s32.totalorder %v5833, 0
        %v5835 = vsel %vm5834, %v5833, 0
        %v5836 = vshrl.u32 %v5835, 5
        %v5837 = vand.u32 %v5835, 31
        %v5838 = vsub.s32 32, %v5837
        %v5839 = vshrl.u32 683565275, %v5838
        %v5840 = vshll.u32 683565275, %v5837
        %v5841 = vshrl.u32 2475754826, %v5838
        %v5842 = vor.u32 %v5840, %v5841
        %v5843 = vshll.u32 2475754826, %v5837
        %v5844 = vshrl.u32 2131351028, %v5838
        %v5845 = vor.u32 %v5843, %v5844
        %v5846 = vshll.u32 2131351028, %v5837
        %v5847 = vshrl.u32 2102212464, %v5838
        %v5848 = vor.u32 %v5846, %v5847
        %v5849 = vshll.u32 2102212464, %v5837
        %v5850 = vshrl.u32 920167782, %v5838
        %v5851 = vor.u32 %v5849, %v5850
        %v5852 = vshll.u32 920167782, %v5837
        %v5853 = vshrl.u32 1326507024, %v5838
        %v5854 = vor.u32 %v5852, %v5853
        %vm5855 = vcmp.lt.s32.totalorder %v5836, 1
        %vm5856 = vcmp.lt.s32.totalorder %v5836, 2
        %vm5857 = vcmp.lt.s32.totalorder %v5836, 3
        %vm5858 = vcmp.lt.s32.totalorder %v5836, 4
        %v5859 = vsel %vm5855, %v5839, %v5842
        %v5860 = vsel %vm5858, %v5848, 2102212464
        %v5861 = vsel %vm5857, %v5845, %v5860
        %v5862 = vsel %vm5856, %v5859, %v5861
        %v5863 = vsel %vm5855, %v5842, %v5845
        %v5864 = vsel %vm5858, %v5851, 920167782
        %v5865 = vsel %vm5857, %v5848, %v5864
        %v5866 = vsel %vm5856, %v5863, %v5865
        %v5867 = vsel %vm5855, %v5845, %v5848
        %v5868 = vsel %vm5858, %v5854, 1326507024
        %v5869 = vsel %vm5857, %v5851, %v5868
        %v5870 = vsel %vm5856, %v5867, %v5869
        %v5871 = vshll.u32 %v5831, 8
        %v5872 = vmul.u32.u64.compose %v5871, %v5870
        %v5873 = vextract.low.u32 %v5872
        %v5874 = vextract.high.u32 %v5872
        %v5875 = vmul.u32.u64.compose %v5871, %v5866
        %v5876 = vextract.low.u32 %v5875
        %v5877 = vextract.high.u32 %v5875
        %v5878 = vmul.u32 %v5871, %v5862
        %v5879 = vadd.s32 %v5874, %v5876
        %vm5880 = vc.u32 %v5874, %v5876
        %v5881 = vadd.s32 %v5877, 1
        %v5882 = vsel %vm5880, %v5881, %v5877
        %v5883 = vadd.s32 %v5878, %v5882
        %v5884 = vadd.s32 %v5883, 536870912
        %v5885 = vshrl.u32 %v5884, 30
        %v5886 = vshll.u32 %v5885, 30
        %v5887 = vsub.s32 %v5883, %v5886
        %vm5888 = vcmp.lt.s32.totalorder %v5887, 0
        %v5889 = vsub.s32 0, %v5887
        %v5890 = vsel %vm5888, %v5889, %v5887
        %v5891 = vclz %v5890
        %v5892 = vsub.s32 %v5891, 2
        %vm5893 = vcmp.gt.s32.totalorder 0, %v5892
        %v5894 = vsel %vm5893, 0, %v5892
        %v5895 = vsub.s32 32, %v5894
        %v5896 = vshll.u32 %v5887, %v5894
        %v5897 = vshrl.u32 %v5879, %v5895
        %v5898 = vor.u32 %v5896, %v5897
        %v5899 = vsub.s32 4294967266, %v5894
        %v5900 = vadd.s32 %v5899, 127
        %v5901 = vshll.u32 %v5900, 23
        %v5902 = vor.u32 4788187, %v5901
        %v5903 = vand.u32 2147483647, %v5902
        %v5905 = vcvt.s32.f32 %v5898
        %v5906 = vmul.f32 %v5905, %v5903
        %v5907 = vxor.u32 %v5906, 2147483648
        %v5908 = vsel %vm5825, %v5907, %v5906
        %v5909 = vsub.s32 4, %v5885
        %v5910 = vsel %vm5825, %v5909, %v5885
        %v5911 = vsel %vm5824, %v4850, %v5908
        %v5912 = vsel %vm5824, 0, %v5910
        %v5913 = vcosq.f32.pop %v5911
        %v5914 = vsinq.f32.pop %v5911
        %vm5915 = vweird.f32 %v4850
        %v5916 = vadd.s32 %v5912, 3
        %v5917 = vand.u32 %v5916, 3
        %vm5918 = vcmp.lt.s32.totalorder %v5917, 2
        %vm5919 = vcmp.eq.s32.totalorder %v5917, 0
        %v5920 = vxor.u32 %v5914, 2147483648
        %v5921 = vsel %vm5919, %v5913, %v5920
        %vm5922 = vcmp.eq.s32.totalorder %v5917, 2
        %v5923 = vxor.u32 %v5913, 2147483648
        %v5924 = vsel %vm5922, %v5923, %v5914
        %v5925 = vsel %vm5918, %v5921, %v5924
        %v5926 = vsel %vm5915, nan, %v5925
        %v5927 = vand.u32 2147483647, %v4856
        %vm5928 = vcmp.le.f32.partialorder %v5927, 0.7853982
        %vm5929 = vcmp.lt.s32.totalorder %v4856, 0
        %v5930 = vand.u32 %v4856, 2139095040
        %v5931 = vshrl.u32 %v5930, 23
        %v5932 = vsub.s32 %v5931, 127
        %v5933 = vand.u32 2147483647, %v4856
        %v5934 = vand.u32 %v5933, 8388607
        %v5935 = vor.u32 %v5934, 8388608
        %v5936 = vsub.s32 0, %v5935
        %v5937 = vadd.s32 %v5932, 1
        %vm5938 = vcmp.gt.s32.totalorder %v5937, 0
        %v5939 = vsel %vm5938, %v5937, 0
        %v5940 = vshrl.u32 %v5939, 5
        %v5941 = vand.u32 %v5939, 31
        %v5942 = vsub.s32 32, %v5941
        %v5943 = vshrl.u32 683565275, %v5942
        %v5944 = vshll.u32 683565275, %v5941
        %v5945 = vshrl.u32 2475754826, %v5942
        %v5946 = vor.u32 %v5944, %v5945
        %v5947 = vshll.u32 2475754826, %v5941
        %v5948 = vshrl.u32 2131351028, %v5942
        %v5949 = vor.u32 %v5947, %v5948
        %v5950 = vshll.u32 2131351028, %v5941
        %v5951 = vshrl.u32 2102212464, %v5942
        %v5952 = vor.u32 %v5950, %v5951
        %v5953 = vshll.u32 2102212464, %v5941
        %v5954 = vshrl.u32 920167782, %v5942
        %v5955 = vor.u32 %v5953, %v5954
        %v5956 = vshll.u32 920167782, %v5941
        %v5957 = vshrl.u32 1326507024, %v5942
        %v5958 = vor.u32 %v5956, %v5957
        %vm5959 = vcmp.lt.s32.totalorder %v5940, 1
        %vm5960 = vcmp.lt.s32.totalorder %v5940, 2
        %vm5961 = vcmp.lt.s32.totalorder %v5940, 3
        %vm5962 = vcmp.lt.s32.totalorder %v5940, 4
        %v5963 = vsel %vm5959, %v5943, %v5946
        %v5964 = vsel %vm5962, %v5952, 2102212464
        %v5965 = vsel %vm5961, %v5949, %v5964
        %v5966 = vsel %vm5960, %v5963, %v5965
        %v5967 = vsel %vm5959, %v5946, %v5949
        %v5968 = vsel %vm5962, %v5955, 920167782
        %v5969 = vsel %vm5961, %v5952, %v5968
        %v5970 = vsel %vm5960, %v5967, %v5969
        %v5971 = vsel %vm5959, %v5949, %v5952
        %v5972 = vsel %vm5962, %v5958, 1326507024
        %v5973 = vsel %vm5961, %v5955, %v5972
        %v5974 = vsel %vm5960, %v5971, %v5973
        %v5975 = vshll.u32 %v5935, 8
        %v5976 = vmul.u32.u64.compose %v5975, %v5974
        %v5977 = vextract.low.u32 %v5976
        %v5978 = vextract.high.u32 %v5976
        %v5979 = vmul.u32.u64.compose %v5975, %v5970
        %v5980 = vextract.low.u32 %v5979
        %v5981 = vextract.high.u32 %v5979
        %v5982 = vmul.u32 %v5975, %v5966
        %v5983 = vadd.s32 %v5978, %v5980
        %vm5984 = vc.u32 %v5978, %v5980
        %v5985 = vadd.s32 %v5981, 1
        %v5986 = vsel %vm5984, %v5985, %v5981
        %v5987 = vadd.s32 %v5982, %v5986
        %v5988 = vadd.s32 %v5987, 536870912
        %v5989 = vshrl.u32 %v5988, 30
        %v5990 = vshll.u32 %v5989, 30
        %v5991 = vsub.s32 %v5987, %v5990
        %vm5992 = vcmp.lt.s32.totalorder %v5991, 0
        %v5993 = vsub.s32 0, %v5991
        %v5994 = vsel %vm5992, %v5993, %v5991
        %v5995 = vclz %v5994
        %v5996 = vsub.s32 %v5995, 2
        %vm5997 = vcmp.gt.s32.totalorder 0, %v5996
        %v5998 = vsel %vm5997, 0, %v5996
        %v5999 = vsub.s32 32, %v5998
        %v6000 = vshll.u32 %v5991, %v5998
        %v6001 = vshrl.u32 %v5983, %v5999
        %v6002 = vor.u32 %v6000, %v6001
        %v6003 = vsub.s32 4294967266, %v5998
        %v6004 = vadd.s32 %v6003, 127
        %v6005 = vshll.u32 %v6004, 23
        %v6006 = vor.u32 4788187, %v6005
        %v6007 = vand.u32 2147483647, %v6006
        %v6009 = vcvt.s32.f32 %v6002
        %v6010 = vmul.f32 %v6009, %v6007
        %v6011 = vxor.u32 %v6010, 2147483648
        %v6012 = vsel %vm5929, %v6011, %v6010
        %v6013 = vsub.s32 4, %v5989
        %v6014 = vsel %vm5929, %v6013, %v5989
        %v6015 = vsel %vm5928, %v4856, %v6012
        %v6016 = vsel %vm5928, 0, %v6014
        %v6017 = vcosq.f32.pop %v6015
        %v6018 = vsinq.f32.pop %v6015
        %vm6019 = vweird.f32 %v4856
        %v6020 = vadd.s32 %v6016, 3
        %v6021 = vand.u32 %v6020, 3
        %vm6022 = vcmp.lt.s32.totalorder %v6021, 2
        %vm6023 = vcmp.eq.s32.totalorder %v6021, 0
        %v6024 = vxor.u32 %v6018, 2147483648
        %v6025 = vsel %vm6023, %v6017, %v6024
        %vm6026 = vcmp.eq.s32.totalorder %v6021, 2
        %v6027 = vxor.u32 %v6017, 2147483648
        %v6028 = vsel %vm6026, %v6027, %v6018
        %v6029 = vsel %vm6022, %v6025, %v6028
        %v6030 = vsel %vm6019, nan, %v6029
        %v6031 = vand.u32 2147483647, %v4862
        %vm6032 = vcmp.le.f32.partialorder %v6031, 0.7853982
        %vm6033 = vcmp.lt.s32.totalorder %v4862, 0
        %v6034 = vand.u32 %v4862, 2139095040
        %v6035 = vshrl.u32 %v6034, 23
        %v6036 = vsub.s32 %v6035, 127
        %v6037 = vand.u32 2147483647, %v4862
        %v6038 = vand.u32 %v6037, 8388607
        %v6039 = vor.u32 %v6038, 8388608
        %v6040 = vsub.s32 0, %v6039
        %v6041 = vadd.s32 %v6036, 1
        %vm6042 = vcmp.gt.s32.totalorder %v6041, 0
        %v6043 = vsel %vm6042, %v6041, 0
        %v6044 = vshrl.u32 %v6043, 5
        %v6045 = vand.u32 %v6043, 31
        %v6046 = vsub.s32 32, %v6045
        %v6047 = vshrl.u32 683565275, %v6046
        %v6048 = vshll.u32 683565275, %v6045
        %v6049 = vshrl.u32 2475754826, %v6046
        %v6050 = vor.u32 %v6048, %v6049
        %v6051 = vshll.u32 2475754826, %v6045
        %v6052 = vshrl.u32 2131351028, %v6046
        %v6053 = vor.u32 %v6051, %v6052
        %v6054 = vshll.u32 2131351028, %v6045
        %v6055 = vshrl.u32 2102212464, %v6046
        %v6056 = vor.u32 %v6054, %v6055
        %v6057 = vshll.u32 2102212464, %v6045
        %v6058 = vshrl.u32 920167782, %v6046
        %v6059 = vor.u32 %v6057, %v6058
        %v6060 = vshll.u32 920167782, %v6045
        %v6061 = vshrl.u32 1326507024, %v6046
        %v6062 = vor.u32 %v6060, %v6061
        %vm6063 = vcmp.lt.s32.totalorder %v6044, 1
        %vm6064 = vcmp.lt.s32.totalorder %v6044, 2
        %vm6065 = vcmp.lt.s32.totalorder %v6044, 3
        %vm6066 = vcmp.lt.s32.totalorder %v6044, 4
        %v6067 = vsel %vm6063, %v6047, %v6050
        %v6068 = vsel %vm6066, %v6056, 2102212464
        %v6069 = vsel %vm6065, %v6053, %v6068
        %v6070 = vsel %vm6064, %v6067, %v6069
        %v6071 = vsel %vm6063, %v6050, %v6053
        %v6072 = vsel %vm6066, %v6059, 920167782
        %v6073 = vsel %vm6065, %v6056, %v6072
        %v6074 = vsel %vm6064, %v6071, %v6073
        %v6075 = vsel %vm6063, %v6053, %v6056
        %v6076 = vsel %vm6066, %v6062, 1326507024
        %v6077 = vsel %vm6065, %v6059, %v6076
        %v6078 = vsel %vm6064, %v6075, %v6077
        %v6079 = vshll.u32 %v6039, 8
        %v6080 = vmul.u32.u64.compose %v6079, %v6078
        %v6081 = vextract.low.u32 %v6080
        %v6082 = vextract.high.u32 %v6080
        %v6083 = vmul.u32.u64.compose %v6079, %v6074
        %v6084 = vextract.low.u32 %v6083
        %v6085 = vextract.high.u32 %v6083
        %v6086 = vmul.u32 %v6079, %v6070
        %v6087 = vadd.s32 %v6082, %v6084
        %vm6088 = vc.u32 %v6082, %v6084
        %v6089 = vadd.s32 %v6085, 1
        %v6090 = vsel %vm6088, %v6089, %v6085
        %v6091 = vadd.s32 %v6086, %v6090
        %v6092 = vadd.s32 %v6091, 536870912
        %v6093 = vshrl.u32 %v6092, 30
        %v6094 = vshll.u32 %v6093, 30
        %v6095 = vsub.s32 %v6091, %v6094
        %vm6096 = vcmp.lt.s32.totalorder %v6095, 0
        %v6097 = vsub.s32 0, %v6095
        %v6098 = vsel %vm6096, %v6097, %v6095
        %v6099 = vclz %v6098
        %v6100 = vsub.s32 %v6099, 2
        %vm6101 = vcmp.gt.s32.totalorder 0, %v6100
        %v6102 = vsel %vm6101, 0, %v6100
        %v6103 = vsub.s32 32, %v6102
        %v6104 = vshll.u32 %v6095, %v6102
        %v6105 = vshrl.u32 %v6087, %v6103
        %v6106 = vor.u32 %v6104, %v6105
        %v6107 = vsub.s32 4294967266, %v6102
        %v6108 = vadd.s32 %v6107, 127
        %v6109 = vshll.u32 %v6108, 23
        %v6110 = vor.u32 4788187, %v6109
        %v6111 = vand.u32 2147483647, %v6110
        %v6113 = vcvt.s32.f32 %v6106
        %v6114 = vmul.f32 %v6113, %v6111
        %v6115 = vxor.u32 %v6114, 2147483648
        %v6116 = vsel %vm6033, %v6115, %v6114
        %v6117 = vsub.s32 4, %v6093
        %v6118 = vsel %vm6033, %v6117, %v6093
        %v6119 = vsel %vm6032, %v4862, %v6116
        %v6120 = vsel %vm6032, 0, %v6118
        %v6121 = vcosq.f32.pop %v6119
        %v6122 = vsinq.f32.pop %v6119
        %vm6123 = vweird.f32 %v4862
        %v6124 = vadd.s32 %v6120, 3
        %v6125 = vand.u32 %v6124, 3
        %vm6126 = vcmp.lt.s32.totalorder %v6125, 2
        %vm6127 = vcmp.eq.s32.totalorder %v6125, 0
        %v6128 = vxor.u32 %v6122, 2147483648
        %v6129 = vsel %vm6127, %v6121, %v6128
        %vm6130 = vcmp.eq.s32.totalorder %v6125, 2
        %v6131 = vxor.u32 %v6121, 2147483648
        %v6132 = vsel %vm6130, %v6131, %v6122
        %v6133 = vsel %vm6126, %v6129, %v6132
        %v6134 = vsel %vm6123, nan, %v6133
        %v6135 = vand.u32 2147483647, %v4868
        %vm6136 = vcmp.le.f32.partialorder %v6135, 0.7853982
        %vm6137 = vcmp.lt.s32.totalorder %v4868, 0
        %v6138 = vand.u32 %v4868, 2139095040
        %v6139 = vshrl.u32 %v6138, 23
        %v6140 = vsub.s32 %v6139, 127
        %v6141 = vand.u32 2147483647, %v4868
        %v6142 = vand.u32 %v6141, 8388607
        %v6143 = vor.u32 %v6142, 8388608
        %v6144 = vsub.s32 0, %v6143
        %v6145 = vadd.s32 %v6140, 1
        %vm6146 = vcmp.gt.s32.totalorder %v6145, 0
        %v6147 = vsel %vm6146, %v6145, 0
        %v6148 = vshrl.u32 %v6147, 5
        %v6149 = vand.u32 %v6147, 31
        %v6150 = vsub.s32 32, %v6149
        %v6151 = vshrl.u32 683565275, %v6150
        %v6152 = vshll.u32 683565275, %v6149
        %v6153 = vshrl.u32 2475754826, %v6150
        %v6154 = vor.u32 %v6152, %v6153
        %v6155 = vshll.u32 2475754826, %v6149
        %v6156 = vshrl.u32 2131351028, %v6150
        %v6157 = vor.u32 %v6155, %v6156
        %v6158 = vshll.u32 2131351028, %v6149
        %v6159 = vshrl.u32 2102212464, %v6150
        %v6160 = vor.u32 %v6158, %v6159
        %v6161 = vshll.u32 2102212464, %v6149
        %v6162 = vshrl.u32 920167782, %v6150
        %v6163 = vor.u32 %v6161, %v6162
        %v6164 = vshll.u32 920167782, %v6149
        %v6165 = vshrl.u32 1326507024, %v6150
        %v6166 = vor.u32 %v6164, %v6165
        %vm6167 = vcmp.lt.s32.totalorder %v6148, 1
        %vm6168 = vcmp.lt.s32.totalorder %v6148, 2
        %vm6169 = vcmp.lt.s32.totalorder %v6148, 3
        %vm6170 = vcmp.lt.s32.totalorder %v6148, 4
        %v6171 = vsel %vm6167, %v6151, %v6154
        %v6172 = vsel %vm6170, %v6160, 2102212464
        %v6173 = vsel %vm6169, %v6157, %v6172
        %v6174 = vsel %vm6168, %v6171, %v6173
        %v6175 = vsel %vm6167, %v6154, %v6157
        %v6176 = vsel %vm6170, %v6163, 920167782
        %v6177 = vsel %vm6169, %v6160, %v6176
        %v6178 = vsel %vm6168, %v6175, %v6177
        %v6179 = vsel %vm6167, %v6157, %v6160
        %v6180 = vsel %vm6170, %v6166, 1326507024
        %v6181 = vsel %vm6169, %v6163, %v6180
        %v6182 = vsel %vm6168, %v6179, %v6181
        %v6183 = vshll.u32 %v6143, 8
        %v6184 = vmul.u32.u64.compose %v6183, %v6182
        %v6185 = vextract.low.u32 %v6184
        %v6186 = vextract.high.u32 %v6184
        %v6187 = vmul.u32.u64.compose %v6183, %v6178
        %v6188 = vextract.low.u32 %v6187
        %v6189 = vextract.high.u32 %v6187
        %v6190 = vmul.u32 %v6183, %v6174
        %v6191 = vadd.s32 %v6186, %v6188
        %vm6192 = vc.u32 %v6186, %v6188
        %v6193 = vadd.s32 %v6189, 1
        %v6194 = vsel %vm6192, %v6193, %v6189
        %v6195 = vadd.s32 %v6190, %v6194
        %v6196 = vadd.s32 %v6195, 536870912
        %v6197 = vshrl.u32 %v6196, 30
        %v6198 = vshll.u32 %v6197, 30
        %v6199 = vsub.s32 %v6195, %v6198
        %vm6200 = vcmp.lt.s32.totalorder %v6199, 0
        %v6201 = vsub.s32 0, %v6199
        %v6202 = vsel %vm6200, %v6201, %v6199
        %v6203 = vclz %v6202
        %v6204 = vsub.s32 %v6203, 2
        %vm6205 = vcmp.gt.s32.totalorder 0, %v6204
        %v6206 = vsel %vm6205, 0, %v6204
        %v6207 = vsub.s32 32, %v6206
        %v6208 = vshll.u32 %v6199, %v6206
        %v6209 = vshrl.u32 %v6191, %v6207
        %v6210 = vor.u32 %v6208, %v6209
        %v6211 = vsub.s32 4294967266, %v6206
        %v6212 = vadd.s32 %v6211, 127
        %v6213 = vshll.u32 %v6212, 23
        %v6214 = vor.u32 4788187, %v6213
        %v6215 = vand.u32 2147483647, %v6214
        %v6217 = vcvt.s32.f32 %v6210
        %v6218 = vmul.f32 %v6217, %v6215
        %v6219 = vxor.u32 %v6218, 2147483648
        %v6220 = vsel %vm6137, %v6219, %v6218
        %v6221 = vsub.s32 4, %v6197
        %v6222 = vsel %vm6137, %v6221, %v6197
        %v6223 = vsel %vm6136, %v4868, %v6220
        %v6224 = vsel %vm6136, 0, %v6222
        %v6225 = vcosq.f32.pop %v6223
        %v6226 = vsinq.f32.pop %v6223
        %vm6227 = vweird.f32 %v4868
        %v6228 = vadd.s32 %v6224, 3
        %v6229 = vand.u32 %v6228, 3
        %vm6230 = vcmp.lt.s32.totalorder %v6229, 2
        %vm6231 = vcmp.eq.s32.totalorder %v6229, 0
        %v6232 = vxor.u32 %v6226, 2147483648
        %v6233 = vsel %vm6231, %v6225, %v6232
        %vm6234 = vcmp.eq.s32.totalorder %v6229, 2
        %v6235 = vxor.u32 %v6225, 2147483648
        %v6236 = vsel %vm6234, %v6235, %v6226
        %v6237 = vsel %vm6230, %v6233, %v6236
        %v6238 = vsel %vm6227, nan, %v6237
        %v6239 = vand.u32 2147483647, %v4874
        %vm6240 = vcmp.le.f32.partialorder %v6239, 0.7853982
        %vm6241 = vcmp.lt.s32.totalorder %v4874, 0
        %v6242 = vand.u32 %v4874, 2139095040
        %v6243 = vshrl.u32 %v6242, 23
        %v6244 = vsub.s32 %v6243, 127
        %v6245 = vand.u32 2147483647, %v4874
        %v6246 = vand.u32 %v6245, 8388607
        %v6247 = vor.u32 %v6246, 8388608
        %v6248 = vsub.s32 0, %v6247
        %v6249 = vadd.s32 %v6244, 1
        %vm6250 = vcmp.gt.s32.totalorder %v6249, 0
        %v6251 = vsel %vm6250, %v6249, 0
        %v6252 = vshrl.u32 %v6251, 5
        %v6253 = vand.u32 %v6251, 31
        %v6254 = vsub.s32 32, %v6253
        %v6255 = vshrl.u32 683565275, %v6254
        %v6256 = vshll.u32 683565275, %v6253
        %v6257 = vshrl.u32 2475754826, %v6254
        %v6258 = vor.u32 %v6256, %v6257
        %v6259 = vshll.u32 2475754826, %v6253
        %v6260 = vshrl.u32 2131351028, %v6254
        %v6261 = vor.u32 %v6259, %v6260
        %v6262 = vshll.u32 2131351028, %v6253
        %v6263 = vshrl.u32 2102212464, %v6254
        %v6264 = vor.u32 %v6262, %v6263
        %v6265 = vshll.u32 2102212464, %v6253
        %v6266 = vshrl.u32 920167782, %v6254
        %v6267 = vor.u32 %v6265, %v6266
        %v6268 = vshll.u32 920167782, %v6253
        %v6269 = vshrl.u32 1326507024, %v6254
        %v6270 = vor.u32 %v6268, %v6269
        %vm6271 = vcmp.lt.s32.totalorder %v6252, 1
        %vm6272 = vcmp.lt.s32.totalorder %v6252, 2
        %vm6273 = vcmp.lt.s32.totalorder %v6252, 3
        %vm6274 = vcmp.lt.s32.totalorder %v6252, 4
        %v6275 = vsel %vm6271, %v6255, %v6258
        %v6276 = vsel %vm6274, %v6264, 2102212464
        %v6277 = vsel %vm6273, %v6261, %v6276
        %v6278 = vsel %vm6272, %v6275, %v6277
        %v6279 = vsel %vm6271, %v6258, %v6261
        %v6280 = vsel %vm6274, %v6267, 920167782
        %v6281 = vsel %vm6273, %v6264, %v6280
        %v6282 = vsel %vm6272, %v6279, %v6281
        %v6283 = vsel %vm6271, %v6261, %v6264
        %v6284 = vsel %vm6274, %v6270, 1326507024
        %v6285 = vsel %vm6273, %v6267, %v6284
        %v6286 = vsel %vm6272, %v6283, %v6285
        %v6287 = vshll.u32 %v6247, 8
        %v6288 = vmul.u32.u64.compose %v6287, %v6286
        %v6289 = vextract.low.u32 %v6288
        %v6290 = vextract.high.u32 %v6288
        %v6291 = vmul.u32.u64.compose %v6287, %v6282
        %v6292 = vextract.low.u32 %v6291
        %v6293 = vextract.high.u32 %v6291
        %v6294 = vmul.u32 %v6287, %v6278
        %v6295 = vadd.s32 %v6290, %v6292
        %vm6296 = vc.u32 %v6290, %v6292
        %v6297 = vadd.s32 %v6293, 1
        %v6298 = vsel %vm6296, %v6297, %v6293
        %v6299 = vadd.s32 %v6294, %v6298
        %v6300 = vadd.s32 %v6299, 536870912
        %v6301 = vshrl.u32 %v6300, 30
        %v6302 = vshll.u32 %v6301, 30
        %v6303 = vsub.s32 %v6299, %v6302
        %vm6304 = vcmp.lt.s32.totalorder %v6303, 0
        %v6305 = vsub.s32 0, %v6303
        %v6306 = vsel %vm6304, %v6305, %v6303
        %v6307 = vclz %v6306
        %v6308 = vsub.s32 %v6307, 2
        %vm6309 = vcmp.gt.s32.totalorder 0, %v6308
        %v6310 = vsel %vm6309, 0, %v6308
        %v6311 = vsub.s32 32, %v6310
        %v6312 = vshll.u32 %v6303, %v6310
        %v6313 = vshrl.u32 %v6295, %v6311
        %v6314 = vor.u32 %v6312, %v6313
        %v6315 = vsub.s32 4294967266, %v6310
        %v6316 = vadd.s32 %v6315, 127
        %v6317 = vshll.u32 %v6316, 23
        %v6318 = vor.u32 4788187, %v6317
        %v6319 = vand.u32 2147483647, %v6318
        %v6321 = vcvt.s32.f32 %v6314
        %v6322 = vmul.f32 %v6321, %v6319
        %v6323 = vxor.u32 %v6322, 2147483648
        %v6324 = vsel %vm6241, %v6323, %v6322
        %v6325 = vsub.s32 4, %v6301
        %v6326 = vsel %vm6241, %v6325, %v6301
        %v6327 = vsel %vm6240, %v4874, %v6324
        %v6328 = vsel %vm6240, 0, %v6326
        %v6329 = vcosq.f32.pop %v6327
        %v6330 = vsinq.f32.pop %v6327
        %vm6331 = vweird.f32 %v4874
        %v6332 = vadd.s32 %v6328, 3
        %v6333 = vand.u32 %v6332, 3
        %vm6334 = vcmp.lt.s32.totalorder %v6333, 2
        %vm6335 = vcmp.eq.s32.totalorder %v6333, 0
        %v6336 = vxor.u32 %v6330, 2147483648
        %v6337 = vsel %vm6335, %v6329, %v6336
        %vm6338 = vcmp.eq.s32.totalorder %v6333, 2
        %v6339 = vxor.u32 %v6329, 2147483648
        %v6340 = vsel %vm6338, %v6339, %v6330
        %v6341 = vsel %vm6334, %v6337, %v6340
        %v6342 = vsel %vm6331, nan, %v6341
        %v6343 = vand.u32 2147483647, %v4880
        %vm6344 = vcmp.le.f32.partialorder %v6343, 0.7853982
        %vm6345 = vcmp.lt.s32.totalorder %v4880, 0
        %v6346 = vand.u32 %v4880, 2139095040
        %v6347 = vshrl.u32 %v6346, 23
        %v6348 = vsub.s32 %v6347, 127
        %v6349 = vand.u32 2147483647, %v4880
        %v6350 = vand.u32 %v6349, 8388607
        %v6351 = vor.u32 %v6350, 8388608
        %v6352 = vsub.s32 0, %v6351
        %v6353 = vadd.s32 %v6348, 1
        %vm6354 = vcmp.gt.s32.totalorder %v6353, 0
        %v6355 = vsel %vm6354, %v6353, 0
        %v6356 = vshrl.u32 %v6355, 5
        %v6357 = vand.u32 %v6355, 31
        %v6358 = vsub.s32 32, %v6357
        %v6359 = vshrl.u32 683565275, %v6358
        %v6360 = vshll.u32 683565275, %v6357
        %v6361 = vshrl.u32 2475754826, %v6358
        %v6362 = vor.u32 %v6360, %v6361
        %v6363 = vshll.u32 2475754826, %v6357
        %v6364 = vshrl.u32 2131351028, %v6358
        %v6365 = vor.u32 %v6363, %v6364
        %v6366 = vshll.u32 2131351028, %v6357
        %v6367 = vshrl.u32 2102212464, %v6358
        %v6368 = vor.u32 %v6366, %v6367
        %v6369 = vshll.u32 2102212464, %v6357
        %v6370 = vshrl.u32 920167782, %v6358
        %v6371 = vor.u32 %v6369, %v6370
        %v6372 = vshll.u32 920167782, %v6357
        %v6373 = vshrl.u32 1326507024, %v6358
        %v6374 = vor.u32 %v6372, %v6373
        %vm6375 = vcmp.lt.s32.totalorder %v6356, 1
        %vm6376 = vcmp.lt.s32.totalorder %v6356, 2
        %vm6377 = vcmp.lt.s32.totalorder %v6356, 3
        %vm6378 = vcmp.lt.s32.totalorder %v6356, 4
        %v6379 = vsel %vm6375, %v6359, %v6362
        %v6380 = vsel %vm6378, %v6368, 2102212464
        %v6381 = vsel %vm6377, %v6365, %v6380
        %v6382 = vsel %vm6376, %v6379, %v6381
        %v6383 = vsel %vm6375, %v6362, %v6365
        %v6384 = vsel %vm6378, %v6371, 920167782
        %v6385 = vsel %vm6377, %v6368, %v6384
        %v6386 = vsel %vm6376, %v6383, %v6385
        %v6387 = vsel %vm6375, %v6365, %v6368
        %v6388 = vsel %vm6378, %v6374, 1326507024
        %v6389 = vsel %vm6377, %v6371, %v6388
        %v6390 = vsel %vm6376, %v6387, %v6389
        %v6391 = vshll.u32 %v6351, 8
        %v6392 = vmul.u32.u64.compose %v6391, %v6390
        %v6393 = vextract.low.u32 %v6392
        %v6394 = vextract.high.u32 %v6392
        %v6395 = vmul.u32.u64.compose %v6391, %v6386
        %v6396 = vextract.low.u32 %v6395
        %v6397 = vextract.high.u32 %v6395
        %v6398 = vmul.u32 %v6391, %v6382
        %v6399 = vadd.s32 %v6394, %v6396
        %vm6400 = vc.u32 %v6394, %v6396
        %v6401 = vadd.s32 %v6397, 1
        %v6402 = vsel %vm6400, %v6401, %v6397
        %v6403 = vadd.s32 %v6398, %v6402
        %v6404 = vadd.s32 %v6403, 536870912
        %v6405 = vshrl.u32 %v6404, 30
        %v6406 = vshll.u32 %v6405, 30
        %v6407 = vsub.s32 %v6403, %v6406
        %vm6408 = vcmp.lt.s32.totalorder %v6407, 0
        %v6409 = vsub.s32 0, %v6407
        %v6410 = vsel %vm6408, %v6409, %v6407
        %v6411 = vclz %v6410
        %v6412 = vsub.s32 %v6411, 2
        %vm6413 = vcmp.gt.s32.totalorder 0, %v6412
        %v6414 = vsel %vm6413, 0, %v6412
        %v6415 = vsub.s32 32, %v6414
        %v6416 = vshll.u32 %v6407, %v6414
        %v6417 = vshrl.u32 %v6399, %v6415
        %v6418 = vor.u32 %v6416, %v6417
        %v6419 = vsub.s32 4294967266, %v6414
        %v6420 = vadd.s32 %v6419, 127
        %v6421 = vshll.u32 %v6420, 23
        %v6422 = vor.u32 4788187, %v6421
        %v6423 = vand.u32 2147483647, %v6422
        %v6425 = vcvt.s32.f32 %v6418
        %v6426 = vmul.f32 %v6425, %v6423
        %v6427 = vxor.u32 %v6426, 2147483648
        %v6428 = vsel %vm6345, %v6427, %v6426
        %v6429 = vsub.s32 4, %v6405
        %v6430 = vsel %vm6345, %v6429, %v6405
        %v6431 = vsel %vm6344, %v4880, %v6428
        %v6432 = vsel %vm6344, 0, %v6430
        %v6433 = vcosq.f32.pop %v6431
        %v6434 = vsinq.f32.pop %v6431
        %vm6435 = vweird.f32 %v4880
        %v6436 = vadd.s32 %v6432, 3
        %v6437 = vand.u32 %v6436, 3
        %vm6438 = vcmp.lt.s32.totalorder %v6437, 2
        %vm6439 = vcmp.eq.s32.totalorder %v6437, 0
        %v6440 = vxor.u32 %v6434, 2147483648
        %v6441 = vsel %vm6439, %v6433, %v6440
        %vm6442 = vcmp.eq.s32.totalorder %v6437, 2
        %v6443 = vxor.u32 %v6433, 2147483648
        %v6444 = vsel %vm6442, %v6443, %v6434
        %v6445 = vsel %vm6438, %v6441, %v6444
        %v6446 = vsel %vm6435, nan, %v6445
        %v6447 = vand.u32 2147483647, %v4886
        %vm6448 = vcmp.le.f32.partialorder %v6447, 0.7853982
        %vm6449 = vcmp.lt.s32.totalorder %v4886, 0
        %v6450 = vand.u32 %v4886, 2139095040
        %v6451 = vshrl.u32 %v6450, 23
        %v6452 = vsub.s32 %v6451, 127
        %v6453 = vand.u32 2147483647, %v4886
        %v6454 = vand.u32 %v6453, 8388607
        %v6455 = vor.u32 %v6454, 8388608
        %v6456 = vsub.s32 0, %v6455
        %v6457 = vadd.s32 %v6452, 1
        %vm6458 = vcmp.gt.s32.totalorder %v6457, 0
        %v6459 = vsel %vm6458, %v6457, 0
        %v6460 = vshrl.u32 %v6459, 5
        %v6461 = vand.u32 %v6459, 31
        %v6462 = vsub.s32 32, %v6461
        %v6463 = vshrl.u32 683565275, %v6462
        %v6464 = vshll.u32 683565275, %v6461
        %v6465 = vshrl.u32 2475754826, %v6462
        %v6466 = vor.u32 %v6464, %v6465
        %v6467 = vshll.u32 2475754826, %v6461
        %v6468 = vshrl.u32 2131351028, %v6462
        %v6469 = vor.u32 %v6467, %v6468
        %v6470 = vshll.u32 2131351028, %v6461
        %v6471 = vshrl.u32 2102212464, %v6462
        %v6472 = vor.u32 %v6470, %v6471
        %v6473 = vshll.u32 2102212464, %v6461
        %v6474 = vshrl.u32 920167782, %v6462
        %v6475 = vor.u32 %v6473, %v6474
        %v6476 = vshll.u32 920167782, %v6461
        %v6477 = vshrl.u32 1326507024, %v6462
        %v6478 = vor.u32 %v6476, %v6477
        %vm6479 = vcmp.lt.s32.totalorder %v6460, 1
        %vm6480 = vcmp.lt.s32.totalorder %v6460, 2
        %vm6481 = vcmp.lt.s32.totalorder %v6460, 3
        %vm6482 = vcmp.lt.s32.totalorder %v6460, 4
        %v6483 = vsel %vm6479, %v6463, %v6466
        %v6484 = vsel %vm6482, %v6472, 2102212464
        %v6485 = vsel %vm6481, %v6469, %v6484
        %v6486 = vsel %vm6480, %v6483, %v6485
        %v6487 = vsel %vm6479, %v6466, %v6469
        %v6488 = vsel %vm6482, %v6475, 920167782
        %v6489 = vsel %vm6481, %v6472, %v6488
        %v6490 = vsel %vm6480, %v6487, %v6489
        %v6491 = vsel %vm6479, %v6469, %v6472
        %v6492 = vsel %vm6482, %v6478, 1326507024
        %v6493 = vsel %vm6481, %v6475, %v6492
        %v6494 = vsel %vm6480, %v6491, %v6493
        %v6495 = vshll.u32 %v6455, 8
        %v6496 = vmul.u32.u64.compose %v6495, %v6494
        %v6497 = vextract.low.u32 %v6496
        %v6498 = vextract.high.u32 %v6496
        %v6499 = vmul.u32.u64.compose %v6495, %v6490
        %v6500 = vextract.low.u32 %v6499
        %v6501 = vextract.high.u32 %v6499
        %v6502 = vmul.u32 %v6495, %v6486
        %v6503 = vadd.s32 %v6498, %v6500
        %vm6504 = vc.u32 %v6498, %v6500
        %v6505 = vadd.s32 %v6501, 1
        %v6506 = vsel %vm6504, %v6505, %v6501
        %v6507 = vadd.s32 %v6502, %v6506
        %v6508 = vadd.s32 %v6507, 536870912
        %v6509 = vshrl.u32 %v6508, 30
        %v6510 = vshll.u32 %v6509, 30
        %v6511 = vsub.s32 %v6507, %v6510
        %vm6512 = vcmp.lt.s32.totalorder %v6511, 0
        %v6513 = vsub.s32 0, %v6511
        %v6514 = vsel %vm6512, %v6513, %v6511
        %v6515 = vclz %v6514
        %v6516 = vsub.s32 %v6515, 2
        %vm6517 = vcmp.gt.s32.totalorder 0, %v6516
        %v6518 = vsel %vm6517, 0, %v6516
        %v6519 = vsub.s32 32, %v6518
        %v6520 = vshll.u32 %v6511, %v6518
        %v6521 = vshrl.u32 %v6503, %v6519
        %v6522 = vor.u32 %v6520, %v6521
        %v6523 = vsub.s32 4294967266, %v6518
        %v6524 = vadd.s32 %v6523, 127
        %v6525 = vshll.u32 %v6524, 23
        %v6526 = vor.u32 4788187, %v6525
        %v6527 = vand.u32 2147483647, %v6526
        %v6529 = vcvt.s32.f32 %v6522
        %v6530 = vmul.f32 %v6529, %v6527
        %v6531 = vxor.u32 %v6530, 2147483648
        %v6532 = vsel %vm6449, %v6531, %v6530
        %v6533 = vsub.s32 4, %v6509
        %v6534 = vsel %vm6449, %v6533, %v6509
        %v6535 = vsel %vm6448, %v4886, %v6532
        %v6536 = vsel %vm6448, 0, %v6534
        %v6537 = vcosq.f32.pop %v6535
        %v6538 = vsinq.f32.pop %v6535
        %vm6539 = vweird.f32 %v4886
        %v6540 = vadd.s32 %v6536, 3
        %v6541 = vand.u32 %v6540, 3
        %vm6542 = vcmp.lt.s32.totalorder %v6541, 2
        %vm6543 = vcmp.eq.s32.totalorder %v6541, 0
        %v6544 = vxor.u32 %v6538, 2147483648
        %v6545 = vsel %vm6543, %v6537, %v6544
        %vm6546 = vcmp.eq.s32.totalorder %v6541, 2
        %v6547 = vxor.u32 %v6537, 2147483648
        %v6548 = vsel %vm6546, %v6547, %v6538
        %v6549 = vsel %vm6542, %v6545, %v6548
        %v6550 = vsel %vm6539, nan, %v6549
        %v6551 = vand.u32 2147483647, %v4892
        %vm6552 = vcmp.le.f32.partialorder %v6551, 0.7853982
        %vm6553 = vcmp.lt.s32.totalorder %v4892, 0
        %v6554 = vand.u32 %v4892, 2139095040
        %v6555 = vshrl.u32 %v6554, 23
        %v6556 = vsub.s32 %v6555, 127
        %v6557 = vand.u32 2147483647, %v4892
        %v6558 = vand.u32 %v6557, 8388607
        %v6559 = vor.u32 %v6558, 8388608
        %v6560 = vsub.s32 0, %v6559
        %v6561 = vadd.s32 %v6556, 1
        %vm6562 = vcmp.gt.s32.totalorder %v6561, 0
        %v6563 = vsel %vm6562, %v6561, 0
        %v6564 = vshrl.u32 %v6563, 5
        %v6565 = vand.u32 %v6563, 31
        %v6566 = vsub.s32 32, %v6565
        %v6567 = vshrl.u32 683565275, %v6566
        %v6568 = vshll.u32 683565275, %v6565
        %v6569 = vshrl.u32 2475754826, %v6566
        %v6570 = vor.u32 %v6568, %v6569
        %v6571 = vshll.u32 2475754826, %v6565
        %v6572 = vshrl.u32 2131351028, %v6566
        %v6573 = vor.u32 %v6571, %v6572
        %v6574 = vshll.u32 2131351028, %v6565
        %v6575 = vshrl.u32 2102212464, %v6566
        %v6576 = vor.u32 %v6574, %v6575
        %v6577 = vshll.u32 2102212464, %v6565
        %v6578 = vshrl.u32 920167782, %v6566
        %v6579 = vor.u32 %v6577, %v6578
        %v6580 = vshll.u32 920167782, %v6565
        %v6581 = vshrl.u32 1326507024, %v6566
        %v6582 = vor.u32 %v6580, %v6581
        %vm6583 = vcmp.lt.s32.totalorder %v6564, 1
        %vm6584 = vcmp.lt.s32.totalorder %v6564, 2
        %vm6585 = vcmp.lt.s32.totalorder %v6564, 3
        %vm6586 = vcmp.lt.s32.totalorder %v6564, 4
        %v6587 = vsel %vm6583, %v6567, %v6570
        %v6588 = vsel %vm6586, %v6576, 2102212464
        %v6589 = vsel %vm6585, %v6573, %v6588
        %v6590 = vsel %vm6584, %v6587, %v6589
        %v6591 = vsel %vm6583, %v6570, %v6573
        %v6592 = vsel %vm6586, %v6579, 920167782
        %v6593 = vsel %vm6585, %v6576, %v6592
        %v6594 = vsel %vm6584, %v6591, %v6593
        %v6595 = vsel %vm6583, %v6573, %v6576
        %v6596 = vsel %vm6586, %v6582, 1326507024
        %v6597 = vsel %vm6585, %v6579, %v6596
        %v6598 = vsel %vm6584, %v6595, %v6597
        %v6599 = vshll.u32 %v6559, 8
        %v6600 = vmul.u32.u64.compose %v6599, %v6598
        %v6601 = vextract.low.u32 %v6600
        %v6602 = vextract.high.u32 %v6600
        %v6603 = vmul.u32.u64.compose %v6599, %v6594
        %v6604 = vextract.low.u32 %v6603
        %v6605 = vextract.high.u32 %v6603
        %v6606 = vmul.u32 %v6599, %v6590
        %v6607 = vadd.s32 %v6602, %v6604
        %vm6608 = vc.u32 %v6602, %v6604
        %v6609 = vadd.s32 %v6605, 1
        %v6610 = vsel %vm6608, %v6609, %v6605
        %v6611 = vadd.s32 %v6606, %v6610
        %v6612 = vadd.s32 %v6611, 536870912
        %v6613 = vshrl.u32 %v6612, 30
        %v6614 = vshll.u32 %v6613, 30
        %v6615 = vsub.s32 %v6611, %v6614
        %vm6616 = vcmp.lt.s32.totalorder %v6615, 0
        %v6617 = vsub.s32 0, %v6615
        %v6618 = vsel %vm6616, %v6617, %v6615
        %v6619 = vclz %v6618
        %v6620 = vsub.s32 %v6619, 2
        %vm6621 = vcmp.gt.s32.totalorder 0, %v6620
        %v6622 = vsel %vm6621, 0, %v6620
        %v6623 = vsub.s32 32, %v6622
        %v6624 = vshll.u32 %v6615, %v6622
        %v6625 = vshrl.u32 %v6607, %v6623
        %v6626 = vor.u32 %v6624, %v6625
        %v6627 = vsub.s32 4294967266, %v6622
        %v6628 = vadd.s32 %v6627, 127
        %v6629 = vshll.u32 %v6628, 23
        %v6630 = vor.u32 4788187, %v6629
        %v6631 = vand.u32 2147483647, %v6630
        %v6633 = vcvt.s32.f32 %v6626
        %v6634 = vmul.f32 %v6633, %v6631
        %v6635 = vxor.u32 %v6634, 2147483648
        %v6636 = vsel %vm6553, %v6635, %v6634
        %v6637 = vsub.s32 4, %v6613
        %v6638 = vsel %vm6553, %v6637, %v6613
        %v6639 = vsel %vm6552, %v4892, %v6636
        %v6640 = vsel %vm6552, 0, %v6638
        %v6641 = vcosq.f32.pop %v6639
        %v6642 = vsinq.f32.pop %v6639
        %vm6643 = vweird.f32 %v4892
        %v6644 = vadd.s32 %v6640, 3
        %v6645 = vand.u32 %v6644, 3
        %vm6646 = vcmp.lt.s32.totalorder %v6645, 2
        %vm6647 = vcmp.eq.s32.totalorder %v6645, 0
        %v6648 = vxor.u32 %v6642, 2147483648
        %v6649 = vsel %vm6647, %v6641, %v6648
        %vm6650 = vcmp.eq.s32.totalorder %v6645, 2
        %v6651 = vxor.u32 %v6641, 2147483648
        %v6652 = vsel %vm6650, %v6651, %v6642
        %v6653 = vsel %vm6646, %v6649, %v6652
        %v6654 = vsel %vm6643, nan, %v6653
        %v6655 = vand.u32 2147483647, %v4898
        %vm6656 = vcmp.le.f32.partialorder %v6655, 0.7853982
        %vm6657 = vcmp.lt.s32.totalorder %v4898, 0
        %v6658 = vand.u32 %v4898, 2139095040
        %v6659 = vshrl.u32 %v6658, 23
        %v6660 = vsub.s32 %v6659, 127
        %v6661 = vand.u32 2147483647, %v4898
        %v6662 = vand.u32 %v6661, 8388607
        %v6663 = vor.u32 %v6662, 8388608
        %v6664 = vsub.s32 0, %v6663
        %v6665 = vadd.s32 %v6660, 1
        %vm6666 = vcmp.gt.s32.totalorder %v6665, 0
        %v6667 = vsel %vm6666, %v6665, 0
        %v6668 = vshrl.u32 %v6667, 5
        %v6669 = vand.u32 %v6667, 31
        %v6670 = vsub.s32 32, %v6669
        %v6671 = vshrl.u32 683565275, %v6670
        %v6672 = vshll.u32 683565275, %v6669
        %v6673 = vshrl.u32 2475754826, %v6670
        %v6674 = vor.u32 %v6672, %v6673
        %v6675 = vshll.u32 2475754826, %v6669
        %v6676 = vshrl.u32 2131351028, %v6670
        %v6677 = vor.u32 %v6675, %v6676
        %v6678 = vshll.u32 2131351028, %v6669
        %v6679 = vshrl.u32 2102212464, %v6670
        %v6680 = vor.u32 %v6678, %v6679
        %v6681 = vshll.u32 2102212464, %v6669
        %v6682 = vshrl.u32 920167782, %v6670
        %v6683 = vor.u32 %v6681, %v6682
        %v6684 = vshll.u32 920167782, %v6669
        %v6685 = vshrl.u32 1326507024, %v6670
        %v6686 = vor.u32 %v6684, %v6685
        %vm6687 = vcmp.lt.s32.totalorder %v6668, 1
        %vm6688 = vcmp.lt.s32.totalorder %v6668, 2
        %vm6689 = vcmp.lt.s32.totalorder %v6668, 3
        %vm6690 = vcmp.lt.s32.totalorder %v6668, 4
        %v6691 = vsel %vm6687, %v6671, %v6674
        %v6692 = vsel %vm6690, %v6680, 2102212464
        %v6693 = vsel %vm6689, %v6677, %v6692
        %v6694 = vsel %vm6688, %v6691, %v6693
        %v6695 = vsel %vm6687, %v6674, %v6677
        %v6696 = vsel %vm6690, %v6683, 920167782
        %v6697 = vsel %vm6689, %v6680, %v6696
        %v6698 = vsel %vm6688, %v6695, %v6697
        %v6699 = vsel %vm6687, %v6677, %v6680
        %v6700 = vsel %vm6690, %v6686, 1326507024
        %v6701 = vsel %vm6689, %v6683, %v6700
        %v6702 = vsel %vm6688, %v6699, %v6701
        %v6703 = vshll.u32 %v6663, 8
        %v6704 = vmul.u32.u64.compose %v6703, %v6702
        %v6705 = vextract.low.u32 %v6704
        %v6706 = vextract.high.u32 %v6704
        %v6707 = vmul.u32.u64.compose %v6703, %v6698
        %v6708 = vextract.low.u32 %v6707
        %v6709 = vextract.high.u32 %v6707
        %v6710 = vmul.u32 %v6703, %v6694
        %v6711 = vadd.s32 %v6706, %v6708
        %vm6712 = vc.u32 %v6706, %v6708
        %v6713 = vadd.s32 %v6709, 1
        %v6714 = vsel %vm6712, %v6713, %v6709
        %v6715 = vadd.s32 %v6710, %v6714
        %v6716 = vadd.s32 %v6715, 536870912
        %v6717 = vshrl.u32 %v6716, 30
        %v6718 = vshll.u32 %v6717, 30
        %v6719 = vsub.s32 %v6715, %v6718
        %vm6720 = vcmp.lt.s32.totalorder %v6719, 0
        %v6721 = vsub.s32 0, %v6719
        %v6722 = vsel %vm6720, %v6721, %v6719
        %v6723 = vclz %v6722
        %v6724 = vsub.s32 %v6723, 2
        %vm6725 = vcmp.gt.s32.totalorder 0, %v6724
        %v6726 = vsel %vm6725, 0, %v6724
        %v6727 = vsub.s32 32, %v6726
        %v6728 = vshll.u32 %v6719, %v6726
        %v6729 = vshrl.u32 %v6711, %v6727
        %v6730 = vor.u32 %v6728, %v6729
        %v6731 = vsub.s32 4294967266, %v6726
        %v6732 = vadd.s32 %v6731, 127
        %v6733 = vshll.u32 %v6732, 23
        %v6734 = vor.u32 4788187, %v6733
        %v6735 = vand.u32 2147483647, %v6734
        %v6737 = vcvt.s32.f32 %v6730
        %v6738 = vmul.f32 %v6737, %v6735
        %v6739 = vxor.u32 %v6738, 2147483648
        %v6740 = vsel %vm6657, %v6739, %v6738
        %v6741 = vsub.s32 4, %v6717
        %v6742 = vsel %vm6657, %v6741, %v6717
        %v6743 = vsel %vm6656, %v4898, %v6740
        %v6744 = vsel %vm6656, 0, %v6742
        %v6745 = vcosq.f32.pop %v6743
        %v6746 = vsinq.f32.pop %v6743
        %vm6747 = vweird.f32 %v4898
        %v6748 = vadd.s32 %v6744, 3
        %v6749 = vand.u32 %v6748, 3
        %vm6750 = vcmp.lt.s32.totalorder %v6749, 2
        %vm6751 = vcmp.eq.s32.totalorder %v6749, 0
        %v6752 = vxor.u32 %v6746, 2147483648
        %v6753 = vsel %vm6751, %v6745, %v6752
        %vm6754 = vcmp.eq.s32.totalorder %v6749, 2
        %v6755 = vxor.u32 %v6745, 2147483648
        %v6756 = vsel %vm6754, %v6755, %v6746
        %v6757 = vsel %vm6750, %v6753, %v6756
        %v6758 = vsel %vm6747, nan, %v6757
        %v6759 = vand.u32 2147483647, %v4904
        %vm6760 = vcmp.le.f32.partialorder %v6759, 0.7853982
        %vm6761 = vcmp.lt.s32.totalorder %v4904, 0
        %v6762 = vand.u32 %v4904, 2139095040
        %v6763 = vshrl.u32 %v6762, 23
        %v6764 = vsub.s32 %v6763, 127
        %v6765 = vand.u32 2147483647, %v4904
        %v6766 = vand.u32 %v6765, 8388607
        %v6767 = vor.u32 %v6766, 8388608
        %v6768 = vsub.s32 0, %v6767
        %v6769 = vadd.s32 %v6764, 1
        %vm6770 = vcmp.gt.s32.totalorder %v6769, 0
        %v6771 = vsel %vm6770, %v6769, 0
        %v6772 = vshrl.u32 %v6771, 5
        %v6773 = vand.u32 %v6771, 31
        %v6774 = vsub.s32 32, %v6773
        %v6775 = vshrl.u32 683565275, %v6774
        %v6776 = vshll.u32 683565275, %v6773
        %v6777 = vshrl.u32 2475754826, %v6774
        %v6778 = vor.u32 %v6776, %v6777
        %v6779 = vshll.u32 2475754826, %v6773
        %v6780 = vshrl.u32 2131351028, %v6774
        %v6781 = vor.u32 %v6779, %v6780
        %v6782 = vshll.u32 2131351028, %v6773
        %v6783 = vshrl.u32 2102212464, %v6774
        %v6784 = vor.u32 %v6782, %v6783
        %v6785 = vshll.u32 2102212464, %v6773
        %v6786 = vshrl.u32 920167782, %v6774
        %v6787 = vor.u32 %v6785, %v6786
        %v6788 = vshll.u32 920167782, %v6773
        %v6789 = vshrl.u32 1326507024, %v6774
        %v6790 = vor.u32 %v6788, %v6789
        %vm6791 = vcmp.lt.s32.totalorder %v6772, 1
        %vm6792 = vcmp.lt.s32.totalorder %v6772, 2
        %vm6793 = vcmp.lt.s32.totalorder %v6772, 3
        %vm6794 = vcmp.lt.s32.totalorder %v6772, 4
        %v6795 = vsel %vm6791, %v6775, %v6778
        %v6796 = vsel %vm6794, %v6784, 2102212464
        %v6797 = vsel %vm6793, %v6781, %v6796
        %v6798 = vsel %vm6792, %v6795, %v6797
        %v6799 = vsel %vm6791, %v6778, %v6781
        %v6800 = vsel %vm6794, %v6787, 920167782
        %v6801 = vsel %vm6793, %v6784, %v6800
        %v6802 = vsel %vm6792, %v6799, %v6801
        %v6803 = vsel %vm6791, %v6781, %v6784
        %v6804 = vsel %vm6794, %v6790, 1326507024
        %v6805 = vsel %vm6793, %v6787, %v6804
        %v6806 = vsel %vm6792, %v6803, %v6805
        %v6807 = vshll.u32 %v6767, 8
        %v6808 = vmul.u32.u64.compose %v6807, %v6806
        %v6809 = vextract.low.u32 %v6808
        %v6810 = vextract.high.u32 %v6808
        %v6811 = vmul.u32.u64.compose %v6807, %v6802
        %v6812 = vextract.low.u32 %v6811
        %v6813 = vextract.high.u32 %v6811
        %v6814 = vmul.u32 %v6807, %v6798
        %v6815 = vadd.s32 %v6810, %v6812
        %vm6816 = vc.u32 %v6810, %v6812
        %v6817 = vadd.s32 %v6813, 1
        %v6818 = vsel %vm6816, %v6817, %v6813
        %v6819 = vadd.s32 %v6814, %v6818
        %v6820 = vadd.s32 %v6819, 536870912
        %v6821 = vshrl.u32 %v6820, 30
        %v6822 = vshll.u32 %v6821, 30
        %v6823 = vsub.s32 %v6819, %v6822
        %vm6824 = vcmp.lt.s32.totalorder %v6823, 0
        %v6825 = vsub.s32 0, %v6823
        %v6826 = vsel %vm6824, %v6825, %v6823
        %v6827 = vclz %v6826
        %v6828 = vsub.s32 %v6827, 2
        %vm6829 = vcmp.gt.s32.totalorder 0, %v6828
        %v6830 = vsel %vm6829, 0, %v6828
        %v6831 = vsub.s32 32, %v6830
        %v6832 = vshll.u32 %v6823, %v6830
        %v6833 = vshrl.u32 %v6815, %v6831
        %v6834 = vor.u32 %v6832, %v6833
        %v6835 = vsub.s32 4294967266, %v6830
        %v6836 = vadd.s32 %v6835, 127
        %v6837 = vshll.u32 %v6836, 23
        %v6838 = vor.u32 4788187, %v6837
        %v6839 = vand.u32 2147483647, %v6838
        %v6841 = vcvt.s32.f32 %v6834
        %v6842 = vmul.f32 %v6841, %v6839
        %v6843 = vxor.u32 %v6842, 2147483648
        %v6844 = vsel %vm6761, %v6843, %v6842
        %v6845 = vsub.s32 4, %v6821
        %v6846 = vsel %vm6761, %v6845, %v6821
        %v6847 = vsel %vm6760, %v4904, %v6844
        %v6848 = vsel %vm6760, 0, %v6846
        %v6849 = vcosq.f32.pop %v6847
        %v6850 = vsinq.f32.pop %v6847
        %vm6851 = vweird.f32 %v4904
        %v6852 = vadd.s32 %v6848, 3
        %v6853 = vand.u32 %v6852, 3
        %vm6854 = vcmp.lt.s32.totalorder %v6853, 2
        %vm6855 = vcmp.eq.s32.totalorder %v6853, 0
        %v6856 = vxor.u32 %v6850, 2147483648
        %v6857 = vsel %vm6855, %v6849, %v6856
        %vm6858 = vcmp.eq.s32.totalorder %v6853, 2
        %v6859 = vxor.u32 %v6849, 2147483648
        %v6860 = vsel %vm6858, %v6859, %v6850
        %v6861 = vsel %vm6854, %v6857, %v6860
        %v6862 = vsel %vm6851, nan, %v6861
        %v6863 = vand.u32 2147483647, %v4910
        %vm6864 = vcmp.le.f32.partialorder %v6863, 0.7853982
        %vm6865 = vcmp.lt.s32.totalorder %v4910, 0
        %v6866 = vand.u32 %v4910, 2139095040
        %v6867 = vshrl.u32 %v6866, 23
        %v6868 = vsub.s32 %v6867, 127
        %v6869 = vand.u32 2147483647, %v4910
        %v6870 = vand.u32 %v6869, 8388607
        %v6871 = vor.u32 %v6870, 8388608
        %v6872 = vsub.s32 0, %v6871
        %v6873 = vadd.s32 %v6868, 1
        %vm6874 = vcmp.gt.s32.totalorder %v6873, 0
        %v6875 = vsel %vm6874, %v6873, 0
        %v6876 = vshrl.u32 %v6875, 5
        %v6877 = vand.u32 %v6875, 31
        %v6878 = vsub.s32 32, %v6877
        %v6879 = vshrl.u32 683565275, %v6878
        %v6880 = vshll.u32 683565275, %v6877
        %v6881 = vshrl.u32 2475754826, %v6878
        %v6882 = vor.u32 %v6880, %v6881
        %v6883 = vshll.u32 2475754826, %v6877
        %v6884 = vshrl.u32 2131351028, %v6878
        %v6885 = vor.u32 %v6883, %v6884
        %v6886 = vshll.u32 2131351028, %v6877
        %v6887 = vshrl.u32 2102212464, %v6878
        %v6888 = vor.u32 %v6886, %v6887
        %v6889 = vshll.u32 2102212464, %v6877
        %v6890 = vshrl.u32 920167782, %v6878
        %v6891 = vor.u32 %v6889, %v6890
        %v6892 = vshll.u32 920167782, %v6877
        %v6893 = vshrl.u32 1326507024, %v6878
        %v6894 = vor.u32 %v6892, %v6893
        %vm6895 = vcmp.lt.s32.totalorder %v6876, 1
        %vm6896 = vcmp.lt.s32.totalorder %v6876, 2
        %vm6897 = vcmp.lt.s32.totalorder %v6876, 3
        %vm6898 = vcmp.lt.s32.totalorder %v6876, 4
        %v6899 = vsel %vm6895, %v6879, %v6882
        %v6900 = vsel %vm6898, %v6888, 2102212464
        %v6901 = vsel %vm6897, %v6885, %v6900
        %v6902 = vsel %vm6896, %v6899, %v6901
        %v6903 = vsel %vm6895, %v6882, %v6885
        %v6904 = vsel %vm6898, %v6891, 920167782
        %v6905 = vsel %vm6897, %v6888, %v6904
        %v6906 = vsel %vm6896, %v6903, %v6905
        %v6907 = vsel %vm6895, %v6885, %v6888
        %v6908 = vsel %vm6898, %v6894, 1326507024
        %v6909 = vsel %vm6897, %v6891, %v6908
        %v6910 = vsel %vm6896, %v6907, %v6909
        %v6911 = vshll.u32 %v6871, 8
        %v6912 = vmul.u32.u64.compose %v6911, %v6910
        %v6913 = vextract.low.u32 %v6912
        %v6914 = vextract.high.u32 %v6912
        %v6915 = vmul.u32.u64.compose %v6911, %v6906
        %v6916 = vextract.low.u32 %v6915
        %v6917 = vextract.high.u32 %v6915
        %v6918 = vmul.u32 %v6911, %v6902
        %v6919 = vadd.s32 %v6914, %v6916
        %vm6920 = vc.u32 %v6914, %v6916
        %v6921 = vadd.s32 %v6917, 1
        %v6922 = vsel %vm6920, %v6921, %v6917
        %v6923 = vadd.s32 %v6918, %v6922
        %v6924 = vadd.s32 %v6923, 536870912
        %v6925 = vshrl.u32 %v6924, 30
        %v6926 = vshll.u32 %v6925, 30
        %v6927 = vsub.s32 %v6923, %v6926
        %vm6928 = vcmp.lt.s32.totalorder %v6927, 0
        %v6929 = vsub.s32 0, %v6927
        %v6930 = vsel %vm6928, %v6929, %v6927
        %v6931 = vclz %v6930
        %v6932 = vsub.s32 %v6931, 2
        %vm6933 = vcmp.gt.s32.totalorder 0, %v6932
        %v6934 = vsel %vm6933, 0, %v6932
        %v6935 = vsub.s32 32, %v6934
        %v6936 = vshll.u32 %v6927, %v6934
        %v6937 = vshrl.u32 %v6919, %v6935
        %v6938 = vor.u32 %v6936, %v6937
        %v6939 = vsub.s32 4294967266, %v6934
        %v6940 = vadd.s32 %v6939, 127
        %v6941 = vshll.u32 %v6940, 23
        %v6942 = vor.u32 4788187, %v6941
        %v6943 = vand.u32 2147483647, %v6942
        %v6945 = vcvt.s32.f32 %v6938
        %v6946 = vmul.f32 %v6945, %v6943
        %v6947 = vxor.u32 %v6946, 2147483648
        %v6948 = vsel %vm6865, %v6947, %v6946
        %v6949 = vsub.s32 4, %v6925
        %v6950 = vsel %vm6865, %v6949, %v6925
        %v6951 = vsel %vm6864, %v4910, %v6948
        %v6952 = vsel %vm6864, 0, %v6950
        %v6953 = vcosq.f32.pop %v6951
        %v6954 = vsinq.f32.pop %v6951
        %vm6955 = vweird.f32 %v4910
        %v6956 = vadd.s32 %v6952, 3
        %v6957 = vand.u32 %v6956, 3
        %vm6958 = vcmp.lt.s32.totalorder %v6957, 2
        %vm6959 = vcmp.eq.s32.totalorder %v6957, 0
        %v6960 = vxor.u32 %v6954, 2147483648
        %v6961 = vsel %vm6959, %v6953, %v6960
        %vm6962 = vcmp.eq.s32.totalorder %v6957, 2
        %v6963 = vxor.u32 %v6953, 2147483648
        %v6964 = vsel %vm6962, %v6963, %v6954
        %v6965 = vsel %vm6958, %v6961, %v6964
        %v6966 = vsel %vm6955, nan, %v6965
        %v6967 = vand.u32 2147483647, %v4916
        %vm6968 = vcmp.le.f32.partialorder %v6967, 0.7853982
        %vm6969 = vcmp.lt.s32.totalorder %v4916, 0
        %v6970 = vand.u32 %v4916, 2139095040
        %v6971 = vshrl.u32 %v6970, 23
        %v6972 = vsub.s32 %v6971, 127
        %v6973 = vand.u32 2147483647, %v4916
        %v6974 = vand.u32 %v6973, 8388607
        %v6975 = vor.u32 %v6974, 8388608
        %v6976 = vsub.s32 0, %v6975
        %v6977 = vadd.s32 %v6972, 1
        %vm6978 = vcmp.gt.s32.totalorder %v6977, 0
        %v6979 = vsel %vm6978, %v6977, 0
        %v6980 = vshrl.u32 %v6979, 5
        %v6981 = vand.u32 %v6979, 31
        %v6982 = vsub.s32 32, %v6981
        %v6983 = vshrl.u32 683565275, %v6982
        %v6984 = vshll.u32 683565275, %v6981
        %v6985 = vshrl.u32 2475754826, %v6982
        %v6986 = vor.u32 %v6984, %v6985
        %v6987 = vshll.u32 2475754826, %v6981
        %v6988 = vshrl.u32 2131351028, %v6982
        %v6989 = vor.u32 %v6987, %v6988
        %v6990 = vshll.u32 2131351028, %v6981
        %v6991 = vshrl.u32 2102212464, %v6982
        %v6992 = vor.u32 %v6990, %v6991
        %v6993 = vshll.u32 2102212464, %v6981
        %v6994 = vshrl.u32 920167782, %v6982
        %v6995 = vor.u32 %v6993, %v6994
        %v6996 = vshll.u32 920167782, %v6981
        %v6997 = vshrl.u32 1326507024, %v6982
        %v6998 = vor.u32 %v6996, %v6997
        %vm6999 = vcmp.lt.s32.totalorder %v6980, 1
        %vm7000 = vcmp.lt.s32.totalorder %v6980, 2
        %vm7001 = vcmp.lt.s32.totalorder %v6980, 3
        %vm7002 = vcmp.lt.s32.totalorder %v6980, 4
        %v7003 = vsel %vm6999, %v6983, %v6986
        %v7004 = vsel %vm7002, %v6992, 2102212464
        %v7005 = vsel %vm7001, %v6989, %v7004
        %v7006 = vsel %vm7000, %v7003, %v7005
        %v7007 = vsel %vm6999, %v6986, %v6989
        %v7008 = vsel %vm7002, %v6995, 920167782
        %v7009 = vsel %vm7001, %v6992, %v7008
        %v7010 = vsel %vm7000, %v7007, %v7009
        %v7011 = vsel %vm6999, %v6989, %v6992
        %v7012 = vsel %vm7002, %v6998, 1326507024
        %v7013 = vsel %vm7001, %v6995, %v7012
        %v7014 = vsel %vm7000, %v7011, %v7013
        %v7015 = vshll.u32 %v6975, 8
        %v7016 = vmul.u32.u64.compose %v7015, %v7014
        %v7017 = vextract.low.u32 %v7016
        %v7018 = vextract.high.u32 %v7016
        %v7019 = vmul.u32.u64.compose %v7015, %v7010
        %v7020 = vextract.low.u32 %v7019
        %v7021 = vextract.high.u32 %v7019
        %v7022 = vmul.u32 %v7015, %v7006
        %v7023 = vadd.s32 %v7018, %v7020
        %vm7024 = vc.u32 %v7018, %v7020
        %v7025 = vadd.s32 %v7021, 1
        %v7026 = vsel %vm7024, %v7025, %v7021
        %v7027 = vadd.s32 %v7022, %v7026
        %v7028 = vadd.s32 %v7027, 536870912
        %v7029 = vshrl.u32 %v7028, 30
        %v7030 = vshll.u32 %v7029, 30
        %v7031 = vsub.s32 %v7027, %v7030
        %vm7032 = vcmp.lt.s32.totalorder %v7031, 0
        %v7033 = vsub.s32 0, %v7031
        %v7034 = vsel %vm7032, %v7033, %v7031
        %v7035 = vclz %v7034
        %v7036 = vsub.s32 %v7035, 2
        %vm7037 = vcmp.gt.s32.totalorder 0, %v7036
        %v7038 = vsel %vm7037, 0, %v7036
        %v7039 = vsub.s32 32, %v7038
        %v7040 = vshll.u32 %v7031, %v7038
        %v7041 = vshrl.u32 %v7023, %v7039
        %v7042 = vor.u32 %v7040, %v7041
        %v7043 = vsub.s32 4294967266, %v7038
        %v7044 = vadd.s32 %v7043, 127
        %v7045 = vshll.u32 %v7044, 23
        %v7046 = vor.u32 4788187, %v7045
        %v7047 = vand.u32 2147483647, %v7046
        %v7049 = vcvt.s32.f32 %v7042
        %v7050 = vmul.f32 %v7049, %v7047
        %v7051 = vxor.u32 %v7050, 2147483648
        %v7052 = vsel %vm6969, %v7051, %v7050
        %v7053 = vsub.s32 4, %v7029
        %v7054 = vsel %vm6969, %v7053, %v7029
        %v7055 = vsel %vm6968, %v4916, %v7052
        %v7056 = vsel %vm6968, 0, %v7054
        %v7057 = vcosq.f32.pop %v7055
        %v7058 = vsinq.f32.pop %v7055
        %vm7059 = vweird.f32 %v4916
        %v7060 = vadd.s32 %v7056, 3
        %v7061 = vand.u32 %v7060, 3
        %vm7062 = vcmp.lt.s32.totalorder %v7061, 2
        %vm7063 = vcmp.eq.s32.totalorder %v7061, 0
        %v7064 = vxor.u32 %v7058, 2147483648
        %v7065 = vsel %vm7063, %v7057, %v7064
        %vm7066 = vcmp.eq.s32.totalorder %v7061, 2
        %v7067 = vxor.u32 %v7057, 2147483648
        %v7068 = vsel %vm7066, %v7067, %v7058
        %v7069 = vsel %vm7062, %v7065, %v7068
        %v7070 = vsel %vm7059, nan, %v7069
        %v7071 = vand.u32 2147483647, %v4922
        %vm7072 = vcmp.le.f32.partialorder %v7071, 0.7853982
        %vm7073 = vcmp.lt.s32.totalorder %v4922, 0
        %v7074 = vand.u32 %v4922, 2139095040
        %v7075 = vshrl.u32 %v7074, 23
        %v7076 = vsub.s32 %v7075, 127
        %v7077 = vand.u32 2147483647, %v4922
        %v7078 = vand.u32 %v7077, 8388607
        %v7079 = vor.u32 %v7078, 8388608
        %v7080 = vsub.s32 0, %v7079
        %v7081 = vadd.s32 %v7076, 1
        %vm7082 = vcmp.gt.s32.totalorder %v7081, 0
        %v7083 = vsel %vm7082, %v7081, 0
        %v7084 = vshrl.u32 %v7083, 5
        %v7085 = vand.u32 %v7083, 31
        %v7086 = vsub.s32 32, %v7085
        %v7087 = vshrl.u32 683565275, %v7086
        %v7088 = vshll.u32 683565275, %v7085
        %v7089 = vshrl.u32 2475754826, %v7086
        %v7090 = vor.u32 %v7088, %v7089
        %v7091 = vshll.u32 2475754826, %v7085
        %v7092 = vshrl.u32 2131351028, %v7086
        %v7093 = vor.u32 %v7091, %v7092
        %v7094 = vshll.u32 2131351028, %v7085
        %v7095 = vshrl.u32 2102212464, %v7086
        %v7096 = vor.u32 %v7094, %v7095
        %v7097 = vshll.u32 2102212464, %v7085
        %v7098 = vshrl.u32 920167782, %v7086
        %v7099 = vor.u32 %v7097, %v7098
        %v7100 = vshll.u32 920167782, %v7085
        %v7101 = vshrl.u32 1326507024, %v7086
        %v7102 = vor.u32 %v7100, %v7101
        %vm7103 = vcmp.lt.s32.totalorder %v7084, 1
        %vm7104 = vcmp.lt.s32.totalorder %v7084, 2
        %vm7105 = vcmp.lt.s32.totalorder %v7084, 3
        %vm7106 = vcmp.lt.s32.totalorder %v7084, 4
        %v7107 = vsel %vm7103, %v7087, %v7090
        %v7108 = vsel %vm7106, %v7096, 2102212464
        %v7109 = vsel %vm7105, %v7093, %v7108
        %v7110 = vsel %vm7104, %v7107, %v7109
        %v7111 = vsel %vm7103, %v7090, %v7093
        %v7112 = vsel %vm7106, %v7099, 920167782
        %v7113 = vsel %vm7105, %v7096, %v7112
        %v7114 = vsel %vm7104, %v7111, %v7113
        %v7115 = vsel %vm7103, %v7093, %v7096
        %v7116 = vsel %vm7106, %v7102, 1326507024
        %v7117 = vsel %vm7105, %v7099, %v7116
        %v7118 = vsel %vm7104, %v7115, %v7117
        %v7119 = vshll.u32 %v7079, 8
        %v7120 = vmul.u32.u64.compose %v7119, %v7118
        %v7121 = vextract.low.u32 %v7120
        %v7122 = vextract.high.u32 %v7120
        %v7123 = vmul.u32.u64.compose %v7119, %v7114
        %v7124 = vextract.low.u32 %v7123
        %v7125 = vextract.high.u32 %v7123
        %v7126 = vmul.u32 %v7119, %v7110
        %v7127 = vadd.s32 %v7122, %v7124
        %vm7128 = vc.u32 %v7122, %v7124
        %v7129 = vadd.s32 %v7125, 1
        %v7130 = vsel %vm7128, %v7129, %v7125
        %v7131 = vadd.s32 %v7126, %v7130
        %v7132 = vadd.s32 %v7131, 536870912
        %v7133 = vshrl.u32 %v7132, 30
        %v7134 = vshll.u32 %v7133, 30
        %v7135 = vsub.s32 %v7131, %v7134
        %vm7136 = vcmp.lt.s32.totalorder %v7135, 0
        %v7137 = vsub.s32 0, %v7135
        %v7138 = vsel %vm7136, %v7137, %v7135
        %v7139 = vclz %v7138
        %v7140 = vsub.s32 %v7139, 2
        %vm7141 = vcmp.gt.s32.totalorder 0, %v7140
        %v7142 = vsel %vm7141, 0, %v7140
        %v7143 = vsub.s32 32, %v7142
        %v7144 = vshll.u32 %v7135, %v7142
        %v7145 = vshrl.u32 %v7127, %v7143
        %v7146 = vor.u32 %v7144, %v7145
        %v7147 = vsub.s32 4294967266, %v7142
        %v7148 = vadd.s32 %v7147, 127
        %v7149 = vshll.u32 %v7148, 23
        %v7150 = vor.u32 4788187, %v7149
        %v7151 = vand.u32 2147483647, %v7150
        %v7153 = vcvt.s32.f32 %v7146
        %v7154 = vmul.f32 %v7153, %v7151
        %v7155 = vxor.u32 %v7154, 2147483648
        %v7156 = vsel %vm7073, %v7155, %v7154
        %v7157 = vsub.s32 4, %v7133
        %v7158 = vsel %vm7073, %v7157, %v7133
        %v7159 = vsel %vm7072, %v4922, %v7156
        %v7160 = vsel %vm7072, 0, %v7158
        %v7161 = vcosq.f32.pop %v7159
        %v7162 = vsinq.f32.pop %v7159
        %vm7163 = vweird.f32 %v4922
        %v7164 = vadd.s32 %v7160, 3
        %v7165 = vand.u32 %v7164, 3
        %vm7166 = vcmp.lt.s32.totalorder %v7165, 2
        %vm7167 = vcmp.eq.s32.totalorder %v7165, 0
        %v7168 = vxor.u32 %v7162, 2147483648
        %v7169 = vsel %vm7167, %v7161, %v7168
        %vm7170 = vcmp.eq.s32.totalorder %v7165, 2
        %v7171 = vxor.u32 %v7161, 2147483648
        %v7172 = vsel %vm7170, %v7171, %v7162
        %v7173 = vsel %vm7166, %v7169, %v7172
        %v7174 = vsel %vm7163, nan, %v7173
        %v7175 = vand.u32 2147483647, %v4928
        %vm7176 = vcmp.le.f32.partialorder %v7175, 0.7853982
        %vm7177 = vcmp.lt.s32.totalorder %v4928, 0
        %v7178 = vand.u32 %v4928, 2139095040
        %v7179 = vshrl.u32 %v7178, 23
        %v7180 = vsub.s32 %v7179, 127
        %v7181 = vand.u32 2147483647, %v4928
        %v7182 = vand.u32 %v7181, 8388607
        %v7183 = vor.u32 %v7182, 8388608
        %v7184 = vsub.s32 0, %v7183
        %v7185 = vadd.s32 %v7180, 1
        %vm7186 = vcmp.gt.s32.totalorder %v7185, 0
        %v7187 = vsel %vm7186, %v7185, 0
        %v7188 = vshrl.u32 %v7187, 5
        %v7189 = vand.u32 %v7187, 31
        %v7190 = vsub.s32 32, %v7189
        %v7191 = vshrl.u32 683565275, %v7190
        %v7192 = vshll.u32 683565275, %v7189
        %v7193 = vshrl.u32 2475754826, %v7190
        %v7194 = vor.u32 %v7192, %v7193
        %v7195 = vshll.u32 2475754826, %v7189
        %v7196 = vshrl.u32 2131351028, %v7190
        %v7197 = vor.u32 %v7195, %v7196
        %v7198 = vshll.u32 2131351028, %v7189
        %v7199 = vshrl.u32 2102212464, %v7190
        %v7200 = vor.u32 %v7198, %v7199
        %v7201 = vshll.u32 2102212464, %v7189
        %v7202 = vshrl.u32 920167782, %v7190
        %v7203 = vor.u32 %v7201, %v7202
        %v7204 = vshll.u32 920167782, %v7189
        %v7205 = vshrl.u32 1326507024, %v7190
        %v7206 = vor.u32 %v7204, %v7205
        %vm7207 = vcmp.lt.s32.totalorder %v7188, 1
        %vm7208 = vcmp.lt.s32.totalorder %v7188, 2
        %vm7209 = vcmp.lt.s32.totalorder %v7188, 3
        %vm7210 = vcmp.lt.s32.totalorder %v7188, 4
        %v7211 = vsel %vm7207, %v7191, %v7194
        %v7212 = vsel %vm7210, %v7200, 2102212464
        %v7213 = vsel %vm7209, %v7197, %v7212
        %v7214 = vsel %vm7208, %v7211, %v7213
        %v7215 = vsel %vm7207, %v7194, %v7197
        %v7216 = vsel %vm7210, %v7203, 920167782
        %v7217 = vsel %vm7209, %v7200, %v7216
        %v7218 = vsel %vm7208, %v7215, %v7217
        %v7219 = vsel %vm7207, %v7197, %v7200
        %v7220 = vsel %vm7210, %v7206, 1326507024
        %v7221 = vsel %vm7209, %v7203, %v7220
        %v7222 = vsel %vm7208, %v7219, %v7221
        %v7223 = vshll.u32 %v7183, 8
        %v7224 = vmul.u32.u64.compose %v7223, %v7222
        %v7225 = vextract.low.u32 %v7224
        %v7226 = vextract.high.u32 %v7224
        %v7227 = vmul.u32.u64.compose %v7223, %v7218
        %v7228 = vextract.low.u32 %v7227
        %v7229 = vextract.high.u32 %v7227
        %v7230 = vmul.u32 %v7223, %v7214
        %v7231 = vadd.s32 %v7226, %v7228
        %vm7232 = vc.u32 %v7226, %v7228
        %v7233 = vadd.s32 %v7229, 1
        %v7234 = vsel %vm7232, %v7233, %v7229
        %v7235 = vadd.s32 %v7230, %v7234
        %v7236 = vadd.s32 %v7235, 536870912
        %v7237 = vshrl.u32 %v7236, 30
        %v7238 = vshll.u32 %v7237, 30
        %v7239 = vsub.s32 %v7235, %v7238
        %vm7240 = vcmp.lt.s32.totalorder %v7239, 0
        %v7241 = vsub.s32 0, %v7239
        %v7242 = vsel %vm7240, %v7241, %v7239
        %v7243 = vclz %v7242
        %v7244 = vsub.s32 %v7243, 2
        %vm7245 = vcmp.gt.s32.totalorder 0, %v7244
        %v7246 = vsel %vm7245, 0, %v7244
        %v7247 = vsub.s32 32, %v7246
        %v7248 = vshll.u32 %v7239, %v7246
        %v7249 = vshrl.u32 %v7231, %v7247
        %v7250 = vor.u32 %v7248, %v7249
        %v7251 = vsub.s32 4294967266, %v7246
        %v7252 = vadd.s32 %v7251, 127
        %v7253 = vshll.u32 %v7252, 23
        %v7254 = vor.u32 4788187, %v7253
        %v7255 = vand.u32 2147483647, %v7254
        %v7257 = vcvt.s32.f32 %v7250
        %v7258 = vmul.f32 %v7257, %v7255
        %v7259 = vxor.u32 %v7258, 2147483648
        %v7260 = vsel %vm7177, %v7259, %v7258
        %v7261 = vsub.s32 4, %v7237
        %v7262 = vsel %vm7177, %v7261, %v7237
        %v7263 = vsel %vm7176, %v4928, %v7260
        %v7264 = vsel %vm7176, 0, %v7262
        %v7265 = vcosq.f32.pop %v7263
        %v7266 = vsinq.f32.pop %v7263
        %vm7267 = vweird.f32 %v4928
        %v7268 = vadd.s32 %v7264, 3
        %v7269 = vand.u32 %v7268, 3
        %vm7270 = vcmp.lt.s32.totalorder %v7269, 2
        %vm7271 = vcmp.eq.s32.totalorder %v7269, 0
        %v7272 = vxor.u32 %v7266, 2147483648
        %v7273 = vsel %vm7271, %v7265, %v7272
        %vm7274 = vcmp.eq.s32.totalorder %v7269, 2
        %v7275 = vxor.u32 %v7265, 2147483648
        %v7276 = vsel %vm7274, %v7275, %v7266
        %v7277 = vsel %vm7270, %v7273, %v7276
        %v7278 = vsel %vm7267, nan, %v7277
        %v7279 = vand.u32 2147483647, %v4934
        %vm7280 = vcmp.le.f32.partialorder %v7279, 0.7853982
        %vm7281 = vcmp.lt.s32.totalorder %v4934, 0
        %v7282 = vand.u32 %v4934, 2139095040
        %v7283 = vshrl.u32 %v7282, 23
        %v7284 = vsub.s32 %v7283, 127
        %v7285 = vand.u32 2147483647, %v4934
        %v7286 = vand.u32 %v7285, 8388607
        %v7287 = vor.u32 %v7286, 8388608
        %v7288 = vsub.s32 0, %v7287
        %v7289 = vadd.s32 %v7284, 1
        %vm7290 = vcmp.gt.s32.totalorder %v7289, 0
        %v7291 = vsel %vm7290, %v7289, 0
        %v7292 = vshrl.u32 %v7291, 5
        %v7293 = vand.u32 %v7291, 31
        %v7294 = vsub.s32 32, %v7293
        %v7295 = vshrl.u32 683565275, %v7294
        %v7296 = vshll.u32 683565275, %v7293
        %v7297 = vshrl.u32 2475754826, %v7294
        %v7298 = vor.u32 %v7296, %v7297
        %v7299 = vshll.u32 2475754826, %v7293
        %v7300 = vshrl.u32 2131351028, %v7294
        %v7301 = vor.u32 %v7299, %v7300
        %v7302 = vshll.u32 2131351028, %v7293
        %v7303 = vshrl.u32 2102212464, %v7294
        %v7304 = vor.u32 %v7302, %v7303
        %v7305 = vshll.u32 2102212464, %v7293
        %v7306 = vshrl.u32 920167782, %v7294
        %v7307 = vor.u32 %v7305, %v7306
        %v7308 = vshll.u32 920167782, %v7293
        %v7309 = vshrl.u32 1326507024, %v7294
        %v7310 = vor.u32 %v7308, %v7309
        %vm7311 = vcmp.lt.s32.totalorder %v7292, 1
        %vm7312 = vcmp.lt.s32.totalorder %v7292, 2
        %vm7313 = vcmp.lt.s32.totalorder %v7292, 3
        %vm7314 = vcmp.lt.s32.totalorder %v7292, 4
        %v7315 = vsel %vm7311, %v7295, %v7298
        %v7316 = vsel %vm7314, %v7304, 2102212464
        %v7317 = vsel %vm7313, %v7301, %v7316
        %v7318 = vsel %vm7312, %v7315, %v7317
        %v7319 = vsel %vm7311, %v7298, %v7301
        %v7320 = vsel %vm7314, %v7307, 920167782
        %v7321 = vsel %vm7313, %v7304, %v7320
        %v7322 = vsel %vm7312, %v7319, %v7321
        %v7323 = vsel %vm7311, %v7301, %v7304
        %v7324 = vsel %vm7314, %v7310, 1326507024
        %v7325 = vsel %vm7313, %v7307, %v7324
        %v7326 = vsel %vm7312, %v7323, %v7325
        %v7327 = vshll.u32 %v7287, 8
        %v7328 = vmul.u32.u64.compose %v7327, %v7326
        %v7329 = vextract.low.u32 %v7328
        %v7330 = vextract.high.u32 %v7328
        %v7331 = vmul.u32.u64.compose %v7327, %v7322
        %v7332 = vextract.low.u32 %v7331
        %v7333 = vextract.high.u32 %v7331
        %v7334 = vmul.u32 %v7327, %v7318
        %v7335 = vadd.s32 %v7330, %v7332
        %vm7336 = vc.u32 %v7330, %v7332
        %v7337 = vadd.s32 %v7333, 1
        %v7338 = vsel %vm7336, %v7337, %v7333
        %v7339 = vadd.s32 %v7334, %v7338
        %v7340 = vadd.s32 %v7339, 536870912
        %v7341 = vshrl.u32 %v7340, 30
        %v7342 = vshll.u32 %v7341, 30
        %v7343 = vsub.s32 %v7339, %v7342
        %vm7344 = vcmp.lt.s32.totalorder %v7343, 0
        %v7345 = vsub.s32 0, %v7343
        %v7346 = vsel %vm7344, %v7345, %v7343
        %v7347 = vclz %v7346
        %v7348 = vsub.s32 %v7347, 2
        %vm7349 = vcmp.gt.s32.totalorder 0, %v7348
        %v7350 = vsel %vm7349, 0, %v7348
        %v7351 = vsub.s32 32, %v7350
        %v7352 = vshll.u32 %v7343, %v7350
        %v7353 = vshrl.u32 %v7335, %v7351
        %v7354 = vor.u32 %v7352, %v7353
        %v7355 = vsub.s32 4294967266, %v7350
        %v7356 = vadd.s32 %v7355, 127
        %v7357 = vshll.u32 %v7356, 23
        %v7358 = vor.u32 4788187, %v7357
        %v7359 = vand.u32 2147483647, %v7358
        %v7361 = vcvt.s32.f32 %v7354
        %v7362 = vmul.f32 %v7361, %v7359
        %v7363 = vxor.u32 %v7362, 2147483648
        %v7364 = vsel %vm7281, %v7363, %v7362
        %v7365 = vsub.s32 4, %v7341
        %v7366 = vsel %vm7281, %v7365, %v7341
        %v7367 = vsel %vm7280, %v4934, %v7364
        %v7368 = vsel %vm7280, 0, %v7366
        %v7369 = vcosq.f32.pop %v7367
        %v7370 = vsinq.f32.pop %v7367
        %vm7371 = vweird.f32 %v4934
        %v7372 = vadd.s32 %v7368, 3
        %v7373 = vand.u32 %v7372, 3
        %vm7374 = vcmp.lt.s32.totalorder %v7373, 2
        %vm7375 = vcmp.eq.s32.totalorder %v7373, 0
        %v7376 = vxor.u32 %v7370, 2147483648
        %v7377 = vsel %vm7375, %v7369, %v7376
        %vm7378 = vcmp.eq.s32.totalorder %v7373, 2
        %v7379 = vxor.u32 %v7369, 2147483648
        %v7380 = vsel %vm7378, %v7379, %v7370
        %v7381 = vsel %vm7374, %v7377, %v7380
        %v7382 = vsel %vm7371, nan, %v7381
        %v7383 = vand.u32 2147483647, %v4940
        %vm7384 = vcmp.le.f32.partialorder %v7383, 0.7853982
        %vm7385 = vcmp.lt.s32.totalorder %v4940, 0
        %v7386 = vand.u32 %v4940, 2139095040
        %v7387 = vshrl.u32 %v7386, 23
        %v7388 = vsub.s32 %v7387, 127
        %v7389 = vand.u32 2147483647, %v4940
        %v7390 = vand.u32 %v7389, 8388607
        %v7391 = vor.u32 %v7390, 8388608
        %v7392 = vsub.s32 0, %v7391
        %v7393 = vadd.s32 %v7388, 1
        %vm7394 = vcmp.gt.s32.totalorder %v7393, 0
        %v7395 = vsel %vm7394, %v7393, 0
        %v7396 = vshrl.u32 %v7395, 5
        %v7397 = vand.u32 %v7395, 31
        %v7398 = vsub.s32 32, %v7397
        %v7399 = vshrl.u32 683565275, %v7398
        %v7400 = vshll.u32 683565275, %v7397
        %v7401 = vshrl.u32 2475754826, %v7398
        %v7402 = vor.u32 %v7400, %v7401
        %v7403 = vshll.u32 2475754826, %v7397
        %v7404 = vshrl.u32 2131351028, %v7398
        %v7405 = vor.u32 %v7403, %v7404
        %v7406 = vshll.u32 2131351028, %v7397
        %v7407 = vshrl.u32 2102212464, %v7398
        %v7408 = vor.u32 %v7406, %v7407
        %v7409 = vshll.u32 2102212464, %v7397
        %v7410 = vshrl.u32 920167782, %v7398
        %v7411 = vor.u32 %v7409, %v7410
        %v7412 = vshll.u32 920167782, %v7397
        %v7413 = vshrl.u32 1326507024, %v7398
        %v7414 = vor.u32 %v7412, %v7413
        %vm7415 = vcmp.lt.s32.totalorder %v7396, 1
        %vm7416 = vcmp.lt.s32.totalorder %v7396, 2
        %vm7417 = vcmp.lt.s32.totalorder %v7396, 3
        %vm7418 = vcmp.lt.s32.totalorder %v7396, 4
        %v7419 = vsel %vm7415, %v7399, %v7402
        %v7420 = vsel %vm7418, %v7408, 2102212464
        %v7421 = vsel %vm7417, %v7405, %v7420
        %v7422 = vsel %vm7416, %v7419, %v7421
        %v7423 = vsel %vm7415, %v7402, %v7405
        %v7424 = vsel %vm7418, %v7411, 920167782
        %v7425 = vsel %vm7417, %v7408, %v7424
        %v7426 = vsel %vm7416, %v7423, %v7425
        %v7427 = vsel %vm7415, %v7405, %v7408
        %v7428 = vsel %vm7418, %v7414, 1326507024
        %v7429 = vsel %vm7417, %v7411, %v7428
        %v7430 = vsel %vm7416, %v7427, %v7429
        %v7431 = vshll.u32 %v7391, 8
        %v7432 = vmul.u32.u64.compose %v7431, %v7430
        %v7433 = vextract.low.u32 %v7432
        %v7434 = vextract.high.u32 %v7432
        %v7435 = vmul.u32.u64.compose %v7431, %v7426
        %v7436 = vextract.low.u32 %v7435
        %v7437 = vextract.high.u32 %v7435
        %v7438 = vmul.u32 %v7431, %v7422
        %v7439 = vadd.s32 %v7434, %v7436
        %vm7440 = vc.u32 %v7434, %v7436
        %v7441 = vadd.s32 %v7437, 1
        %v7442 = vsel %vm7440, %v7441, %v7437
        %v7443 = vadd.s32 %v7438, %v7442
        %v7444 = vadd.s32 %v7443, 536870912
        %v7445 = vshrl.u32 %v7444, 30
        %v7446 = vshll.u32 %v7445, 30
        %v7447 = vsub.s32 %v7443, %v7446
        %vm7448 = vcmp.lt.s32.totalorder %v7447, 0
        %v7449 = vsub.s32 0, %v7447
        %v7450 = vsel %vm7448, %v7449, %v7447
        %v7451 = vclz %v7450
        %v7452 = vsub.s32 %v7451, 2
        %vm7453 = vcmp.gt.s32.totalorder 0, %v7452
        %v7454 = vsel %vm7453, 0, %v7452
        %v7455 = vsub.s32 32, %v7454
        %v7456 = vshll.u32 %v7447, %v7454
        %v7457 = vshrl.u32 %v7439, %v7455
        %v7458 = vor.u32 %v7456, %v7457
        %v7459 = vsub.s32 4294967266, %v7454
        %v7460 = vadd.s32 %v7459, 127
        %v7461 = vshll.u32 %v7460, 23
        %v7462 = vor.u32 4788187, %v7461
        %v7463 = vand.u32 2147483647, %v7462
        %v7465 = vcvt.s32.f32 %v7458
        %v7466 = vmul.f32 %v7465, %v7463
        %v7467 = vxor.u32 %v7466, 2147483648
        %v7468 = vsel %vm7385, %v7467, %v7466
        %v7469 = vsub.s32 4, %v7445
        %v7470 = vsel %vm7385, %v7469, %v7445
        %v7471 = vsel %vm7384, %v4940, %v7468
        %v7472 = vsel %vm7384, 0, %v7470
        %v7473 = vcosq.f32.pop %v7471
        %v7474 = vsinq.f32.pop %v7471
        %vm7475 = vweird.f32 %v4940
        %v7476 = vadd.s32 %v7472, 3
        %v7477 = vand.u32 %v7476, 3
        %vm7478 = vcmp.lt.s32.totalorder %v7477, 2
        %vm7479 = vcmp.eq.s32.totalorder %v7477, 0
        %v7480 = vxor.u32 %v7474, 2147483648
        %v7481 = vsel %vm7479, %v7473, %v7480
        %vm7482 = vcmp.eq.s32.totalorder %v7477, 2
        %v7483 = vxor.u32 %v7473, 2147483648
        %v7484 = vsel %vm7482, %v7483, %v7474
        %v7485 = vsel %vm7478, %v7481, %v7484
        %v7486 = vsel %vm7475, nan, %v7485
        %v7487 = vand.u32 2147483647, %v4946
        %vm7488 = vcmp.le.f32.partialorder %v7487, 0.7853982
        %vm7489 = vcmp.lt.s32.totalorder %v4946, 0
        %v7490 = vand.u32 %v4946, 2139095040
        %v7491 = vshrl.u32 %v7490, 23
        %v7492 = vsub.s32 %v7491, 127
        %v7493 = vand.u32 2147483647, %v4946
        %v7494 = vand.u32 %v7493, 8388607
        %v7495 = vor.u32 %v7494, 8388608
        %v7496 = vsub.s32 0, %v7495
        %v7497 = vadd.s32 %v7492, 1
        %vm7498 = vcmp.gt.s32.totalorder %v7497, 0
        %v7499 = vsel %vm7498, %v7497, 0
        %v7500 = vshrl.u32 %v7499, 5
        %v7501 = vand.u32 %v7499, 31
        %v7502 = vsub.s32 32, %v7501
        %v7503 = vshrl.u32 683565275, %v7502
        %v7504 = vshll.u32 683565275, %v7501
        %v7505 = vshrl.u32 2475754826, %v7502
        %v7506 = vor.u32 %v7504, %v7505
        %v7507 = vshll.u32 2475754826, %v7501
        %v7508 = vshrl.u32 2131351028, %v7502
        %v7509 = vor.u32 %v7507, %v7508
        %v7510 = vshll.u32 2131351028, %v7501
        %v7511 = vshrl.u32 2102212464, %v7502
        %v7512 = vor.u32 %v7510, %v7511
        %v7513 = vshll.u32 2102212464, %v7501
        %v7514 = vshrl.u32 920167782, %v7502
        %v7515 = vor.u32 %v7513, %v7514
        %v7516 = vshll.u32 920167782, %v7501
        %v7517 = vshrl.u32 1326507024, %v7502
        %v7518 = vor.u32 %v7516, %v7517
        %vm7519 = vcmp.lt.s32.totalorder %v7500, 1
        %vm7520 = vcmp.lt.s32.totalorder %v7500, 2
        %vm7521 = vcmp.lt.s32.totalorder %v7500, 3
        %vm7522 = vcmp.lt.s32.totalorder %v7500, 4
        %v7523 = vsel %vm7519, %v7503, %v7506
        %v7524 = vsel %vm7522, %v7512, 2102212464
        %v7525 = vsel %vm7521, %v7509, %v7524
        %v7526 = vsel %vm7520, %v7523, %v7525
        %v7527 = vsel %vm7519, %v7506, %v7509
        %v7528 = vsel %vm7522, %v7515, 920167782
        %v7529 = vsel %vm7521, %v7512, %v7528
        %v7530 = vsel %vm7520, %v7527, %v7529
        %v7531 = vsel %vm7519, %v7509, %v7512
        %v7532 = vsel %vm7522, %v7518, 1326507024
        %v7533 = vsel %vm7521, %v7515, %v7532
        %v7534 = vsel %vm7520, %v7531, %v7533
        %v7535 = vshll.u32 %v7495, 8
        %v7536 = vmul.u32.u64.compose %v7535, %v7534
        %v7537 = vextract.low.u32 %v7536
        %v7538 = vextract.high.u32 %v7536
        %v7539 = vmul.u32.u64.compose %v7535, %v7530
        %v7540 = vextract.low.u32 %v7539
        %v7541 = vextract.high.u32 %v7539
        %v7542 = vmul.u32 %v7535, %v7526
        %v7543 = vadd.s32 %v7538, %v7540
        %vm7544 = vc.u32 %v7538, %v7540
        %v7545 = vadd.s32 %v7541, 1
        %v7546 = vsel %vm7544, %v7545, %v7541
        %v7547 = vadd.s32 %v7542, %v7546
        %v7548 = vadd.s32 %v7547, 536870912
        %v7549 = vshrl.u32 %v7548, 30
        %v7550 = vshll.u32 %v7549, 30
        %v7551 = vsub.s32 %v7547, %v7550
        %vm7552 = vcmp.lt.s32.totalorder %v7551, 0
        %v7553 = vsub.s32 0, %v7551
        %v7554 = vsel %vm7552, %v7553, %v7551
        %v7555 = vclz %v7554
        %v7556 = vsub.s32 %v7555, 2
        %vm7557 = vcmp.gt.s32.totalorder 0, %v7556
        %v7558 = vsel %vm7557, 0, %v7556
        %v7559 = vsub.s32 32, %v7558
        %v7560 = vshll.u32 %v7551, %v7558
        %v7561 = vshrl.u32 %v7543, %v7559
        %v7562 = vor.u32 %v7560, %v7561
        %v7563 = vsub.s32 4294967266, %v7558
        %v7564 = vadd.s32 %v7563, 127
        %v7565 = vshll.u32 %v7564, 23
        %v7566 = vor.u32 4788187, %v7565
        %v7567 = vand.u32 2147483647, %v7566
        %v7569 = vcvt.s32.f32 %v7562
        %v7570 = vmul.f32 %v7569, %v7567
        %v7571 = vxor.u32 %v7570, 2147483648
        %v7572 = vsel %vm7489, %v7571, %v7570
        %v7573 = vsub.s32 4, %v7549
        %v7574 = vsel %vm7489, %v7573, %v7549
        %v7575 = vsel %vm7488, %v4946, %v7572
        %v7576 = vsel %vm7488, 0, %v7574
        %v7577 = vcosq.f32.pop %v7575
        %v7578 = vsinq.f32.pop %v7575
        %vm7579 = vweird.f32 %v4946
        %v7580 = vadd.s32 %v7576, 3
        %v7581 = vand.u32 %v7580, 3
        %vm7582 = vcmp.lt.s32.totalorder %v7581, 2
        %vm7583 = vcmp.eq.s32.totalorder %v7581, 0
        %v7584 = vxor.u32 %v7578, 2147483648
        %v7585 = vsel %vm7583, %v7577, %v7584
        %vm7586 = vcmp.eq.s32.totalorder %v7581, 2
        %v7587 = vxor.u32 %v7577, 2147483648
        %v7588 = vsel %vm7586, %v7587, %v7578
        %v7589 = vsel %vm7582, %v7585, %v7588
        %v7590 = vsel %vm7579, nan, %v7589
        %v7591 = vand.u32 2147483647, %v4952
        %vm7592 = vcmp.le.f32.partialorder %v7591, 0.7853982
        %vm7593 = vcmp.lt.s32.totalorder %v4952, 0
        %v7594 = vand.u32 %v4952, 2139095040
        %v7595 = vshrl.u32 %v7594, 23
        %v7596 = vsub.s32 %v7595, 127
        %v7597 = vand.u32 2147483647, %v4952
        %v7598 = vand.u32 %v7597, 8388607
        %v7599 = vor.u32 %v7598, 8388608
        %v7600 = vsub.s32 0, %v7599
        %v7601 = vadd.s32 %v7596, 1
        %vm7602 = vcmp.gt.s32.totalorder %v7601, 0
        %v7603 = vsel %vm7602, %v7601, 0
        %v7604 = vshrl.u32 %v7603, 5
        %v7605 = vand.u32 %v7603, 31
        %v7606 = vsub.s32 32, %v7605
        %v7607 = vshrl.u32 683565275, %v7606
        %v7608 = vshll.u32 683565275, %v7605
        %v7609 = vshrl.u32 2475754826, %v7606
        %v7610 = vor.u32 %v7608, %v7609
        %v7611 = vshll.u32 2475754826, %v7605
        %v7612 = vshrl.u32 2131351028, %v7606
        %v7613 = vor.u32 %v7611, %v7612
        %v7614 = vshll.u32 2131351028, %v7605
        %v7615 = vshrl.u32 2102212464, %v7606
        %v7616 = vor.u32 %v7614, %v7615
        %v7617 = vshll.u32 2102212464, %v7605
        %v7618 = vshrl.u32 920167782, %v7606
        %v7619 = vor.u32 %v7617, %v7618
        %v7620 = vshll.u32 920167782, %v7605
        %v7621 = vshrl.u32 1326507024, %v7606
        %v7622 = vor.u32 %v7620, %v7621
        %vm7623 = vcmp.lt.s32.totalorder %v7604, 1
        %vm7624 = vcmp.lt.s32.totalorder %v7604, 2
        %vm7625 = vcmp.lt.s32.totalorder %v7604, 3
        %vm7626 = vcmp.lt.s32.totalorder %v7604, 4
        %v7627 = vsel %vm7623, %v7607, %v7610
        %v7628 = vsel %vm7626, %v7616, 2102212464
        %v7629 = vsel %vm7625, %v7613, %v7628
        %v7630 = vsel %vm7624, %v7627, %v7629
        %v7631 = vsel %vm7623, %v7610, %v7613
        %v7632 = vsel %vm7626, %v7619, 920167782
        %v7633 = vsel %vm7625, %v7616, %v7632
        %v7634 = vsel %vm7624, %v7631, %v7633
        %v7635 = vsel %vm7623, %v7613, %v7616
        %v7636 = vsel %vm7626, %v7622, 1326507024
        %v7637 = vsel %vm7625, %v7619, %v7636
        %v7638 = vsel %vm7624, %v7635, %v7637
        %v7639 = vshll.u32 %v7599, 8
        %v7640 = vmul.u32.u64.compose %v7639, %v7638
        %v7641 = vextract.low.u32 %v7640
        %v7642 = vextract.high.u32 %v7640
        %v7643 = vmul.u32.u64.compose %v7639, %v7634
        %v7644 = vextract.low.u32 %v7643
        %v7645 = vextract.high.u32 %v7643
        %v7646 = vmul.u32 %v7639, %v7630
        %v7647 = vadd.s32 %v7642, %v7644
        %vm7648 = vc.u32 %v7642, %v7644
        %v7649 = vadd.s32 %v7645, 1
        %v7650 = vsel %vm7648, %v7649, %v7645
        %v7651 = vadd.s32 %v7646, %v7650
        %v7652 = vadd.s32 %v7651, 536870912
        %v7653 = vshrl.u32 %v7652, 30
        %v7654 = vshll.u32 %v7653, 30
        %v7655 = vsub.s32 %v7651, %v7654
        %vm7656 = vcmp.lt.s32.totalorder %v7655, 0
        %v7657 = vsub.s32 0, %v7655
        %v7658 = vsel %vm7656, %v7657, %v7655
        %v7659 = vclz %v7658
        %v7660 = vsub.s32 %v7659, 2
        %vm7661 = vcmp.gt.s32.totalorder 0, %v7660
        %v7662 = vsel %vm7661, 0, %v7660
        %v7663 = vsub.s32 32, %v7662
        %v7664 = vshll.u32 %v7655, %v7662
        %v7665 = vshrl.u32 %v7647, %v7663
        %v7666 = vor.u32 %v7664, %v7665
        %v7667 = vsub.s32 4294967266, %v7662
        %v7668 = vadd.s32 %v7667, 127
        %v7669 = vshll.u32 %v7668, 23
        %v7670 = vor.u32 4788187, %v7669
        %v7671 = vand.u32 2147483647, %v7670
        %v7673 = vcvt.s32.f32 %v7666
        %v7674 = vmul.f32 %v7673, %v7671
        %v7675 = vxor.u32 %v7674, 2147483648
        %v7676 = vsel %vm7593, %v7675, %v7674
        %v7677 = vsub.s32 4, %v7653
        %v7678 = vsel %vm7593, %v7677, %v7653
        %v7679 = vsel %vm7592, %v4952, %v7676
        %v7680 = vsel %vm7592, 0, %v7678
        %v7681 = vcosq.f32.pop %v7679
        %v7682 = vsinq.f32.pop %v7679
        %vm7683 = vweird.f32 %v4952
        %v7684 = vadd.s32 %v7680, 3
        %v7685 = vand.u32 %v7684, 3
        %vm7686 = vcmp.lt.s32.totalorder %v7685, 2
        %vm7687 = vcmp.eq.s32.totalorder %v7685, 0
        %v7688 = vxor.u32 %v7682, 2147483648
        %v7689 = vsel %vm7687, %v7681, %v7688
        %vm7690 = vcmp.eq.s32.totalorder %v7685, 2
        %v7691 = vxor.u32 %v7681, 2147483648
        %v7692 = vsel %vm7690, %v7691, %v7682
        %v7693 = vsel %vm7686, %v7689, %v7692
        %v7694 = vsel %vm7683, nan, %v7693
        %v7695 = vand.u32 2147483647, %v4958
        %vm7696 = vcmp.le.f32.partialorder %v7695, 0.7853982
        %vm7697 = vcmp.lt.s32.totalorder %v4958, 0
        %v7698 = vand.u32 %v4958, 2139095040
        %v7699 = vshrl.u32 %v7698, 23
        %v7700 = vsub.s32 %v7699, 127
        %v7701 = vand.u32 2147483647, %v4958
        %v7702 = vand.u32 %v7701, 8388607
        %v7703 = vor.u32 %v7702, 8388608
        %v7704 = vsub.s32 0, %v7703
        %v7705 = vadd.s32 %v7700, 1
        %vm7706 = vcmp.gt.s32.totalorder %v7705, 0
        %v7707 = vsel %vm7706, %v7705, 0
        %v7708 = vshrl.u32 %v7707, 5
        %v7709 = vand.u32 %v7707, 31
        %v7710 = vsub.s32 32, %v7709
        %v7711 = vshrl.u32 683565275, %v7710
        %v7712 = vshll.u32 683565275, %v7709
        %v7713 = vshrl.u32 2475754826, %v7710
        %v7714 = vor.u32 %v7712, %v7713
        %v7715 = vshll.u32 2475754826, %v7709
        %v7716 = vshrl.u32 2131351028, %v7710
        %v7717 = vor.u32 %v7715, %v7716
        %v7718 = vshll.u32 2131351028, %v7709
        %v7719 = vshrl.u32 2102212464, %v7710
        %v7720 = vor.u32 %v7718, %v7719
        %v7721 = vshll.u32 2102212464, %v7709
        %v7722 = vshrl.u32 920167782, %v7710
        %v7723 = vor.u32 %v7721, %v7722
        %v7724 = vshll.u32 920167782, %v7709
        %v7725 = vshrl.u32 1326507024, %v7710
        %v7726 = vor.u32 %v7724, %v7725
        %vm7727 = vcmp.lt.s32.totalorder %v7708, 1
        %vm7728 = vcmp.lt.s32.totalorder %v7708, 2
        %vm7729 = vcmp.lt.s32.totalorder %v7708, 3
        %vm7730 = vcmp.lt.s32.totalorder %v7708, 4
        %v7731 = vsel %vm7727, %v7711, %v7714
        %v7732 = vsel %vm7730, %v7720, 2102212464
        %v7733 = vsel %vm7729, %v7717, %v7732
        %v7734 = vsel %vm7728, %v7731, %v7733
        %v7735 = vsel %vm7727, %v7714, %v7717
        %v7736 = vsel %vm7730, %v7723, 920167782
        %v7737 = vsel %vm7729, %v7720, %v7736
        %v7738 = vsel %vm7728, %v7735, %v7737
        %v7739 = vsel %vm7727, %v7717, %v7720
        %v7740 = vsel %vm7730, %v7726, 1326507024
        %v7741 = vsel %vm7729, %v7723, %v7740
        %v7742 = vsel %vm7728, %v7739, %v7741
        %v7743 = vshll.u32 %v7703, 8
        %v7744 = vmul.u32.u64.compose %v7743, %v7742
        %v7745 = vextract.low.u32 %v7744
        %v7746 = vextract.high.u32 %v7744
        %v7747 = vmul.u32.u64.compose %v7743, %v7738
        %v7748 = vextract.low.u32 %v7747
        %v7749 = vextract.high.u32 %v7747
        %v7750 = vmul.u32 %v7743, %v7734
        %v7751 = vadd.s32 %v7746, %v7748
        %vm7752 = vc.u32 %v7746, %v7748
        %v7753 = vadd.s32 %v7749, 1
        %v7754 = vsel %vm7752, %v7753, %v7749
        %v7755 = vadd.s32 %v7750, %v7754
        %v7756 = vadd.s32 %v7755, 536870912
        %v7757 = vshrl.u32 %v7756, 30
        %v7758 = vshll.u32 %v7757, 30
        %v7759 = vsub.s32 %v7755, %v7758
        %vm7760 = vcmp.lt.s32.totalorder %v7759, 0
        %v7761 = vsub.s32 0, %v7759
        %v7762 = vsel %vm7760, %v7761, %v7759
        %v7763 = vclz %v7762
        %v7764 = vsub.s32 %v7763, 2
        %vm7765 = vcmp.gt.s32.totalorder 0, %v7764
        %v7766 = vsel %vm7765, 0, %v7764
        %v7767 = vsub.s32 32, %v7766
        %v7768 = vshll.u32 %v7759, %v7766
        %v7769 = vshrl.u32 %v7751, %v7767
        %v7770 = vor.u32 %v7768, %v7769
        %v7771 = vsub.s32 4294967266, %v7766
        %v7772 = vadd.s32 %v7771, 127
        %v7773 = vshll.u32 %v7772, 23
        %v7774 = vor.u32 4788187, %v7773
        %v7775 = vand.u32 2147483647, %v7774
        %v7777 = vcvt.s32.f32 %v7770
        %v7778 = vmul.f32 %v7777, %v7775
        %v7779 = vxor.u32 %v7778, 2147483648
        %v7780 = vsel %vm7697, %v7779, %v7778
        %v7781 = vsub.s32 4, %v7757
        %v7782 = vsel %vm7697, %v7781, %v7757
        %v7783 = vsel %vm7696, %v4958, %v7780
        %v7784 = vsel %vm7696, 0, %v7782
        %v7785 = vcosq.f32.pop %v7783
        %v7786 = vsinq.f32.pop %v7783
        %vm7787 = vweird.f32 %v4958
        %v7788 = vadd.s32 %v7784, 3
        %v7789 = vand.u32 %v7788, 3
        %vm7790 = vcmp.lt.s32.totalorder %v7789, 2
        %vm7791 = vcmp.eq.s32.totalorder %v7789, 0
        %v7792 = vxor.u32 %v7786, 2147483648
        %v7793 = vsel %vm7791, %v7785, %v7792
        %vm7794 = vcmp.eq.s32.totalorder %v7789, 2
        %v7795 = vxor.u32 %v7785, 2147483648
        %v7796 = vsel %vm7794, %v7795, %v7786
        %v7797 = vsel %vm7790, %v7793, %v7796
        %v7798 = vsel %vm7787, nan, %v7797
        %v7799 = vand.u32 2147483647, %v4964
        %vm7800 = vcmp.le.f32.partialorder %v7799, 0.7853982
        %vm7801 = vcmp.lt.s32.totalorder %v4964, 0
        %v7802 = vand.u32 %v4964, 2139095040
        %v7803 = vshrl.u32 %v7802, 23
        %v7804 = vsub.s32 %v7803, 127
        %v7805 = vand.u32 2147483647, %v4964
        %v7806 = vand.u32 %v7805, 8388607
        %v7807 = vor.u32 %v7806, 8388608
        %v7808 = vsub.s32 0, %v7807
        %v7809 = vadd.s32 %v7804, 1
        %vm7810 = vcmp.gt.s32.totalorder %v7809, 0
        %v7811 = vsel %vm7810, %v7809, 0
        %v7812 = vshrl.u32 %v7811, 5
        %v7813 = vand.u32 %v7811, 31
        %v7814 = vsub.s32 32, %v7813
        %v7815 = vshrl.u32 683565275, %v7814
        %v7816 = vshll.u32 683565275, %v7813
        %v7817 = vshrl.u32 2475754826, %v7814
        %v7818 = vor.u32 %v7816, %v7817
        %v7819 = vshll.u32 2475754826, %v7813
        %v7820 = vshrl.u32 2131351028, %v7814
        %v7821 = vor.u32 %v7819, %v7820
        %v7822 = vshll.u32 2131351028, %v7813
        %v7823 = vshrl.u32 2102212464, %v7814
        %v7824 = vor.u32 %v7822, %v7823
        %v7825 = vshll.u32 2102212464, %v7813
        %v7826 = vshrl.u32 920167782, %v7814
        %v7827 = vor.u32 %v7825, %v7826
        %v7828 = vshll.u32 920167782, %v7813
        %v7829 = vshrl.u32 1326507024, %v7814
        %v7830 = vor.u32 %v7828, %v7829
        %vm7831 = vcmp.lt.s32.totalorder %v7812, 1
        %vm7832 = vcmp.lt.s32.totalorder %v7812, 2
        %vm7833 = vcmp.lt.s32.totalorder %v7812, 3
        %vm7834 = vcmp.lt.s32.totalorder %v7812, 4
        %v7835 = vsel %vm7831, %v7815, %v7818
        %v7836 = vsel %vm7834, %v7824, 2102212464
        %v7837 = vsel %vm7833, %v7821, %v7836
        %v7838 = vsel %vm7832, %v7835, %v7837
        %v7839 = vsel %vm7831, %v7818, %v7821
        %v7840 = vsel %vm7834, %v7827, 920167782
        %v7841 = vsel %vm7833, %v7824, %v7840
        %v7842 = vsel %vm7832, %v7839, %v7841
        %v7843 = vsel %vm7831, %v7821, %v7824
        %v7844 = vsel %vm7834, %v7830, 1326507024
        %v7845 = vsel %vm7833, %v7827, %v7844
        %v7846 = vsel %vm7832, %v7843, %v7845
        %v7847 = vshll.u32 %v7807, 8
        %v7848 = vmul.u32.u64.compose %v7847, %v7846
        %v7849 = vextract.low.u32 %v7848
        %v7850 = vextract.high.u32 %v7848
        %v7851 = vmul.u32.u64.compose %v7847, %v7842
        %v7852 = vextract.low.u32 %v7851
        %v7853 = vextract.high.u32 %v7851
        %v7854 = vmul.u32 %v7847, %v7838
        %v7855 = vadd.s32 %v7850, %v7852
        %vm7856 = vc.u32 %v7850, %v7852
        %v7857 = vadd.s32 %v7853, 1
        %v7858 = vsel %vm7856, %v7857, %v7853
        %v7859 = vadd.s32 %v7854, %v7858
        %v7860 = vadd.s32 %v7859, 536870912
        %v7861 = vshrl.u32 %v7860, 30
        %v7862 = vshll.u32 %v7861, 30
        %v7863 = vsub.s32 %v7859, %v7862
        %vm7864 = vcmp.lt.s32.totalorder %v7863, 0
        %v7865 = vsub.s32 0, %v7863
        %v7866 = vsel %vm7864, %v7865, %v7863
        %v7867 = vclz %v7866
        %v7868 = vsub.s32 %v7867, 2
        %vm7869 = vcmp.gt.s32.totalorder 0, %v7868
        %v7870 = vsel %vm7869, 0, %v7868
        %v7871 = vsub.s32 32, %v7870
        %v7872 = vshll.u32 %v7863, %v7870
        %v7873 = vshrl.u32 %v7855, %v7871
        %v7874 = vor.u32 %v7872, %v7873
        %v7875 = vsub.s32 4294967266, %v7870
        %v7876 = vadd.s32 %v7875, 127
        %v7877 = vshll.u32 %v7876, 23
        %v7878 = vor.u32 4788187, %v7877
        %v7879 = vand.u32 2147483647, %v7878
        %v7881 = vcvt.s32.f32 %v7874
        %v7882 = vmul.f32 %v7881, %v7879
        %v7883 = vxor.u32 %v7882, 2147483648
        %v7884 = vsel %vm7801, %v7883, %v7882
        %v7885 = vsub.s32 4, %v7861
        %v7886 = vsel %vm7801, %v7885, %v7861
        %v7887 = vsel %vm7800, %v4964, %v7884
        %v7888 = vsel %vm7800, 0, %v7886
        %v7889 = vcosq.f32.pop %v7887
        %v7890 = vsinq.f32.pop %v7887
        %vm7891 = vweird.f32 %v4964
        %v7892 = vadd.s32 %v7888, 3
        %v7893 = vand.u32 %v7892, 3
        %vm7894 = vcmp.lt.s32.totalorder %v7893, 2
        %vm7895 = vcmp.eq.s32.totalorder %v7893, 0
        %v7896 = vxor.u32 %v7890, 2147483648
        %v7897 = vsel %vm7895, %v7889, %v7896
        %vm7898 = vcmp.eq.s32.totalorder %v7893, 2
        %v7899 = vxor.u32 %v7889, 2147483648
        %v7900 = vsel %vm7898, %v7899, %v7890
        %v7901 = vsel %vm7894, %v7897, %v7900
        %v7902 = vsel %vm7891, nan, %v7901
        %v7903 = vand.u32 2147483647, %v4970
        %vm7904 = vcmp.le.f32.partialorder %v7903, 0.7853982
        %vm7905 = vcmp.lt.s32.totalorder %v4970, 0
        %v7906 = vand.u32 %v4970, 2139095040
        %v7907 = vshrl.u32 %v7906, 23
        %v7908 = vsub.s32 %v7907, 127
        %v7909 = vand.u32 2147483647, %v4970
        %v7910 = vand.u32 %v7909, 8388607
        %v7911 = vor.u32 %v7910, 8388608
        %v7912 = vsub.s32 0, %v7911
        %v7913 = vadd.s32 %v7908, 1
        %vm7914 = vcmp.gt.s32.totalorder %v7913, 0
        %v7915 = vsel %vm7914, %v7913, 0
        %v7916 = vshrl.u32 %v7915, 5
        %v7917 = vand.u32 %v7915, 31
        %v7918 = vsub.s32 32, %v7917
        %v7919 = vshrl.u32 683565275, %v7918
        %v7920 = vshll.u32 683565275, %v7917
        %v7921 = vshrl.u32 2475754826, %v7918
        %v7922 = vor.u32 %v7920, %v7921
        %v7923 = vshll.u32 2475754826, %v7917
        %v7924 = vshrl.u32 2131351028, %v7918
        %v7925 = vor.u32 %v7923, %v7924
        %v7926 = vshll.u32 2131351028, %v7917
        %v7927 = vshrl.u32 2102212464, %v7918
        %v7928 = vor.u32 %v7926, %v7927
        %v7929 = vshll.u32 2102212464, %v7917
        %v7930 = vshrl.u32 920167782, %v7918
        %v7931 = vor.u32 %v7929, %v7930
        %v7932 = vshll.u32 920167782, %v7917
        %v7933 = vshrl.u32 1326507024, %v7918
        %v7934 = vor.u32 %v7932, %v7933
        %vm7935 = vcmp.lt.s32.totalorder %v7916, 1
        %vm7936 = vcmp.lt.s32.totalorder %v7916, 2
        %vm7937 = vcmp.lt.s32.totalorder %v7916, 3
        %vm7938 = vcmp.lt.s32.totalorder %v7916, 4
        %v7939 = vsel %vm7935, %v7919, %v7922
        %v7940 = vsel %vm7938, %v7928, 2102212464
        %v7941 = vsel %vm7937, %v7925, %v7940
        %v7942 = vsel %vm7936, %v7939, %v7941
        %v7943 = vsel %vm7935, %v7922, %v7925
        %v7944 = vsel %vm7938, %v7931, 920167782
        %v7945 = vsel %vm7937, %v7928, %v7944
        %v7946 = vsel %vm7936, %v7943, %v7945
        %v7947 = vsel %vm7935, %v7925, %v7928
        %v7948 = vsel %vm7938, %v7934, 1326507024
        %v7949 = vsel %vm7937, %v7931, %v7948
        %v7950 = vsel %vm7936, %v7947, %v7949
        %v7951 = vshll.u32 %v7911, 8
        %v7952 = vmul.u32.u64.compose %v7951, %v7950
        %v7953 = vextract.low.u32 %v7952
        %v7954 = vextract.high.u32 %v7952
        %v7955 = vmul.u32.u64.compose %v7951, %v7946
        %v7956 = vextract.low.u32 %v7955
        %v7957 = vextract.high.u32 %v7955
        %v7958 = vmul.u32 %v7951, %v7942
        %v7959 = vadd.s32 %v7954, %v7956
        %vm7960 = vc.u32 %v7954, %v7956
        %v7961 = vadd.s32 %v7957, 1
        %v7962 = vsel %vm7960, %v7961, %v7957
        %v7963 = vadd.s32 %v7958, %v7962
        %v7964 = vadd.s32 %v7963, 536870912
        %v7965 = vshrl.u32 %v7964, 30
        %v7966 = vshll.u32 %v7965, 30
        %v7967 = vsub.s32 %v7963, %v7966
        %vm7968 = vcmp.lt.s32.totalorder %v7967, 0
        %v7969 = vsub.s32 0, %v7967
        %v7970 = vsel %vm7968, %v7969, %v7967
        %v7971 = vclz %v7970
        %v7972 = vsub.s32 %v7971, 2
        %vm7973 = vcmp.gt.s32.totalorder 0, %v7972
        %v7974 = vsel %vm7973, 0, %v7972
        %v7975 = vsub.s32 32, %v7974
        %v7976 = vshll.u32 %v7967, %v7974
        %v7977 = vshrl.u32 %v7959, %v7975
        %v7978 = vor.u32 %v7976, %v7977
        %v7979 = vsub.s32 4294967266, %v7974
        %v7980 = vadd.s32 %v7979, 127
        %v7981 = vshll.u32 %v7980, 23
        %v7982 = vor.u32 4788187, %v7981
        %v7983 = vand.u32 2147483647, %v7982
        %v7985 = vcvt.s32.f32 %v7978
        %v7986 = vmul.f32 %v7985, %v7983
        %v7987 = vxor.u32 %v7986, 2147483648
        %v7988 = vsel %vm7905, %v7987, %v7986
        %v7989 = vsub.s32 4, %v7965
        %v7990 = vsel %vm7905, %v7989, %v7965
        %v7991 = vsel %vm7904, %v4970, %v7988
        %v7992 = vsel %vm7904, 0, %v7990
        %v7993 = vcosq.f32.pop %v7991
        %v7994 = vsinq.f32.pop %v7991
        %vm7995 = vweird.f32 %v4970
        %v7996 = vadd.s32 %v7992, 3
        %v7997 = vand.u32 %v7996, 3
        %vm7998 = vcmp.lt.s32.totalorder %v7997, 2
        %vm7999 = vcmp.eq.s32.totalorder %v7997, 0
        %v8000 = vxor.u32 %v7994, 2147483648
        %v8001 = vsel %vm7999, %v7993, %v8000
        %vm8002 = vcmp.eq.s32.totalorder %v7997, 2
        %v8003 = vxor.u32 %v7993, 2147483648
        %v8004 = vsel %vm8002, %v8003, %v7994
        %v8005 = vsel %vm7998, %v8001, %v8004
        %v8006 = vsel %vm7995, nan, %v8005
        %v8007 = vand.u32 2147483647, %v4976
        %vm8008 = vcmp.le.f32.partialorder %v8007, 0.7853982
        %vm8009 = vcmp.lt.s32.totalorder %v4976, 0
        %v8010 = vand.u32 %v4976, 2139095040
        %v8011 = vshrl.u32 %v8010, 23
        %v8012 = vsub.s32 %v8011, 127
        %v8013 = vand.u32 2147483647, %v4976
        %v8014 = vand.u32 %v8013, 8388607
        %v8015 = vor.u32 %v8014, 8388608
        %v8016 = vsub.s32 0, %v8015
        %v8017 = vadd.s32 %v8012, 1
        %vm8018 = vcmp.gt.s32.totalorder %v8017, 0
        %v8019 = vsel %vm8018, %v8017, 0
        %v8020 = vshrl.u32 %v8019, 5
        %v8021 = vand.u32 %v8019, 31
        %v8022 = vsub.s32 32, %v8021
        %v8023 = vshrl.u32 683565275, %v8022
        %v8024 = vshll.u32 683565275, %v8021
        %v8025 = vshrl.u32 2475754826, %v8022
        %v8026 = vor.u32 %v8024, %v8025
        %v8027 = vshll.u32 2475754826, %v8021
        %v8028 = vshrl.u32 2131351028, %v8022
        %v8029 = vor.u32 %v8027, %v8028
        %v8030 = vshll.u32 2131351028, %v8021
        %v8031 = vshrl.u32 2102212464, %v8022
        %v8032 = vor.u32 %v8030, %v8031
        %v8033 = vshll.u32 2102212464, %v8021
        %v8034 = vshrl.u32 920167782, %v8022
        %v8035 = vor.u32 %v8033, %v8034
        %v8036 = vshll.u32 920167782, %v8021
        %v8037 = vshrl.u32 1326507024, %v8022
        %v8038 = vor.u32 %v8036, %v8037
        %vm8039 = vcmp.lt.s32.totalorder %v8020, 1
        %vm8040 = vcmp.lt.s32.totalorder %v8020, 2
        %vm8041 = vcmp.lt.s32.totalorder %v8020, 3
        %vm8042 = vcmp.lt.s32.totalorder %v8020, 4
        %v8043 = vsel %vm8039, %v8023, %v8026
        %v8044 = vsel %vm8042, %v8032, 2102212464
        %v8045 = vsel %vm8041, %v8029, %v8044
        %v8046 = vsel %vm8040, %v8043, %v8045
        %v8047 = vsel %vm8039, %v8026, %v8029
        %v8048 = vsel %vm8042, %v8035, 920167782
        %v8049 = vsel %vm8041, %v8032, %v8048
        %v8050 = vsel %vm8040, %v8047, %v8049
        %v8051 = vsel %vm8039, %v8029, %v8032
        %v8052 = vsel %vm8042, %v8038, 1326507024
        %v8053 = vsel %vm8041, %v8035, %v8052
        %v8054 = vsel %vm8040, %v8051, %v8053
        %v8055 = vshll.u32 %v8015, 8
        %v8056 = vmul.u32.u64.compose %v8055, %v8054
        %v8057 = vextract.low.u32 %v8056
        %v8058 = vextract.high.u32 %v8056
        %v8059 = vmul.u32.u64.compose %v8055, %v8050
        %v8060 = vextract.low.u32 %v8059
        %v8061 = vextract.high.u32 %v8059
        %v8062 = vmul.u32 %v8055, %v8046
        %v8063 = vadd.s32 %v8058, %v8060
        %vm8064 = vc.u32 %v8058, %v8060
        %v8065 = vadd.s32 %v8061, 1
        %v8066 = vsel %vm8064, %v8065, %v8061
        %v8067 = vadd.s32 %v8062, %v8066
        %v8068 = vadd.s32 %v8067, 536870912
        %v8069 = vshrl.u32 %v8068, 30
        %v8070 = vshll.u32 %v8069, 30
        %v8071 = vsub.s32 %v8067, %v8070
        %vm8072 = vcmp.lt.s32.totalorder %v8071, 0
        %v8073 = vsub.s32 0, %v8071
        %v8074 = vsel %vm8072, %v8073, %v8071
        %v8075 = vclz %v8074
        %v8076 = vsub.s32 %v8075, 2
        %vm8077 = vcmp.gt.s32.totalorder 0, %v8076
        %v8078 = vsel %vm8077, 0, %v8076
        %v8079 = vsub.s32 32, %v8078
        %v8080 = vshll.u32 %v8071, %v8078
        %v8081 = vshrl.u32 %v8063, %v8079
        %v8082 = vor.u32 %v8080, %v8081
        %v8083 = vsub.s32 4294967266, %v8078
        %v8084 = vadd.s32 %v8083, 127
        %v8085 = vshll.u32 %v8084, 23
        %v8086 = vor.u32 4788187, %v8085
        %v8087 = vand.u32 2147483647, %v8086
        %v8089 = vcvt.s32.f32 %v8082
        %v8090 = vmul.f32 %v8089, %v8087
        %v8091 = vxor.u32 %v8090, 2147483648
        %v8092 = vsel %vm8009, %v8091, %v8090
        %v8093 = vsub.s32 4, %v8069
        %v8094 = vsel %vm8009, %v8093, %v8069
        %v8095 = vsel %vm8008, %v4976, %v8092
        %v8096 = vsel %vm8008, 0, %v8094
        %v8097 = vcosq.f32.pop %v8095
        %v8098 = vsinq.f32.pop %v8095
        %vm8099 = vweird.f32 %v4976
        %v8100 = vadd.s32 %v8096, 3
        %v8101 = vand.u32 %v8100, 3
        %vm8102 = vcmp.lt.s32.totalorder %v8101, 2
        %vm8103 = vcmp.eq.s32.totalorder %v8101, 0
        %v8104 = vxor.u32 %v8098, 2147483648
        %v8105 = vsel %vm8103, %v8097, %v8104
        %vm8106 = vcmp.eq.s32.totalorder %v8101, 2
        %v8107 = vxor.u32 %v8097, 2147483648
        %v8108 = vsel %vm8106, %v8107, %v8098
        %v8109 = vsel %vm8102, %v8105, %v8108
        %v8110 = vsel %vm8099, nan, %v8109
        %v8111 = vand.u32 2147483647, %v4982
        %vm8112 = vcmp.le.f32.partialorder %v8111, 0.7853982
        %vm8113 = vcmp.lt.s32.totalorder %v4982, 0
        %v8114 = vand.u32 %v4982, 2139095040
        %v8115 = vshrl.u32 %v8114, 23
        %v8116 = vsub.s32 %v8115, 127
        %v8117 = vand.u32 2147483647, %v4982
        %v8118 = vand.u32 %v8117, 8388607
        %v8119 = vor.u32 %v8118, 8388608
        %v8120 = vsub.s32 0, %v8119
        %v8121 = vadd.s32 %v8116, 1
        %vm8122 = vcmp.gt.s32.totalorder %v8121, 0
        %v8123 = vsel %vm8122, %v8121, 0
        %v8124 = vshrl.u32 %v8123, 5
        %v8125 = vand.u32 %v8123, 31
        %v8126 = vsub.s32 32, %v8125
        %v8127 = vshrl.u32 683565275, %v8126
        %v8128 = vshll.u32 683565275, %v8125
        %v8129 = vshrl.u32 2475754826, %v8126
        %v8130 = vor.u32 %v8128, %v8129
        %v8131 = vshll.u32 2475754826, %v8125
        %v8132 = vshrl.u32 2131351028, %v8126
        %v8133 = vor.u32 %v8131, %v8132
        %v8134 = vshll.u32 2131351028, %v8125
        %v8135 = vshrl.u32 2102212464, %v8126
        %v8136 = vor.u32 %v8134, %v8135
        %v8137 = vshll.u32 2102212464, %v8125
        %v8138 = vshrl.u32 920167782, %v8126
        %v8139 = vor.u32 %v8137, %v8138
        %v8140 = vshll.u32 920167782, %v8125
        %v8141 = vshrl.u32 1326507024, %v8126
        %v8142 = vor.u32 %v8140, %v8141
        %vm8143 = vcmp.lt.s32.totalorder %v8124, 1
        %vm8144 = vcmp.lt.s32.totalorder %v8124, 2
        %vm8145 = vcmp.lt.s32.totalorder %v8124, 3
        %vm8146 = vcmp.lt.s32.totalorder %v8124, 4
        %v8147 = vsel %vm8143, %v8127, %v8130
        %v8148 = vsel %vm8146, %v8136, 2102212464
        %v8149 = vsel %vm8145, %v8133, %v8148
        %v8150 = vsel %vm8144, %v8147, %v8149
        %v8151 = vsel %vm8143, %v8130, %v8133
        %v8152 = vsel %vm8146, %v8139, 920167782
        %v8153 = vsel %vm8145, %v8136, %v8152
        %v8154 = vsel %vm8144, %v8151, %v8153
        %v8155 = vsel %vm8143, %v8133, %v8136
        %v8156 = vsel %vm8146, %v8142, 1326507024
        %v8157 = vsel %vm8145, %v8139, %v8156
        %v8158 = vsel %vm8144, %v8155, %v8157
        %v8159 = vshll.u32 %v8119, 8
        %v8160 = vmul.u32.u64.compose %v8159, %v8158
        %v8161 = vextract.low.u32 %v8160
        %v8162 = vextract.high.u32 %v8160
        %v8163 = vmul.u32.u64.compose %v8159, %v8154
        %v8164 = vextract.low.u32 %v8163
        %v8165 = vextract.high.u32 %v8163
        %v8166 = vmul.u32 %v8159, %v8150
        %v8167 = vadd.s32 %v8162, %v8164
        %vm8168 = vc.u32 %v8162, %v8164
        %v8169 = vadd.s32 %v8165, 1
        %v8170 = vsel %vm8168, %v8169, %v8165
        %v8171 = vadd.s32 %v8166, %v8170
        %v8172 = vadd.s32 %v8171, 536870912
        %v8173 = vshrl.u32 %v8172, 30
        %v8174 = vshll.u32 %v8173, 30
        %v8175 = vsub.s32 %v8171, %v8174
        %vm8176 = vcmp.lt.s32.totalorder %v8175, 0
        %v8177 = vsub.s32 0, %v8175
        %v8178 = vsel %vm8176, %v8177, %v8175
        %v8179 = vclz %v8178
        %v8180 = vsub.s32 %v8179, 2
        %vm8181 = vcmp.gt.s32.totalorder 0, %v8180
        %v8182 = vsel %vm8181, 0, %v8180
        %v8183 = vsub.s32 32, %v8182
        %v8184 = vshll.u32 %v8175, %v8182
        %v8185 = vshrl.u32 %v8167, %v8183
        %v8186 = vor.u32 %v8184, %v8185
        %v8187 = vsub.s32 4294967266, %v8182
        %v8188 = vadd.s32 %v8187, 127
        %v8189 = vshll.u32 %v8188, 23
        %v8190 = vor.u32 4788187, %v8189
        %v8191 = vand.u32 2147483647, %v8190
        %v8193 = vcvt.s32.f32 %v8186
        %v8194 = vmul.f32 %v8193, %v8191
        %v8195 = vxor.u32 %v8194, 2147483648
        %v8196 = vsel %vm8113, %v8195, %v8194
        %v8197 = vsub.s32 4, %v8173
        %v8198 = vsel %vm8113, %v8197, %v8173
        %v8199 = vsel %vm8112, %v4982, %v8196
        %v8200 = vsel %vm8112, 0, %v8198
        %v8201 = vcosq.f32.pop %v8199
        %v8202 = vsinq.f32.pop %v8199
        %vm8203 = vweird.f32 %v4982
        %v8204 = vadd.s32 %v8200, 3
        %v8205 = vand.u32 %v8204, 3
        %vm8206 = vcmp.lt.s32.totalorder %v8205, 2
        %vm8207 = vcmp.eq.s32.totalorder %v8205, 0
        %v8208 = vxor.u32 %v8202, 2147483648
        %v8209 = vsel %vm8207, %v8201, %v8208
        %vm8210 = vcmp.eq.s32.totalorder %v8205, 2
        %v8211 = vxor.u32 %v8201, 2147483648
        %v8212 = vsel %vm8210, %v8211, %v8202
        %v8213 = vsel %vm8206, %v8209, %v8212
        %v8214 = vsel %vm8203, nan, %v8213
        %v8215 = vand.u32 2147483647, %v4988
        %vm8216 = vcmp.le.f32.partialorder %v8215, 0.7853982
        %vm8217 = vcmp.lt.s32.totalorder %v4988, 0
        %v8218 = vand.u32 %v4988, 2139095040
        %v8219 = vshrl.u32 %v8218, 23
        %v8220 = vsub.s32 %v8219, 127
        %v8221 = vand.u32 2147483647, %v4988
        %v8222 = vand.u32 %v8221, 8388607
        %v8223 = vor.u32 %v8222, 8388608
        %v8224 = vsub.s32 0, %v8223
        %v8225 = vadd.s32 %v8220, 1
        %vm8226 = vcmp.gt.s32.totalorder %v8225, 0
        %v8227 = vsel %vm8226, %v8225, 0
        %v8228 = vshrl.u32 %v8227, 5
        %v8229 = vand.u32 %v8227, 31
        %v8230 = vsub.s32 32, %v8229
        %v8231 = vshrl.u32 683565275, %v8230
        %v8232 = vshll.u32 683565275, %v8229
        %v8233 = vshrl.u32 2475754826, %v8230
        %v8234 = vor.u32 %v8232, %v8233
        %v8235 = vshll.u32 2475754826, %v8229
        %v8236 = vshrl.u32 2131351028, %v8230
        %v8237 = vor.u32 %v8235, %v8236
        %v8238 = vshll.u32 2131351028, %v8229
        %v8239 = vshrl.u32 2102212464, %v8230
        %v8240 = vor.u32 %v8238, %v8239
        %v8241 = vshll.u32 2102212464, %v8229
        %v8242 = vshrl.u32 920167782, %v8230
        %v8243 = vor.u32 %v8241, %v8242
        %v8244 = vshll.u32 920167782, %v8229
        %v8245 = vshrl.u32 1326507024, %v8230
        %v8246 = vor.u32 %v8244, %v8245
        %vm8247 = vcmp.lt.s32.totalorder %v8228, 1
        %vm8248 = vcmp.lt.s32.totalorder %v8228, 2
        %vm8249 = vcmp.lt.s32.totalorder %v8228, 3
        %vm8250 = vcmp.lt.s32.totalorder %v8228, 4
        %v8251 = vsel %vm8247, %v8231, %v8234
        %v8252 = vsel %vm8250, %v8240, 2102212464
        %v8253 = vsel %vm8249, %v8237, %v8252
        %v8254 = vsel %vm8248, %v8251, %v8253
        %v8255 = vsel %vm8247, %v8234, %v8237
        %v8256 = vsel %vm8250, %v8243, 920167782
        %v8257 = vsel %vm8249, %v8240, %v8256
        %v8258 = vsel %vm8248, %v8255, %v8257
        %v8259 = vsel %vm8247, %v8237, %v8240
        %v8260 = vsel %vm8250, %v8246, 1326507024
        %v8261 = vsel %vm8249, %v8243, %v8260
        %v8262 = vsel %vm8248, %v8259, %v8261
        %v8263 = vshll.u32 %v8223, 8
        %v8264 = vmul.u32.u64.compose %v8263, %v8262
        %v8265 = vextract.low.u32 %v8264
        %v8266 = vextract.high.u32 %v8264
        %v8267 = vmul.u32.u64.compose %v8263, %v8258
        %v8268 = vextract.low.u32 %v8267
        %v8269 = vextract.high.u32 %v8267
        %v8270 = vmul.u32 %v8263, %v8254
        %v8271 = vadd.s32 %v8266, %v8268
        %vm8272 = vc.u32 %v8266, %v8268
        %v8273 = vadd.s32 %v8269, 1
        %v8274 = vsel %vm8272, %v8273, %v8269
        %v8275 = vadd.s32 %v8270, %v8274
        %v8276 = vadd.s32 %v8275, 536870912
        %v8277 = vshrl.u32 %v8276, 30
        %v8278 = vshll.u32 %v8277, 30
        %v8279 = vsub.s32 %v8275, %v8278
        %vm8280 = vcmp.lt.s32.totalorder %v8279, 0
        %v8281 = vsub.s32 0, %v8279
        %v8282 = vsel %vm8280, %v8281, %v8279
        %v8283 = vclz %v8282
        %v8284 = vsub.s32 %v8283, 2
        %vm8285 = vcmp.gt.s32.totalorder 0, %v8284
        %v8286 = vsel %vm8285, 0, %v8284
        %v8287 = vsub.s32 32, %v8286
        %v8288 = vshll.u32 %v8279, %v8286
        %v8289 = vshrl.u32 %v8271, %v8287
        %v8290 = vor.u32 %v8288, %v8289
        %v8291 = vsub.s32 4294967266, %v8286
        %v8292 = vadd.s32 %v8291, 127
        %v8293 = vshll.u32 %v8292, 23
        %v8294 = vor.u32 4788187, %v8293
        %v8295 = vand.u32 2147483647, %v8294
        %v8297 = vcvt.s32.f32 %v8290
        %v8298 = vmul.f32 %v8297, %v8295
        %v8299 = vxor.u32 %v8298, 2147483648
        %v8300 = vsel %vm8217, %v8299, %v8298
        %v8301 = vsub.s32 4, %v8277
        %v8302 = vsel %vm8217, %v8301, %v8277
        %v8303 = vsel %vm8216, %v4988, %v8300
        %v8304 = vsel %vm8216, 0, %v8302
        %v8305 = vcosq.f32.pop %v8303
        %v8306 = vsinq.f32.pop %v8303
        %vm8307 = vweird.f32 %v4988
        %v8308 = vadd.s32 %v8304, 3
        %v8309 = vand.u32 %v8308, 3
        %vm8310 = vcmp.lt.s32.totalorder %v8309, 2
        %vm8311 = vcmp.eq.s32.totalorder %v8309, 0
        %v8312 = vxor.u32 %v8306, 2147483648
        %v8313 = vsel %vm8311, %v8305, %v8312
        %vm8314 = vcmp.eq.s32.totalorder %v8309, 2
        %v8315 = vxor.u32 %v8305, 2147483648
        %v8316 = vsel %vm8314, %v8315, %v8306
        %v8317 = vsel %vm8310, %v8313, %v8316
        %v8318 = vsel %vm8307, nan, %v8317
        %8319 = vxpose.xlu0.b32.start [1/16] %v5094, 128
        %8320 = vxpose.xlu0.b32.cont [2/16] %v5198, 128
        %8321 = vxpose.xlu0.b32.cont [3/16] %v5302, 128
        %8322 = vxpose.xlu0.b32.cont [4/16] %v5406, 128
        %8323 = vxpose.xlu0.b32.cont [5/16] %v5510, 128
        %8324 = vxpose.xlu0.b32.cont [6/16] %v5614, 128
        %8325 = vxpose.xlu0.b32.cont [7/16] %v5718, 128
        %8326 = vxpose.xlu0.b32.cont [8/16] %v5822, 128
        %8327 = vxpose.xlu0.b32.cont [9/16] %v5926, 128
        %8328 = vxpose.xlu0.b32.cont [10/16] %v6030, 128
        %8329 = vxpose.xlu0.b32.cont [11/16] %v6134, 128
        %8330 = vxpose.xlu0.b32.cont [12/16] %v6238, 128
        %8331 = vxpose.xlu0.b32.cont [13/16] %v6342, 128
        %8332 = vxpose.xlu0.b32.cont [14/16] %v6446, 128
        %8333 = vxpose.xlu0.b32.cont [15/16] %v6550, 128
        %8334 = vxpose.xlu0.b32.end [16/16] %v6654, 128
        %v8335 = vpop.trf.xlu0
        %v8336 = vpop.trf.xlu0
        %v8337 = vpop.trf.xlu0
        %v8338 = vpop.trf.xlu0
        %v8339 = vpop.trf.xlu0
        %v8340 = vpop.trf.xlu0
        %v8341 = vpop.trf.xlu0
        %v8342 = vpop.trf.xlu0
        %v8343 = vpop.trf.xlu0
        %v8344 = vpop.trf.xlu0
        %v8345 = vpop.trf.xlu0
        %v8346 = vpop.trf.xlu0
        %v8347 = vpop.trf.xlu0
        %v8348 = vpop.trf.xlu0
        %v8349 = vpop.trf.xlu0
        %v8350 = vpop.trf.xlu0
        %8351 = vxpose.xlu0.b32.start [1/16] %v6758, 128
        %8352 = vxpose.xlu0.b32.cont [2/16] %v6862, 128
        %8353 = vxpose.xlu0.b32.cont [3/16] %v6966, 128
        %8354 = vxpose.xlu0.b32.cont [4/16] %v7070, 128
        %8355 = vxpose.xlu0.b32.cont [5/16] %v7174, 128
        %8356 = vxpose.xlu0.b32.cont [6/16] %v7278, 128
        %8357 = vxpose.xlu0.b32.cont [7/16] %v7382, 128
        %8358 = vxpose.xlu0.b32.cont [8/16] %v7486, 128
        %8359 = vxpose.xlu0.b32.cont [9/16] %v7590, 128
        %8360 = vxpose.xlu0.b32.cont [10/16] %v7694, 128
        %8361 = vxpose.xlu0.b32.cont [11/16] %v7798, 128
        %8362 = vxpose.xlu0.b32.cont [12/16] %v7902, 128
        %8363 = vxpose.xlu0.b32.cont [13/16] %v8006, 128
        %8364 = vxpose.xlu0.b32.cont [14/16] %v8110, 128
        %8365 = vxpose.xlu0.b32.cont [15/16] %v8214, 128
        %8366 = vxpose.xlu0.b32.end [16/16] %v8318, 128
        %v8367 = vpop.trf.xlu0
        %v8368 = vpop.trf.xlu0
        %v8369 = vpop.trf.xlu0
        %v8370 = vpop.trf.xlu0
        %v8371 = vpop.trf.xlu0
        %v8372 = vpop.trf.xlu0
        %v8373 = vpop.trf.xlu0
        %v8374 = vpop.trf.xlu0
        %v8375 = vpop.trf.xlu0
        %v8376 = vpop.trf.xlu0
        %v8377 = vpop.trf.xlu0
        %v8378 = vpop.trf.xlu0
        %v8379 = vpop.trf.xlu0
        %v8380 = vpop.trf.xlu0
        %v8381 = vpop.trf.xlu0
        %v8382 = vpop.trf.xlu0
        %8383 = vst [vmem:[%s246] sm:$0xff] %v8335
        %8384 = vst [vmem:[%s246 + $0x8] sm:$0xff] %v8367
        %8385 = vst [vmem:[%s246 + $0x10] sm:$0xff] %v8336
        %8386 = vst [vmem:[%s246 + $0x18] sm:$0xff] %v8368
        %8387 = vst [vmem:[%s246 + $0x20] sm:$0xff] %v8337
        %8388 = vst [vmem:[%s246 + $0x28] sm:$0xff] %v8369
        %8389 = vst [vmem:[%s246 + $0x30] sm:$0xff] %v8338
        %8390 = vst [vmem:[%s246 + $0x38] sm:$0xff] %v8370
        %8391 = vst [vmem:[%s246 + $0x40] sm:$0xff] %v8339
        %8392 = vst [vmem:[%s246 + $0x48] sm:$0xff] %v8371
        %8393 = vst [vmem:[%s246 + $0x50] sm:$0xff] %v8340
        %8394 = vst [vmem:[%s246 + $0x58] sm:$0xff] %v8372
        %8395 = vst [vmem:[%s246 + $0x60] sm:$0xff] %v8341
        %8396 = vst [vmem:[%s246 + $0x68] sm:$0xff] %v8373
        %8397 = vst [vmem:[%s246 + $0x70] sm:$0xff] %v8342
        %8398 = vst [vmem:[%s246 + $0x78] sm:$0xff] %v8374
        %8399 = vst [vmem:[%s246 + $0x80] sm:$0xff] %v8343
        %8400 = vst [vmem:[%s246 + $0x88] sm:$0xff] %v8375
        %8401 = vst [vmem:[%s246 + $0x90] sm:$0xff] %v8344
        %8402 = vst [vmem:[%s246 + $0x98] sm:$0xff] %v8376
        %8403 = vst [vmem:[%s246 + $0xa0] sm:$0xff] %v8345
        %8404 = vst [vmem:[%s246 + $0xa8] sm:$0xff] %v8377
        %8405 = vst [vmem:[%s246 + $0xb0] sm:$0xff] %v8346
        %8406 = vst [vmem:[%s246 + $0xb8] sm:$0xff] %v8378
        %8407 = vst [vmem:[%s246 + $0xc0] sm:$0xff] %v8347
        %8408 = vst [vmem:[%s246 + $0xc8] sm:$0xff] %v8379
        %8409 = vst [vmem:[%s246 + $0xd0] sm:$0xff] %v8348
        %8410 = vst [vmem:[%s246 + $0xd8] sm:$0xff] %v8380
        %8411 = vst [vmem:[%s246 + $0xe0] sm:$0xff] %v8349
        %8412 = vst [vmem:[%s246 + $0xe8] sm:$0xff] %v8381
        %8413 = vst [vmem:[%s246 + $0xf0] sm:$0xff] %v8350
        %8414 = vst [vmem:[%s246 + $0xf8] sm:$0xff] %v8382
        %s8415 = smul.u32 %s24, 128
        %v8416 = vlaneseq
        %v8417 = vshrl.u32 %v8416, 7
        %v8418 = vadd.s32 %v8417, 8
        %v8419 = vadd.s32 %v8417, 16
        %v8420 = vadd.s32 %v8417, 24
        %v8421 = vadd.s32 %v8417, 32
        %v8422 = vadd.s32 %v8417, 40
        %v8423 = vadd.s32 %v8417, 48
        %v8424 = vadd.s32 %v8417, 56
        %v8425 = vadd.s32 %v8417, 64
        %v8426 = vadd.s32 %v8417, 72
        %v8427 = vadd.s32 %v8417, 80
        %v8428 = vadd.s32 %v8417, 88
        %v8429 = vadd.s32 %v8417, 96
        %v8430 = vadd.s32 %v8417, 104
        %v8431 = vadd.s32 %v8417, 112
        %v8432 = vadd.s32 %v8417, 120
        %v8433 = vstv %s8415
        %v8434 = vadd.s32 %v8433, %v8417
        %v8435 = vadd.s32 %v8433, %v8418
        %v8436 = vadd.s32 %v8433, %v8419
        %v8437 = vadd.s32 %v8433, %v8420
        %v8438 = vadd.s32 %v8433, %v8421
        %v8439 = vadd.s32 %v8433, %v8422
        %v8440 = vadd.s32 %v8433, %v8423
        %v8441 = vadd.s32 %v8433, %v8424
        %v8442 = vadd.s32 %v8433, %v8425
        %v8443 = vadd.s32 %v8433, %v8426
        %v8444 = vadd.s32 %v8433, %v8427
        %v8445 = vadd.s32 %v8433, %v8428
        %v8446 = vadd.s32 %v8433, %v8429
        %v8447 = vadd.s32 %v8433, %v8430
        %v8448 = vadd.s32 %v8433, %v8431
        %v8449 = vadd.s32 %v8433, %v8432
        %vm8450 = vcmp.lt.s32.totalorder %v8434, 192
        %vm8451 = vcmp.lt.s32.totalorder %v8435, 192
        %vm8452 = vcmp.lt.s32.totalorder %v8436, 192
        %vm8453 = vcmp.lt.s32.totalorder %v8437, 192
        %vm8454 = vcmp.lt.s32.totalorder %v8438, 192
        %vm8455 = vcmp.lt.s32.totalorder %v8439, 192
        %vm8456 = vcmp.lt.s32.totalorder %v8440, 192
        %vm8457 = vcmp.lt.s32.totalorder %v8441, 192
        %vm8458 = vcmp.lt.s32.totalorder %v8442, 192
        %vm8459 = vcmp.lt.s32.totalorder %v8443, 192
        %vm8460 = vcmp.lt.s32.totalorder %v8444, 192
        %vm8461 = vcmp.lt.s32.totalorder %v8445, 192
        %vm8462 = vcmp.lt.s32.totalorder %v8446, 192
        %vm8463 = vcmp.lt.s32.totalorder %v8447, 192
        %vm8464 = vcmp.lt.s32.totalorder %v8448, 192
        %vm8465 = vcmp.lt.s32.totalorder %v8449, 192
        %v8466 = vsel %vm8450, 1, 0
        %v8467 = vsel %vm8451, 1, 0
        %v8468 = vsel %vm8452, 1, 0
        %v8469 = vsel %vm8453, 1, 0
        %v8470 = vsel %vm8454, 1, 0
        %v8471 = vsel %vm8455, 1, 0
        %v8472 = vsel %vm8456, 1, 0
        %v8473 = vsel %vm8457, 1, 0
        %v8474 = vsel %vm8458, 1, 0
        %v8475 = vsel %vm8459, 1, 0
        %v8476 = vsel %vm8460, 1, 0
        %v8477 = vsel %vm8461, 1, 0
        %v8478 = vsel %vm8462, 1, 0
        %v8479 = vsel %vm8463, 1, 0
        %v8480 = vsel %vm8464, 1, 0
        %v8481 = vsel %vm8465, 1, 0
        %vm8482 = vcmp.eq.s32.totalorder %v8466, 1
        %vm8483 = vcmp.eq.s32.totalorder %v8467, 1
        %vm8484 = vcmp.eq.s32.totalorder %v8468, 1
        %vm8485 = vcmp.eq.s32.totalorder %v8469, 1
        %vm8486 = vcmp.eq.s32.totalorder %v8470, 1
        %vm8487 = vcmp.eq.s32.totalorder %v8471, 1
        %vm8488 = vcmp.eq.s32.totalorder %v8472, 1
        %vm8489 = vcmp.eq.s32.totalorder %v8473, 1
        %vm8490 = vcmp.eq.s32.totalorder %v8474, 1
        %vm8491 = vcmp.eq.s32.totalorder %v8475, 1
        %vm8492 = vcmp.eq.s32.totalorder %v8476, 1
        %vm8493 = vcmp.eq.s32.totalorder %v8477, 1
        %vm8494 = vcmp.eq.s32.totalorder %v8478, 1
        %vm8495 = vcmp.eq.s32.totalorder %v8479, 1
        %vm8496 = vcmp.eq.s32.totalorder %v8480, 1
        %vm8497 = vcmp.eq.s32.totalorder %v8481, 1
        %v8498 = vsel %vm8482, %v8335, 0.0
        %v8499 = vsel %vm8482, %v8367, 0.0
        %v8500 = vsel %vm8483, %v8336, 0.0
        %v8501 = vsel %vm8483, %v8368, 0.0
        %v8502 = vsel %vm8484, %v8337, 0.0
        %v8503 = vsel %vm8484, %v8369, 0.0
        %v8504 = vsel %vm8485, %v8338, 0.0
        %v8505 = vsel %vm8485, %v8370, 0.0
        %v8506 = vsel %vm8486, %v8339, 0.0
        %v8507 = vsel %vm8486, %v8371, 0.0
        %v8508 = vsel %vm8487, %v8340, 0.0
        %v8509 = vsel %vm8487, %v8372, 0.0
        %v8510 = vsel %vm8488, %v8341, 0.0
        %v8511 = vsel %vm8488, %v8373, 0.0
        %v8512 = vsel %vm8489, %v8342, 0.0
        %v8513 = vsel %vm8489, %v8374, 0.0
        %v8514 = vsel %vm8490, %v8343, 0.0
        %v8515 = vsel %vm8490, %v8375, 0.0
        %v8516 = vsel %vm8491, %v8344, 0.0
        %v8517 = vsel %vm8491, %v8376, 0.0
        %v8518 = vsel %vm8492, %v8345, 0.0
        %v8519 = vsel %vm8492, %v8377, 0.0
        %v8520 = vsel %vm8493, %v8346, 0.0
        %v8521 = vsel %vm8493, %v8378, 0.0
        %v8522 = vsel %vm8494, %v8347, 0.0
        %v8523 = vsel %vm8494, %v8379, 0.0
        %v8524 = vsel %vm8495, %v8348, 0.0
        %v8525 = vsel %vm8495, %v8380, 0.0
        %v8526 = vsel %vm8496, %v8349, 0.0
        %v8527 = vsel %vm8496, %v8381, 0.0
        %v8528 = vsel %vm8497, %v8350, 0.0
        %v8529 = vsel %vm8497, %v8382, 0.0
        %v8530 = vadd.f32 %v8498, %v8500
        %v8531 = vadd.f32 %v8530, %v8502
        %v8532 = vadd.f32 %v8531, %v8504
        %v8533 = vadd.f32 %v8532, %v8506
        %v8534 = vadd.f32 %v8533, %v8508
        %v8535 = vadd.f32 %v8534, %v8510
        %v8536 = vadd.f32 %v8535, %v8512
        %v8537 = vadd.f32 %v8536, %v8514
        %v8538 = vadd.f32 %v8537, %v8516
        %v8539 = vadd.f32 %v8538, %v8518
        %v8540 = vadd.f32 %v8539, %v8520
        %v8541 = vadd.f32 %v8540, %v8522
        %v8542 = vadd.f32 %v8541, %v8524
        %v8543 = vadd.f32 %v8542, %v8526
        %v8544 = vadd.f32 %v8543, %v8528
        %v8545 = vrot.slane %v8544, 4
        %v8546 = vadd.f32 %v8544, %v8545
        %v8547 = vrot.slane %v8546, 2
        %v8548 = vadd.f32 %v8546, %v8547
        %v8549 = vrot.slane %v8548, 1
        %v8550 = vadd.f32 %v8548, %v8549
        %v8551 = vadd.f32 %v8499, %v8501
        %v8552 = vadd.f32 %v8551, %v8503
        %v8553 = vadd.f32 %v8552, %v8505
        %v8554 = vadd.f32 %v8553, %v8507
        %v8555 = vadd.f32 %v8554, %v8509
        %v8556 = vadd.f32 %v8555, %v8511
        %v8557 = vadd.f32 %v8556, %v8513
        %v8558 = vadd.f32 %v8557, %v8515
        %v8559 = vadd.f32 %v8558, %v8517
        %v8560 = vadd.f32 %v8559, %v8519
        %v8561 = vadd.f32 %v8560, %v8521
        %v8562 = vadd.f32 %v8561, %v8523
        %v8563 = vadd.f32 %v8562, %v8525
        %v8564 = vadd.f32 %v8563, %v8527
        %v8565 = vadd.f32 %v8564, %v8529
        %v8566 = vrot.slane %v8565, 4
        %v8567 = vadd.f32 %v8565, %v8566
        %v8568 = vrot.slane %v8567, 2
        %v8569 = vadd.f32 %v8567, %v8568
        %v8570 = vrot.slane %v8569, 1
        %v8571 = vadd.f32 %v8569, %v8570
        %v8574 = vcombine.low %v8550, %v8571
        %v8576 = vunpack.c.l.s4 1966171168
        %v8577 = vunpack.c.0.s8 %v8576
        %v8578 = vlaneseq
        %v8579 = vshrl.u32 %v8578, 7
        %v8580 = vsub.s32 %v8577, %v8579
        %v8581 = vrot.slane %v8574, %v8580
        %v8583 = vunpack.c.l.s4 1966171168
        %v8584 = vunpack.c.0.s8 %v8583
        %v8585 = vlaneseq
        %v8586 = vshrl.u32 %v8585, 7
        %v8587 = vsub.s32 %v8584, %v8586
        %v8588 = vrot.slane %v8581, %v8587
        %v8590 = vlaneseq
        %vm8591 = vcmp.ge.s32.totalorder %v8590, 0
        %vm8592 = vcmp.lt.s32.totalorder %v8590, 256
        %vm8593 = vmand %vm8591, %vm8592
        %8594 = vst.msk [vmem:[%s253] sm:$0x3] %vm8593, %v8588
        %v8595 = vmul.f32 %v8498, %v8498
        %v8596 = vmul.f32 %v8499, %v8499
        %v8597 = vmul.f32 %v8500, %v8500
        %v8598 = vmul.f32 %v8501, %v8501
        %v8599 = vmul.f32 %v8502, %v8502
        %v8600 = vmul.f32 %v8503, %v8503
        %v8601 = vmul.f32 %v8504, %v8504
        %v8602 = vmul.f32 %v8505, %v8505
        %v8603 = vmul.f32 %v8506, %v8506
        %v8604 = vmul.f32 %v8507, %v8507
        %v8605 = vmul.f32 %v8508, %v8508
        %v8606 = vmul.f32 %v8509, %v8509
        %v8607 = vmul.f32 %v8510, %v8510
        %v8608 = vmul.f32 %v8511, %v8511
        %v8609 = vmul.f32 %v8512, %v8512
        %v8610 = vmul.f32 %v8513, %v8513
        %v8611 = vmul.f32 %v8514, %v8514
        %v8612 = vmul.f32 %v8515, %v8515
        %v8613 = vmul.f32 %v8516, %v8516
        %v8614 = vmul.f32 %v8517, %v8517
        %v8615 = vmul.f32 %v8518, %v8518
        %v8616 = vmul.f32 %v8519, %v8519
        %v8617 = vmul.f32 %v8520, %v8520
        %v8618 = vmul.f32 %v8521, %v8521
        %v8619 = vmul.f32 %v8522, %v8522
        %v8620 = vmul.f32 %v8523, %v8523
        %v8621 = vmul.f32 %v8524, %v8524
        %v8622 = vmul.f32 %v8525, %v8525
        %v8623 = vmul.f32 %v8526, %v8526
        %v8624 = vmul.f32 %v8527, %v8527
        %v8625 = vmul.f32 %v8528, %v8528
        %v8626 = vmul.f32 %v8529, %v8529
        %v8627 = vadd.f32 %v8595, %v8597
        %v8628 = vadd.f32 %v8627, %v8599
        %v8629 = vadd.f32 %v8628, %v8601
        %v8630 = vadd.f32 %v8629, %v8603
        %v8631 = vadd.f32 %v8630, %v8605
        %v8632 = vadd.f32 %v8631, %v8607
        %v8633 = vadd.f32 %v8632, %v8609
        %v8634 = vadd.f32 %v8633, %v8611
        %v8635 = vadd.f32 %v8634, %v8613
        %v8636 = vadd.f32 %v8635, %v8615
        %v8637 = vadd.f32 %v8636, %v8617
        %v8638 = vadd.f32 %v8637, %v8619
        %v8639 = vadd.f32 %v8638, %v8621
        %v8640 = vadd.f32 %v8639, %v8623
        %v8641 = vadd.f32 %v8640, %v8625
        %v8642 = vrot.slane %v8641, 4
        %v8643 = vadd.f32 %v8641, %v8642
        %v8644 = vrot.slane %v8643, 2
        %v8645 = vadd.f32 %v8643, %v8644
        %v8646 = vrot.slane %v8645, 1
        %v8647 = vadd.f32 %v8645, %v8646
        %v8648 = vadd.f32 %v8596, %v8598
        %v8649 = vadd.f32 %v8648, %v8600
        %v8650 = vadd.f32 %v8649, %v8602
        %v8651 = vadd.f32 %v8650, %v8604
        %v8652 = vadd.f32 %v8651, %v8606
        %v8653 = vadd.f32 %v8652, %v8608
        %v8654 = vadd.f32 %v8653, %v8610
        %v8655 = vadd.f32 %v8654, %v8612
        %v8656 = vadd.f32 %v8655, %v8614
        %v8657 = vadd.f32 %v8656, %v8616
        %v8658 = vadd.f32 %v8657, %v8618
        %v8659 = vadd.f32 %v8658, %v8620
        %v8660 = vadd.f32 %v8659, %v8622
        %v8661 = vadd.f32 %v8660, %v8624
        %v8662 = vadd.f32 %v8661, %v8626
        %v8663 = vrot.slane %v8662, 4
        %v8664 = vadd.f32 %v8662, %v8663
        %v8665 = vrot.slane %v8664, 2
        %v8666 = vadd.f32 %v8664, %v8665
        %v8667 = vrot.slane %v8666, 1
        %v8668 = vadd.f32 %v8666, %v8667
        %v8671 = vcombine.low %v8647, %v8668
        %v8673 = vunpack.c.l.s4 1966171168
        %v8674 = vunpack.c.0.s8 %v8673
        %v8675 = vlaneseq
        %v8676 = vshrl.u32 %v8675, 7
        %v8677 = vsub.s32 %v8674, %v8676
        %v8678 = vrot.slane %v8671, %v8677
        %v8680 = vunpack.c.l.s4 1966171168
        %v8681 = vunpack.c.0.s8 %v8680
        %v8682 = vlaneseq
        %v8683 = vshrl.u32 %v8682, 7
        %v8684 = vsub.s32 %v8681, %v8683
        %v8685 = vrot.slane %v8678, %v8684
        %8687 = vst.msk [vmem:[%s260] sm:$0x3] %vm8593, %v8685
        %s8688 = sand.u32 %s121, 1
        %s8689 = scalar_lea.sflag [#allocation3], %s8688
        %s8690 = sand.u32 %s121, 1
        %s8691 = smul.addr %s8690, 256
        %s8692 = scalar_lea.vmem [#allocation2], %s8691
        %s8693 = sand.u32 %s24, 1
        %s8694 = scalar_lea.sflag [#allocation5], %s8693
        %s8695 = sand.u32 %s147, 1
        %s8696 = smul.addr %s8695, 2
        %s8697 = scalar_lea.vmem [#allocation4], %s8696
        %s8698 = sand.u32 %s24, 1
        %s8699 = scalar_lea.sflag [#allocation5], %s8698
        %s8700 = sand.u32 %s173, 1
        %s8701 = smul.addr %s8700, 2
        %s8702 = scalar_lea.vmem [#allocation6], %s8701
        // Predicated region
        $region37: #{tpu_custom_call.1} parent=35 // pred_check
          %p8703 = pneg %p131
        $region38: #{tpu_custom_call.1} parent=35 // pred_check_branch
          %8705 = sbr.rel (%p8703) target = $region40
        $region39: #{tpu_custom_call.1} parent=35 // pred_region
          %s8706 = smul.u32 16, %s24
          %s8708 = ssub.s32 4096, 4096
          %8709 = vsyncadd %s8689, %s8708
          %s8710 = smul.addr %s8706, 2
          %s8711 = smul.addr %s8710, 128
          %s8712 = scalar_lea.hbm %s4, %s8711
          %s8713 = sshll.u32 %s8692, 4
          %s8714 = int_to_ptr.vmem [resolvable:$true] %s8713
          %8719 = dma.vmem_to_hbm [thread:$0]  %s8714, 4096, %s8712, %s8689, 256, 256, 16
        $region40: #{tpu_custom_call.1} parent=35 // pred_fallthru
          _
        // Predicated region
        $region41: #{tpu_custom_call.1} parent=35 // pred_check
          %p8720 = pneg %p157
        $region42: #{tpu_custom_call.1} parent=35 // pred_check_branch
          %8722 = sbr.rel (%p8720) target = $region44
        $region43: #{tpu_custom_call.1} parent=35 // pred_region
          %s8724 = ssub.s32 32, 32
          %8725 = vsyncadd %s8694, %s8724
          %s8726 = smul.addr %s24, 2
          %s8727 = smul.addr %s8726, 16
          %s8728 = scalar_lea.hbm %s5, %s8727
          %s8730 = sshll.u32 %s8697, 4
          %s8731 = int_to_ptr.vmem [resolvable:$true] %s8730
          %8733 = dma.vmem_to_hbm [thread:$0]  %s8731, 32, %s8728, %s8694
        $region44: #{tpu_custom_call.1} parent=35 // pred_fallthru
          _
        // Predicated region
        $region45: #{tpu_custom_call.1} parent=35 // pred_check
          %p8734 = pneg %p183
        $region46: #{tpu_custom_call.1} parent=35 // pred_check_branch
          %8736 = sbr.rel (%p8734) target = $region48
        $region47: #{tpu_custom_call.1} parent=35 // pred_region
          %s8738 = ssub.s32 32, 32
          %8739 = vsyncadd %s8699, %s8738
          %s8740 = smul.addr %s24, 2
          %s8741 = smul.addr %s8740, 16
          %s8742 = scalar_lea.hbm %s6, %s8741
          %s8744 = sshll.u32 %s8702, 4
          %s8745 = int_to_ptr.vmem [resolvable:$true] %s8744
          %8747 = dma.vmem_to_hbm [thread:$0]  %s8745, 32, %s8742, %s8699
        $region48: #{tpu_custom_call.1} parent=35 // pred_fallthru
          _
      $region36: #{tpu_custom_call.1} parent=5 // pred_fallthru
        _
      %p8748 = scmp.le.s32.totalorder 2, %s19
      // Predicated region
      $region49: #{tpu_custom_call.1} parent=5 // pred_check
        %p8749 = pneg %p8748
      $region50: #{tpu_custom_call.1} parent=5 // pred_check_branch
        %8751 = sbr.rel (%p8749) target = $region52
      $region51: #{tpu_custom_call.1} parent=5 // pred_region
        %s8752 = ssub.s32 %s19, 2
        // Predicated region
        $region53: #{tpu_custom_call.1} parent=51 // pred_check
          %p8753 = pneg %p137
        $region54: #{tpu_custom_call.1} parent=51 // pred_check_branch
          %8755 = sbr.rel (%p8753) target = $region56
        $region55: #{tpu_custom_call.1} parent=51 // pred_region
          %s8756 = sand.u32 %s122, 1
          %s8757 = scalar_lea.sflag [#allocation3], %s8756
          %s8758 = sand.u32 %s122, 1
          %s8759 = smul.addr %s8758, 256
          %s8760 = scalar_lea.vmem [#allocation2], %s8759
          %8761 = dma.done %s8757, 4096
        $region56: #{tpu_custom_call.1} parent=51 // pred_fallthru
          _
        // Predicated region
        $region57: #{tpu_custom_call.1} parent=51 // pred_check
          %p8762 = pneg %p163
        $region58: #{tpu_custom_call.1} parent=51 // pred_check_branch
          %8764 = sbr.rel (%p8762) target = $region60
        $region59: #{tpu_custom_call.1} parent=51 // pred_region
          %s8765 = sand.u32 %s25, 1
          %s8766 = scalar_lea.sflag [#allocation5], %s8765
          %s8767 = sand.u32 %s148, 1
          %s8768 = smul.addr %s8767, 2
          %s8769 = scalar_lea.vmem [#allocation4], %s8768
          %8770 = dma.done %s8766, 32
        $region60: #{tpu_custom_call.1} parent=51 // pred_fallthru
          _
        // Predicated region
        $region61: #{tpu_custom_call.1} parent=51 // pred_check
          %p8771 = pneg %p189
        $region62: #{tpu_custom_call.1} parent=51 // pred_check_branch
          %8773 = sbr.rel (%p8771) target = $region64
        $region63: #{tpu_custom_call.1} parent=51 // pred_region
          %s8774 = sand.u32 %s25, 1
          %s8775 = scalar_lea.sflag [#allocation5], %s8774
          %s8776 = sand.u32 %s174, 1
          %s8777 = smul.addr %s8776, 2
          %s8778 = scalar_lea.vmem [#allocation6], %s8777
          %8779 = dma.done %s8775, 32
        $region64: #{tpu_custom_call.1} parent=51 // pred_fallthru
          _
      $region52: #{tpu_custom_call.1} parent=5 // pred_fallthru
        _
    $region6: #{tpu_custom_call.1} parent=1 // loop_footer
      %s23 = sadd.s32 1, %s19
    $region7: #{tpu_custom_call.1} parent=1 // loop_footer_branch
      %18 = sbr.rel target = $region3
    $region8: #{tpu_custom_call.1} parent=1 // loop_exit
      _
    %8780 = vsyncpa [#allocation3], 1
    %s8781 = scalar_lea.sflag [#allocation3], 1
    %8782 = vsyncpa %s8781, 1
    %8783 = vsyncpa [#allocation5], 1
    %s8784 = scalar_lea.sflag [#allocation5], 1
    %8785 = vsyncpa %s8784, 1

</llo_original>
